<compile_context>
chip_gen: v7x
topology: tpu7x:2x2x1
jax: 0.10.0
libtpu: 0.0.40
codegen_flags: <defaults>
</compile_context>

<pallas_src>
import functools

import numpy as np
import jax
import jax.numpy as jnp
from jax.experimental import pallas as pl
from jax.experimental.pallas import tpu as pltpu


# ---------------------------------------------------------------------------
# Gaussian taps / constant tap matrices (compile-time, numpy)
# ---------------------------------------------------------------------------

def _gaussian_1d(scale):
    """Normalized 1-D Gaussian taps as in AntiAliasInterpolation2d.__init__.

    outer(g, g) equals the module's normalized 2-D kernel, so the blur is
    exactly separable into a row pass and a column pass.
    NOTE: scale == 1.0 gives sigma == 0 (NaN kernel in the torch original too).
    """
    sigma = (1.0 / scale - 1.0) / 2.0
    ksize = 2 * round(sigma * 4) + 1          # always odd -> ka == kb
    ax = np.arange(ksize, dtype=np.float32)
    mean = (ksize - 1) / 2.0
    g = np.exp(-((ax - mean) ** 2) / (2.0 * sigma ** 2)).astype(np.float32)
    g = g / g.sum()
    ka = ksize // 2
    return g, ka


def _tap_matrices(scale, H, W):
    """Constant matrices folding taps + zero padding + ::inv stride.

    For an unpadded (H, W) plane x:  out = A @ x @ S, with out (H_out, W_out).
    """
    g, ka = _gaussian_1d(scale)
    K = g.shape[0]
    inv = int(1.0 / scale)                    # matches torch int(1/scale)
    H_out = -(-H // inv)
    W_out = -(-W // inv)

    A = np.zeros((H_out, H), np.float32)
    for r in range(H_out):
        for i in range(K):
            h = r * inv + i - ka              # zero padding -> OOB taps dropped
            if 0 <= h < H:
                A[r, h] = g[i]

    S = np.zeros((W, W_out), np.float32)
    for c in range(W_out):
        for j in range(K):
            w = c * inv + j - ka
            if 0 <= w < W:
                S[w, c] = g[j]
    return A, S


# ---------------------------------------------------------------------------
# Pallas kernel: all scales from one input block of P planes
# ---------------------------------------------------------------------------

def _make_pyramid_kernel(n_scales):
    """kernel(x_ref, A0, S0, A1, S1, ..., out0, out1, ...)."""

    def kernel(*refs):
        x_ref = refs[0]
        mat_refs = refs[1:1 + 2 * n_scales]
        out_refs = refs[1 + 2 * n_scales:]

        x = x_ref[...].astype(jnp.float32)            # (P, H, W)
        P = x.shape[0]

        for s in range(n_scales):
            A = mat_refs[2 * s][...]                  # (H_out, H)
            S = mat_refs[2 * s + 1][...]              # (W,  W_out)
            A_b = jnp.broadcast_to(A, (P,) + A.shape)
            S_b = jnp.broadcast_to(S, (P,) + S.shape)
            # Row pass (taps + stride + padding folded into A): MXU batched matmul.
            t = jnp.einsum('prh,phw->prw', A_b, x,
                           preferred_element_type=jnp.float32,
                           precision=jax.lax.Precision.HIGHEST)
            # Column pass (taps + stride + padding folded into S): MXU batched matmul.
            o = jnp.einsum('prw,pwc->prc', t, S_b,
                           preferred_element_type=jnp.float32,
                           precision=jax.lax.Precision.HIGHEST)
            out_refs[s][...] = o.astype(out_refs[s].dtype)

    return kernel


def _choose_planes_per_block(N, H, W, out_hw, budget_bytes=16 * 1024 * 1024):
    """Largest divisor of N whose double-buffered f32 blocks fit the VMEM budget."""
    per_plane_elems = H * W + sum(ho * wo for ho, wo in out_hw)
    p_max = max(1, budget_bytes // (2 * 4 * per_plane_elems))
    p_max = int(min(p_max, 64, N))
    if N >= 2:
        # Keep at least 2 grid steps so v7x can shard the plane axis across both TCs.
        p_max = min(p_max, max(1, N // 2))
    for p in range(p_max, 0, -1):
        if N % p == 0:
            return p
    return 1


@functools.partial(jax.jit, static_argnums=(1,))
def _pyramid_on_planes(x, scales):
    """x: (N, H, W) planes -> tuple of (N, H_out_s, W_out_s), one per scale."""
    N, H, W = x.shape
    n_scales = len(scales)

    mats = []
    mat_specs = []
    out_shapes = []
    out_hw = []
    for scale in scales:
        A, S = _tap_matrices(scale, H, W)
        H_out, W_out = A.shape[0], S.shape[1]
        out_hw.append((H_out, W_out))
        mats += [jnp.asarray(A), jnp.asarray(S)]
        mat_specs += [
            pl.BlockSpec((H_out, H), lambda n: (0, 0)),
            pl.BlockSpec((W, W_out), lambda n: (0, 0)),
        ]
        out_shapes.append(jax.ShapeDtypeStruct((N, H_out, W_out), x.dtype))

    P = _choose_planes_per_block(N, H, W, out_hw)

    in_specs = [pl.BlockSpec((P, H, W), lambda n: (n, 0, 0))] + mat_specs
    out_specs = tuple(
        pl.BlockSpec((P, ho, wo), lambda n: (n, 0, 0)) for ho, wo in out_hw
    )

    return pl.pallas_call(
        _make_pyramid_kernel(n_scales),
        out_shape=tuple(out_shapes),
        grid=(N // P,),
        in_specs=in_specs,
        out_specs=out_specs,
        compiler_params=pltpu.CompilerParams(
            dimension_semantics=("parallel",),
            vmem_limit_bytes=48 * 1024 * 1024,
        ),
    )(x, *mats)


# ---------------------------------------------------------------------------
# Module-level wrappers (NCHW, PyTorch convention)
# ---------------------------------------------------------------------------

def anti_alias_pyramid(x_nchw, scales):
    """AntiAliasInterpolation2d.forward for every scale, sharing one input read."""
    B, C, H, W = x_nchw.shape
    planes = x_nchw.reshape(B * C, H, W)      # blur is depthwise: per-plane
    outs = _pyramid_on_planes(planes, tuple(scales))
    return [o.reshape(B, C, o.shape[1], o.shape[2]) for o in outs]


def anti_alias_downsample(x_nchw, scale):
    return anti_alias_pyramid(x_nchw, (scale,))[0]


class ImagePyramide:
    """JAX/Pallas port of the torch ImagePyramide module."""

    def __init__(self, scales, num_channels):
        self.scales = list(scales)
        self.num_channels = num_channels      # identical Gaussian per channel

    def __call__(self, x):
        if x.ndim == 5:
            B, T, C, H, W = x.shape
            x = x.reshape(B * T, C, H, W)
        outs = anti_alias_pyramid(x, tuple(self.scales))
        return {
            'prediction_' + str(scale).replace('-', '.'): o
            for scale, o in zip(self.scales, outs)
        }


# ---------------------------------------------------------------------------
# Numpy reference & self-test
# ---------------------------------------------------------------------------

def _reference_downsample_np(x_nchw, scale):
    """Pure-numpy reference of AntiAliasInterpolation2d.forward (direct K*K conv)."""
    g, ka = _gaussian_1d(scale)
    k2d = np.outer(g, g).astype(np.float32)
    K = k2d.shape[0]
    inv = int(1.0 / scale)
    B, C, H, W = x_nchw.shape
    xpad = np.pad(x_nchw, ((0, 0), (0, 0), (ka, ka), (ka, ka)))
    out = np.zeros((B, C, H, W), dtype=np.float32)
    for i in range(K):
        for j in range(K):
            out += k2d[i, j] * xpad[:, :, i:i + H, j:j + W]
    return out[:, :, ::inv, ::inv]


if __name__ == "__main__":
    key = jax.random.PRNGKey(0)
    # 5D video-style input (B, T, C, H, W), matching the module's forward branch.
    B, T, C, H, W = 2, 2, 3, 16, 16
    x = jax.random.uniform(key, (B, T, C, H, W), dtype=jnp.float32)

    scales = (0.5, 0.25)   # scale == 1.0 yields sigma=0 (NaN kernel in torch too), omitted
    pyramid = ImagePyramide(scales, num_channels=C)

    out = pyramid(x)
    out = jax.tree_util.tree_map(jax.block_until_ready, out)

    # Cross-check against the numpy reference.
    x_np = np.asarray(x).reshape(B * T, C, H, W)
    for scale in scales:
        got = np.asarray(out['prediction_' + str(scale)])
        ref = _reference_downsample_np(x_np, scale)
        assert got.shape == ref.shape, (got.shape, ref.shape)
        np.testing.assert_allclose(got, ref, atol=1e-4, rtol=1e-4)

    print("KERNEL_OK")
</pallas_src>

<mosaic_0001>
module attributes {stable_mosaic.version = 11 : i64} {
  func.func @kernel(%arg0: i32, %arg1: memref<6x16x16xf32, #tpu.memory_space<vmem>>, %arg2: memref<8x16xf32, #tpu.memory_space<vmem>>, %arg3: memref<16x8xf32, #tpu.memory_space<vmem>>, %arg4: memref<4x16xf32, #tpu.memory_space<vmem>>, %arg5: memref<16x4xf32, #tpu.memory_space<vmem>>, %arg6: memref<6x8x8xf32, #tpu.memory_space<vmem>>, %arg7: memref<6x4x4xf32, #tpu.memory_space<vmem>>) attributes {dimension_semantics = [#tpu.dimension_semantics<parallel>], iteration_bounds = array<i64: 2>, scalar_prefetch = 0 : i64, scratch_operands = 0 : i64, tpu.core_type = #tpu.core_type<tc>, window_params = [{transform_indices = @transform_0, window_bounds = array<i64: 6, 16, 16>}, {pipeline_mode = #tpu.pipeline_mode<synchronous>, transform_indices = @transform_1, window_bounds = array<i64: 8, 16>}, {pipeline_mode = #tpu.pipeline_mode<synchronous>, transform_indices = @transform_2, window_bounds = array<i64: 16, 8>}, {pipeline_mode = #tpu.pipeline_mode<synchronous>, transform_indices = @transform_3, window_bounds = array<i64: 4, 16>}, {pipeline_mode = #tpu.pipeline_mode<synchronous>, transform_indices = @transform_4, window_bounds = array<i64: 16, 4>}, {transform_indices = @transform_5, window_bounds = array<i64: 6, 8, 8>}, {transform_indices = @transform_6, window_bounds = array<i64: 6, 4, 4>}]} {
    %c0 = arith.constant 0 : index
    %c0_0 = arith.constant 0 : index
    %c0_1 = arith.constant 0 : index
    %0 = vector.load %arg1[%c0, %c0_0, %c0_1] : memref<6x16x16xf32, #tpu.memory_space<vmem>>, vector<6x16x16xf32>
    %c0_2 = arith.constant 0 : index
    %c0_3 = arith.constant 0 : index
    %1 = vector.load %arg2[%c0_2, %c0_3] : memref<8x16xf32, #tpu.memory_space<vmem>>, vector<8x16xf32>
    %c0_4 = arith.constant 0 : index
    %c0_5 = arith.constant 0 : index
    %2 = vector.load %arg3[%c0_4, %c0_5] : memref<16x8xf32, #tpu.memory_space<vmem>>, vector<16x8xf32>
    %3 = vector.shape_cast %1 : vector<8x16xf32> to vector<1x8x16xf32>
    %4 = vector.broadcast %3 : vector<1x8x16xf32> to vector<6x8x16xf32>
    %5 = vector.shape_cast %2 : vector<16x8xf32> to vector<1x16x8xf32>
    %6 = vector.broadcast %5 : vector<1x16x8xf32> to vector<6x16x8xf32>
    "tpu.trace_start"() <{level = 10 : i32, message = "prh,phw->prw"}> : () -> ()
    %cst = arith.constant dense<0.000000e+00> : vector<6x8x16xf32>
    %7 = tpu.matmul %4, %0, %cst {dimension_numbers = #tpu.dot_dimension_numbers<[2], [1], [1], [2], [0, 0, 0, 1, 1, 2], [0], [0]>, precision = #tpu.contract_precision<fp32>} : vector<6x8x16xf32>, vector<6x16x16xf32>, vector<6x8x16xf32> -> vector<6x8x16xf32>
    "tpu.trace_stop"() : () -> ()
    "tpu.trace_start"() <{level = 10 : i32, message = "prw,pwc->prc"}> : () -> ()
    %cst_6 = arith.constant dense<0.000000e+00> : vector<6x8x8xf32>
    %8 = tpu.matmul %7, %6, %cst_6 {dimension_numbers = #tpu.dot_dimension_numbers<[2], [1], [1], [2], [0, 0, 0, 1, 1, 2], [0], [0]>, precision = #tpu.contract_precision<fp32>} : vector<6x8x16xf32>, vector<6x16x8xf32>, vector<6x8x8xf32> -> vector<6x8x8xf32>
    "tpu.trace_stop"() : () -> ()
    %c0_7 = arith.constant 0 : index
    %c0_8 = arith.constant 0 : index
    %c0_9 = arith.constant 0 : index
    %9 = vector.load %arg6[%c0_7, %c0_8, %c0_9] : memref<6x8x8xf32, #tpu.memory_space<vmem>>, vector<6x8x8xf32>
    tpu.vector_store %arg6[%c0_7, %c0_8, %c0_9], %8 {strides = array<i32>} : memref<6x8x8xf32, #tpu.memory_space<vmem>>, vector<6x8x8xf32>,
    %c0_10 = arith.constant 0 : index
    %c0_11 = arith.constant 0 : index
    %10 = vector.load %arg4[%c0_10, %c0_11] : memref<4x16xf32, #tpu.memory_space<vmem>>, vector<4x16xf32>
    %c0_12 = arith.constant 0 : index
    %c0_13 = arith.constant 0 : index
    %11 = vector.load %arg5[%c0_12, %c0_13] : memref<16x4xf32, #tpu.memory_space<vmem>>, vector<16x4xf32>
    %12 = vector.shape_cast %10 : vector<4x16xf32> to vector<1x4x16xf32>
    %13 = vector.broadcast %12 : vector<1x4x16xf32> to vector<6x4x16xf32>
    %14 = vector.shape_cast %11 : vector<16x4xf32> to vector<1x16x4xf32>
    %15 = vector.broadcast %14 : vector<1x16x4xf32> to vector<6x16x4xf32>
    "tpu.trace_start"() <{level = 10 : i32, message = "prh,phw->prw"}> : () -> ()
    %cst_14 = arith.constant dense<0.000000e+00> : vector<6x4x16xf32>
    %16 = tpu.matmul %13, %0, %cst_14 {dimension_numbers = #tpu.dot_dimension_numbers<[2], [1], [1], [2], [0, 0, 0, 1, 1, 2], [0], [0]>, precision = #tpu.contract_precision<fp32>} : vector<6x4x16xf32>, vector<6x16x16xf32>, vector<6x4x16xf32> -> vector<6x4x16xf32>
    "tpu.trace_stop"() : () -> ()
    "tpu.trace_start"() <{level = 10 : i32, message = "prw,pwc->prc"}> : () -> ()
    %cst_15 = arith.constant dense<0.000000e+00> : vector<6x4x4xf32>
    %17 = tpu.matmul %16, %15, %cst_15 {dimension_numbers = #tpu.dot_dimension_numbers<[2], [1], [1], [2], [0, 0, 0, 1, 1, 2], [0], [0]>, precision = #tpu.contract_precision<fp32>} : vector<6x4x16xf32>, vector<6x16x4xf32>, vector<6x4x4xf32> -> vector<6x4x4xf32>
    "tpu.trace_stop"() : () -> ()
    %c0_16 = arith.constant 0 : index
    %c0_17 = arith.constant 0 : index
    %c0_18 = arith.constant 0 : index
    %18 = vector.load %arg7[%c0_16, %c0_17, %c0_18] : memref<6x4x4xf32, #tpu.memory_space<vmem>>, vector<6x4x4xf32>
    tpu.vector_store %arg7[%c0_16, %c0_17, %c0_18], %17 {strides = array<i32>} : memref<6x4x4xf32, #tpu.memory_space<vmem>>, vector<6x4x4xf32>,
    return
  }
  func.func @transform_0(%arg0: i32) -> (i32, i32, i32) {
    %c0_i32 = arith.constant 0 : i32
    %c0_i32_0 = arith.constant 0 : i32
    %c0_i32_1 = arith.constant 0 : i32
    return %arg0, %c0_i32, %c0_i32_0 : i32, i32, i32
  }
  func.func @transform_1(%arg0: i32) -> (i32, i32) {
    %c0_i32 = arith.constant 0 : i32
    %c0_i32_0 = arith.constant 0 : i32
    %c0_i32_1 = arith.constant 0 : i32
    return %c0_i32, %c0_i32_0 : i32, i32
  }
  func.func @transform_2(%arg0: i32) -> (i32, i32) {
    %c0_i32 = arith.constant 0 : i32
    %c0_i32_0 = arith.constant 0 : i32
    %c0_i32_1 = arith.constant 0 : i32
    return %c0_i32, %c0_i32_0 : i32, i32
  }
  func.func @transform_3(%arg0: i32) -> (i32, i32) {
    %c0_i32 = arith.constant 0 : i32
    %c0_i32_0 = arith.constant 0 : i32
    %c0_i32_1 = arith.constant 0 : i32
    return %c0_i32, %c0_i32_0 : i32, i32
  }
  func.func @transform_4(%arg0: i32) -> (i32, i32) {
    %c0_i32 = arith.constant 0 : i32
    %c0_i32_0 = arith.constant 0 : i32
    %c0_i32_1 = arith.constant 0 : i32
    return %c0_i32, %c0_i32_0 : i32, i32
  }
  func.func @transform_5(%arg0: i32) -> (i32, i32, i32) {
    %c0_i32 = arith.constant 0 : i32
    %c0_i32_0 = arith.constant 0 : i32
    %c0_i32_1 = arith.constant 0 : i32
    return %arg0, %c0_i32, %c0_i32_0 : i32, i32, i32
  }
  func.func @transform_6(%arg0: i32) -> (i32, i32, i32) {
    %c0_i32 = arith.constant 0 : i32
    %c0_i32_0 = arith.constant 0 : i32
    %c0_i32_1 = arith.constant 0 : i32
    return %arg0, %c0_i32, %c0_i32_0 : i32, i32, i32
  }
}

</mosaic_0001>

<llo_original>
// kernel: _pyramid_on_planes.1
$region0: #{_pyramid_on_planes.1}
  #allocation0 [shape = 'u32[]', space=smem, size = 0x4, offset = 0x4, fixed_abs, tag = 'smem constant byte address 0x4 - core index']
  #allocation1 [shape = 'u32[144,128]{1,0:T(1,128)}', space=vmem, size = 0x12000, scoped, tag = 'internal scratch']
  %s0 = inlined_call_operand.hbm [shape: f32[12,16,16], index: 0, kind: input, shape index: {}]
  %s1 = inlined_call_operand.hbm [shape: f32[8,16], index: 1, kind: input, shape index: {}]
  %s2 = inlined_call_operand.hbm [shape: f32[16,8], index: 2, kind: input, shape index: {}]
  %s3 = inlined_call_operand.vmem [shape: f32[4,16], index: 3, kind: input, shape index: {}]
  %s4 = inlined_call_operand.hbm [shape: f32[16,4], index: 4, kind: input, shape index: {}]
  %s5 = inlined_call_operand.vmem [shape: f32[12,8,8], index: 5, kind: output, shape index: {0}]
  %s6 = inlined_call_operand.vmem [shape: f32[12,4,4], index: 6, kind: output, shape index: {1}]
  %7 = xla_tuple %s5, %s6
  %s8 = sld [smem:[#allocation0]]
  $region77: #{_pyramid_on_planes.1} parent=0
    _
  %s10 = ssub.s32 1, %s8
  %s11 = scalar_select 0, %s10, %s8
  $region1: #{_pyramid_on_planes.1} parent=0
    #allocation2 [shape = 'u8[98304]{0}', space=vmem, size = 0x18000, scoped, tag = 'input window, operand 0']
    #allocation3 [shape = 's32[2]{0}', space=sflag, size = 0x8, scoped, tag = 'scoped memory for _pyramid_on_planes.1']
    #allocation4 [shape = 'u8[4096]{0}', space=vmem, size = 0x1000, scoped, tag = 'input window, operand 1, single buffered']
    #allocation5 [shape = 's32[1]{0}', space=sflag, size = 0x4, scoped, tag = 'scoped memory for _pyramid_on_planes.1']
    #allocation6 [shape = 'u8[8192]{0}', space=vmem, size = 0x2000, scoped, tag = 'input window, operand 2, single buffered']
    #allocation7 [shape = 'u8[8192]{0}', space=vmem, size = 0x2000, scoped, tag = 'input window, operand 4, single buffered']
    #allocation8 [shape = 's32[1]{0}', space=sflag, size = 0x4, scoped, tag = 'scoped memory for _pyramid_on_planes.1']
    %12 = vsyncpa [#allocation3], 0
    %s13 = scalar_lea.sflag [#allocation3], 1
    %14 = vsyncpa %s13, 0
    %15 = vsyncpa [#allocation5], 0
    %16 = vsyncpa [#allocation8], 0
    loop: start=0, step=1, limit=4
    $region2: #{_pyramid_on_planes.1} parent=1 // loop_pre_header
      _
    $region3: #{_pyramid_on_planes.1} parent=1 // loop_header
      %s18 = sphi 0, %s22
      %p19 = scmp.ge.s32.totalorder %s18, 4
      %s28 = sphi 0, %s30
      %s31 = sphi 0, %s28
      %s32 = sphi 0, %s31
      %s48 = sphi 0, %s32
      %s52 = sphi 0, %s52
      %s54 = sphi 0, %s52
      %s55 = sphi 0, %s54
      %s69 = sphi 0, %s55
      %s73 = sphi 0, %s73
      %s75 = sphi 0, %s73
      %s76 = sphi 0, %s75
      %s90 = sphi 0, %s76
      %s94 = sphi 0, %s94
      %s96 = sphi 0, %s94
      %s97 = sphi 0, %s96
      %s111 = sphi 0, %s97
      %s115 = sphi 0, %s115
      %s117 = sphi 0, %s115
      %s118 = sphi 0, %s117
      %s132 = sphi 0, %s118
      %s138 = sphi 0, %s140
      %s141 = sphi 0, %s138
      %s142 = sphi 0, %s141
      %s158 = sphi 0, %s142
      %s164 = sphi 0, %s166
      %s167 = sphi 0, %s164
      %s168 = sphi 0, %s167
      %s184 = sphi 0, %s168
    $region4: #{_pyramid_on_planes.1} parent=1 // loop_header_branch
      %21 = sbr.rel (%p19) target = $region8
    $region5: #{_pyramid_on_planes.1} parent=1 // loop_body
      %s23 = ssub.s32 %s18, 1
      %s24 = ssub.s32 %s18, 2
      %s25 = sadd.s32 %s18, 1
      %s26 = ssub.s32 %s18, %s25
      %p27 = scmp.eq.s32.totalorder %s26, 0
      %s29 = sadd.s32 %s28, 1
      %s30 = scalar_select %p27, %s28, %s29
      %p33 = pneg %p27
      %p34 = scmp.eq.s32.totalorder %s18, 1
      %p35 = por %p33, %p34
      %p36 = scmp.ne.s32.totalorder %s28, %s31
      %p37 = scmp.eq.s32.totalorder %s18, 0
      %p38 = por %p36, %p37
      %p39 = scmp.ne.s32.totalorder %s28, %s31
      %p40 = scmp.eq.s32.totalorder %s23, 1
      %p41 = por %p39, %p40
      %p42 = scmp.ne.s32.totalorder %s31, %s32
      %p43 = scmp.eq.s32.totalorder %s23, 0
      %p44 = por %p42, %p43
      %p45 = scmp.ne.s32.totalorder %s31, %s32
      %p46 = scmp.eq.s32.totalorder %s24, 1
      %p47 = por %p45, %p46
      %p49 = scmp.ne.s32.totalorder %s32, %s48
      %p50 = scmp.eq.s32.totalorder %s24, 0
      %p51 = por %p49, %p50
      %s53 = sadd.s32 %s52, 1
      %p56 = scmp.eq.s32.totalorder %s18, 1
      %p57 = scmp.ne.s32.totalorder %s52, %s54
      %p58 = scmp.eq.s32.totalorder %s18, 0
      %p59 = por %p57, %p58
      %p60 = scmp.ne.s32.totalorder %s52, %s54
      %p61 = scmp.eq.s32.totalorder %s23, 1
      %p62 = por %p60, %p61
      %p63 = scmp.ne.s32.totalorder %s54, %s55
      %p64 = scmp.eq.s32.totalorder %s23, 0
      %p65 = por %p63, %p64
      %p66 = scmp.ne.s32.totalorder %s54, %s55
      %p67 = scmp.eq.s32.totalorder %s24, 1
      %p68 = por %p66, %p67
      %p70 = scmp.ne.s32.totalorder %s55, %s69
      %p71 = scmp.eq.s32.totalorder %s24, 0
      %p72 = por %p70, %p71
      %s74 = sadd.s32 %s73, 1
      %p77 = scmp.eq.s32.totalorder %s18, 1
      %p78 = scmp.ne.s32.totalorder %s73, %s75
      %p79 = scmp.eq.s32.totalorder %s18, 0
      %p80 = por %p78, %p79
      %p81 = scmp.ne.s32.totalorder %s73, %s75
      %p82 = scmp.eq.s32.totalorder %s23, 1
      %p83 = por %p81, %p82
      %p84 = scmp.ne.s32.totalorder %s75, %s76
      %p85 = scmp.eq.s32.totalorder %s23, 0
      %p86 = por %p84, %p85
      %p87 = scmp.ne.s32.totalorder %s75, %s76
      %p88 = scmp.eq.s32.totalorder %s24, 1
      %p89 = por %p87, %p88
      %p91 = scmp.ne.s32.totalorder %s76, %s90
      %p92 = scmp.eq.s32.totalorder %s24, 0
      %p93 = por %p91, %p92
      %s95 = sadd.s32 %s94, 1
      %p98 = scmp.eq.s32.totalorder %s18, 1
      %p99 = scmp.ne.s32.totalorder %s94, %s96
      %p100 = scmp.eq.s32.totalorder %s18, 0
      %p101 = por %p99, %p100
      %p102 = scmp.ne.s32.totalorder %s94, %s96
      %p103 = scmp.eq.s32.totalorder %s23, 1
      %p104 = por %p102, %p103
      %p105 = scmp.ne.s32.totalorder %s96, %s97
      %p106 = scmp.eq.s32.totalorder %s23, 0
      %p107 = por %p105, %p106
      %p108 = scmp.ne.s32.totalorder %s96, %s97
      %p109 = scmp.eq.s32.totalorder %s24, 1
      %p110 = por %p108, %p109
      %p112 = scmp.ne.s32.totalorder %s97, %s111
      %p113 = scmp.eq.s32.totalorder %s24, 0
      %p114 = por %p112, %p113
      %s116 = sadd.s32 %s115, 1
      %p119 = scmp.eq.s32.totalorder %s18, 1
      %p120 = scmp.ne.s32.totalorder %s115, %s117
      %p121 = scmp.eq.s32.totalorder %s18, 0
      %p122 = por %p120, %p121
      %p123 = scmp.ne.s32.totalorder %s115, %s117
      %p124 = scmp.eq.s32.totalorder %s23, 1
      %p125 = por %p123, %p124
      %p126 = scmp.ne.s32.totalorder %s117, %s118
      %p127 = scmp.eq.s32.totalorder %s23, 0
      %p128 = por %p126, %p127
      %p129 = scmp.ne.s32.totalorder %s117, %s118
      %p130 = scmp.eq.s32.totalorder %s24, 1
      %p131 = por %p129, %p130
      %p133 = scmp.ne.s32.totalorder %s118, %s132
      %p134 = scmp.eq.s32.totalorder %s24, 0
      %p135 = por %p133, %p134
      %s136 = ssub.s32 %s18, %s25
      %p137 = scmp.eq.s32.totalorder %s136, 0
      %s139 = sadd.s32 %s138, 1
      %s140 = scalar_select %p137, %s138, %s139
      %p143 = pneg %p137
      %p144 = scmp.eq.s32.totalorder %s18, 1
      %p145 = por %p143, %p144
      %p146 = scmp.ne.s32.totalorder %s138, %s141
      %p147 = scmp.eq.s32.totalorder %s18, 0
      %p148 = por %p146, %p147
      %p149 = scmp.ne.s32.totalorder %s138, %s141
      %p150 = scmp.eq.s32.totalorder %s23, 1
      %p151 = por %p149, %p150
      %p152 = scmp.ne.s32.totalorder %s141, %s142
      %p153 = scmp.eq.s32.totalorder %s23, 0
      %p154 = por %p152, %p153
      %p155 = scmp.ne.s32.totalorder %s141, %s142
      %p156 = scmp.eq.s32.totalorder %s24, 1
      %p157 = por %p155, %p156
      %p159 = scmp.ne.s32.totalorder %s142, %s158
      %p160 = scmp.eq.s32.totalorder %s24, 0
      %p161 = por %p159, %p160
      %s162 = ssub.s32 %s18, %s25
      %p163 = scmp.eq.s32.totalorder %s162, 0
      %s165 = sadd.s32 %s164, 1
      %s166 = scalar_select %p163, %s164, %s165
      %p169 = pneg %p163
      %p170 = scmp.eq.s32.totalorder %s18, 1
      %p171 = por %p169, %p170
      %p172 = scmp.ne.s32.totalorder %s164, %s167
      %p173 = scmp.eq.s32.totalorder %s18, 0
      %p174 = por %p172, %p173
      %p175 = scmp.ne.s32.totalorder %s164, %s167
      %p176 = scmp.eq.s32.totalorder %s23, 1
      %p177 = por %p175, %p176
      %p178 = scmp.ne.s32.totalorder %s167, %s168
      %p179 = scmp.eq.s32.totalorder %s23, 0
      %p180 = por %p178, %p179
      %p181 = scmp.ne.s32.totalorder %s167, %s168
      %p182 = scmp.eq.s32.totalorder %s24, 1
      %p183 = por %p181, %p182
      %p185 = scmp.ne.s32.totalorder %s168, %s184
      %p186 = scmp.eq.s32.totalorder %s24, 0
      %p187 = por %p185, %p186
      %p188 = scmp.le.s32.totalorder 1, %s18
      %p189 = scmp.lt.s32.totalorder %s18, 3
      %p190 = pnand %p188, %p189
      %p191 = pneg %p190
      // Predicated region
      $region9: #{_pyramid_on_planes.1} parent=5 // pred_check
        _
      $region10: #{_pyramid_on_planes.1} parent=5 // pred_check_branch
        %193 = sbr.rel (%p190) target = $region12
      $region11: #{_pyramid_on_planes.1} parent=5 // pred_region
        %s194 = ssub.s32 %s18, 1
        // Predicated region
        $region13: #{_pyramid_on_planes.1} parent=11 // pred_check
          %p195 = pneg %p65
        $region14: #{_pyramid_on_planes.1} parent=11 // pred_check_branch
          %197 = sbr.rel (%p195) target = $region16
        $region15: #{_pyramid_on_planes.1} parent=11 // pred_region
          %s199 = ssub.s32 128, 128
          %200 = vsyncadd [#allocation5], %s199
          %s202 = sshll.u32 [#allocation4], 4
          %s203 = int_to_ptr.vmem [resolvable:$true] %s202
          %205 = dma.hbm_to_vmem [thread:$0]  %s1, 128, %s203, [#allocation5]
        $region16: #{_pyramid_on_planes.1} parent=11 // pred_fallthru
          _
        // Predicated region
        $region17: #{_pyramid_on_planes.1} parent=11 // pred_check
          %p206 = pneg %p86
        $region18: #{_pyramid_on_planes.1} parent=11 // pred_check_branch
          %208 = sbr.rel (%p206) target = $region20
        $region19: #{_pyramid_on_planes.1} parent=11 // pred_region
          %s210 = ssub.s32 256, 256
          %211 = vsyncadd [#allocation5], %s210
          %s212 = sshll.u32 [#allocation6], 4
          %s213 = int_to_ptr.vmem [resolvable:$true] %s212
          %218 = dma.hbm_to_vmem [thread:$0]  %s2, 256, %s213, [#allocation5], 128, 128, 8
        $region20: #{_pyramid_on_planes.1} parent=11 // pred_fallthru
          _
        // Predicated region
        $region21: #{_pyramid_on_planes.1} parent=11 // pred_check
          %p219 = pneg %p107
        $region22: #{_pyramid_on_planes.1} parent=11 // pred_check_branch
          %221 = sbr.rel (%p219) target = $region24
        $region23: #{_pyramid_on_planes.1} parent=11 // pred_region
          _
        $region24: #{_pyramid_on_planes.1} parent=11 // pred_fallthru
          _
        // Predicated region
        $region25: #{_pyramid_on_planes.1} parent=11 // pred_check
          %p222 = pneg %p128
        $region26: #{_pyramid_on_planes.1} parent=11 // pred_check_branch
          %224 = sbr.rel (%p222) target = $region28
        $region27: #{_pyramid_on_planes.1} parent=11 // pred_region
          %s226 = ssub.s32 256, 256
          %227 = vsyncadd [#allocation8], %s226
          %s228 = sshll.u32 [#allocation7], 4
          %s229 = int_to_ptr.vmem [resolvable:$true] %s228
          %234 = dma.hbm_to_vmem [thread:$0]  %s4, 256, %s229, [#allocation8], 128, 128, 8
        $region28: #{_pyramid_on_planes.1} parent=11 // pred_fallthru
          _
      $region12: #{_pyramid_on_planes.1} parent=5 // pred_fallthru
        _
      %p235 = scmp.lt.s32.totalorder %s18, 2
      // Predicated region
      $region29: #{_pyramid_on_planes.1} parent=5 // pred_check
        %p236 = pneg %p235
      $region30: #{_pyramid_on_planes.1} parent=5 // pred_check_branch
        %238 = sbr.rel (%p236) target = $region32
      $region31: #{_pyramid_on_planes.1} parent=5 // pred_region
        // Predicated region
        $region33: #{_pyramid_on_planes.1} parent=31 // pred_check
          %p239 = pneg %p38
        $region34: #{_pyramid_on_planes.1} parent=31 // pred_check_branch
          %241 = sbr.rel (%p239) target = $region36
        $region35: #{_pyramid_on_planes.1} parent=31 // pred_region
          %s242 = sand.u32 %s28, 1
          %s243 = scalar_lea.sflag [#allocation3], %s242
          %s244 = sand.u32 %s28, 1
          %s245 = smul.addr %s244, 96
          %s246 = scalar_lea.vmem [#allocation2], %s245
          %s247 = smul.u32 6, %s18
          %s249 = ssub.s32 1536, 1536
          %250 = vsyncadd %s243, %s249
          %s251 = smul.addr %s247, 2
          %s252 = smul.addr %s251, 128
          %s253 = scalar_lea.hbm %s0, %s252
          %s254 = sshll.u32 %s246, 4
          %s255 = int_to_ptr.vmem [resolvable:$true] %s254
          %260 = dma.hbm_to_vmem [thread:$0]  %s253, 1536, %s255, %s243, 128, 128, 8
        $region36: #{_pyramid_on_planes.1} parent=31 // pred_fallthru
          _
      $region32: #{_pyramid_on_planes.1} parent=5 // pred_fallthru
        _
      %p261 = scmp.le.s32.totalorder 1, %s18
      %p262 = scmp.lt.s32.totalorder %s18, 3
      %p263 = pnand %p261, %p262
      %p264 = pneg %p263
      // Predicated region
      $region37: #{_pyramid_on_planes.1} parent=5 // pred_check
        _
      $region38: #{_pyramid_on_planes.1} parent=5 // pred_check_branch
        %266 = sbr.rel (%p263) target = $region40
      $region39: #{_pyramid_on_planes.1} parent=5 // pred_region
        %s267 = ssub.s32 %s18, 1
        %s268 = sand.u32 %s31, 1
        %s269 = scalar_lea.sflag [#allocation3], %s268
        %s270 = sand.u32 %s31, 1
        %s271 = smul.addr %s270, 96
        %s272 = scalar_lea.vmem [#allocation2], %s271
        // Predicated region
        $region41: #{_pyramid_on_planes.1} parent=39 // pred_check
          %p273 = pneg %p44
        $region42: #{_pyramid_on_planes.1} parent=39 // pred_check_branch
          %275 = sbr.rel (%p273) target = $region44
        $region43: #{_pyramid_on_planes.1} parent=39 // pred_region
          %276 = dma.done %s269, 1536
        $region44: #{_pyramid_on_planes.1} parent=39 // pred_fallthru
          _
        // Predicated region
        $region45: #{_pyramid_on_planes.1} parent=39 // pred_check
          %p277 = pneg %p65
        $region46: #{_pyramid_on_planes.1} parent=39 // pred_check_branch
          %279 = sbr.rel (%p277) target = $region48
        $region47: #{_pyramid_on_planes.1} parent=39 // pred_region
          %280 = dma.done [#allocation5], 128
        $region48: #{_pyramid_on_planes.1} parent=39 // pred_fallthru
          _
        // Predicated region
        $region49: #{_pyramid_on_planes.1} parent=39 // pred_check
          %p281 = pneg %p86
        $region50: #{_pyramid_on_planes.1} parent=39 // pred_check_branch
          %283 = sbr.rel (%p281) target = $region52
        $region51: #{_pyramid_on_planes.1} parent=39 // pred_region
          %284 = dma.done [#allocation5], 256
        $region52: #{_pyramid_on_planes.1} parent=39 // pred_fallthru
          _
        // Predicated region
        $region53: #{_pyramid_on_planes.1} parent=39 // pred_check
          %p285 = pneg %p128
        $region54: #{_pyramid_on_planes.1} parent=39 // pred_check_branch
          %287 = sbr.rel (%p285) target = $region56
        $region55: #{_pyramid_on_planes.1} parent=39 // pred_region
          %288 = dma.done [#allocation8], 256
        $region56: #{_pyramid_on_planes.1} parent=39 // pred_fallthru
          _
        %s289 = sand.u32 %s31, 1
        %s290 = scalar_lea.sflag [#allocation3], %s289
        %s291 = sand.u32 %s31, 1
        %s292 = smul.addr %s291, 96
        %s293 = scalar_lea.vmem [#allocation2], %s292
        %p294 = pneg %p44
        %p295 = pneg %p41
        %p296 = pneg %p65
        %p297 = pneg %p62
        %p298 = pneg %p86
        %p299 = pneg %p83
        %p300 = pneg %p107
        %p301 = pneg %p104
        %p302 = pneg %p128
        %p303 = pneg %p125
        %p304 = pneg %p154
        %p305 = pneg %p151
        %s306 = smul.u32 6, %s23
        %p307 = scmp.lt.s32.totalorder %s306, 11
        %s308 = scalar_select %p307, %s306, 11
        %s309 = smul.addr %s308, 8
        %s310 = scalar_lea.vmem %s5, %s309
        %p311 = pneg %p180
        %p312 = pneg %p177
        %s313 = smul.u32 6, %s23
        %p314 = scmp.lt.s32.totalorder %s313, 11
        %s315 = scalar_select %p314, %s313, 11
        %s316 = smul.addr %s315, 4
        %s317 = scalar_lea.vmem %s6, %s316
        %s318 = smul.u32 6, %s23
        %s319 = smul.u32 6, %s23
        %p320 = scmp.lt.s32.totalorder %s319, 11
        %s321 = scalar_select %p320, %s319, 11
        %s322 = smul.addr %s321, 8
        %s323 = scalar_lea.vmem %s5, %s322
        %s324 = smul.u32 6, %s23
        %s325 = smul.u32 6, %s23
        %p326 = scmp.lt.s32.totalorder %s325, 11
        %s327 = scalar_select %p326, %s325, 11
        %s328 = smul.addr %s327, 4
        %s329 = scalar_lea.vmem %s6, %s328
        %s330 = smul.u32 6, %s23
        %v331 = vld [vmem:[%s272] sm:$0xff]
        %v332 = vld [vmem:[%s272 + $0x8] sm:$0xff]
        %v333 = vld [vmem:[%s272 + $0x10] sm:$0xff]
        %v334 = vld [vmem:[%s272 + $0x18] sm:$0xff]
        %v335 = vld [vmem:[%s272 + $0x20] sm:$0xff]
        %v336 = vld [vmem:[%s272 + $0x28] sm:$0xff]
        %v337 = vld [vmem:[%s272 + $0x30] sm:$0xff]
        %v338 = vld [vmem:[%s272 + $0x38] sm:$0xff]
        %v339 = vld [vmem:[%s272 + $0x40] sm:$0xff]
        %v340 = vld [vmem:[%s272 + $0x48] sm:$0xff]
        %v341 = vld [vmem:[%s272 + $0x50] sm:$0xff]
        %v342 = vld [vmem:[%s272 + $0x58] sm:$0xff]
        %v343 = vld [vmem:[#allocation4] sm:$0xff]
        %v344 = vld [vmem:[#allocation6] sm:$0xff]
        %v345 = vld [vmem:[#allocation6 + $0x8] sm:$0xff]
        %vm346 = vcmask 130048
        %v348 = vsel %vm346, %v343, 0
        %350 = vmatprep.subr.mxu0 0.0
        %v351 = vand.u32 %v331, 4294901760
        %352 = vmatpush1.msra.mxu0 %v351
        %353 = vmatprep.subr.mxu0 0.0
        %v354 = vand.u32 %v332, 4294901760
        %355 = vmatpush1.msra.mxu0 %v354
        %356 = vmatprep.subr.mxu0 0.0
        %357 = vmatpush1.msra.mxu0 0.0
        %358 = vmatprep.subr.mxu0 0.0
        %359 = vmatpush1.msra.mxu0 0.0
        %360 = vmatprep.subr.mxu0 0.0
        %361 = vmatpush1.msra.mxu0 0.0
        %362 = vmatprep.subr.mxu0 0.0
        %363 = vmatpush1.msra.mxu0 0.0
        %364 = vmatprep.subr.mxu0 0.0
        %365 = vmatpush1.msra.mxu0 0.0
        %366 = vmatprep.subr.mxu0 0.0
        %367 = vmatpush1.msra.mxu0 0.0
        %368 = vmatprep.subr.mxu0 0.0
        %369 = vmatpush1.msra.mxu0 0.0
        %370 = vmatprep.subr.mxu0 0.0
        %371 = vmatpush1.msra.mxu0 0.0
        %372 = vmatprep.subr.mxu0 0.0
        %373 = vmatpush1.msra.mxu0 0.0
        %374 = vmatprep.subr.mxu0 0.0
        %375 = vmatpush1.msra.mxu0 0.0
        %376 = vmatprep.subr.mxu0 0.0
        %377 = vmatpush1.msra.mxu0 0.0
        %378 = vmatprep.subr.mxu0 0.0
        %379 = vmatpush1.msra.mxu0 0.0
        %380 = vmatprep.subr.mxu0 0.0
        %381 = vmatpush1.msra.mxu0 0.0
        %382 = vmatprep.subr.mxu0 0.0
        %383 = vmatpush1.msra.mxu0 0.0
        %384 = vmatprep.subr.mxu0 0.0
        %385 = vmatpush1.msra.mxu0 0.0
        %386 = vmatprep.subr.mxu0 0.0
        %387 = vmatpush1.msra.mxu0 0.0
        %388 = vmatprep.subr.mxu0 0.0
        %389 = vmatpush1.msra.mxu0 0.0
        %390 = vmatprep.subr.mxu0 0.0
        %391 = vmatpush1.msra.mxu0 0.0
        %392 = vmatprep.subr.mxu0 0.0
        %393 = vmatpush1.msra.mxu0 0.0
        %394 = vmatprep.subr.mxu0 0.0
        %395 = vmatpush1.msra.mxu0 0.0
        %396 = vmatprep.subr.mxu0 0.0
        %397 = vmatpush1.msra.mxu0 0.0
        %398 = vmatprep.subr.mxu0 0.0
        %399 = vmatpush1.msra.mxu0 0.0
        %400 = vmatprep.subr.mxu0 0.0
        %401 = vmatpush1.msra.mxu0 0.0
        %402 = vmatprep.subr.mxu0 0.0
        %403 = vmatpush1.msra.mxu0 0.0
        %404 = vmatprep.subr.mxu0 0.0
        %405 = vmatpush1.msra.mxu0 0.0
        %406 = vmatprep.subr.mxu0 0.0
        %407 = vmatpush1.msra.mxu0 0.0
        %408 = vmatprep.subr.mxu0 0.0
        %409 = vmatpush1.msra.mxu0 0.0
        %410 = vmatprep.subr.mxu0 0.0
        %411 = vmatpush1.msra.mxu0 0.0
        %412 = vmatprep.subr.mxu0 0.0
        %413 = vmatpush1.msra.mxu0 0.0
        %414 = vmatprep.subr.mxu0 0.0
        %415 = vmatpush1.msra.mxu0 0.0
        %416 = vmatprep.mubr.f32.mxu0 0.0
        %v417 = vand.u32 %v348, 4294901760
        %v418 = vsub.f32 %v348, %v417
        %v419 = vand.u32 %v418, 4294901760
        %v420 = vsub.f32 %v418, %v419
        %v421 = vand.u32 %v420, 4294901760
        %422 = vmatmul.mubr.f32.gmra.mrb[0].mxu0 %v421
        %v423 = vpop.f32.mrb[0].mxu0
        %v424 = vadd.f32 0.0, %v423
        %v425 = vpop.f32.mrb[0].mxu0
        %426 = vdwg.mxu0
        %427 = vmatprep.subr.mxu0 0.0
        %v428 = vand.u32 %v331, 4294901760
        %v429 = vsub.f32 %v331, %v428
        %v430 = vand.u32 %v429, 4294901760
        %v431 = vsub.f32 %v429, %v430
        %v432 = vand.u32 %v431, 4294901760
        %433 = vmatpush1.msra.mxu0 %v432
        %434 = vmatprep.subr.mxu0 0.0
        %v435 = vand.u32 %v332, 4294901760
        %v436 = vsub.f32 %v332, %v435
        %v437 = vand.u32 %v436, 4294901760
        %v438 = vsub.f32 %v436, %v437
        %v439 = vand.u32 %v438, 4294901760
        %440 = vmatpush1.msra.mxu0 %v439
        %441 = vmatprep.subr.mxu0 0.0
        %442 = vmatpush1.msra.mxu0 0.0
        %443 = vmatprep.subr.mxu0 0.0
        %444 = vmatpush1.msra.mxu0 0.0
        %445 = vmatprep.subr.mxu0 0.0
        %446 = vmatpush1.msra.mxu0 0.0
        %447 = vmatprep.subr.mxu0 0.0
        %448 = vmatpush1.msra.mxu0 0.0
        %449 = vmatprep.subr.mxu0 0.0
        %450 = vmatpush1.msra.mxu0 0.0
        %451 = vmatprep.subr.mxu0 0.0
        %452 = vmatpush1.msra.mxu0 0.0
        %453 = vmatprep.subr.mxu0 0.0
        %454 = vmatpush1.msra.mxu0 0.0
        %455 = vmatprep.subr.mxu0 0.0
        %456 = vmatpush1.msra.mxu0 0.0
        %457 = vmatprep.subr.mxu0 0.0
        %458 = vmatpush1.msra.mxu0 0.0
        %459 = vmatprep.subr.mxu0 0.0
        %460 = vmatpush1.msra.mxu0 0.0
        %461 = vmatprep.subr.mxu0 0.0
        %462 = vmatpush1.msra.mxu0 0.0
        %463 = vmatprep.subr.mxu0 0.0
        %464 = vmatpush1.msra.mxu0 0.0
        %465 = vmatprep.subr.mxu0 0.0
        %466 = vmatpush1.msra.mxu0 0.0
        %467 = vmatprep.subr.mxu0 0.0
        %468 = vmatpush1.msra.mxu0 0.0
        %469 = vmatprep.subr.mxu0 0.0
        %470 = vmatpush1.msra.mxu0 0.0
        %471 = vmatprep.subr.mxu0 0.0
        %472 = vmatpush1.msra.mxu0 0.0
        %473 = vmatprep.subr.mxu0 0.0
        %474 = vmatpush1.msra.mxu0 0.0
        %475 = vmatprep.subr.mxu0 0.0
        %476 = vmatpush1.msra.mxu0 0.0
        %477 = vmatprep.subr.mxu0 0.0
        %478 = vmatpush1.msra.mxu0 0.0
        %479 = vmatprep.subr.mxu0 0.0
        %480 = vmatpush1.msra.mxu0 0.0
        %481 = vmatprep.subr.mxu0 0.0
        %482 = vmatpush1.msra.mxu0 0.0
        %483 = vmatprep.subr.mxu0 0.0
        %484 = vmatpush1.msra.mxu0 0.0
        %485 = vmatprep.subr.mxu0 0.0
        %486 = vmatpush1.msra.mxu0 0.0
        %487 = vmatprep.subr.mxu0 0.0
        %488 = vmatpush1.msra.mxu0 0.0
        %489 = vmatprep.subr.mxu0 0.0
        %490 = vmatpush1.msra.mxu0 0.0
        %491 = vmatprep.subr.mxu0 0.0
        %492 = vmatpush1.msra.mxu0 0.0
        %493 = vmatprep.subr.mxu0 0.0
        %494 = vmatpush1.msra.mxu0 0.0
        %495 = vmatprep.subr.mxu0 0.0
        %496 = vmatpush1.msra.mxu0 0.0
        %497 = vmatprep.subr.mxu0 0.0
        %498 = vmatpush1.msra.mxu0 0.0
        %499 = vmatprep.subr.mxu0 0.0
        %500 = vmatpush1.msra.mxu0 0.0
        %501 = vmatprep.mubr.f32.mxu0 0.0
        %v502 = vand.u32 %v348, 4294901760
        %503 = vmatmul.mubr.f32.gmra.mrb[0].mxu0 %v502
        %v504 = vpop.f32.mrb[0].mxu0
        %v505 = vadd.f32 %v424, %v504
        %v506 = vpop.f32.mrb[0].mxu0
        %507 = vdwg.mxu0
        %508 = vmatprep.subr.mxu0 0.0
        %v509 = vand.u32 %v331, 4294901760
        %v510 = vsub.f32 %v331, %v509
        %511 = vmatpush1.msra.mxu0 %v510
        %512 = vmatprep.subr.mxu0 0.0
        %v513 = vand.u32 %v332, 4294901760
        %v514 = vsub.f32 %v332, %v513
        %515 = vmatpush1.msra.mxu0 %v514
        %516 = vmatprep.subr.mxu0 0.0
        %517 = vmatpush1.msra.mxu0 0.0
        %518 = vmatprep.subr.mxu0 0.0
        %519 = vmatpush1.msra.mxu0 0.0
        %520 = vmatprep.subr.mxu0 0.0
        %521 = vmatpush1.msra.mxu0 0.0
        %522 = vmatprep.subr.mxu0 0.0
        %523 = vmatpush1.msra.mxu0 0.0
        %524 = vmatprep.subr.mxu0 0.0
        %525 = vmatpush1.msra.mxu0 0.0
        %526 = vmatprep.subr.mxu0 0.0
        %527 = vmatpush1.msra.mxu0 0.0
        %528 = vmatprep.subr.mxu0 0.0
        %529 = vmatpush1.msra.mxu0 0.0
        %530 = vmatprep.subr.mxu0 0.0
        %531 = vmatpush1.msra.mxu0 0.0
        %532 = vmatprep.subr.mxu0 0.0
        %533 = vmatpush1.msra.mxu0 0.0
        %534 = vmatprep.subr.mxu0 0.0
        %535 = vmatpush1.msra.mxu0 0.0
        %536 = vmatprep.subr.mxu0 0.0
        %537 = vmatpush1.msra.mxu0 0.0
        %538 = vmatprep.subr.mxu0 0.0
        %539 = vmatpush1.msra.mxu0 0.0
        %540 = vmatprep.subr.mxu0 0.0
        %541 = vmatpush1.msra.mxu0 0.0
        %542 = vmatprep.subr.mxu0 0.0
        %543 = vmatpush1.msra.mxu0 0.0
        %544 = vmatprep.subr.mxu0 0.0
        %545 = vmatpush1.msra.mxu0 0.0
        %546 = vmatprep.subr.mxu0 0.0
        %547 = vmatpush1.msra.mxu0 0.0
        %548 = vmatprep.subr.mxu0 0.0
        %549 = vmatpush1.msra.mxu0 0.0
        %550 = vmatprep.subr.mxu0 0.0
        %551 = vmatpush1.msra.mxu0 0.0
        %552 = vmatprep.subr.mxu0 0.0
        %553 = vmatpush1.msra.mxu0 0.0
        %554 = vmatprep.subr.mxu0 0.0
        %555 = vmatpush1.msra.mxu0 0.0
        %556 = vmatprep.subr.mxu0 0.0
        %557 = vmatpush1.msra.mxu0 0.0
        %558 = vmatprep.subr.mxu0 0.0
        %559 = vmatpush1.msra.mxu0 0.0
        %560 = vmatprep.subr.mxu0 0.0
        %561 = vmatpush1.msra.mxu0 0.0
        %562 = vmatprep.subr.mxu0 0.0
        %563 = vmatpush1.msra.mxu0 0.0
        %564 = vmatprep.subr.mxu0 0.0
        %565 = vmatpush1.msra.mxu0 0.0
        %566 = vmatprep.subr.mxu0 0.0
        %567 = vmatpush1.msra.mxu0 0.0
        %568 = vmatprep.subr.mxu0 0.0
        %569 = vmatpush1.msra.mxu0 0.0
        %570 = vmatprep.subr.mxu0 0.0
        %571 = vmatpush1.msra.mxu0 0.0
        %572 = vmatprep.subr.mxu0 0.0
        %573 = vmatpush1.msra.mxu0 0.0
        %574 = vmatprep.subr.mxu0 0.0
        %575 = vmatpush1.msra.mxu0 0.0
        %576 = vmatprep.mubr.f32.mxu0 0.0
        %v577 = vand.u32 %v348, 4294901760
        %v578 = vsub.f32 %v348, %v577
        %579 = vmatmul.mubr.f32.gmra.mrb[0].mxu0 %v578
        %v580 = vpop.f32.mrb[0].mxu0
        %v581 = vadd.f32 %v505, %v580
        %v582 = vpop.f32.mrb[0].mxu0
        %583 = vdwg.mxu0
        %584 = vmatprep.subr.mxu0 0.0
        %v585 = vand.u32 %v331, 4294901760
        %586 = vmatpush1.msra.mxu0 %v585
        %587 = vmatprep.subr.mxu0 0.0
        %v588 = vand.u32 %v332, 4294901760
        %589 = vmatpush1.msra.mxu0 %v588
        %590 = vmatprep.subr.mxu0 0.0
        %591 = vmatpush1.msra.mxu0 0.0
        %592 = vmatprep.subr.mxu0 0.0
        %593 = vmatpush1.msra.mxu0 0.0
        %594 = vmatprep.subr.mxu0 0.0
        %595 = vmatpush1.msra.mxu0 0.0
        %596 = vmatprep.subr.mxu0 0.0
        %597 = vmatpush1.msra.mxu0 0.0
        %598 = vmatprep.subr.mxu0 0.0
        %599 = vmatpush1.msra.mxu0 0.0
        %600 = vmatprep.subr.mxu0 0.0
        %601 = vmatpush1.msra.mxu0 0.0
        %602 = vmatprep.subr.mxu0 0.0
        %603 = vmatpush1.msra.mxu0 0.0
        %604 = vmatprep.subr.mxu0 0.0
        %605 = vmatpush1.msra.mxu0 0.0
        %606 = vmatprep.subr.mxu0 0.0
        %607 = vmatpush1.msra.mxu0 0.0
        %608 = vmatprep.subr.mxu0 0.0
        %609 = vmatpush1.msra.mxu0 0.0
        %610 = vmatprep.subr.mxu0 0.0
        %611 = vmatpush1.msra.mxu0 0.0
        %612 = vmatprep.subr.mxu0 0.0
        %613 = vmatpush1.msra.mxu0 0.0
        %614 = vmatprep.subr.mxu0 0.0
        %615 = vmatpush1.msra.mxu0 0.0
        %616 = vmatprep.subr.mxu0 0.0
        %617 = vmatpush1.msra.mxu0 0.0
        %618 = vmatprep.subr.mxu0 0.0
        %619 = vmatpush1.msra.mxu0 0.0
        %620 = vmatprep.subr.mxu0 0.0
        %621 = vmatpush1.msra.mxu0 0.0
        %622 = vmatprep.subr.mxu0 0.0
        %623 = vmatpush1.msra.mxu0 0.0
        %624 = vmatprep.subr.mxu0 0.0
        %625 = vmatpush1.msra.mxu0 0.0
        %626 = vmatprep.subr.mxu0 0.0
        %627 = vmatpush1.msra.mxu0 0.0
        %628 = vmatprep.subr.mxu0 0.0
        %629 = vmatpush1.msra.mxu0 0.0
        %630 = vmatprep.subr.mxu0 0.0
        %631 = vmatpush1.msra.mxu0 0.0
        %632 = vmatprep.subr.mxu0 0.0
        %633 = vmatpush1.msra.mxu0 0.0
        %634 = vmatprep.subr.mxu0 0.0
        %635 = vmatpush1.msra.mxu0 0.0
        %636 = vmatprep.subr.mxu0 0.0
        %637 = vmatpush1.msra.mxu0 0.0
        %638 = vmatprep.subr.mxu0 0.0
        %639 = vmatpush1.msra.mxu0 0.0
        %640 = vmatprep.subr.mxu0 0.0
        %641 = vmatpush1.msra.mxu0 0.0
        %642 = vmatprep.subr.mxu0 0.0
        %643 = vmatpush1.msra.mxu0 0.0
        %644 = vmatprep.subr.mxu0 0.0
        %645 = vmatpush1.msra.mxu0 0.0
        %646 = vmatprep.subr.mxu0 0.0
        %647 = vmatpush1.msra.mxu0 0.0
        %648 = vmatprep.subr.mxu0 0.0
        %649 = vmatpush1.msra.mxu0 0.0
        %650 = vmatprep.mubr.f32.mxu0 0.0
        %v651 = vand.u32 %v348, 4294901760
        %v652 = vsub.f32 %v348, %v651
        %v653 = vand.u32 %v652, 4294901760
        %654 = vmatmul.mubr.f32.gmra.mrb[0].mxu0 %v653
        %v655 = vpop.f32.mrb[0].mxu0
        %v656 = vadd.f32 %v581, %v655
        %v657 = vpop.f32.mrb[0].mxu0
        %658 = vdwg.mxu0
        %659 = vmatprep.subr.mxu0 0.0
        %v660 = vand.u32 %v331, 4294901760
        %v661 = vsub.f32 %v331, %v660
        %v662 = vand.u32 %v661, 4294901760
        %663 = vmatpush1.msra.mxu0 %v662
        %664 = vmatprep.subr.mxu0 0.0
        %v665 = vand.u32 %v332, 4294901760
        %v666 = vsub.f32 %v332, %v665
        %v667 = vand.u32 %v666, 4294901760
        %668 = vmatpush1.msra.mxu0 %v667
        %669 = vmatprep.subr.mxu0 0.0
        %670 = vmatpush1.msra.mxu0 0.0
        %671 = vmatprep.subr.mxu0 0.0
        %672 = vmatpush1.msra.mxu0 0.0
        %673 = vmatprep.subr.mxu0 0.0
        %674 = vmatpush1.msra.mxu0 0.0
        %675 = vmatprep.subr.mxu0 0.0
        %676 = vmatpush1.msra.mxu0 0.0
        %677 = vmatprep.subr.mxu0 0.0
        %678 = vmatpush1.msra.mxu0 0.0
        %679 = vmatprep.subr.mxu0 0.0
        %680 = vmatpush1.msra.mxu0 0.0
        %681 = vmatprep.subr.mxu0 0.0
        %682 = vmatpush1.msra.mxu0 0.0
        %683 = vmatprep.subr.mxu0 0.0
        %684 = vmatpush1.msra.mxu0 0.0
        %685 = vmatprep.subr.mxu0 0.0
        %686 = vmatpush1.msra.mxu0 0.0
        %687 = vmatprep.subr.mxu0 0.0
        %688 = vmatpush1.msra.mxu0 0.0
        %689 = vmatprep.subr.mxu0 0.0
        %690 = vmatpush1.msra.mxu0 0.0
        %691 = vmatprep.subr.mxu0 0.0
        %692 = vmatpush1.msra.mxu0 0.0
        %693 = vmatprep.subr.mxu0 0.0
        %694 = vmatpush1.msra.mxu0 0.0
        %695 = vmatprep.subr.mxu0 0.0
        %696 = vmatpush1.msra.mxu0 0.0
        %697 = vmatprep.subr.mxu0 0.0
        %698 = vmatpush1.msra.mxu0 0.0
        %699 = vmatprep.subr.mxu0 0.0
        %700 = vmatpush1.msra.mxu0 0.0
        %701 = vmatprep.subr.mxu0 0.0
        %702 = vmatpush1.msra.mxu0 0.0
        %703 = vmatprep.subr.mxu0 0.0
        %704 = vmatpush1.msra.mxu0 0.0
        %705 = vmatprep.subr.mxu0 0.0
        %706 = vmatpush1.msra.mxu0 0.0
        %707 = vmatprep.subr.mxu0 0.0
        %708 = vmatpush1.msra.mxu0 0.0
        %709 = vmatprep.subr.mxu0 0.0
        %710 = vmatpush1.msra.mxu0 0.0
        %711 = vmatprep.subr.mxu0 0.0
        %712 = vmatpush1.msra.mxu0 0.0
        %713 = vmatprep.subr.mxu0 0.0
        %714 = vmatpush1.msra.mxu0 0.0
        %715 = vmatprep.subr.mxu0 0.0
        %716 = vmatpush1.msra.mxu0 0.0
        %717 = vmatprep.subr.mxu0 0.0
        %718 = vmatpush1.msra.mxu0 0.0
        %719 = vmatprep.subr.mxu0 0.0
        %720 = vmatpush1.msra.mxu0 0.0
        %721 = vmatprep.subr.mxu0 0.0
        %722 = vmatpush1.msra.mxu0 0.0
        %723 = vmatprep.subr.mxu0 0.0
        %724 = vmatpush1.msra.mxu0 0.0
        %725 = vmatprep.subr.mxu0 0.0
        %726 = vmatpush1.msra.mxu0 0.0
        %727 = vmatprep.subr.mxu0 0.0
        %728 = vmatpush1.msra.mxu0 0.0
        %729 = vmatprep.mubr.f32.mxu0 0.0
        %v730 = vand.u32 %v348, 4294901760
        %731 = vmatmul.mubr.f32.gmra.mrb[0].mxu0 %v730
        %v732 = vpop.f32.mrb[0].mxu0
        %v733 = vadd.f32 %v656, %v732
        %v734 = vpop.f32.mrb[0].mxu0
        %735 = vdwg.mxu0
        %736 = vmatprep.subr.mxu0 0.0
        %v737 = vand.u32 %v331, 4294901760
        %738 = vmatpush1.msra.mxu0 %v737
        %739 = vmatprep.subr.mxu0 0.0
        %v740 = vand.u32 %v332, 4294901760
        %741 = vmatpush1.msra.mxu0 %v740
        %742 = vmatprep.subr.mxu0 0.0
        %743 = vmatpush1.msra.mxu0 0.0
        %744 = vmatprep.subr.mxu0 0.0
        %745 = vmatpush1.msra.mxu0 0.0
        %746 = vmatprep.subr.mxu0 0.0
        %747 = vmatpush1.msra.mxu0 0.0
        %748 = vmatprep.subr.mxu0 0.0
        %749 = vmatpush1.msra.mxu0 0.0
        %750 = vmatprep.subr.mxu0 0.0
        %751 = vmatpush1.msra.mxu0 0.0
        %752 = vmatprep.subr.mxu0 0.0
        %753 = vmatpush1.msra.mxu0 0.0
        %754 = vmatprep.subr.mxu0 0.0
        %755 = vmatpush1.msra.mxu0 0.0
        %756 = vmatprep.subr.mxu0 0.0
        %757 = vmatpush1.msra.mxu0 0.0
        %758 = vmatprep.subr.mxu0 0.0
        %759 = vmatpush1.msra.mxu0 0.0
        %760 = vmatprep.subr.mxu0 0.0
        %761 = vmatpush1.msra.mxu0 0.0
        %762 = vmatprep.subr.mxu0 0.0
        %763 = vmatpush1.msra.mxu0 0.0
        %764 = vmatprep.subr.mxu0 0.0
        %765 = vmatpush1.msra.mxu0 0.0
        %766 = vmatprep.subr.mxu0 0.0
        %767 = vmatpush1.msra.mxu0 0.0
        %768 = vmatprep.subr.mxu0 0.0
        %769 = vmatpush1.msra.mxu0 0.0
        %770 = vmatprep.subr.mxu0 0.0
        %771 = vmatpush1.msra.mxu0 0.0
        %772 = vmatprep.subr.mxu0 0.0
        %773 = vmatpush1.msra.mxu0 0.0
        %774 = vmatprep.subr.mxu0 0.0
        %775 = vmatpush1.msra.mxu0 0.0
        %776 = vmatprep.subr.mxu0 0.0
        %777 = vmatpush1.msra.mxu0 0.0
        %778 = vmatprep.subr.mxu0 0.0
        %779 = vmatpush1.msra.mxu0 0.0
        %780 = vmatprep.subr.mxu0 0.0
        %781 = vmatpush1.msra.mxu0 0.0
        %782 = vmatprep.subr.mxu0 0.0
        %783 = vmatpush1.msra.mxu0 0.0
        %784 = vmatprep.subr.mxu0 0.0
        %785 = vmatpush1.msra.mxu0 0.0
        %786 = vmatprep.subr.mxu0 0.0
        %787 = vmatpush1.msra.mxu0 0.0
        %788 = vmatprep.subr.mxu0 0.0
        %789 = vmatpush1.msra.mxu0 0.0
        %790 = vmatprep.subr.mxu0 0.0
        %791 = vmatpush1.msra.mxu0 0.0
        %792 = vmatprep.subr.mxu0 0.0
        %793 = vmatpush1.msra.mxu0 0.0
        %794 = vmatprep.subr.mxu0 0.0
        %795 = vmatpush1.msra.mxu0 0.0
        %796 = vmatprep.subr.mxu0 0.0
        %797 = vmatpush1.msra.mxu0 0.0
        %798 = vmatprep.subr.mxu0 0.0
        %799 = vmatpush1.msra.mxu0 0.0
        %800 = vmatprep.subr.mxu0 0.0
        %801 = vmatpush1.msra.mxu0 0.0
        %802 = vmatprep.mubr.f32.mxu0 0.0
        %v803 = vand.u32 %v348, 4294901760
        %804 = vmatmul.mubr.f32.gmra.mrb[0].mxu0 %v803
        %v805 = vpop.f32.mrb[0].mxu0
        %v806 = vadd.f32 %v733, %v805
        %v807 = vpop.f32.mrb[0].mxu0
        %808 = vdwg.mxu0
        %809 = vmatprep.subr.mxu0 0.0
        %v810 = vand.u32 %v333, 4294901760
        %811 = vmatpush1.msra.mxu0 %v810
        %812 = vmatprep.subr.mxu0 0.0
        %v813 = vand.u32 %v334, 4294901760
        %814 = vmatpush1.msra.mxu0 %v813
        %815 = vmatprep.subr.mxu0 0.0
        %816 = vmatpush1.msra.mxu0 0.0
        %817 = vmatprep.subr.mxu0 0.0
        %818 = vmatpush1.msra.mxu0 0.0
        %819 = vmatprep.subr.mxu0 0.0
        %820 = vmatpush1.msra.mxu0 0.0
        %821 = vmatprep.subr.mxu0 0.0
        %822 = vmatpush1.msra.mxu0 0.0
        %823 = vmatprep.subr.mxu0 0.0
        %824 = vmatpush1.msra.mxu0 0.0
        %825 = vmatprep.subr.mxu0 0.0
        %826 = vmatpush1.msra.mxu0 0.0
        %827 = vmatprep.subr.mxu0 0.0
        %828 = vmatpush1.msra.mxu0 0.0
        %829 = vmatprep.subr.mxu0 0.0
        %830 = vmatpush1.msra.mxu0 0.0
        %831 = vmatprep.subr.mxu0 0.0
        %832 = vmatpush1.msra.mxu0 0.0
        %833 = vmatprep.subr.mxu0 0.0
        %834 = vmatpush1.msra.mxu0 0.0
        %835 = vmatprep.subr.mxu0 0.0
        %836 = vmatpush1.msra.mxu0 0.0
        %837 = vmatprep.subr.mxu0 0.0
        %838 = vmatpush1.msra.mxu0 0.0
        %839 = vmatprep.subr.mxu0 0.0
        %840 = vmatpush1.msra.mxu0 0.0
        %841 = vmatprep.subr.mxu0 0.0
        %842 = vmatpush1.msra.mxu0 0.0
        %843 = vmatprep.subr.mxu0 0.0
        %844 = vmatpush1.msra.mxu0 0.0
        %845 = vmatprep.subr.mxu0 0.0
        %846 = vmatpush1.msra.mxu0 0.0
        %847 = vmatprep.subr.mxu0 0.0
        %848 = vmatpush1.msra.mxu0 0.0
        %849 = vmatprep.subr.mxu0 0.0
        %850 = vmatpush1.msra.mxu0 0.0
        %851 = vmatprep.subr.mxu0 0.0
        %852 = vmatpush1.msra.mxu0 0.0
        %853 = vmatprep.subr.mxu0 0.0
        %854 = vmatpush1.msra.mxu0 0.0
        %855 = vmatprep.subr.mxu0 0.0
        %856 = vmatpush1.msra.mxu0 0.0
        %857 = vmatprep.subr.mxu0 0.0
        %858 = vmatpush1.msra.mxu0 0.0
        %859 = vmatprep.subr.mxu0 0.0
        %860 = vmatpush1.msra.mxu0 0.0
        %861 = vmatprep.subr.mxu0 0.0
        %862 = vmatpush1.msra.mxu0 0.0
        %863 = vmatprep.subr.mxu0 0.0
        %864 = vmatpush1.msra.mxu0 0.0
        %865 = vmatprep.subr.mxu0 0.0
        %866 = vmatpush1.msra.mxu0 0.0
        %867 = vmatprep.subr.mxu0 0.0
        %868 = vmatpush1.msra.mxu0 0.0
        %869 = vmatprep.subr.mxu0 0.0
        %870 = vmatpush1.msra.mxu0 0.0
        %871 = vmatprep.subr.mxu0 0.0
        %872 = vmatpush1.msra.mxu0 0.0
        %873 = vmatprep.subr.mxu0 0.0
        %874 = vmatpush1.msra.mxu0 0.0
        %875 = vmatprep.mubr.f32.mxu0 0.0
        %v876 = vand.u32 %v348, 4294901760
        %v877 = vsub.f32 %v348, %v876
        %v878 = vand.u32 %v877, 4294901760
        %v879 = vsub.f32 %v877, %v878
        %v880 = vand.u32 %v879, 4294901760
        %881 = vmatmul.mubr.f32.gmra.mrb[0].mxu0 %v880
        %v882 = vpop.f32.mrb[0].mxu0
        %v883 = vadd.f32 0.0, %v882
        %v884 = vpop.f32.mrb[0].mxu0
        %885 = vdwg.mxu0
        %886 = vmatprep.subr.mxu0 0.0
        %v887 = vand.u32 %v333, 4294901760
        %v888 = vsub.f32 %v333, %v887
        %v889 = vand.u32 %v888, 4294901760
        %v890 = vsub.f32 %v888, %v889
        %v891 = vand.u32 %v890, 4294901760
        %892 = vmatpush1.msra.mxu0 %v891
        %893 = vmatprep.subr.mxu0 0.0
        %v894 = vand.u32 %v334, 4294901760
        %v895 = vsub.f32 %v334, %v894
        %v896 = vand.u32 %v895, 4294901760
        %v897 = vsub.f32 %v895, %v896
        %v898 = vand.u32 %v897, 4294901760
        %899 = vmatpush1.msra.mxu0 %v898
        %900 = vmatprep.subr.mxu0 0.0
        %901 = vmatpush1.msra.mxu0 0.0
        %902 = vmatprep.subr.mxu0 0.0
        %903 = vmatpush1.msra.mxu0 0.0
        %904 = vmatprep.subr.mxu0 0.0
        %905 = vmatpush1.msra.mxu0 0.0
        %906 = vmatprep.subr.mxu0 0.0
        %907 = vmatpush1.msra.mxu0 0.0
        %908 = vmatprep.subr.mxu0 0.0
        %909 = vmatpush1.msra.mxu0 0.0
        %910 = vmatprep.subr.mxu0 0.0
        %911 = vmatpush1.msra.mxu0 0.0
        %912 = vmatprep.subr.mxu0 0.0
        %913 = vmatpush1.msra.mxu0 0.0
        %914 = vmatprep.subr.mxu0 0.0
        %915 = vmatpush1.msra.mxu0 0.0
        %916 = vmatprep.subr.mxu0 0.0
        %917 = vmatpush1.msra.mxu0 0.0
        %918 = vmatprep.subr.mxu0 0.0
        %919 = vmatpush1.msra.mxu0 0.0
        %920 = vmatprep.subr.mxu0 0.0
        %921 = vmatpush1.msra.mxu0 0.0
        %922 = vmatprep.subr.mxu0 0.0
        %923 = vmatpush1.msra.mxu0 0.0
        %924 = vmatprep.subr.mxu0 0.0
        %925 = vmatpush1.msra.mxu0 0.0
        %926 = vmatprep.subr.mxu0 0.0
        %927 = vmatpush1.msra.mxu0 0.0
        %928 = vmatprep.subr.mxu0 0.0
        %929 = vmatpush1.msra.mxu0 0.0
        %930 = vmatprep.subr.mxu0 0.0
        %931 = vmatpush1.msra.mxu0 0.0
        %932 = vmatprep.subr.mxu0 0.0
        %933 = vmatpush1.msra.mxu0 0.0
        %934 = vmatprep.subr.mxu0 0.0
        %935 = vmatpush1.msra.mxu0 0.0
        %936 = vmatprep.subr.mxu0 0.0
        %937 = vmatpush1.msra.mxu0 0.0
        %938 = vmatprep.subr.mxu0 0.0
        %939 = vmatpush1.msra.mxu0 0.0
        %940 = vmatprep.subr.mxu0 0.0
        %941 = vmatpush1.msra.mxu0 0.0
        %942 = vmatprep.subr.mxu0 0.0
        %943 = vmatpush1.msra.mxu0 0.0
        %944 = vmatprep.subr.mxu0 0.0
        %945 = vmatpush1.msra.mxu0 0.0
        %946 = vmatprep.subr.mxu0 0.0
        %947 = vmatpush1.msra.mxu0 0.0
        %948 = vmatprep.subr.mxu0 0.0
        %949 = vmatpush1.msra.mxu0 0.0
        %950 = vmatprep.subr.mxu0 0.0
        %951 = vmatpush1.msra.mxu0 0.0
        %952 = vmatprep.subr.mxu0 0.0
        %953 = vmatpush1.msra.mxu0 0.0
        %954 = vmatprep.subr.mxu0 0.0
        %955 = vmatpush1.msra.mxu0 0.0
        %956 = vmatprep.subr.mxu0 0.0
        %957 = vmatpush1.msra.mxu0 0.0
        %958 = vmatprep.subr.mxu0 0.0
        %959 = vmatpush1.msra.mxu0 0.0
        %960 = vmatprep.mubr.f32.mxu0 0.0
        %v961 = vand.u32 %v348, 4294901760
        %962 = vmatmul.mubr.f32.gmra.mrb[0].mxu0 %v961
        %v963 = vpop.f32.mrb[0].mxu0
        %v964 = vadd.f32 %v883, %v963
        %v965 = vpop.f32.mrb[0].mxu0
        %966 = vdwg.mxu0
        %967 = vmatprep.subr.mxu0 0.0
        %v968 = vand.u32 %v333, 4294901760
        %v969 = vsub.f32 %v333, %v968
        %970 = vmatpush1.msra.mxu0 %v969
        %971 = vmatprep.subr.mxu0 0.0
        %v972 = vand.u32 %v334, 4294901760
        %v973 = vsub.f32 %v334, %v972
        %974 = vmatpush1.msra.mxu0 %v973
        %975 = vmatprep.subr.mxu0 0.0
        %976 = vmatpush1.msra.mxu0 0.0
        %977 = vmatprep.subr.mxu0 0.0
        %978 = vmatpush1.msra.mxu0 0.0
        %979 = vmatprep.subr.mxu0 0.0
        %980 = vmatpush1.msra.mxu0 0.0
        %981 = vmatprep.subr.mxu0 0.0
        %982 = vmatpush1.msra.mxu0 0.0
        %983 = vmatprep.subr.mxu0 0.0
        %984 = vmatpush1.msra.mxu0 0.0
        %985 = vmatprep.subr.mxu0 0.0
        %986 = vmatpush1.msra.mxu0 0.0
        %987 = vmatprep.subr.mxu0 0.0
        %988 = vmatpush1.msra.mxu0 0.0
        %989 = vmatprep.subr.mxu0 0.0
        %990 = vmatpush1.msra.mxu0 0.0
        %991 = vmatprep.subr.mxu0 0.0
        %992 = vmatpush1.msra.mxu0 0.0
        %993 = vmatprep.subr.mxu0 0.0
        %994 = vmatpush1.msra.mxu0 0.0
        %995 = vmatprep.subr.mxu0 0.0
        %996 = vmatpush1.msra.mxu0 0.0
        %997 = vmatprep.subr.mxu0 0.0
        %998 = vmatpush1.msra.mxu0 0.0
        %999 = vmatprep.subr.mxu0 0.0
        %1000 = vmatpush1.msra.mxu0 0.0
        %1001 = vmatprep.subr.mxu0 0.0
        %1002 = vmatpush1.msra.mxu0 0.0
        %1003 = vmatprep.subr.mxu0 0.0
        %1004 = vmatpush1.msra.mxu0 0.0
        %1005 = vmatprep.subr.mxu0 0.0
        %1006 = vmatpush1.msra.mxu0 0.0
        %1007 = vmatprep.subr.mxu0 0.0
        %1008 = vmatpush1.msra.mxu0 0.0
        %1009 = vmatprep.subr.mxu0 0.0
        %1010 = vmatpush1.msra.mxu0 0.0
        %1011 = vmatprep.subr.mxu0 0.0
        %1012 = vmatpush1.msra.mxu0 0.0
        %1013 = vmatprep.subr.mxu0 0.0
        %1014 = vmatpush1.msra.mxu0 0.0
        %1015 = vmatprep.subr.mxu0 0.0
        %1016 = vmatpush1.msra.mxu0 0.0
        %1017 = vmatprep.subr.mxu0 0.0
        %1018 = vmatpush1.msra.mxu0 0.0
        %1019 = vmatprep.subr.mxu0 0.0
        %1020 = vmatpush1.msra.mxu0 0.0
        %1021 = vmatprep.subr.mxu0 0.0
        %1022 = vmatpush1.msra.mxu0 0.0
        %1023 = vmatprep.subr.mxu0 0.0
        %1024 = vmatpush1.msra.mxu0 0.0
        %1025 = vmatprep.subr.mxu0 0.0
        %1026 = vmatpush1.msra.mxu0 0.0
        %1027 = vmatprep.subr.mxu0 0.0
        %1028 = vmatpush1.msra.mxu0 0.0
        %1029 = vmatprep.subr.mxu0 0.0
        %1030 = vmatpush1.msra.mxu0 0.0
        %1031 = vmatprep.subr.mxu0 0.0
        %1032 = vmatpush1.msra.mxu0 0.0
        %1033 = vmatprep.subr.mxu0 0.0
        %1034 = vmatpush1.msra.mxu0 0.0
        %1035 = vmatprep.mubr.f32.mxu0 0.0
        %v1036 = vand.u32 %v348, 4294901760
        %v1037 = vsub.f32 %v348, %v1036
        %1038 = vmatmul.mubr.f32.gmra.mrb[0].mxu0 %v1037
        %v1039 = vpop.f32.mrb[0].mxu0
        %v1040 = vadd.f32 %v964, %v1039
        %v1041 = vpop.f32.mrb[0].mxu0
        %1042 = vdwg.mxu0
        %1043 = vmatprep.subr.mxu0 0.0
        %v1044 = vand.u32 %v333, 4294901760
        %1045 = vmatpush1.msra.mxu0 %v1044
        %1046 = vmatprep.subr.mxu0 0.0
        %v1047 = vand.u32 %v334, 4294901760
        %1048 = vmatpush1.msra.mxu0 %v1047
        %1049 = vmatprep.subr.mxu0 0.0
        %1050 = vmatpush1.msra.mxu0 0.0
        %1051 = vmatprep.subr.mxu0 0.0
        %1052 = vmatpush1.msra.mxu0 0.0
        %1053 = vmatprep.subr.mxu0 0.0
        %1054 = vmatpush1.msra.mxu0 0.0
        %1055 = vmatprep.subr.mxu0 0.0
        %1056 = vmatpush1.msra.mxu0 0.0
        %1057 = vmatprep.subr.mxu0 0.0
        %1058 = vmatpush1.msra.mxu0 0.0
        %1059 = vmatprep.subr.mxu0 0.0
        %1060 = vmatpush1.msra.mxu0 0.0
        %1061 = vmatprep.subr.mxu0 0.0
        %1062 = vmatpush1.msra.mxu0 0.0
        %1063 = vmatprep.subr.mxu0 0.0
        %1064 = vmatpush1.msra.mxu0 0.0
        %1065 = vmatprep.subr.mxu0 0.0
        %1066 = vmatpush1.msra.mxu0 0.0
        %1067 = vmatprep.subr.mxu0 0.0
        %1068 = vmatpush1.msra.mxu0 0.0
        %1069 = vmatprep.subr.mxu0 0.0
        %1070 = vmatpush1.msra.mxu0 0.0
        %1071 = vmatprep.subr.mxu0 0.0
        %1072 = vmatpush1.msra.mxu0 0.0
        %1073 = vmatprep.subr.mxu0 0.0
        %1074 = vmatpush1.msra.mxu0 0.0
        %1075 = vmatprep.subr.mxu0 0.0
        %1076 = vmatpush1.msra.mxu0 0.0
        %1077 = vmatprep.subr.mxu0 0.0
        %1078 = vmatpush1.msra.mxu0 0.0
        %1079 = vmatprep.subr.mxu0 0.0
        %1080 = vmatpush1.msra.mxu0 0.0
        %1081 = vmatprep.subr.mxu0 0.0
        %1082 = vmatpush1.msra.mxu0 0.0
        %1083 = vmatprep.subr.mxu0 0.0
        %1084 = vmatpush1.msra.mxu0 0.0
        %1085 = vmatprep.subr.mxu0 0.0
        %1086 = vmatpush1.msra.mxu0 0.0
        %1087 = vmatprep.subr.mxu0 0.0
        %1088 = vmatpush1.msra.mxu0 0.0
        %1089 = vmatprep.subr.mxu0 0.0
        %1090 = vmatpush1.msra.mxu0 0.0
        %1091 = vmatprep.subr.mxu0 0.0
        %1092 = vmatpush1.msra.mxu0 0.0
        %1093 = vmatprep.subr.mxu0 0.0
        %1094 = vmatpush1.msra.mxu0 0.0
        %1095 = vmatprep.subr.mxu0 0.0
        %1096 = vmatpush1.msra.mxu0 0.0
        %1097 = vmatprep.subr.mxu0 0.0
        %1098 = vmatpush1.msra.mxu0 0.0
        %1099 = vmatprep.subr.mxu0 0.0
        %1100 = vmatpush1.msra.mxu0 0.0
        %1101 = vmatprep.subr.mxu0 0.0
        %1102 = vmatpush1.msra.mxu0 0.0
        %1103 = vmatprep.subr.mxu0 0.0
        %1104 = vmatpush1.msra.mxu0 0.0
        %1105 = vmatprep.subr.mxu0 0.0
        %1106 = vmatpush1.msra.mxu0 0.0
        %1107 = vmatprep.subr.mxu0 0.0
        %1108 = vmatpush1.msra.mxu0 0.0
        %1109 = vmatprep.mubr.f32.mxu0 0.0
        %v1110 = vand.u32 %v348, 4294901760
        %v1111 = vsub.f32 %v348, %v1110
        %v1112 = vand.u32 %v1111, 4294901760
        %1113 = vmatmul.mubr.f32.gmra.mrb[0].mxu0 %v1112
        %v1114 = vpop.f32.mrb[0].mxu0
        %v1115 = vadd.f32 %v1040, %v1114
        %v1116 = vpop.f32.mrb[0].mxu0
        %1117 = vdwg.mxu0
        %1118 = vmatprep.subr.mxu0 0.0
        %v1119 = vand.u32 %v333, 4294901760
        %v1120 = vsub.f32 %v333, %v1119
        %v1121 = vand.u32 %v1120, 4294901760
        %1122 = vmatpush1.msra.mxu0 %v1121
        %1123 = vmatprep.subr.mxu0 0.0
        %v1124 = vand.u32 %v334, 4294901760
        %v1125 = vsub.f32 %v334, %v1124
        %v1126 = vand.u32 %v1125, 4294901760
        %1127 = vmatpush1.msra.mxu0 %v1126
        %1128 = vmatprep.subr.mxu0 0.0
        %1129 = vmatpush1.msra.mxu0 0.0
        %1130 = vmatprep.subr.mxu0 0.0
        %1131 = vmatpush1.msra.mxu0 0.0
        %1132 = vmatprep.subr.mxu0 0.0
        %1133 = vmatpush1.msra.mxu0 0.0
        %1134 = vmatprep.subr.mxu0 0.0
        %1135 = vmatpush1.msra.mxu0 0.0
        %1136 = vmatprep.subr.mxu0 0.0
        %1137 = vmatpush1.msra.mxu0 0.0
        %1138 = vmatprep.subr.mxu0 0.0
        %1139 = vmatpush1.msra.mxu0 0.0
        %1140 = vmatprep.subr.mxu0 0.0
        %1141 = vmatpush1.msra.mxu0 0.0
        %1142 = vmatprep.subr.mxu0 0.0
        %1143 = vmatpush1.msra.mxu0 0.0
        %1144 = vmatprep.subr.mxu0 0.0
        %1145 = vmatpush1.msra.mxu0 0.0
        %1146 = vmatprep.subr.mxu0 0.0
        %1147 = vmatpush1.msra.mxu0 0.0
        %1148 = vmatprep.subr.mxu0 0.0
        %1149 = vmatpush1.msra.mxu0 0.0
        %1150 = vmatprep.subr.mxu0 0.0
        %1151 = vmatpush1.msra.mxu0 0.0
        %1152 = vmatprep.subr.mxu0 0.0
        %1153 = vmatpush1.msra.mxu0 0.0
        %1154 = vmatprep.subr.mxu0 0.0
        %1155 = vmatpush1.msra.mxu0 0.0
        %1156 = vmatprep.subr.mxu0 0.0
        %1157 = vmatpush1.msra.mxu0 0.0
        %1158 = vmatprep.subr.mxu0 0.0
        %1159 = vmatpush1.msra.mxu0 0.0
        %1160 = vmatprep.subr.mxu0 0.0
        %1161 = vmatpush1.msra.mxu0 0.0
        %1162 = vmatprep.subr.mxu0 0.0
        %1163 = vmatpush1.msra.mxu0 0.0
        %1164 = vmatprep.subr.mxu0 0.0
        %1165 = vmatpush1.msra.mxu0 0.0
        %1166 = vmatprep.subr.mxu0 0.0
        %1167 = vmatpush1.msra.mxu0 0.0
        %1168 = vmatprep.subr.mxu0 0.0
        %1169 = vmatpush1.msra.mxu0 0.0
        %1170 = vmatprep.subr.mxu0 0.0
        %1171 = vmatpush1.msra.mxu0 0.0
        %1172 = vmatprep.subr.mxu0 0.0
        %1173 = vmatpush1.msra.mxu0 0.0
        %1174 = vmatprep.subr.mxu0 0.0
        %1175 = vmatpush1.msra.mxu0 0.0
        %1176 = vmatprep.subr.mxu0 0.0
        %1177 = vmatpush1.msra.mxu0 0.0
        %1178 = vmatprep.subr.mxu0 0.0
        %1179 = vmatpush1.msra.mxu0 0.0
        %1180 = vmatprep.subr.mxu0 0.0
        %1181 = vmatpush1.msra.mxu0 0.0
        %1182 = vmatprep.subr.mxu0 0.0
        %1183 = vmatpush1.msra.mxu0 0.0
        %1184 = vmatprep.subr.mxu0 0.0
        %1185 = vmatpush1.msra.mxu0 0.0
        %1186 = vmatprep.subr.mxu0 0.0
        %1187 = vmatpush1.msra.mxu0 0.0
        %1188 = vmatprep.mubr.f32.mxu0 0.0
        %v1189 = vand.u32 %v348, 4294901760
        %1190 = vmatmul.mubr.f32.gmra.mrb[0].mxu0 %v1189
        %v1191 = vpop.f32.mrb[0].mxu0
        %v1192 = vadd.f32 %v1115, %v1191
        %v1193 = vpop.f32.mrb[0].mxu0
        %1194 = vdwg.mxu0
        %1195 = vmatprep.subr.mxu0 0.0
        %v1196 = vand.u32 %v333, 4294901760
        %1197 = vmatpush1.msra.mxu0 %v1196
        %1198 = vmatprep.subr.mxu0 0.0
        %v1199 = vand.u32 %v334, 4294901760
        %1200 = vmatpush1.msra.mxu0 %v1199
        %1201 = vmatprep.subr.mxu0 0.0
        %1202 = vmatpush1.msra.mxu0 0.0
        %1203 = vmatprep.subr.mxu0 0.0
        %1204 = vmatpush1.msra.mxu0 0.0
        %1205 = vmatprep.subr.mxu0 0.0
        %1206 = vmatpush1.msra.mxu0 0.0
        %1207 = vmatprep.subr.mxu0 0.0
        %1208 = vmatpush1.msra.mxu0 0.0
        %1209 = vmatprep.subr.mxu0 0.0
        %1210 = vmatpush1.msra.mxu0 0.0
        %1211 = vmatprep.subr.mxu0 0.0
        %1212 = vmatpush1.msra.mxu0 0.0
        %1213 = vmatprep.subr.mxu0 0.0
        %1214 = vmatpush1.msra.mxu0 0.0
        %1215 = vmatprep.subr.mxu0 0.0
        %1216 = vmatpush1.msra.mxu0 0.0
        %1217 = vmatprep.subr.mxu0 0.0
        %1218 = vmatpush1.msra.mxu0 0.0
        %1219 = vmatprep.subr.mxu0 0.0
        %1220 = vmatpush1.msra.mxu0 0.0
        %1221 = vmatprep.subr.mxu0 0.0
        %1222 = vmatpush1.msra.mxu0 0.0
        %1223 = vmatprep.subr.mxu0 0.0
        %1224 = vmatpush1.msra.mxu0 0.0
        %1225 = vmatprep.subr.mxu0 0.0
        %1226 = vmatpush1.msra.mxu0 0.0
        %1227 = vmatprep.subr.mxu0 0.0
        %1228 = vmatpush1.msra.mxu0 0.0
        %1229 = vmatprep.subr.mxu0 0.0
        %1230 = vmatpush1.msra.mxu0 0.0
        %1231 = vmatprep.subr.mxu0 0.0
        %1232 = vmatpush1.msra.mxu0 0.0
        %1233 = vmatprep.subr.mxu0 0.0
        %1234 = vmatpush1.msra.mxu0 0.0
        %1235 = vmatprep.subr.mxu0 0.0
        %1236 = vmatpush1.msra.mxu0 0.0
        %1237 = vmatprep.subr.mxu0 0.0
        %1238 = vmatpush1.msra.mxu0 0.0
        %1239 = vmatprep.subr.mxu0 0.0
        %1240 = vmatpush1.msra.mxu0 0.0
        %1241 = vmatprep.subr.mxu0 0.0
        %1242 = vmatpush1.msra.mxu0 0.0
        %1243 = vmatprep.subr.mxu0 0.0
        %1244 = vmatpush1.msra.mxu0 0.0
        %1245 = vmatprep.subr.mxu0 0.0
        %1246 = vmatpush1.msra.mxu0 0.0
        %1247 = vmatprep.subr.mxu0 0.0
        %1248 = vmatpush1.msra.mxu0 0.0
        %1249 = vmatprep.subr.mxu0 0.0
        %1250 = vmatpush1.msra.mxu0 0.0
        %1251 = vmatprep.subr.mxu0 0.0
        %1252 = vmatpush1.msra.mxu0 0.0
        %1253 = vmatprep.subr.mxu0 0.0
        %1254 = vmatpush1.msra.mxu0 0.0
        %1255 = vmatprep.subr.mxu0 0.0
        %1256 = vmatpush1.msra.mxu0 0.0
        %1257 = vmatprep.subr.mxu0 0.0
        %1258 = vmatpush1.msra.mxu0 0.0
        %1259 = vmatprep.subr.mxu0 0.0
        %1260 = vmatpush1.msra.mxu0 0.0
        %1261 = vmatprep.mubr.f32.mxu0 0.0
        %v1262 = vand.u32 %v348, 4294901760
        %1263 = vmatmul.mubr.f32.gmra.mrb[0].mxu0 %v1262
        %v1264 = vpop.f32.mrb[0].mxu0
        %v1265 = vadd.f32 %v1192, %v1264
        %v1266 = vpop.f32.mrb[0].mxu0
        %1267 = vdwg.mxu0
        %1268 = vmatprep.subr.mxu0 0.0
        %v1269 = vand.u32 %v335, 4294901760
        %1270 = vmatpush1.msra.mxu0 %v1269
        %1271 = vmatprep.subr.mxu0 0.0
        %v1272 = vand.u32 %v336, 4294901760
        %1273 = vmatpush1.msra.mxu0 %v1272
        %1274 = vmatprep.subr.mxu0 0.0
        %1275 = vmatpush1.msra.mxu0 0.0
        %1276 = vmatprep.subr.mxu0 0.0
        %1277 = vmatpush1.msra.mxu0 0.0
        %1278 = vmatprep.subr.mxu0 0.0
        %1279 = vmatpush1.msra.mxu0 0.0
        %1280 = vmatprep.subr.mxu0 0.0
        %1281 = vmatpush1.msra.mxu0 0.0
        %1282 = vmatprep.subr.mxu0 0.0
        %1283 = vmatpush1.msra.mxu0 0.0
        %1284 = vmatprep.subr.mxu0 0.0
        %1285 = vmatpush1.msra.mxu0 0.0
        %1286 = vmatprep.subr.mxu0 0.0
        %1287 = vmatpush1.msra.mxu0 0.0
        %1288 = vmatprep.subr.mxu0 0.0
        %1289 = vmatpush1.msra.mxu0 0.0
        %1290 = vmatprep.subr.mxu0 0.0
        %1291 = vmatpush1.msra.mxu0 0.0
        %1292 = vmatprep.subr.mxu0 0.0
        %1293 = vmatpush1.msra.mxu0 0.0
        %1294 = vmatprep.subr.mxu0 0.0
        %1295 = vmatpush1.msra.mxu0 0.0
        %1296 = vmatprep.subr.mxu0 0.0
        %1297 = vmatpush1.msra.mxu0 0.0
        %1298 = vmatprep.subr.mxu0 0.0
        %1299 = vmatpush1.msra.mxu0 0.0
        %1300 = vmatprep.subr.mxu0 0.0
        %1301 = vmatpush1.msra.mxu0 0.0
        %1302 = vmatprep.subr.mxu0 0.0
        %1303 = vmatpush1.msra.mxu0 0.0
        %1304 = vmatprep.subr.mxu0 0.0
        %1305 = vmatpush1.msra.mxu0 0.0
        %1306 = vmatprep.subr.mxu0 0.0
        %1307 = vmatpush1.msra.mxu0 0.0
        %1308 = vmatprep.subr.mxu0 0.0
        %1309 = vmatpush1.msra.mxu0 0.0
        %1310 = vmatprep.subr.mxu0 0.0
        %1311 = vmatpush1.msra.mxu0 0.0
        %1312 = vmatprep.subr.mxu0 0.0
        %1313 = vmatpush1.msra.mxu0 0.0
        %1314 = vmatprep.subr.mxu0 0.0
        %1315 = vmatpush1.msra.mxu0 0.0
        %1316 = vmatprep.subr.mxu0 0.0
        %1317 = vmatpush1.msra.mxu0 0.0
        %1318 = vmatprep.subr.mxu0 0.0
        %1319 = vmatpush1.msra.mxu0 0.0
        %1320 = vmatprep.subr.mxu0 0.0
        %1321 = vmatpush1.msra.mxu0 0.0
        %1322 = vmatprep.subr.mxu0 0.0
        %1323 = vmatpush1.msra.mxu0 0.0
        %1324 = vmatprep.subr.mxu0 0.0
        %1325 = vmatpush1.msra.mxu0 0.0
        %1326 = vmatprep.subr.mxu0 0.0
        %1327 = vmatpush1.msra.mxu0 0.0
        %1328 = vmatprep.subr.mxu0 0.0
        %1329 = vmatpush1.msra.mxu0 0.0
        %1330 = vmatprep.subr.mxu0 0.0
        %1331 = vmatpush1.msra.mxu0 0.0
        %1332 = vmatprep.subr.mxu0 0.0
        %1333 = vmatpush1.msra.mxu0 0.0
        %1334 = vmatprep.mubr.f32.mxu0 0.0
        %v1335 = vand.u32 %v348, 4294901760
        %v1336 = vsub.f32 %v348, %v1335
        %v1337 = vand.u32 %v1336, 4294901760
        %v1338 = vsub.f32 %v1336, %v1337
        %v1339 = vand.u32 %v1338, 4294901760
        %1340 = vmatmul.mubr.f32.gmra.mrb[0].mxu0 %v1339
        %v1341 = vpop.f32.mrb[0].mxu0
        %v1342 = vadd.f32 0.0, %v1341
        %v1343 = vpop.f32.mrb[0].mxu0
        %1344 = vdwg.mxu0
        %1345 = vmatprep.subr.mxu0 0.0
        %v1346 = vand.u32 %v335, 4294901760
        %v1347 = vsub.f32 %v335, %v1346
        %v1348 = vand.u32 %v1347, 4294901760
        %v1349 = vsub.f32 %v1347, %v1348
        %v1350 = vand.u32 %v1349, 4294901760
        %1351 = vmatpush1.msra.mxu0 %v1350
        %1352 = vmatprep.subr.mxu0 0.0
        %v1353 = vand.u32 %v336, 4294901760
        %v1354 = vsub.f32 %v336, %v1353
        %v1355 = vand.u32 %v1354, 4294901760
        %v1356 = vsub.f32 %v1354, %v1355
        %v1357 = vand.u32 %v1356, 4294901760
        %1358 = vmatpush1.msra.mxu0 %v1357
        %1359 = vmatprep.subr.mxu0 0.0
        %1360 = vmatpush1.msra.mxu0 0.0
        %1361 = vmatprep.subr.mxu0 0.0
        %1362 = vmatpush1.msra.mxu0 0.0
        %1363 = vmatprep.subr.mxu0 0.0
        %1364 = vmatpush1.msra.mxu0 0.0
        %1365 = vmatprep.subr.mxu0 0.0
        %1366 = vmatpush1.msra.mxu0 0.0
        %1367 = vmatprep.subr.mxu0 0.0
        %1368 = vmatpush1.msra.mxu0 0.0
        %1369 = vmatprep.subr.mxu0 0.0
        %1370 = vmatpush1.msra.mxu0 0.0
        %1371 = vmatprep.subr.mxu0 0.0
        %1372 = vmatpush1.msra.mxu0 0.0
        %1373 = vmatprep.subr.mxu0 0.0
        %1374 = vmatpush1.msra.mxu0 0.0
        %1375 = vmatprep.subr.mxu0 0.0
        %1376 = vmatpush1.msra.mxu0 0.0
        %1377 = vmatprep.subr.mxu0 0.0
        %1378 = vmatpush1.msra.mxu0 0.0
        %1379 = vmatprep.subr.mxu0 0.0
        %1380 = vmatpush1.msra.mxu0 0.0
        %1381 = vmatprep.subr.mxu0 0.0
        %1382 = vmatpush1.msra.mxu0 0.0
        %1383 = vmatprep.subr.mxu0 0.0
        %1384 = vmatpush1.msra.mxu0 0.0
        %1385 = vmatprep.subr.mxu0 0.0
        %1386 = vmatpush1.msra.mxu0 0.0
        %1387 = vmatprep.subr.mxu0 0.0
        %1388 = vmatpush1.msra.mxu0 0.0
        %1389 = vmatprep.subr.mxu0 0.0
        %1390 = vmatpush1.msra.mxu0 0.0
        %1391 = vmatprep.subr.mxu0 0.0
        %1392 = vmatpush1.msra.mxu0 0.0
        %1393 = vmatprep.subr.mxu0 0.0
        %1394 = vmatpush1.msra.mxu0 0.0
        %1395 = vmatprep.subr.mxu0 0.0
        %1396 = vmatpush1.msra.mxu0 0.0
        %1397 = vmatprep.subr.mxu0 0.0
        %1398 = vmatpush1.msra.mxu0 0.0
        %1399 = vmatprep.subr.mxu0 0.0
        %1400 = vmatpush1.msra.mxu0 0.0
        %1401 = vmatprep.subr.mxu0 0.0
        %1402 = vmatpush1.msra.mxu0 0.0
        %1403 = vmatprep.subr.mxu0 0.0
        %1404 = vmatpush1.msra.mxu0 0.0
        %1405 = vmatprep.subr.mxu0 0.0
        %1406 = vmatpush1.msra.mxu0 0.0
        %1407 = vmatprep.subr.mxu0 0.0
        %1408 = vmatpush1.msra.mxu0 0.0
        %1409 = vmatprep.subr.mxu0 0.0
        %1410 = vmatpush1.msra.mxu0 0.0
        %1411 = vmatprep.subr.mxu0 0.0
        %1412 = vmatpush1.msra.mxu0 0.0
        %1413 = vmatprep.subr.mxu0 0.0
        %1414 = vmatpush1.msra.mxu0 0.0
        %1415 = vmatprep.subr.mxu0 0.0
        %1416 = vmatpush1.msra.mxu0 0.0
        %1417 = vmatprep.subr.mxu0 0.0
        %1418 = vmatpush1.msra.mxu0 0.0
        %1419 = vmatprep.mubr.f32.mxu0 0.0
        %v1420 = vand.u32 %v348, 4294901760
        %1421 = vmatmul.mubr.f32.gmra.mrb[0].mxu0 %v1420
        %v1422 = vpop.f32.mrb[0].mxu0
        %v1423 = vadd.f32 %v1342, %v1422
        %v1424 = vpop.f32.mrb[0].mxu0
        %1425 = vdwg.mxu0
        %1426 = vmatprep.subr.mxu0 0.0
        %v1427 = vand.u32 %v335, 4294901760
        %v1428 = vsub.f32 %v335, %v1427
        %1429 = vmatpush1.msra.mxu0 %v1428
        %1430 = vmatprep.subr.mxu0 0.0
        %v1431 = vand.u32 %v336, 4294901760
        %v1432 = vsub.f32 %v336, %v1431
        %1433 = vmatpush1.msra.mxu0 %v1432
        %1434 = vmatprep.subr.mxu0 0.0
        %1435 = vmatpush1.msra.mxu0 0.0
        %1436 = vmatprep.subr.mxu0 0.0
        %1437 = vmatpush1.msra.mxu0 0.0
        %1438 = vmatprep.subr.mxu0 0.0
        %1439 = vmatpush1.msra.mxu0 0.0
        %1440 = vmatprep.subr.mxu0 0.0
        %1441 = vmatpush1.msra.mxu0 0.0
        %1442 = vmatprep.subr.mxu0 0.0
        %1443 = vmatpush1.msra.mxu0 0.0
        %1444 = vmatprep.subr.mxu0 0.0
        %1445 = vmatpush1.msra.mxu0 0.0
        %1446 = vmatprep.subr.mxu0 0.0
        %1447 = vmatpush1.msra.mxu0 0.0
        %1448 = vmatprep.subr.mxu0 0.0
        %1449 = vmatpush1.msra.mxu0 0.0
        %1450 = vmatprep.subr.mxu0 0.0
        %1451 = vmatpush1.msra.mxu0 0.0
        %1452 = vmatprep.subr.mxu0 0.0
        %1453 = vmatpush1.msra.mxu0 0.0
        %1454 = vmatprep.subr.mxu0 0.0
        %1455 = vmatpush1.msra.mxu0 0.0
        %1456 = vmatprep.subr.mxu0 0.0
        %1457 = vmatpush1.msra.mxu0 0.0
        %1458 = vmatprep.subr.mxu0 0.0
        %1459 = vmatpush1.msra.mxu0 0.0
        %1460 = vmatprep.subr.mxu0 0.0
        %1461 = vmatpush1.msra.mxu0 0.0
        %1462 = vmatprep.subr.mxu0 0.0
        %1463 = vmatpush1.msra.mxu0 0.0
        %1464 = vmatprep.subr.mxu0 0.0
        %1465 = vmatpush1.msra.mxu0 0.0
        %1466 = vmatprep.subr.mxu0 0.0
        %1467 = vmatpush1.msra.mxu0 0.0
        %1468 = vmatprep.subr.mxu0 0.0
        %1469 = vmatpush1.msra.mxu0 0.0
        %1470 = vmatprep.subr.mxu0 0.0
        %1471 = vmatpush1.msra.mxu0 0.0
        %1472 = vmatprep.subr.mxu0 0.0
        %1473 = vmatpush1.msra.mxu0 0.0
        %1474 = vmatprep.subr.mxu0 0.0
        %1475 = vmatpush1.msra.mxu0 0.0
        %1476 = vmatprep.subr.mxu0 0.0
        %1477 = vmatpush1.msra.mxu0 0.0
        %1478 = vmatprep.subr.mxu0 0.0
        %1479 = vmatpush1.msra.mxu0 0.0
        %1480 = vmatprep.subr.mxu0 0.0
        %1481 = vmatpush1.msra.mxu0 0.0
        %1482 = vmatprep.subr.mxu0 0.0
        %1483 = vmatpush1.msra.mxu0 0.0
        %1484 = vmatprep.subr.mxu0 0.0
        %1485 = vmatpush1.msra.mxu0 0.0
        %1486 = vmatprep.subr.mxu0 0.0
        %1487 = vmatpush1.msra.mxu0 0.0
        %1488 = vmatprep.subr.mxu0 0.0
        %1489 = vmatpush1.msra.mxu0 0.0
        %1490 = vmatprep.subr.mxu0 0.0
        %1491 = vmatpush1.msra.mxu0 0.0
        %1492 = vmatprep.subr.mxu0 0.0
        %1493 = vmatpush1.msra.mxu0 0.0
        %1494 = vmatprep.mubr.f32.mxu0 0.0
        %v1495 = vand.u32 %v348, 4294901760
        %v1496 = vsub.f32 %v348, %v1495
        %1497 = vmatmul.mubr.f32.gmra.mrb[0].mxu0 %v1496
        %v1498 = vpop.f32.mrb[0].mxu0
        %v1499 = vadd.f32 %v1423, %v1498
        %v1500 = vpop.f32.mrb[0].mxu0
        %1501 = vdwg.mxu0
        %1502 = vmatprep.subr.mxu0 0.0
        %v1503 = vand.u32 %v335, 4294901760
        %1504 = vmatpush1.msra.mxu0 %v1503
        %1505 = vmatprep.subr.mxu0 0.0
        %v1506 = vand.u32 %v336, 4294901760
        %1507 = vmatpush1.msra.mxu0 %v1506
        %1508 = vmatprep.subr.mxu0 0.0
        %1509 = vmatpush1.msra.mxu0 0.0
        %1510 = vmatprep.subr.mxu0 0.0
        %1511 = vmatpush1.msra.mxu0 0.0
        %1512 = vmatprep.subr.mxu0 0.0
        %1513 = vmatpush1.msra.mxu0 0.0
        %1514 = vmatprep.subr.mxu0 0.0
        %1515 = vmatpush1.msra.mxu0 0.0
        %1516 = vmatprep.subr.mxu0 0.0
        %1517 = vmatpush1.msra.mxu0 0.0
        %1518 = vmatprep.subr.mxu0 0.0
        %1519 = vmatpush1.msra.mxu0 0.0
        %1520 = vmatprep.subr.mxu0 0.0
        %1521 = vmatpush1.msra.mxu0 0.0
        %1522 = vmatprep.subr.mxu0 0.0
        %1523 = vmatpush1.msra.mxu0 0.0
        %1524 = vmatprep.subr.mxu0 0.0
        %1525 = vmatpush1.msra.mxu0 0.0
        %1526 = vmatprep.subr.mxu0 0.0
        %1527 = vmatpush1.msra.mxu0 0.0
        %1528 = vmatprep.subr.mxu0 0.0
        %1529 = vmatpush1.msra.mxu0 0.0
        %1530 = vmatprep.subr.mxu0 0.0
        %1531 = vmatpush1.msra.mxu0 0.0
        %1532 = vmatprep.subr.mxu0 0.0
        %1533 = vmatpush1.msra.mxu0 0.0
        %1534 = vmatprep.subr.mxu0 0.0
        %1535 = vmatpush1.msra.mxu0 0.0
        %1536 = vmatprep.subr.mxu0 0.0
        %1537 = vmatpush1.msra.mxu0 0.0
        %1538 = vmatprep.subr.mxu0 0.0
        %1539 = vmatpush1.msra.mxu0 0.0
        %1540 = vmatprep.subr.mxu0 0.0
        %1541 = vmatpush1.msra.mxu0 0.0
        %1542 = vmatprep.subr.mxu0 0.0
        %1543 = vmatpush1.msra.mxu0 0.0
        %1544 = vmatprep.subr.mxu0 0.0
        %1545 = vmatpush1.msra.mxu0 0.0
        %1546 = vmatprep.subr.mxu0 0.0
        %1547 = vmatpush1.msra.mxu0 0.0
        %1548 = vmatprep.subr.mxu0 0.0
        %1549 = vmatpush1.msra.mxu0 0.0
        %1550 = vmatprep.subr.mxu0 0.0
        %1551 = vmatpush1.msra.mxu0 0.0
        %1552 = vmatprep.subr.mxu0 0.0
        %1553 = vmatpush1.msra.mxu0 0.0
        %1554 = vmatprep.subr.mxu0 0.0
        %1555 = vmatpush1.msra.mxu0 0.0
        %1556 = vmatprep.subr.mxu0 0.0
        %1557 = vmatpush1.msra.mxu0 0.0
        %1558 = vmatprep.subr.mxu0 0.0
        %1559 = vmatpush1.msra.mxu0 0.0
        %1560 = vmatprep.subr.mxu0 0.0
        %1561 = vmatpush1.msra.mxu0 0.0
        %1562 = vmatprep.subr.mxu0 0.0
        %1563 = vmatpush1.msra.mxu0 0.0
        %1564 = vmatprep.subr.mxu0 0.0
        %1565 = vmatpush1.msra.mxu0 0.0
        %1566 = vmatprep.subr.mxu0 0.0
        %1567 = vmatpush1.msra.mxu0 0.0
        %1568 = vmatprep.mubr.f32.mxu0 0.0
        %v1569 = vand.u32 %v348, 4294901760
        %v1570 = vsub.f32 %v348, %v1569
        %v1571 = vand.u32 %v1570, 4294901760
        %1572 = vmatmul.mubr.f32.gmra.mrb[0].mxu0 %v1571
        %v1573 = vpop.f32.mrb[0].mxu0
        %v1574 = vadd.f32 %v1499, %v1573
        %v1575 = vpop.f32.mrb[0].mxu0
        %1576 = vdwg.mxu0
        %1577 = vmatprep.subr.mxu0 0.0
        %v1578 = vand.u32 %v335, 4294901760
        %v1579 = vsub.f32 %v335, %v1578
        %v1580 = vand.u32 %v1579, 4294901760
        %1581 = vmatpush1.msra.mxu0 %v1580
        %1582 = vmatprep.subr.mxu0 0.0
        %v1583 = vand.u32 %v336, 4294901760
        %v1584 = vsub.f32 %v336, %v1583
        %v1585 = vand.u32 %v1584, 4294901760
        %1586 = vmatpush1.msra.mxu0 %v1585
        %1587 = vmatprep.subr.mxu0 0.0
        %1588 = vmatpush1.msra.mxu0 0.0
        %1589 = vmatprep.subr.mxu0 0.0
        %1590 = vmatpush1.msra.mxu0 0.0
        %1591 = vmatprep.subr.mxu0 0.0
        %1592 = vmatpush1.msra.mxu0 0.0
        %1593 = vmatprep.subr.mxu0 0.0
        %1594 = vmatpush1.msra.mxu0 0.0
        %1595 = vmatprep.subr.mxu0 0.0
        %1596 = vmatpush1.msra.mxu0 0.0
        %1597 = vmatprep.subr.mxu0 0.0
        %1598 = vmatpush1.msra.mxu0 0.0
        %1599 = vmatprep.subr.mxu0 0.0
        %1600 = vmatpush1.msra.mxu0 0.0
        %1601 = vmatprep.subr.mxu0 0.0
        %1602 = vmatpush1.msra.mxu0 0.0
        %1603 = vmatprep.subr.mxu0 0.0
        %1604 = vmatpush1.msra.mxu0 0.0
        %1605 = vmatprep.subr.mxu0 0.0
        %1606 = vmatpush1.msra.mxu0 0.0
        %1607 = vmatprep.subr.mxu0 0.0
        %1608 = vmatpush1.msra.mxu0 0.0
        %1609 = vmatprep.subr.mxu0 0.0
        %1610 = vmatpush1.msra.mxu0 0.0
        %1611 = vmatprep.subr.mxu0 0.0
        %1612 = vmatpush1.msra.mxu0 0.0
        %1613 = vmatprep.subr.mxu0 0.0
        %1614 = vmatpush1.msra.mxu0 0.0
        %1615 = vmatprep.subr.mxu0 0.0
        %1616 = vmatpush1.msra.mxu0 0.0
        %1617 = vmatprep.subr.mxu0 0.0
        %1618 = vmatpush1.msra.mxu0 0.0
        %1619 = vmatprep.subr.mxu0 0.0
        %1620 = vmatpush1.msra.mxu0 0.0
        %1621 = vmatprep.subr.mxu0 0.0
        %1622 = vmatpush1.msra.mxu0 0.0
        %1623 = vmatprep.subr.mxu0 0.0
        %1624 = vmatpush1.msra.mxu0 0.0
        %1625 = vmatprep.subr.mxu0 0.0
        %1626 = vmatpush1.msra.mxu0 0.0
        %1627 = vmatprep.subr.mxu0 0.0
        %1628 = vmatpush1.msra.mxu0 0.0
        %1629 = vmatprep.subr.mxu0 0.0
        %1630 = vmatpush1.msra.mxu0 0.0
        %1631 = vmatprep.subr.mxu0 0.0
        %1632 = vmatpush1.msra.mxu0 0.0
        %1633 = vmatprep.subr.mxu0 0.0
        %1634 = vmatpush1.msra.mxu0 0.0
        %1635 = vmatprep.subr.mxu0 0.0
        %1636 = vmatpush1.msra.mxu0 0.0
        %1637 = vmatprep.subr.mxu0 0.0
        %1638 = vmatpush1.msra.mxu0 0.0
        %1639 = vmatprep.subr.mxu0 0.0
        %1640 = vmatpush1.msra.mxu0 0.0
        %1641 = vmatprep.subr.mxu0 0.0
        %1642 = vmatpush1.msra.mxu0 0.0
        %1643 = vmatprep.subr.mxu0 0.0
        %1644 = vmatpush1.msra.mxu0 0.0
        %1645 = vmatprep.subr.mxu0 0.0
        %1646 = vmatpush1.msra.mxu0 0.0
        %1647 = vmatprep.mubr.f32.mxu0 0.0
        %v1648 = vand.u32 %v348, 4294901760
        %1649 = vmatmul.mubr.f32.gmra.mrb[0].mxu0 %v1648
        %v1650 = vpop.f32.mrb[0].mxu0
        %v1651 = vadd.f32 %v1574, %v1650
        %v1652 = vpop.f32.mrb[0].mxu0
        %1653 = vdwg.mxu0
        %1654 = vmatprep.subr.mxu0 0.0
        %v1655 = vand.u32 %v335, 4294901760
        %1656 = vmatpush1.msra.mxu0 %v1655
        %1657 = vmatprep.subr.mxu0 0.0
        %v1658 = vand.u32 %v336, 4294901760
        %1659 = vmatpush1.msra.mxu0 %v1658
        %1660 = vmatprep.subr.mxu0 0.0
        %1661 = vmatpush1.msra.mxu0 0.0
        %1662 = vmatprep.subr.mxu0 0.0
        %1663 = vmatpush1.msra.mxu0 0.0
        %1664 = vmatprep.subr.mxu0 0.0
        %1665 = vmatpush1.msra.mxu0 0.0
        %1666 = vmatprep.subr.mxu0 0.0
        %1667 = vmatpush1.msra.mxu0 0.0
        %1668 = vmatprep.subr.mxu0 0.0
        %1669 = vmatpush1.msra.mxu0 0.0
        %1670 = vmatprep.subr.mxu0 0.0
        %1671 = vmatpush1.msra.mxu0 0.0
        %1672 = vmatprep.subr.mxu0 0.0
        %1673 = vmatpush1.msra.mxu0 0.0
        %1674 = vmatprep.subr.mxu0 0.0
        %1675 = vmatpush1.msra.mxu0 0.0
        %1676 = vmatprep.subr.mxu0 0.0
        %1677 = vmatpush1.msra.mxu0 0.0
        %1678 = vmatprep.subr.mxu0 0.0
        %1679 = vmatpush1.msra.mxu0 0.0
        %1680 = vmatprep.subr.mxu0 0.0
        %1681 = vmatpush1.msra.mxu0 0.0
        %1682 = vmatprep.subr.mxu0 0.0
        %1683 = vmatpush1.msra.mxu0 0.0
        %1684 = vmatprep.subr.mxu0 0.0
        %1685 = vmatpush1.msra.mxu0 0.0
        %1686 = vmatprep.subr.mxu0 0.0
        %1687 = vmatpush1.msra.mxu0 0.0
        %1688 = vmatprep.subr.mxu0 0.0
        %1689 = vmatpush1.msra.mxu0 0.0
        %1690 = vmatprep.subr.mxu0 0.0
        %1691 = vmatpush1.msra.mxu0 0.0
        %1692 = vmatprep.subr.mxu0 0.0
        %1693 = vmatpush1.msra.mxu0 0.0
        %1694 = vmatprep.subr.mxu0 0.0
        %1695 = vmatpush1.msra.mxu0 0.0
        %1696 = vmatprep.subr.mxu0 0.0
        %1697 = vmatpush1.msra.mxu0 0.0
        %1698 = vmatprep.subr.mxu0 0.0
        %1699 = vmatpush1.msra.mxu0 0.0
        %1700 = vmatprep.subr.mxu0 0.0
        %1701 = vmatpush1.msra.mxu0 0.0
        %1702 = vmatprep.subr.mxu0 0.0
        %1703 = vmatpush1.msra.mxu0 0.0
        %1704 = vmatprep.subr.mxu0 0.0
        %1705 = vmatpush1.msra.mxu0 0.0
        %1706 = vmatprep.subr.mxu0 0.0
        %1707 = vmatpush1.msra.mxu0 0.0
        %1708 = vmatprep.subr.mxu0 0.0
        %1709 = vmatpush1.msra.mxu0 0.0
        %1710 = vmatprep.subr.mxu0 0.0
        %1711 = vmatpush1.msra.mxu0 0.0
        %1712 = vmatprep.subr.mxu0 0.0
        %1713 = vmatpush1.msra.mxu0 0.0
        %1714 = vmatprep.subr.mxu0 0.0
        %1715 = vmatpush1.msra.mxu0 0.0
        %1716 = vmatprep.subr.mxu0 0.0
        %1717 = vmatpush1.msra.mxu0 0.0
        %1718 = vmatprep.subr.mxu0 0.0
        %1719 = vmatpush1.msra.mxu0 0.0
        %1720 = vmatprep.mubr.f32.mxu0 0.0
        %v1721 = vand.u32 %v348, 4294901760
        %1722 = vmatmul.mubr.f32.gmra.mrb[0].mxu0 %v1721
        %v1723 = vpop.f32.mrb[0].mxu0
        %v1724 = vadd.f32 %v1651, %v1723
        %v1725 = vpop.f32.mrb[0].mxu0
        %1726 = vdwg.mxu0
        %1727 = vmatprep.subr.mxu0 0.0
        %v1728 = vand.u32 %v337, 4294901760
        %1729 = vmatpush1.msra.mxu0 %v1728
        %1730 = vmatprep.subr.mxu0 0.0
        %v1731 = vand.u32 %v338, 4294901760
        %1732 = vmatpush1.msra.mxu0 %v1731
        %1733 = vmatprep.subr.mxu0 0.0
        %1734 = vmatpush1.msra.mxu0 0.0
        %1735 = vmatprep.subr.mxu0 0.0
        %1736 = vmatpush1.msra.mxu0 0.0
        %1737 = vmatprep.subr.mxu0 0.0
        %1738 = vmatpush1.msra.mxu0 0.0
        %1739 = vmatprep.subr.mxu0 0.0
        %1740 = vmatpush1.msra.mxu0 0.0
        %1741 = vmatprep.subr.mxu0 0.0
        %1742 = vmatpush1.msra.mxu0 0.0
        %1743 = vmatprep.subr.mxu0 0.0
        %1744 = vmatpush1.msra.mxu0 0.0
        %1745 = vmatprep.subr.mxu0 0.0
        %1746 = vmatpush1.msra.mxu0 0.0
        %1747 = vmatprep.subr.mxu0 0.0
        %1748 = vmatpush1.msra.mxu0 0.0
        %1749 = vmatprep.subr.mxu0 0.0
        %1750 = vmatpush1.msra.mxu0 0.0
        %1751 = vmatprep.subr.mxu0 0.0
        %1752 = vmatpush1.msra.mxu0 0.0
        %1753 = vmatprep.subr.mxu0 0.0
        %1754 = vmatpush1.msra.mxu0 0.0
        %1755 = vmatprep.subr.mxu0 0.0
        %1756 = vmatpush1.msra.mxu0 0.0
        %1757 = vmatprep.subr.mxu0 0.0
        %1758 = vmatpush1.msra.mxu0 0.0
        %1759 = vmatprep.subr.mxu0 0.0
        %1760 = vmatpush1.msra.mxu0 0.0
        %1761 = vmatprep.subr.mxu0 0.0
        %1762 = vmatpush1.msra.mxu0 0.0
        %1763 = vmatprep.subr.mxu0 0.0
        %1764 = vmatpush1.msra.mxu0 0.0
        %1765 = vmatprep.subr.mxu0 0.0
        %1766 = vmatpush1.msra.mxu0 0.0
        %1767 = vmatprep.subr.mxu0 0.0
        %1768 = vmatpush1.msra.mxu0 0.0
        %1769 = vmatprep.subr.mxu0 0.0
        %1770 = vmatpush1.msra.mxu0 0.0
        %1771 = vmatprep.subr.mxu0 0.0
        %1772 = vmatpush1.msra.mxu0 0.0
        %1773 = vmatprep.subr.mxu0 0.0
        %1774 = vmatpush1.msra.mxu0 0.0
        %1775 = vmatprep.subr.mxu0 0.0
        %1776 = vmatpush1.msra.mxu0 0.0
        %1777 = vmatprep.subr.mxu0 0.0
        %1778 = vmatpush1.msra.mxu0 0.0
        %1779 = vmatprep.subr.mxu0 0.0
        %1780 = vmatpush1.msra.mxu0 0.0
        %1781 = vmatprep.subr.mxu0 0.0
        %1782 = vmatpush1.msra.mxu0 0.0
        %1783 = vmatprep.subr.mxu0 0.0
        %1784 = vmatpush1.msra.mxu0 0.0
        %1785 = vmatprep.subr.mxu0 0.0
        %1786 = vmatpush1.msra.mxu0 0.0
        %1787 = vmatprep.subr.mxu0 0.0
        %1788 = vmatpush1.msra.mxu0 0.0
        %1789 = vmatprep.subr.mxu0 0.0
        %1790 = vmatpush1.msra.mxu0 0.0
        %1791 = vmatprep.subr.mxu0 0.0
        %1792 = vmatpush1.msra.mxu0 0.0
        %1793 = vmatprep.mubr.f32.mxu0 0.0
        %v1794 = vand.u32 %v348, 4294901760
        %v1795 = vsub.f32 %v348, %v1794
        %v1796 = vand.u32 %v1795, 4294901760
        %v1797 = vsub.f32 %v1795, %v1796
        %v1798 = vand.u32 %v1797, 4294901760
        %1799 = vmatmul.mubr.f32.gmra.mrb[0].mxu0 %v1798
        %v1800 = vpop.f32.mrb[0].mxu0
        %v1801 = vadd.f32 0.0, %v1800
        %v1802 = vpop.f32.mrb[0].mxu0
        %1803 = vdwg.mxu0
        %1804 = vmatprep.subr.mxu0 0.0
        %v1805 = vand.u32 %v337, 4294901760
        %v1806 = vsub.f32 %v337, %v1805
        %v1807 = vand.u32 %v1806, 4294901760
        %v1808 = vsub.f32 %v1806, %v1807
        %v1809 = vand.u32 %v1808, 4294901760
        %1810 = vmatpush1.msra.mxu0 %v1809
        %1811 = vmatprep.subr.mxu0 0.0
        %v1812 = vand.u32 %v338, 4294901760
        %v1813 = vsub.f32 %v338, %v1812
        %v1814 = vand.u32 %v1813, 4294901760
        %v1815 = vsub.f32 %v1813, %v1814
        %v1816 = vand.u32 %v1815, 4294901760
        %1817 = vmatpush1.msra.mxu0 %v1816
        %1818 = vmatprep.subr.mxu0 0.0
        %1819 = vmatpush1.msra.mxu0 0.0
        %1820 = vmatprep.subr.mxu0 0.0
        %1821 = vmatpush1.msra.mxu0 0.0
        %1822 = vmatprep.subr.mxu0 0.0
        %1823 = vmatpush1.msra.mxu0 0.0
        %1824 = vmatprep.subr.mxu0 0.0
        %1825 = vmatpush1.msra.mxu0 0.0
        %1826 = vmatprep.subr.mxu0 0.0
        %1827 = vmatpush1.msra.mxu0 0.0
        %1828 = vmatprep.subr.mxu0 0.0
        %1829 = vmatpush1.msra.mxu0 0.0
        %1830 = vmatprep.subr.mxu0 0.0
        %1831 = vmatpush1.msra.mxu0 0.0
        %1832 = vmatprep.subr.mxu0 0.0
        %1833 = vmatpush1.msra.mxu0 0.0
        %1834 = vmatprep.subr.mxu0 0.0
        %1835 = vmatpush1.msra.mxu0 0.0
        %1836 = vmatprep.subr.mxu0 0.0
        %1837 = vmatpush1.msra.mxu0 0.0
        %1838 = vmatprep.subr.mxu0 0.0
        %1839 = vmatpush1.msra.mxu0 0.0
        %1840 = vmatprep.subr.mxu0 0.0
        %1841 = vmatpush1.msra.mxu0 0.0
        %1842 = vmatprep.subr.mxu0 0.0
        %1843 = vmatpush1.msra.mxu0 0.0
        %1844 = vmatprep.subr.mxu0 0.0
        %1845 = vmatpush1.msra.mxu0 0.0
        %1846 = vmatprep.subr.mxu0 0.0
        %1847 = vmatpush1.msra.mxu0 0.0
        %1848 = vmatprep.subr.mxu0 0.0
        %1849 = vmatpush1.msra.mxu0 0.0
        %1850 = vmatprep.subr.mxu0 0.0
        %1851 = vmatpush1.msra.mxu0 0.0
        %1852 = vmatprep.subr.mxu0 0.0
        %1853 = vmatpush1.msra.mxu0 0.0
        %1854 = vmatprep.subr.mxu0 0.0
        %1855 = vmatpush1.msra.mxu0 0.0
        %1856 = vmatprep.subr.mxu0 0.0
        %1857 = vmatpush1.msra.mxu0 0.0
        %1858 = vmatprep.subr.mxu0 0.0
        %1859 = vmatpush1.msra.mxu0 0.0
        %1860 = vmatprep.subr.mxu0 0.0
        %1861 = vmatpush1.msra.mxu0 0.0
        %1862 = vmatprep.subr.mxu0 0.0
        %1863 = vmatpush1.msra.mxu0 0.0
        %1864 = vmatprep.subr.mxu0 0.0
        %1865 = vmatpush1.msra.mxu0 0.0
        %1866 = vmatprep.subr.mxu0 0.0
        %1867 = vmatpush1.msra.mxu0 0.0
        %1868 = vmatprep.subr.mxu0 0.0
        %1869 = vmatpush1.msra.mxu0 0.0
        %1870 = vmatprep.subr.mxu0 0.0
        %1871 = vmatpush1.msra.mxu0 0.0
        %1872 = vmatprep.subr.mxu0 0.0
        %1873 = vmatpush1.msra.mxu0 0.0
        %1874 = vmatprep.subr.mxu0 0.0
        %1875 = vmatpush1.msra.mxu0 0.0
        %1876 = vmatprep.subr.mxu0 0.0
        %1877 = vmatpush1.msra.mxu0 0.0
        %1878 = vmatprep.mubr.f32.mxu0 0.0
        %v1879 = vand.u32 %v348, 4294901760
        %1880 = vmatmul.mubr.f32.gmra.mrb[0].mxu0 %v1879
        %v1881 = vpop.f32.mrb[0].mxu0
        %v1882 = vadd.f32 %v1801, %v1881
        %v1883 = vpop.f32.mrb[0].mxu0
        %1884 = vdwg.mxu0
        %1885 = vmatprep.subr.mxu0 0.0
        %v1886 = vand.u32 %v337, 4294901760
        %v1887 = vsub.f32 %v337, %v1886
        %1888 = vmatpush1.msra.mxu0 %v1887
        %1889 = vmatprep.subr.mxu0 0.0
        %v1890 = vand.u32 %v338, 4294901760
        %v1891 = vsub.f32 %v338, %v1890
        %1892 = vmatpush1.msra.mxu0 %v1891
        %1893 = vmatprep.subr.mxu0 0.0
        %1894 = vmatpush1.msra.mxu0 0.0
        %1895 = vmatprep.subr.mxu0 0.0
        %1896 = vmatpush1.msra.mxu0 0.0
        %1897 = vmatprep.subr.mxu0 0.0
        %1898 = vmatpush1.msra.mxu0 0.0
        %1899 = vmatprep.subr.mxu0 0.0
        %1900 = vmatpush1.msra.mxu0 0.0
        %1901 = vmatprep.subr.mxu0 0.0
        %1902 = vmatpush1.msra.mxu0 0.0
        %1903 = vmatprep.subr.mxu0 0.0
        %1904 = vmatpush1.msra.mxu0 0.0
        %1905 = vmatprep.subr.mxu0 0.0
        %1906 = vmatpush1.msra.mxu0 0.0
        %1907 = vmatprep.subr.mxu0 0.0
        %1908 = vmatpush1.msra.mxu0 0.0
        %1909 = vmatprep.subr.mxu0 0.0
        %1910 = vmatpush1.msra.mxu0 0.0
        %1911 = vmatprep.subr.mxu0 0.0
        %1912 = vmatpush1.msra.mxu0 0.0
        %1913 = vmatprep.subr.mxu0 0.0
        %1914 = vmatpush1.msra.mxu0 0.0
        %1915 = vmatprep.subr.mxu0 0.0
        %1916 = vmatpush1.msra.mxu0 0.0
        %1917 = vmatprep.subr.mxu0 0.0
        %1918 = vmatpush1.msra.mxu0 0.0
        %1919 = vmatprep.subr.mxu0 0.0
        %1920 = vmatpush1.msra.mxu0 0.0
        %1921 = vmatprep.subr.mxu0 0.0
        %1922 = vmatpush1.msra.mxu0 0.0
        %1923 = vmatprep.subr.mxu0 0.0
        %1924 = vmatpush1.msra.mxu0 0.0
        %1925 = vmatprep.subr.mxu0 0.0
        %1926 = vmatpush1.msra.mxu0 0.0
        %1927 = vmatprep.subr.mxu0 0.0
        %1928 = vmatpush1.msra.mxu0 0.0
        %1929 = vmatprep.subr.mxu0 0.0
        %1930 = vmatpush1.msra.mxu0 0.0
        %1931 = vmatprep.subr.mxu0 0.0
        %1932 = vmatpush1.msra.mxu0 0.0
        %1933 = vmatprep.subr.mxu0 0.0
        %1934 = vmatpush1.msra.mxu0 0.0
        %1935 = vmatprep.subr.mxu0 0.0
        %1936 = vmatpush1.msra.mxu0 0.0
        %1937 = vmatprep.subr.mxu0 0.0
        %1938 = vmatpush1.msra.mxu0 0.0
        %1939 = vmatprep.subr.mxu0 0.0
        %1940 = vmatpush1.msra.mxu0 0.0
        %1941 = vmatprep.subr.mxu0 0.0
        %1942 = vmatpush1.msra.mxu0 0.0
        %1943 = vmatprep.subr.mxu0 0.0
        %1944 = vmatpush1.msra.mxu0 0.0
        %1945 = vmatprep.subr.mxu0 0.0
        %1946 = vmatpush1.msra.mxu0 0.0
        %1947 = vmatprep.subr.mxu0 0.0
        %1948 = vmatpush1.msra.mxu0 0.0
        %1949 = vmatprep.subr.mxu0 0.0
        %1950 = vmatpush1.msra.mxu0 0.0
        %1951 = vmatprep.subr.mxu0 0.0
        %1952 = vmatpush1.msra.mxu0 0.0
        %1953 = vmatprep.mubr.f32.mxu0 0.0
        %v1954 = vand.u32 %v348, 4294901760
        %v1955 = vsub.f32 %v348, %v1954
        %1956 = vmatmul.mubr.f32.gmra.mrb[0].mxu0 %v1955
        %v1957 = vpop.f32.mrb[0].mxu0
        %v1958 = vadd.f32 %v1882, %v1957
        %v1959 = vpop.f32.mrb[0].mxu0
        %1960 = vdwg.mxu0
        %1961 = vmatprep.subr.mxu0 0.0
        %v1962 = vand.u32 %v337, 4294901760
        %1963 = vmatpush1.msra.mxu0 %v1962
        %1964 = vmatprep.subr.mxu0 0.0
        %v1965 = vand.u32 %v338, 4294901760
        %1966 = vmatpush1.msra.mxu0 %v1965
        %1967 = vmatprep.subr.mxu0 0.0
        %1968 = vmatpush1.msra.mxu0 0.0
        %1969 = vmatprep.subr.mxu0 0.0
        %1970 = vmatpush1.msra.mxu0 0.0
        %1971 = vmatprep.subr.mxu0 0.0
        %1972 = vmatpush1.msra.mxu0 0.0
        %1973 = vmatprep.subr.mxu0 0.0
        %1974 = vmatpush1.msra.mxu0 0.0
        %1975 = vmatprep.subr.mxu0 0.0
        %1976 = vmatpush1.msra.mxu0 0.0
        %1977 = vmatprep.subr.mxu0 0.0
        %1978 = vmatpush1.msra.mxu0 0.0
        %1979 = vmatprep.subr.mxu0 0.0
        %1980 = vmatpush1.msra.mxu0 0.0
        %1981 = vmatprep.subr.mxu0 0.0
        %1982 = vmatpush1.msra.mxu0 0.0
        %1983 = vmatprep.subr.mxu0 0.0
        %1984 = vmatpush1.msra.mxu0 0.0
        %1985 = vmatprep.subr.mxu0 0.0
        %1986 = vmatpush1.msra.mxu0 0.0
        %1987 = vmatprep.subr.mxu0 0.0
        %1988 = vmatpush1.msra.mxu0 0.0
        %1989 = vmatprep.subr.mxu0 0.0
        %1990 = vmatpush1.msra.mxu0 0.0
        %1991 = vmatprep.subr.mxu0 0.0
        %1992 = vmatpush1.msra.mxu0 0.0
        %1993 = vmatprep.subr.mxu0 0.0
        %1994 = vmatpush1.msra.mxu0 0.0
        %1995 = vmatprep.subr.mxu0 0.0
        %1996 = vmatpush1.msra.mxu0 0.0
        %1997 = vmatprep.subr.mxu0 0.0
        %1998 = vmatpush1.msra.mxu0 0.0
        %1999 = vmatprep.subr.mxu0 0.0
        %2000 = vmatpush1.msra.mxu0 0.0
        %2001 = vmatprep.subr.mxu0 0.0
        %2002 = vmatpush1.msra.mxu0 0.0
        %2003 = vmatprep.subr.mxu0 0.0
        %2004 = vmatpush1.msra.mxu0 0.0
        %2005 = vmatprep.subr.mxu0 0.0
        %2006 = vmatpush1.msra.mxu0 0.0
        %2007 = vmatprep.subr.mxu0 0.0
        %2008 = vmatpush1.msra.mxu0 0.0
        %2009 = vmatprep.subr.mxu0 0.0
        %2010 = vmatpush1.msra.mxu0 0.0
        %2011 = vmatprep.subr.mxu0 0.0
        %2012 = vmatpush1.msra.mxu0 0.0
        %2013 = vmatprep.subr.mxu0 0.0
        %2014 = vmatpush1.msra.mxu0 0.0
        %2015 = vmatprep.subr.mxu0 0.0
        %2016 = vmatpush1.msra.mxu0 0.0
        %2017 = vmatprep.subr.mxu0 0.0
        %2018 = vmatpush1.msra.mxu0 0.0
        %2019 = vmatprep.subr.mxu0 0.0
        %2020 = vmatpush1.msra.mxu0 0.0
        %2021 = vmatprep.subr.mxu0 0.0
        %2022 = vmatpush1.msra.mxu0 0.0
        %2023 = vmatprep.subr.mxu0 0.0
        %2024 = vmatpush1.msra.mxu0 0.0
        %2025 = vmatprep.subr.mxu0 0.0
        %2026 = vmatpush1.msra.mxu0 0.0
        %2027 = vmatprep.mubr.f32.mxu0 0.0
        %v2028 = vand.u32 %v348, 4294901760
        %v2029 = vsub.f32 %v348, %v2028
        %v2030 = vand.u32 %v2029, 4294901760
        %2031 = vmatmul.mubr.f32.gmra.mrb[0].mxu0 %v2030
        %v2032 = vpop.f32.mrb[0].mxu0
        %v2033 = vadd.f32 %v1958, %v2032
        %v2034 = vpop.f32.mrb[0].mxu0
        %2035 = vdwg.mxu0
        %2036 = vmatprep.subr.mxu0 0.0
        %v2037 = vand.u32 %v337, 4294901760
        %v2038 = vsub.f32 %v337, %v2037
        %v2039 = vand.u32 %v2038, 4294901760
        %2040 = vmatpush1.msra.mxu0 %v2039
        %2041 = vmatprep.subr.mxu0 0.0
        %v2042 = vand.u32 %v338, 4294901760
        %v2043 = vsub.f32 %v338, %v2042
        %v2044 = vand.u32 %v2043, 4294901760
        %2045 = vmatpush1.msra.mxu0 %v2044
        %2046 = vmatprep.subr.mxu0 0.0
        %2047 = vmatpush1.msra.mxu0 0.0
        %2048 = vmatprep.subr.mxu0 0.0
        %2049 = vmatpush1.msra.mxu0 0.0
        %2050 = vmatprep.subr.mxu0 0.0
        %2051 = vmatpush1.msra.mxu0 0.0
        %2052 = vmatprep.subr.mxu0 0.0
        %2053 = vmatpush1.msra.mxu0 0.0
        %2054 = vmatprep.subr.mxu0 0.0
        %2055 = vmatpush1.msra.mxu0 0.0
        %2056 = vmatprep.subr.mxu0 0.0
        %2057 = vmatpush1.msra.mxu0 0.0
        %2058 = vmatprep.subr.mxu0 0.0
        %2059 = vmatpush1.msra.mxu0 0.0
        %2060 = vmatprep.subr.mxu0 0.0
        %2061 = vmatpush1.msra.mxu0 0.0
        %2062 = vmatprep.subr.mxu0 0.0
        %2063 = vmatpush1.msra.mxu0 0.0
        %2064 = vmatprep.subr.mxu0 0.0
        %2065 = vmatpush1.msra.mxu0 0.0
        %2066 = vmatprep.subr.mxu0 0.0
        %2067 = vmatpush1.msra.mxu0 0.0
        %2068 = vmatprep.subr.mxu0 0.0
        %2069 = vmatpush1.msra.mxu0 0.0
        %2070 = vmatprep.subr.mxu0 0.0
        %2071 = vmatpush1.msra.mxu0 0.0
        %2072 = vmatprep.subr.mxu0 0.0
        %2073 = vmatpush1.msra.mxu0 0.0
        %2074 = vmatprep.subr.mxu0 0.0
        %2075 = vmatpush1.msra.mxu0 0.0
        %2076 = vmatprep.subr.mxu0 0.0
        %2077 = vmatpush1.msra.mxu0 0.0
        %2078 = vmatprep.subr.mxu0 0.0
        %2079 = vmatpush1.msra.mxu0 0.0
        %2080 = vmatprep.subr.mxu0 0.0
        %2081 = vmatpush1.msra.mxu0 0.0
        %2082 = vmatprep.subr.mxu0 0.0
        %2083 = vmatpush1.msra.mxu0 0.0
        %2084 = vmatprep.subr.mxu0 0.0
        %2085 = vmatpush1.msra.mxu0 0.0
        %2086 = vmatprep.subr.mxu0 0.0
        %2087 = vmatpush1.msra.mxu0 0.0
        %2088 = vmatprep.subr.mxu0 0.0
        %2089 = vmatpush1.msra.mxu0 0.0
        %2090 = vmatprep.subr.mxu0 0.0
        %2091 = vmatpush1.msra.mxu0 0.0
        %2092 = vmatprep.subr.mxu0 0.0
        %2093 = vmatpush1.msra.mxu0 0.0
        %2094 = vmatprep.subr.mxu0 0.0
        %2095 = vmatpush1.msra.mxu0 0.0
        %2096 = vmatprep.subr.mxu0 0.0
        %2097 = vmatpush1.msra.mxu0 0.0
        %2098 = vmatprep.subr.mxu0 0.0
        %2099 = vmatpush1.msra.mxu0 0.0
        %2100 = vmatprep.subr.mxu0 0.0
        %2101 = vmatpush1.msra.mxu0 0.0
        %2102 = vmatprep.subr.mxu0 0.0
        %2103 = vmatpush1.msra.mxu0 0.0
        %2104 = vmatprep.subr.mxu0 0.0
        %2105 = vmatpush1.msra.mxu0 0.0
        %2106 = vmatprep.mubr.f32.mxu0 0.0
        %v2107 = vand.u32 %v348, 4294901760
        %2108 = vmatmul.mubr.f32.gmra.mrb[0].mxu0 %v2107
        %v2109 = vpop.f32.mrb[0].mxu0
        %v2110 = vadd.f32 %v2033, %v2109
        %v2111 = vpop.f32.mrb[0].mxu0
        %2112 = vdwg.mxu0
        %2113 = vmatprep.subr.mxu0 0.0
        %v2114 = vand.u32 %v337, 4294901760
        %2115 = vmatpush1.msra.mxu0 %v2114
        %2116 = vmatprep.subr.mxu0 0.0
        %v2117 = vand.u32 %v338, 4294901760
        %2118 = vmatpush1.msra.mxu0 %v2117
        %2119 = vmatprep.subr.mxu0 0.0
        %2120 = vmatpush1.msra.mxu0 0.0
        %2121 = vmatprep.subr.mxu0 0.0
        %2122 = vmatpush1.msra.mxu0 0.0
        %2123 = vmatprep.subr.mxu0 0.0
        %2124 = vmatpush1.msra.mxu0 0.0
        %2125 = vmatprep.subr.mxu0 0.0
        %2126 = vmatpush1.msra.mxu0 0.0
        %2127 = vmatprep.subr.mxu0 0.0
        %2128 = vmatpush1.msra.mxu0 0.0
        %2129 = vmatprep.subr.mxu0 0.0
        %2130 = vmatpush1.msra.mxu0 0.0
        %2131 = vmatprep.subr.mxu0 0.0
        %2132 = vmatpush1.msra.mxu0 0.0
        %2133 = vmatprep.subr.mxu0 0.0
        %2134 = vmatpush1.msra.mxu0 0.0
        %2135 = vmatprep.subr.mxu0 0.0
        %2136 = vmatpush1.msra.mxu0 0.0
        %2137 = vmatprep.subr.mxu0 0.0
        %2138 = vmatpush1.msra.mxu0 0.0
        %2139 = vmatprep.subr.mxu0 0.0
        %2140 = vmatpush1.msra.mxu0 0.0
        %2141 = vmatprep.subr.mxu0 0.0
        %2142 = vmatpush1.msra.mxu0 0.0
        %2143 = vmatprep.subr.mxu0 0.0
        %2144 = vmatpush1.msra.mxu0 0.0
        %2145 = vmatprep.subr.mxu0 0.0
        %2146 = vmatpush1.msra.mxu0 0.0
        %2147 = vmatprep.subr.mxu0 0.0
        %2148 = vmatpush1.msra.mxu0 0.0
        %2149 = vmatprep.subr.mxu0 0.0
        %2150 = vmatpush1.msra.mxu0 0.0
        %2151 = vmatprep.subr.mxu0 0.0
        %2152 = vmatpush1.msra.mxu0 0.0
        %2153 = vmatprep.subr.mxu0 0.0
        %2154 = vmatpush1.msra.mxu0 0.0
        %2155 = vmatprep.subr.mxu0 0.0
        %2156 = vmatpush1.msra.mxu0 0.0
        %2157 = vmatprep.subr.mxu0 0.0
        %2158 = vmatpush1.msra.mxu0 0.0
        %2159 = vmatprep.subr.mxu0 0.0
        %2160 = vmatpush1.msra.mxu0 0.0
        %2161 = vmatprep.subr.mxu0 0.0
        %2162 = vmatpush1.msra.mxu0 0.0
        %2163 = vmatprep.subr.mxu0 0.0
        %2164 = vmatpush1.msra.mxu0 0.0
        %2165 = vmatprep.subr.mxu0 0.0
        %2166 = vmatpush1.msra.mxu0 0.0
        %2167 = vmatprep.subr.mxu0 0.0
        %2168 = vmatpush1.msra.mxu0 0.0
        %2169 = vmatprep.subr.mxu0 0.0
        %2170 = vmatpush1.msra.mxu0 0.0
        %2171 = vmatprep.subr.mxu0 0.0
        %2172 = vmatpush1.msra.mxu0 0.0
        %2173 = vmatprep.subr.mxu0 0.0
        %2174 = vmatpush1.msra.mxu0 0.0
        %2175 = vmatprep.subr.mxu0 0.0
        %2176 = vmatpush1.msra.mxu0 0.0
        %2177 = vmatprep.subr.mxu0 0.0
        %2178 = vmatpush1.msra.mxu0 0.0
        %2179 = vmatprep.mubr.f32.mxu0 0.0
        %v2180 = vand.u32 %v348, 4294901760
        %2181 = vmatmul.mubr.f32.gmra.mrb[0].mxu0 %v2180
        %v2182 = vpop.f32.mrb[0].mxu0
        %v2183 = vadd.f32 %v2110, %v2182
        %v2184 = vpop.f32.mrb[0].mxu0
        %2185 = vdwg.mxu0
        %2186 = vmatprep.subr.mxu0 0.0
        %v2187 = vand.u32 %v339, 4294901760
        %2188 = vmatpush1.msra.mxu0 %v2187
        %2189 = vmatprep.subr.mxu0 0.0
        %v2190 = vand.u32 %v340, 4294901760
        %2191 = vmatpush1.msra.mxu0 %v2190
        %2192 = vmatprep.subr.mxu0 0.0
        %2193 = vmatpush1.msra.mxu0 0.0
        %2194 = vmatprep.subr.mxu0 0.0
        %2195 = vmatpush1.msra.mxu0 0.0
        %2196 = vmatprep.subr.mxu0 0.0
        %2197 = vmatpush1.msra.mxu0 0.0
        %2198 = vmatprep.subr.mxu0 0.0
        %2199 = vmatpush1.msra.mxu0 0.0
        %2200 = vmatprep.subr.mxu0 0.0
        %2201 = vmatpush1.msra.mxu0 0.0
        %2202 = vmatprep.subr.mxu0 0.0
        %2203 = vmatpush1.msra.mxu0 0.0
        %2204 = vmatprep.subr.mxu0 0.0
        %2205 = vmatpush1.msra.mxu0 0.0
        %2206 = vmatprep.subr.mxu0 0.0
        %2207 = vmatpush1.msra.mxu0 0.0
        %2208 = vmatprep.subr.mxu0 0.0
        %2209 = vmatpush1.msra.mxu0 0.0
        %2210 = vmatprep.subr.mxu0 0.0
        %2211 = vmatpush1.msra.mxu0 0.0
        %2212 = vmatprep.subr.mxu0 0.0
        %2213 = vmatpush1.msra.mxu0 0.0
        %2214 = vmatprep.subr.mxu0 0.0
        %2215 = vmatpush1.msra.mxu0 0.0
        %2216 = vmatprep.subr.mxu0 0.0
        %2217 = vmatpush1.msra.mxu0 0.0
        %2218 = vmatprep.subr.mxu0 0.0
        %2219 = vmatpush1.msra.mxu0 0.0
        %2220 = vmatprep.subr.mxu0 0.0
        %2221 = vmatpush1.msra.mxu0 0.0
        %2222 = vmatprep.subr.mxu0 0.0
        %2223 = vmatpush1.msra.mxu0 0.0
        %2224 = vmatprep.subr.mxu0 0.0
        %2225 = vmatpush1.msra.mxu0 0.0
        %2226 = vmatprep.subr.mxu0 0.0
        %2227 = vmatpush1.msra.mxu0 0.0
        %2228 = vmatprep.subr.mxu0 0.0
        %2229 = vmatpush1.msra.mxu0 0.0
        %2230 = vmatprep.subr.mxu0 0.0
        %2231 = vmatpush1.msra.mxu0 0.0
        %2232 = vmatprep.subr.mxu0 0.0
        %2233 = vmatpush1.msra.mxu0 0.0
        %2234 = vmatprep.subr.mxu0 0.0
        %2235 = vmatpush1.msra.mxu0 0.0
        %2236 = vmatprep.subr.mxu0 0.0
        %2237 = vmatpush1.msra.mxu0 0.0
        %2238 = vmatprep.subr.mxu0 0.0
        %2239 = vmatpush1.msra.mxu0 0.0
        %2240 = vmatprep.subr.mxu0 0.0
        %2241 = vmatpush1.msra.mxu0 0.0
        %2242 = vmatprep.subr.mxu0 0.0
        %2243 = vmatpush1.msra.mxu0 0.0
        %2244 = vmatprep.subr.mxu0 0.0
        %2245 = vmatpush1.msra.mxu0 0.0
        %2246 = vmatprep.subr.mxu0 0.0
        %2247 = vmatpush1.msra.mxu0 0.0
        %2248 = vmatprep.subr.mxu0 0.0
        %2249 = vmatpush1.msra.mxu0 0.0
        %2250 = vmatprep.subr.mxu0 0.0
        %2251 = vmatpush1.msra.mxu0 0.0
        %2252 = vmatprep.mubr.f32.mxu0 0.0
        %v2253 = vand.u32 %v348, 4294901760
        %v2254 = vsub.f32 %v348, %v2253
        %v2255 = vand.u32 %v2254, 4294901760
        %v2256 = vsub.f32 %v2254, %v2255
        %v2257 = vand.u32 %v2256, 4294901760
        %2258 = vmatmul.mubr.f32.gmra.mrb[0].mxu0 %v2257
        %v2259 = vpop.f32.mrb[0].mxu0
        %v2260 = vadd.f32 0.0, %v2259
        %v2261 = vpop.f32.mrb[0].mxu0
        %2262 = vdwg.mxu0
        %2263 = vmatprep.subr.mxu0 0.0
        %v2264 = vand.u32 %v339, 4294901760
        %v2265 = vsub.f32 %v339, %v2264
        %v2266 = vand.u32 %v2265, 4294901760
        %v2267 = vsub.f32 %v2265, %v2266
        %v2268 = vand.u32 %v2267, 4294901760
        %2269 = vmatpush1.msra.mxu0 %v2268
        %2270 = vmatprep.subr.mxu0 0.0
        %v2271 = vand.u32 %v340, 4294901760
        %v2272 = vsub.f32 %v340, %v2271
        %v2273 = vand.u32 %v2272, 4294901760
        %v2274 = vsub.f32 %v2272, %v2273
        %v2275 = vand.u32 %v2274, 4294901760
        %2276 = vmatpush1.msra.mxu0 %v2275
        %2277 = vmatprep.subr.mxu0 0.0
        %2278 = vmatpush1.msra.mxu0 0.0
        %2279 = vmatprep.subr.mxu0 0.0
        %2280 = vmatpush1.msra.mxu0 0.0
        %2281 = vmatprep.subr.mxu0 0.0
        %2282 = vmatpush1.msra.mxu0 0.0
        %2283 = vmatprep.subr.mxu0 0.0
        %2284 = vmatpush1.msra.mxu0 0.0
        %2285 = vmatprep.subr.mxu0 0.0
        %2286 = vmatpush1.msra.mxu0 0.0
        %2287 = vmatprep.subr.mxu0 0.0
        %2288 = vmatpush1.msra.mxu0 0.0
        %2289 = vmatprep.subr.mxu0 0.0
        %2290 = vmatpush1.msra.mxu0 0.0
        %2291 = vmatprep.subr.mxu0 0.0
        %2292 = vmatpush1.msra.mxu0 0.0
        %2293 = vmatprep.subr.mxu0 0.0
        %2294 = vmatpush1.msra.mxu0 0.0
        %2295 = vmatprep.subr.mxu0 0.0
        %2296 = vmatpush1.msra.mxu0 0.0
        %2297 = vmatprep.subr.mxu0 0.0
        %2298 = vmatpush1.msra.mxu0 0.0
        %2299 = vmatprep.subr.mxu0 0.0
        %2300 = vmatpush1.msra.mxu0 0.0
        %2301 = vmatprep.subr.mxu0 0.0
        %2302 = vmatpush1.msra.mxu0 0.0
        %2303 = vmatprep.subr.mxu0 0.0
        %2304 = vmatpush1.msra.mxu0 0.0
        %2305 = vmatprep.subr.mxu0 0.0
        %2306 = vmatpush1.msra.mxu0 0.0
        %2307 = vmatprep.subr.mxu0 0.0
        %2308 = vmatpush1.msra.mxu0 0.0
        %2309 = vmatprep.subr.mxu0 0.0
        %2310 = vmatpush1.msra.mxu0 0.0
        %2311 = vmatprep.subr.mxu0 0.0
        %2312 = vmatpush1.msra.mxu0 0.0
        %2313 = vmatprep.subr.mxu0 0.0
        %2314 = vmatpush1.msra.mxu0 0.0
        %2315 = vmatprep.subr.mxu0 0.0
        %2316 = vmatpush1.msra.mxu0 0.0
        %2317 = vmatprep.subr.mxu0 0.0
        %2318 = vmatpush1.msra.mxu0 0.0
        %2319 = vmatprep.subr.mxu0 0.0
        %2320 = vmatpush1.msra.mxu0 0.0
        %2321 = vmatprep.subr.mxu0 0.0
        %2322 = vmatpush1.msra.mxu0 0.0
        %2323 = vmatprep.subr.mxu0 0.0
        %2324 = vmatpush1.msra.mxu0 0.0
        %2325 = vmatprep.subr.mxu0 0.0
        %2326 = vmatpush1.msra.mxu0 0.0
        %2327 = vmatprep.subr.mxu0 0.0
        %2328 = vmatpush1.msra.mxu0 0.0
        %2329 = vmatprep.subr.mxu0 0.0
        %2330 = vmatpush1.msra.mxu0 0.0
        %2331 = vmatprep.subr.mxu0 0.0
        %2332 = vmatpush1.msra.mxu0 0.0
        %2333 = vmatprep.subr.mxu0 0.0
        %2334 = vmatpush1.msra.mxu0 0.0
        %2335 = vmatprep.subr.mxu0 0.0
        %2336 = vmatpush1.msra.mxu0 0.0
        %2337 = vmatprep.mubr.f32.mxu0 0.0
        %v2338 = vand.u32 %v348, 4294901760
        %2339 = vmatmul.mubr.f32.gmra.mrb[0].mxu0 %v2338
        %v2340 = vpop.f32.mrb[0].mxu0
        %v2341 = vadd.f32 %v2260, %v2340
        %v2342 = vpop.f32.mrb[0].mxu0
        %2343 = vdwg.mxu0
        %2344 = vmatprep.subr.mxu0 0.0
        %v2345 = vand.u32 %v339, 4294901760
        %v2346 = vsub.f32 %v339, %v2345
        %2347 = vmatpush1.msra.mxu0 %v2346
        %2348 = vmatprep.subr.mxu0 0.0
        %v2349 = vand.u32 %v340, 4294901760
        %v2350 = vsub.f32 %v340, %v2349
        %2351 = vmatpush1.msra.mxu0 %v2350
        %2352 = vmatprep.subr.mxu0 0.0
        %2353 = vmatpush1.msra.mxu0 0.0
        %2354 = vmatprep.subr.mxu0 0.0
        %2355 = vmatpush1.msra.mxu0 0.0
        %2356 = vmatprep.subr.mxu0 0.0
        %2357 = vmatpush1.msra.mxu0 0.0
        %2358 = vmatprep.subr.mxu0 0.0
        %2359 = vmatpush1.msra.mxu0 0.0
        %2360 = vmatprep.subr.mxu0 0.0
        %2361 = vmatpush1.msra.mxu0 0.0
        %2362 = vmatprep.subr.mxu0 0.0
        %2363 = vmatpush1.msra.mxu0 0.0
        %2364 = vmatprep.subr.mxu0 0.0
        %2365 = vmatpush1.msra.mxu0 0.0
        %2366 = vmatprep.subr.mxu0 0.0
        %2367 = vmatpush1.msra.mxu0 0.0
        %2368 = vmatprep.subr.mxu0 0.0
        %2369 = vmatpush1.msra.mxu0 0.0
        %2370 = vmatprep.subr.mxu0 0.0
        %2371 = vmatpush1.msra.mxu0 0.0
        %2372 = vmatprep.subr.mxu0 0.0
        %2373 = vmatpush1.msra.mxu0 0.0
        %2374 = vmatprep.subr.mxu0 0.0
        %2375 = vmatpush1.msra.mxu0 0.0
        %2376 = vmatprep.subr.mxu0 0.0
        %2377 = vmatpush1.msra.mxu0 0.0
        %2378 = vmatprep.subr.mxu0 0.0
        %2379 = vmatpush1.msra.mxu0 0.0
        %2380 = vmatprep.subr.mxu0 0.0
        %2381 = vmatpush1.msra.mxu0 0.0
        %2382 = vmatprep.subr.mxu0 0.0
        %2383 = vmatpush1.msra.mxu0 0.0
        %2384 = vmatprep.subr.mxu0 0.0
        %2385 = vmatpush1.msra.mxu0 0.0
        %2386 = vmatprep.subr.mxu0 0.0
        %2387 = vmatpush1.msra.mxu0 0.0
        %2388 = vmatprep.subr.mxu0 0.0
        %2389 = vmatpush1.msra.mxu0 0.0
        %2390 = vmatprep.subr.mxu0 0.0
        %2391 = vmatpush1.msra.mxu0 0.0
        %2392 = vmatprep.subr.mxu0 0.0
        %2393 = vmatpush1.msra.mxu0 0.0
        %2394 = vmatprep.subr.mxu0 0.0
        %2395 = vmatpush1.msra.mxu0 0.0
        %2396 = vmatprep.subr.mxu0 0.0
        %2397 = vmatpush1.msra.mxu0 0.0
        %2398 = vmatprep.subr.mxu0 0.0
        %2399 = vmatpush1.msra.mxu0 0.0
        %2400 = vmatprep.subr.mxu0 0.0
        %2401 = vmatpush1.msra.mxu0 0.0
        %2402 = vmatprep.subr.mxu0 0.0
        %2403 = vmatpush1.msra.mxu0 0.0
        %2404 = vmatprep.subr.mxu0 0.0
        %2405 = vmatpush1.msra.mxu0 0.0
        %2406 = vmatprep.subr.mxu0 0.0
        %2407 = vmatpush1.msra.mxu0 0.0
        %2408 = vmatprep.subr.mxu0 0.0
        %2409 = vmatpush1.msra.mxu0 0.0
        %2410 = vmatprep.subr.mxu0 0.0
        %2411 = vmatpush1.msra.mxu0 0.0
        %2412 = vmatprep.mubr.f32.mxu0 0.0
        %v2413 = vand.u32 %v348, 4294901760
        %v2414 = vsub.f32 %v348, %v2413
        %2415 = vmatmul.mubr.f32.gmra.mrb[0].mxu0 %v2414
        %v2416 = vpop.f32.mrb[0].mxu0
        %v2417 = vadd.f32 %v2341, %v2416
        %v2418 = vpop.f32.mrb[0].mxu0
        %2419 = vdwg.mxu0
        %2420 = vmatprep.subr.mxu0 0.0
        %v2421 = vand.u32 %v339, 4294901760
        %2422 = vmatpush1.msra.mxu0 %v2421
        %2423 = vmatprep.subr.mxu0 0.0
        %v2424 = vand.u32 %v340, 4294901760
        %2425 = vmatpush1.msra.mxu0 %v2424
        %2426 = vmatprep.subr.mxu0 0.0
        %2427 = vmatpush1.msra.mxu0 0.0
        %2428 = vmatprep.subr.mxu0 0.0
        %2429 = vmatpush1.msra.mxu0 0.0
        %2430 = vmatprep.subr.mxu0 0.0
        %2431 = vmatpush1.msra.mxu0 0.0
        %2432 = vmatprep.subr.mxu0 0.0
        %2433 = vmatpush1.msra.mxu0 0.0
        %2434 = vmatprep.subr.mxu0 0.0
        %2435 = vmatpush1.msra.mxu0 0.0
        %2436 = vmatprep.subr.mxu0 0.0
        %2437 = vmatpush1.msra.mxu0 0.0
        %2438 = vmatprep.subr.mxu0 0.0
        %2439 = vmatpush1.msra.mxu0 0.0
        %2440 = vmatprep.subr.mxu0 0.0
        %2441 = vmatpush1.msra.mxu0 0.0
        %2442 = vmatprep.subr.mxu0 0.0
        %2443 = vmatpush1.msra.mxu0 0.0
        %2444 = vmatprep.subr.mxu0 0.0
        %2445 = vmatpush1.msra.mxu0 0.0
        %2446 = vmatprep.subr.mxu0 0.0
        %2447 = vmatpush1.msra.mxu0 0.0
        %2448 = vmatprep.subr.mxu0 0.0
        %2449 = vmatpush1.msra.mxu0 0.0
        %2450 = vmatprep.subr.mxu0 0.0
        %2451 = vmatpush1.msra.mxu0 0.0
        %2452 = vmatprep.subr.mxu0 0.0
        %2453 = vmatpush1.msra.mxu0 0.0
        %2454 = vmatprep.subr.mxu0 0.0
        %2455 = vmatpush1.msra.mxu0 0.0
        %2456 = vmatprep.subr.mxu0 0.0
        %2457 = vmatpush1.msra.mxu0 0.0
        %2458 = vmatprep.subr.mxu0 0.0
        %2459 = vmatpush1.msra.mxu0 0.0
        %2460 = vmatprep.subr.mxu0 0.0
        %2461 = vmatpush1.msra.mxu0 0.0
        %2462 = vmatprep.subr.mxu0 0.0
        %2463 = vmatpush1.msra.mxu0 0.0
        %2464 = vmatprep.subr.mxu0 0.0
        %2465 = vmatpush1.msra.mxu0 0.0
        %2466 = vmatprep.subr.mxu0 0.0
        %2467 = vmatpush1.msra.mxu0 0.0
        %2468 = vmatprep.subr.mxu0 0.0
        %2469 = vmatpush1.msra.mxu0 0.0
        %2470 = vmatprep.subr.mxu0 0.0
        %2471 = vmatpush1.msra.mxu0 0.0
        %2472 = vmatprep.subr.mxu0 0.0
        %2473 = vmatpush1.msra.mxu0 0.0
        %2474 = vmatprep.subr.mxu0 0.0
        %2475 = vmatpush1.msra.mxu0 0.0
        %2476 = vmatprep.subr.mxu0 0.0
        %2477 = vmatpush1.msra.mxu0 0.0
        %2478 = vmatprep.subr.mxu0 0.0
        %2479 = vmatpush1.msra.mxu0 0.0
        %2480 = vmatprep.subr.mxu0 0.0
        %2481 = vmatpush1.msra.mxu0 0.0
        %2482 = vmatprep.subr.mxu0 0.0
        %2483 = vmatpush1.msra.mxu0 0.0
        %2484 = vmatprep.subr.mxu0 0.0
        %2485 = vmatpush1.msra.mxu0 0.0
        %2486 = vmatprep.mubr.f32.mxu0 0.0
        %v2487 = vand.u32 %v348, 4294901760
        %v2488 = vsub.f32 %v348, %v2487
        %v2489 = vand.u32 %v2488, 4294901760
        %2490 = vmatmul.mubr.f32.gmra.mrb[0].mxu0 %v2489
        %v2491 = vpop.f32.mrb[0].mxu0
        %v2492 = vadd.f32 %v2417, %v2491
        %v2493 = vpop.f32.mrb[0].mxu0
        %2494 = vdwg.mxu0
        %2495 = vmatprep.subr.mxu0 0.0
        %v2496 = vand.u32 %v339, 4294901760
        %v2497 = vsub.f32 %v339, %v2496
        %v2498 = vand.u32 %v2497, 4294901760
        %2499 = vmatpush1.msra.mxu0 %v2498
        %2500 = vmatprep.subr.mxu0 0.0
        %v2501 = vand.u32 %v340, 4294901760
        %v2502 = vsub.f32 %v340, %v2501
        %v2503 = vand.u32 %v2502, 4294901760
        %2504 = vmatpush1.msra.mxu0 %v2503
        %2505 = vmatprep.subr.mxu0 0.0
        %2506 = vmatpush1.msra.mxu0 0.0
        %2507 = vmatprep.subr.mxu0 0.0
        %2508 = vmatpush1.msra.mxu0 0.0
        %2509 = vmatprep.subr.mxu0 0.0
        %2510 = vmatpush1.msra.mxu0 0.0
        %2511 = vmatprep.subr.mxu0 0.0
        %2512 = vmatpush1.msra.mxu0 0.0
        %2513 = vmatprep.subr.mxu0 0.0
        %2514 = vmatpush1.msra.mxu0 0.0
        %2515 = vmatprep.subr.mxu0 0.0
        %2516 = vmatpush1.msra.mxu0 0.0
        %2517 = vmatprep.subr.mxu0 0.0
        %2518 = vmatpush1.msra.mxu0 0.0
        %2519 = vmatprep.subr.mxu0 0.0
        %2520 = vmatpush1.msra.mxu0 0.0
        %2521 = vmatprep.subr.mxu0 0.0
        %2522 = vmatpush1.msra.mxu0 0.0
        %2523 = vmatprep.subr.mxu0 0.0
        %2524 = vmatpush1.msra.mxu0 0.0
        %2525 = vmatprep.subr.mxu0 0.0
        %2526 = vmatpush1.msra.mxu0 0.0
        %2527 = vmatprep.subr.mxu0 0.0
        %2528 = vmatpush1.msra.mxu0 0.0
        %2529 = vmatprep.subr.mxu0 0.0
        %2530 = vmatpush1.msra.mxu0 0.0
        %2531 = vmatprep.subr.mxu0 0.0
        %2532 = vmatpush1.msra.mxu0 0.0
        %2533 = vmatprep.subr.mxu0 0.0
        %2534 = vmatpush1.msra.mxu0 0.0
        %2535 = vmatprep.subr.mxu0 0.0
        %2536 = vmatpush1.msra.mxu0 0.0
        %2537 = vmatprep.subr.mxu0 0.0
        %2538 = vmatpush1.msra.mxu0 0.0
        %2539 = vmatprep.subr.mxu0 0.0
        %2540 = vmatpush1.msra.mxu0 0.0
        %2541 = vmatprep.subr.mxu0 0.0
        %2542 = vmatpush1.msra.mxu0 0.0
        %2543 = vmatprep.subr.mxu0 0.0
        %2544 = vmatpush1.msra.mxu0 0.0
        %2545 = vmatprep.subr.mxu0 0.0
        %2546 = vmatpush1.msra.mxu0 0.0
        %2547 = vmatprep.subr.mxu0 0.0
        %2548 = vmatpush1.msra.mxu0 0.0
        %2549 = vmatprep.subr.mxu0 0.0
        %2550 = vmatpush1.msra.mxu0 0.0
        %2551 = vmatprep.subr.mxu0 0.0
        %2552 = vmatpush1.msra.mxu0 0.0
        %2553 = vmatprep.subr.mxu0 0.0
        %2554 = vmatpush1.msra.mxu0 0.0
        %2555 = vmatprep.subr.mxu0 0.0
        %2556 = vmatpush1.msra.mxu0 0.0
        %2557 = vmatprep.subr.mxu0 0.0
        %2558 = vmatpush1.msra.mxu0 0.0
        %2559 = vmatprep.subr.mxu0 0.0
        %2560 = vmatpush1.msra.mxu0 0.0
        %2561 = vmatprep.subr.mxu0 0.0
        %2562 = vmatpush1.msra.mxu0 0.0
        %2563 = vmatprep.subr.mxu0 0.0
        %2564 = vmatpush1.msra.mxu0 0.0
        %2565 = vmatprep.mubr.f32.mxu0 0.0
        %v2566 = vand.u32 %v348, 4294901760
        %2567 = vmatmul.mubr.f32.gmra.mrb[0].mxu0 %v2566
        %v2568 = vpop.f32.mrb[0].mxu0
        %v2569 = vadd.f32 %v2492, %v2568
        %v2570 = vpop.f32.mrb[0].mxu0
        %2571 = vdwg.mxu0
        %2572 = vmatprep.subr.mxu0 0.0
        %v2573 = vand.u32 %v339, 4294901760
        %2574 = vmatpush1.msra.mxu0 %v2573
        %2575 = vmatprep.subr.mxu0 0.0
        %v2576 = vand.u32 %v340, 4294901760
        %2577 = vmatpush1.msra.mxu0 %v2576
        %2578 = vmatprep.subr.mxu0 0.0
        %2579 = vmatpush1.msra.mxu0 0.0
        %2580 = vmatprep.subr.mxu0 0.0
        %2581 = vmatpush1.msra.mxu0 0.0
        %2582 = vmatprep.subr.mxu0 0.0
        %2583 = vmatpush1.msra.mxu0 0.0
        %2584 = vmatprep.subr.mxu0 0.0
        %2585 = vmatpush1.msra.mxu0 0.0
        %2586 = vmatprep.subr.mxu0 0.0
        %2587 = vmatpush1.msra.mxu0 0.0
        %2588 = vmatprep.subr.mxu0 0.0
        %2589 = vmatpush1.msra.mxu0 0.0
        %2590 = vmatprep.subr.mxu0 0.0
        %2591 = vmatpush1.msra.mxu0 0.0
        %2592 = vmatprep.subr.mxu0 0.0
        %2593 = vmatpush1.msra.mxu0 0.0
        %2594 = vmatprep.subr.mxu0 0.0
        %2595 = vmatpush1.msra.mxu0 0.0
        %2596 = vmatprep.subr.mxu0 0.0
        %2597 = vmatpush1.msra.mxu0 0.0
        %2598 = vmatprep.subr.mxu0 0.0
        %2599 = vmatpush1.msra.mxu0 0.0
        %2600 = vmatprep.subr.mxu0 0.0
        %2601 = vmatpush1.msra.mxu0 0.0
        %2602 = vmatprep.subr.mxu0 0.0
        %2603 = vmatpush1.msra.mxu0 0.0
        %2604 = vmatprep.subr.mxu0 0.0
        %2605 = vmatpush1.msra.mxu0 0.0
        %2606 = vmatprep.subr.mxu0 0.0
        %2607 = vmatpush1.msra.mxu0 0.0
        %2608 = vmatprep.subr.mxu0 0.0
        %2609 = vmatpush1.msra.mxu0 0.0
        %2610 = vmatprep.subr.mxu0 0.0
        %2611 = vmatpush1.msra.mxu0 0.0
        %2612 = vmatprep.subr.mxu0 0.0
        %2613 = vmatpush1.msra.mxu0 0.0
        %2614 = vmatprep.subr.mxu0 0.0
        %2615 = vmatpush1.msra.mxu0 0.0
        %2616 = vmatprep.subr.mxu0 0.0
        %2617 = vmatpush1.msra.mxu0 0.0
        %2618 = vmatprep.subr.mxu0 0.0
        %2619 = vmatpush1.msra.mxu0 0.0
        %2620 = vmatprep.subr.mxu0 0.0
        %2621 = vmatpush1.msra.mxu0 0.0
        %2622 = vmatprep.subr.mxu0 0.0
        %2623 = vmatpush1.msra.mxu0 0.0
        %2624 = vmatprep.subr.mxu0 0.0
        %2625 = vmatpush1.msra.mxu0 0.0
        %2626 = vmatprep.subr.mxu0 0.0
        %2627 = vmatpush1.msra.mxu0 0.0
        %2628 = vmatprep.subr.mxu0 0.0
        %2629 = vmatpush1.msra.mxu0 0.0
        %2630 = vmatprep.subr.mxu0 0.0
        %2631 = vmatpush1.msra.mxu0 0.0
        %2632 = vmatprep.subr.mxu0 0.0
        %2633 = vmatpush1.msra.mxu0 0.0
        %2634 = vmatprep.subr.mxu0 0.0
        %2635 = vmatpush1.msra.mxu0 0.0
        %2636 = vmatprep.subr.mxu0 0.0
        %2637 = vmatpush1.msra.mxu0 0.0
        %2638 = vmatprep.mubr.f32.mxu0 0.0
        %v2639 = vand.u32 %v348, 4294901760
        %2640 = vmatmul.mubr.f32.gmra.mrb[0].mxu0 %v2639
        %v2641 = vpop.f32.mrb[0].mxu0
        %v2642 = vadd.f32 %v2569, %v2641
        %v2643 = vpop.f32.mrb[0].mxu0
        %2644 = vdwg.mxu0
        %2645 = vmatprep.subr.mxu0 0.0
        %v2646 = vand.u32 %v341, 4294901760
        %2647 = vmatpush1.msra.mxu0 %v2646
        %2648 = vmatprep.subr.mxu0 0.0
        %v2649 = vand.u32 %v342, 4294901760
        %2650 = vmatpush1.msra.mxu0 %v2649
        %2651 = vmatprep.subr.mxu0 0.0
        %2652 = vmatpush1.msra.mxu0 0.0
        %2653 = vmatprep.subr.mxu0 0.0
        %2654 = vmatpush1.msra.mxu0 0.0
        %2655 = vmatprep.subr.mxu0 0.0
        %2656 = vmatpush1.msra.mxu0 0.0
        %2657 = vmatprep.subr.mxu0 0.0
        %2658 = vmatpush1.msra.mxu0 0.0
        %2659 = vmatprep.subr.mxu0 0.0
        %2660 = vmatpush1.msra.mxu0 0.0
        %2661 = vmatprep.subr.mxu0 0.0
        %2662 = vmatpush1.msra.mxu0 0.0
        %2663 = vmatprep.subr.mxu0 0.0
        %2664 = vmatpush1.msra.mxu0 0.0
        %2665 = vmatprep.subr.mxu0 0.0
        %2666 = vmatpush1.msra.mxu0 0.0
        %2667 = vmatprep.subr.mxu0 0.0
        %2668 = vmatpush1.msra.mxu0 0.0
        %2669 = vmatprep.subr.mxu0 0.0
        %2670 = vmatpush1.msra.mxu0 0.0
        %2671 = vmatprep.subr.mxu0 0.0
        %2672 = vmatpush1.msra.mxu0 0.0
        %2673 = vmatprep.subr.mxu0 0.0
        %2674 = vmatpush1.msra.mxu0 0.0
        %2675 = vmatprep.subr.mxu0 0.0
        %2676 = vmatpush1.msra.mxu0 0.0
        %2677 = vmatprep.subr.mxu0 0.0
        %2678 = vmatpush1.msra.mxu0 0.0
        %2679 = vmatprep.subr.mxu0 0.0
        %2680 = vmatpush1.msra.mxu0 0.0
        %2681 = vmatprep.subr.mxu0 0.0
        %2682 = vmatpush1.msra.mxu0 0.0
        %2683 = vmatprep.subr.mxu0 0.0
        %2684 = vmatpush1.msra.mxu0 0.0
        %2685 = vmatprep.subr.mxu0 0.0
        %2686 = vmatpush1.msra.mxu0 0.0
        %2687 = vmatprep.subr.mxu0 0.0
        %2688 = vmatpush1.msra.mxu0 0.0
        %2689 = vmatprep.subr.mxu0 0.0
        %2690 = vmatpush1.msra.mxu0 0.0
        %2691 = vmatprep.subr.mxu0 0.0
        %2692 = vmatpush1.msra.mxu0 0.0
        %2693 = vmatprep.subr.mxu0 0.0
        %2694 = vmatpush1.msra.mxu0 0.0
        %2695 = vmatprep.subr.mxu0 0.0
        %2696 = vmatpush1.msra.mxu0 0.0
        %2697 = vmatprep.subr.mxu0 0.0
        %2698 = vmatpush1.msra.mxu0 0.0
        %2699 = vmatprep.subr.mxu0 0.0
        %2700 = vmatpush1.msra.mxu0 0.0
        %2701 = vmatprep.subr.mxu0 0.0
        %2702 = vmatpush1.msra.mxu0 0.0
        %2703 = vmatprep.subr.mxu0 0.0
        %2704 = vmatpush1.msra.mxu0 0.0
        %2705 = vmatprep.subr.mxu0 0.0
        %2706 = vmatpush1.msra.mxu0 0.0
        %2707 = vmatprep.subr.mxu0 0.0
        %2708 = vmatpush1.msra.mxu0 0.0
        %2709 = vmatprep.subr.mxu0 0.0
        %2710 = vmatpush1.msra.mxu0 0.0
        %2711 = vmatprep.mubr.f32.mxu0 0.0
        %v2712 = vand.u32 %v348, 4294901760
        %v2713 = vsub.f32 %v348, %v2712
        %v2714 = vand.u32 %v2713, 4294901760
        %v2715 = vsub.f32 %v2713, %v2714
        %v2716 = vand.u32 %v2715, 4294901760
        %2717 = vmatmul.mubr.f32.gmra.mrb[0].mxu0 %v2716
        %v2718 = vpop.f32.mrb[0].mxu0
        %v2719 = vadd.f32 0.0, %v2718
        %v2720 = vpop.f32.mrb[0].mxu0
        %2721 = vdwg.mxu0
        %2722 = vmatprep.subr.mxu0 0.0
        %v2723 = vand.u32 %v341, 4294901760
        %v2724 = vsub.f32 %v341, %v2723
        %v2725 = vand.u32 %v2724, 4294901760
        %v2726 = vsub.f32 %v2724, %v2725
        %v2727 = vand.u32 %v2726, 4294901760
        %2728 = vmatpush1.msra.mxu0 %v2727
        %2729 = vmatprep.subr.mxu0 0.0
        %v2730 = vand.u32 %v342, 4294901760
        %v2731 = vsub.f32 %v342, %v2730
        %v2732 = vand.u32 %v2731, 4294901760
        %v2733 = vsub.f32 %v2731, %v2732
        %v2734 = vand.u32 %v2733, 4294901760
        %2735 = vmatpush1.msra.mxu0 %v2734
        %2736 = vmatprep.subr.mxu0 0.0
        %2737 = vmatpush1.msra.mxu0 0.0
        %2738 = vmatprep.subr.mxu0 0.0
        %2739 = vmatpush1.msra.mxu0 0.0
        %2740 = vmatprep.subr.mxu0 0.0
        %2741 = vmatpush1.msra.mxu0 0.0
        %2742 = vmatprep.subr.mxu0 0.0
        %2743 = vmatpush1.msra.mxu0 0.0
        %2744 = vmatprep.subr.mxu0 0.0
        %2745 = vmatpush1.msra.mxu0 0.0
        %2746 = vmatprep.subr.mxu0 0.0
        %2747 = vmatpush1.msra.mxu0 0.0
        %2748 = vmatprep.subr.mxu0 0.0
        %2749 = vmatpush1.msra.mxu0 0.0
        %2750 = vmatprep.subr.mxu0 0.0
        %2751 = vmatpush1.msra.mxu0 0.0
        %2752 = vmatprep.subr.mxu0 0.0
        %2753 = vmatpush1.msra.mxu0 0.0
        %2754 = vmatprep.subr.mxu0 0.0
        %2755 = vmatpush1.msra.mxu0 0.0
        %2756 = vmatprep.subr.mxu0 0.0
        %2757 = vmatpush1.msra.mxu0 0.0
        %2758 = vmatprep.subr.mxu0 0.0
        %2759 = vmatpush1.msra.mxu0 0.0
        %2760 = vmatprep.subr.mxu0 0.0
        %2761 = vmatpush1.msra.mxu0 0.0
        %2762 = vmatprep.subr.mxu0 0.0
        %2763 = vmatpush1.msra.mxu0 0.0
        %2764 = vmatprep.subr.mxu0 0.0
        %2765 = vmatpush1.msra.mxu0 0.0
        %2766 = vmatprep.subr.mxu0 0.0
        %2767 = vmatpush1.msra.mxu0 0.0
        %2768 = vmatprep.subr.mxu0 0.0
        %2769 = vmatpush1.msra.mxu0 0.0
        %2770 = vmatprep.subr.mxu0 0.0
        %2771 = vmatpush1.msra.mxu0 0.0
        %2772 = vmatprep.subr.mxu0 0.0
        %2773 = vmatpush1.msra.mxu0 0.0
        %2774 = vmatprep.subr.mxu0 0.0
        %2775 = vmatpush1.msra.mxu0 0.0
        %2776 = vmatprep.subr.mxu0 0.0
        %2777 = vmatpush1.msra.mxu0 0.0
        %2778 = vmatprep.subr.mxu0 0.0
        %2779 = vmatpush1.msra.mxu0 0.0
        %2780 = vmatprep.subr.mxu0 0.0
        %2781 = vmatpush1.msra.mxu0 0.0
        %2782 = vmatprep.subr.mxu0 0.0
        %2783 = vmatpush1.msra.mxu0 0.0
        %2784 = vmatprep.subr.mxu0 0.0
        %2785 = vmatpush1.msra.mxu0 0.0
        %2786 = vmatprep.subr.mxu0 0.0
        %2787 = vmatpush1.msra.mxu0 0.0
        %2788 = vmatprep.subr.mxu0 0.0
        %2789 = vmatpush1.msra.mxu0 0.0
        %2790 = vmatprep.subr.mxu0 0.0
        %2791 = vmatpush1.msra.mxu0 0.0
        %2792 = vmatprep.subr.mxu0 0.0
        %2793 = vmatpush1.msra.mxu0 0.0
        %2794 = vmatprep.subr.mxu0 0.0
        %2795 = vmatpush1.msra.mxu0 0.0
        %2796 = vmatprep.mubr.f32.mxu0 0.0
        %v2797 = vand.u32 %v348, 4294901760
        %2798 = vmatmul.mubr.f32.gmra.mrb[0].mxu0 %v2797
        %v2799 = vpop.f32.mrb[0].mxu0
        %v2800 = vadd.f32 %v2719, %v2799
        %v2801 = vpop.f32.mrb[0].mxu0
        %2802 = vdwg.mxu0
        %2803 = vmatprep.subr.mxu0 0.0
        %v2804 = vand.u32 %v341, 4294901760
        %v2805 = vsub.f32 %v341, %v2804
        %2806 = vmatpush1.msra.mxu0 %v2805
        %2807 = vmatprep.subr.mxu0 0.0
        %v2808 = vand.u32 %v342, 4294901760
        %v2809 = vsub.f32 %v342, %v2808
        %2810 = vmatpush1.msra.mxu0 %v2809
        %2811 = vmatprep.subr.mxu0 0.0
        %2812 = vmatpush1.msra.mxu0 0.0
        %2813 = vmatprep.subr.mxu0 0.0
        %2814 = vmatpush1.msra.mxu0 0.0
        %2815 = vmatprep.subr.mxu0 0.0
        %2816 = vmatpush1.msra.mxu0 0.0
        %2817 = vmatprep.subr.mxu0 0.0
        %2818 = vmatpush1.msra.mxu0 0.0
        %2819 = vmatprep.subr.mxu0 0.0
        %2820 = vmatpush1.msra.mxu0 0.0
        %2821 = vmatprep.subr.mxu0 0.0
        %2822 = vmatpush1.msra.mxu0 0.0
        %2823 = vmatprep.subr.mxu0 0.0
        %2824 = vmatpush1.msra.mxu0 0.0
        %2825 = vmatprep.subr.mxu0 0.0
        %2826 = vmatpush1.msra.mxu0 0.0
        %2827 = vmatprep.subr.mxu0 0.0
        %2828 = vmatpush1.msra.mxu0 0.0
        %2829 = vmatprep.subr.mxu0 0.0
        %2830 = vmatpush1.msra.mxu0 0.0
        %2831 = vmatprep.subr.mxu0 0.0
        %2832 = vmatpush1.msra.mxu0 0.0
        %2833 = vmatprep.subr.mxu0 0.0
        %2834 = vmatpush1.msra.mxu0 0.0
        %2835 = vmatprep.subr.mxu0 0.0
        %2836 = vmatpush1.msra.mxu0 0.0
        %2837 = vmatprep.subr.mxu0 0.0
        %2838 = vmatpush1.msra.mxu0 0.0
        %2839 = vmatprep.subr.mxu0 0.0
        %2840 = vmatpush1.msra.mxu0 0.0
        %2841 = vmatprep.subr.mxu0 0.0
        %2842 = vmatpush1.msra.mxu0 0.0
        %2843 = vmatprep.subr.mxu0 0.0
        %2844 = vmatpush1.msra.mxu0 0.0
        %2845 = vmatprep.subr.mxu0 0.0
        %2846 = vmatpush1.msra.mxu0 0.0
        %2847 = vmatprep.subr.mxu0 0.0
        %2848 = vmatpush1.msra.mxu0 0.0
        %2849 = vmatprep.subr.mxu0 0.0
        %2850 = vmatpush1.msra.mxu0 0.0
        %2851 = vmatprep.subr.mxu0 0.0
        %2852 = vmatpush1.msra.mxu0 0.0
        %2853 = vmatprep.subr.mxu0 0.0
        %2854 = vmatpush1.msra.mxu0 0.0
        %2855 = vmatprep.subr.mxu0 0.0
        %2856 = vmatpush1.msra.mxu0 0.0
        %2857 = vmatprep.subr.mxu0 0.0
        %2858 = vmatpush1.msra.mxu0 0.0
        %2859 = vmatprep.subr.mxu0 0.0
        %2860 = vmatpush1.msra.mxu0 0.0
        %2861 = vmatprep.subr.mxu0 0.0
        %2862 = vmatpush1.msra.mxu0 0.0
        %2863 = vmatprep.subr.mxu0 0.0
        %2864 = vmatpush1.msra.mxu0 0.0
        %2865 = vmatprep.subr.mxu0 0.0
        %2866 = vmatpush1.msra.mxu0 0.0
        %2867 = vmatprep.subr.mxu0 0.0
        %2868 = vmatpush1.msra.mxu0 0.0
        %2869 = vmatprep.subr.mxu0 0.0
        %2870 = vmatpush1.msra.mxu0 0.0
        %2871 = vmatprep.mubr.f32.mxu0 0.0
        %v2872 = vand.u32 %v348, 4294901760
        %v2873 = vsub.f32 %v348, %v2872
        %2874 = vmatmul.mubr.f32.gmra.mrb[0].mxu0 %v2873
        %v2875 = vpop.f32.mrb[0].mxu0
        %v2876 = vadd.f32 %v2800, %v2875
        %v2877 = vpop.f32.mrb[0].mxu0
        %2878 = vdwg.mxu0
        %2879 = vmatprep.subr.mxu0 0.0
        %v2880 = vand.u32 %v341, 4294901760
        %2881 = vmatpush1.msra.mxu0 %v2880
        %2882 = vmatprep.subr.mxu0 0.0
        %v2883 = vand.u32 %v342, 4294901760
        %2884 = vmatpush1.msra.mxu0 %v2883
        %2885 = vmatprep.subr.mxu0 0.0
        %2886 = vmatpush1.msra.mxu0 0.0
        %2887 = vmatprep.subr.mxu0 0.0
        %2888 = vmatpush1.msra.mxu0 0.0
        %2889 = vmatprep.subr.mxu0 0.0
        %2890 = vmatpush1.msra.mxu0 0.0
        %2891 = vmatprep.subr.mxu0 0.0
        %2892 = vmatpush1.msra.mxu0 0.0
        %2893 = vmatprep.subr.mxu0 0.0
        %2894 = vmatpush1.msra.mxu0 0.0
        %2895 = vmatprep.subr.mxu0 0.0
        %2896 = vmatpush1.msra.mxu0 0.0
        %2897 = vmatprep.subr.mxu0 0.0
        %2898 = vmatpush1.msra.mxu0 0.0
        %2899 = vmatprep.subr.mxu0 0.0
        %2900 = vmatpush1.msra.mxu0 0.0
        %2901 = vmatprep.subr.mxu0 0.0
        %2902 = vmatpush1.msra.mxu0 0.0
        %2903 = vmatprep.subr.mxu0 0.0
        %2904 = vmatpush1.msra.mxu0 0.0
        %2905 = vmatprep.subr.mxu0 0.0
        %2906 = vmatpush1.msra.mxu0 0.0
        %2907 = vmatprep.subr.mxu0 0.0
        %2908 = vmatpush1.msra.mxu0 0.0
        %2909 = vmatprep.subr.mxu0 0.0
        %2910 = vmatpush1.msra.mxu0 0.0
        %2911 = vmatprep.subr.mxu0 0.0
        %2912 = vmatpush1.msra.mxu0 0.0
        %2913 = vmatprep.subr.mxu0 0.0
        %2914 = vmatpush1.msra.mxu0 0.0
        %2915 = vmatprep.subr.mxu0 0.0
        %2916 = vmatpush1.msra.mxu0 0.0
        %2917 = vmatprep.subr.mxu0 0.0
        %2918 = vmatpush1.msra.mxu0 0.0
        %2919 = vmatprep.subr.mxu0 0.0
        %2920 = vmatpush1.msra.mxu0 0.0
        %2921 = vmatprep.subr.mxu0 0.0
        %2922 = vmatpush1.msra.mxu0 0.0
        %2923 = vmatprep.subr.mxu0 0.0
        %2924 = vmatpush1.msra.mxu0 0.0
        %2925 = vmatprep.subr.mxu0 0.0
        %2926 = vmatpush1.msra.mxu0 0.0
        %2927 = vmatprep.subr.mxu0 0.0
        %2928 = vmatpush1.msra.mxu0 0.0
        %2929 = vmatprep.subr.mxu0 0.0
        %2930 = vmatpush1.msra.mxu0 0.0
        %2931 = vmatprep.subr.mxu0 0.0
        %2932 = vmatpush1.msra.mxu0 0.0
        %2933 = vmatprep.subr.mxu0 0.0
        %2934 = vmatpush1.msra.mxu0 0.0
        %2935 = vmatprep.subr.mxu0 0.0
        %2936 = vmatpush1.msra.mxu0 0.0
        %2937 = vmatprep.subr.mxu0 0.0
        %2938 = vmatpush1.msra.mxu0 0.0
        %2939 = vmatprep.subr.mxu0 0.0
        %2940 = vmatpush1.msra.mxu0 0.0
        %2941 = vmatprep.subr.mxu0 0.0
        %2942 = vmatpush1.msra.mxu0 0.0
        %2943 = vmatprep.subr.mxu0 0.0
        %2944 = vmatpush1.msra.mxu0 0.0
        %2945 = vmatprep.mubr.f32.mxu0 0.0
        %v2946 = vand.u32 %v348, 4294901760
        %v2947 = vsub.f32 %v348, %v2946
        %v2948 = vand.u32 %v2947, 4294901760
        %2949 = vmatmul.mubr.f32.gmra.mrb[0].mxu0 %v2948
        %v2950 = vpop.f32.mrb[0].mxu0
        %v2951 = vadd.f32 %v2876, %v2950
        %v2952 = vpop.f32.mrb[0].mxu0
        %2953 = vdwg.mxu0
        %2954 = vmatprep.subr.mxu0 0.0
        %v2955 = vand.u32 %v341, 4294901760
        %v2956 = vsub.f32 %v341, %v2955
        %v2957 = vand.u32 %v2956, 4294901760
        %2958 = vmatpush1.msra.mxu0 %v2957
        %2959 = vmatprep.subr.mxu0 0.0
        %v2960 = vand.u32 %v342, 4294901760
        %v2961 = vsub.f32 %v342, %v2960
        %v2962 = vand.u32 %v2961, 4294901760
        %2963 = vmatpush1.msra.mxu0 %v2962
        %2964 = vmatprep.subr.mxu0 0.0
        %2965 = vmatpush1.msra.mxu0 0.0
        %2966 = vmatprep.subr.mxu0 0.0
        %2967 = vmatpush1.msra.mxu0 0.0
        %2968 = vmatprep.subr.mxu0 0.0
        %2969 = vmatpush1.msra.mxu0 0.0
        %2970 = vmatprep.subr.mxu0 0.0
        %2971 = vmatpush1.msra.mxu0 0.0
        %2972 = vmatprep.subr.mxu0 0.0
        %2973 = vmatpush1.msra.mxu0 0.0
        %2974 = vmatprep.subr.mxu0 0.0
        %2975 = vmatpush1.msra.mxu0 0.0
        %2976 = vmatprep.subr.mxu0 0.0
        %2977 = vmatpush1.msra.mxu0 0.0
        %2978 = vmatprep.subr.mxu0 0.0
        %2979 = vmatpush1.msra.mxu0 0.0
        %2980 = vmatprep.subr.mxu0 0.0
        %2981 = vmatpush1.msra.mxu0 0.0
        %2982 = vmatprep.subr.mxu0 0.0
        %2983 = vmatpush1.msra.mxu0 0.0
        %2984 = vmatprep.subr.mxu0 0.0
        %2985 = vmatpush1.msra.mxu0 0.0
        %2986 = vmatprep.subr.mxu0 0.0
        %2987 = vmatpush1.msra.mxu0 0.0
        %2988 = vmatprep.subr.mxu0 0.0
        %2989 = vmatpush1.msra.mxu0 0.0
        %2990 = vmatprep.subr.mxu0 0.0
        %2991 = vmatpush1.msra.mxu0 0.0
        %2992 = vmatprep.subr.mxu0 0.0
        %2993 = vmatpush1.msra.mxu0 0.0
        %2994 = vmatprep.subr.mxu0 0.0
        %2995 = vmatpush1.msra.mxu0 0.0
        %2996 = vmatprep.subr.mxu0 0.0
        %2997 = vmatpush1.msra.mxu0 0.0
        %2998 = vmatprep.subr.mxu0 0.0
        %2999 = vmatpush1.msra.mxu0 0.0
        %3000 = vmatprep.subr.mxu0 0.0
        %3001 = vmatpush1.msra.mxu0 0.0
        %3002 = vmatprep.subr.mxu0 0.0
        %3003 = vmatpush1.msra.mxu0 0.0
        %3004 = vmatprep.subr.mxu0 0.0
        %3005 = vmatpush1.msra.mxu0 0.0
        %3006 = vmatprep.subr.mxu0 0.0
        %3007 = vmatpush1.msra.mxu0 0.0
        %3008 = vmatprep.subr.mxu0 0.0
        %3009 = vmatpush1.msra.mxu0 0.0
        %3010 = vmatprep.subr.mxu0 0.0
        %3011 = vmatpush1.msra.mxu0 0.0
        %3012 = vmatprep.subr.mxu0 0.0
        %3013 = vmatpush1.msra.mxu0 0.0
        %3014 = vmatprep.subr.mxu0 0.0
        %3015 = vmatpush1.msra.mxu0 0.0
        %3016 = vmatprep.subr.mxu0 0.0
        %3017 = vmatpush1.msra.mxu0 0.0
        %3018 = vmatprep.subr.mxu0 0.0
        %3019 = vmatpush1.msra.mxu0 0.0
        %3020 = vmatprep.subr.mxu0 0.0
        %3021 = vmatpush1.msra.mxu0 0.0
        %3022 = vmatprep.subr.mxu0 0.0
        %3023 = vmatpush1.msra.mxu0 0.0
        %3024 = vmatprep.mubr.f32.mxu0 0.0
        %v3025 = vand.u32 %v348, 4294901760
        %3026 = vmatmul.mubr.f32.gmra.mrb[0].mxu0 %v3025
        %v3027 = vpop.f32.mrb[0].mxu0
        %v3028 = vadd.f32 %v2951, %v3027
        %v3029 = vpop.f32.mrb[0].mxu0
        %3030 = vdwg.mxu0
        %3031 = vmatprep.subr.mxu0 0.0
        %v3032 = vand.u32 %v341, 4294901760
        %3033 = vmatpush1.msra.mxu0 %v3032
        %3034 = vmatprep.subr.mxu0 0.0
        %v3035 = vand.u32 %v342, 4294901760
        %3036 = vmatpush1.msra.mxu0 %v3035
        %3037 = vmatprep.subr.mxu0 0.0
        %3038 = vmatpush1.msra.mxu0 0.0
        %3039 = vmatprep.subr.mxu0 0.0
        %3040 = vmatpush1.msra.mxu0 0.0
        %3041 = vmatprep.subr.mxu0 0.0
        %3042 = vmatpush1.msra.mxu0 0.0
        %3043 = vmatprep.subr.mxu0 0.0
        %3044 = vmatpush1.msra.mxu0 0.0
        %3045 = vmatprep.subr.mxu0 0.0
        %3046 = vmatpush1.msra.mxu0 0.0
        %3047 = vmatprep.subr.mxu0 0.0
        %3048 = vmatpush1.msra.mxu0 0.0
        %3049 = vmatprep.subr.mxu0 0.0
        %3050 = vmatpush1.msra.mxu0 0.0
        %3051 = vmatprep.subr.mxu0 0.0
        %3052 = vmatpush1.msra.mxu0 0.0
        %3053 = vmatprep.subr.mxu0 0.0
        %3054 = vmatpush1.msra.mxu0 0.0
        %3055 = vmatprep.subr.mxu0 0.0
        %3056 = vmatpush1.msra.mxu0 0.0
        %3057 = vmatprep.subr.mxu0 0.0
        %3058 = vmatpush1.msra.mxu0 0.0
        %3059 = vmatprep.subr.mxu0 0.0
        %3060 = vmatpush1.msra.mxu0 0.0
        %3061 = vmatprep.subr.mxu0 0.0
        %3062 = vmatpush1.msra.mxu0 0.0
        %3063 = vmatprep.subr.mxu0 0.0
        %3064 = vmatpush1.msra.mxu0 0.0
        %3065 = vmatprep.subr.mxu0 0.0
        %3066 = vmatpush1.msra.mxu0 0.0
        %3067 = vmatprep.subr.mxu0 0.0
        %3068 = vmatpush1.msra.mxu0 0.0
        %3069 = vmatprep.subr.mxu0 0.0
        %3070 = vmatpush1.msra.mxu0 0.0
        %3071 = vmatprep.subr.mxu0 0.0
        %3072 = vmatpush1.msra.mxu0 0.0
        %3073 = vmatprep.subr.mxu0 0.0
        %3074 = vmatpush1.msra.mxu0 0.0
        %3075 = vmatprep.subr.mxu0 0.0
        %3076 = vmatpush1.msra.mxu0 0.0
        %3077 = vmatprep.subr.mxu0 0.0
        %3078 = vmatpush1.msra.mxu0 0.0
        %3079 = vmatprep.subr.mxu0 0.0
        %3080 = vmatpush1.msra.mxu0 0.0
        %3081 = vmatprep.subr.mxu0 0.0
        %3082 = vmatpush1.msra.mxu0 0.0
        %3083 = vmatprep.subr.mxu0 0.0
        %3084 = vmatpush1.msra.mxu0 0.0
        %3085 = vmatprep.subr.mxu0 0.0
        %3086 = vmatpush1.msra.mxu0 0.0
        %3087 = vmatprep.subr.mxu0 0.0
        %3088 = vmatpush1.msra.mxu0 0.0
        %3089 = vmatprep.subr.mxu0 0.0
        %3090 = vmatpush1.msra.mxu0 0.0
        %3091 = vmatprep.subr.mxu0 0.0
        %3092 = vmatpush1.msra.mxu0 0.0
        %3093 = vmatprep.subr.mxu0 0.0
        %3094 = vmatpush1.msra.mxu0 0.0
        %3095 = vmatprep.subr.mxu0 0.0
        %3096 = vmatpush1.msra.mxu0 0.0
        %3097 = vmatprep.mubr.f32.mxu0 0.0
        %v3098 = vand.u32 %v348, 4294901760
        %3099 = vmatmul.mubr.f32.gmra.mrb[0].mxu0 %v3098
        %v3100 = vpop.f32.mrb[0].mxu0
        %v3101 = vadd.f32 %v3028, %v3100
        %v3102 = vpop.f32.mrb[0].mxu0
        %3103 = vdwg.mxu0
        %v3105 = vsel %vm346, %v806, 0
        %3107 = vmatprep.subr.mxu0 0.0
        %v3108 = vand.u32 %v344, 4294901760
        %3109 = vmatpush1.msra.mxu0 %v3108
        %3110 = vmatprep.subr.mxu0 0.0
        %v3111 = vand.u32 %v345, 4294901760
        %3112 = vmatpush1.msra.mxu0 %v3111
        %3113 = vmatprep.subr.mxu0 0.0
        %3114 = vmatpush1.msra.mxu0 0.0
        %3115 = vmatprep.subr.mxu0 0.0
        %3116 = vmatpush1.msra.mxu0 0.0
        %3117 = vmatprep.subr.mxu0 0.0
        %3118 = vmatpush1.msra.mxu0 0.0
        %3119 = vmatprep.subr.mxu0 0.0
        %3120 = vmatpush1.msra.mxu0 0.0
        %3121 = vmatprep.subr.mxu0 0.0
        %3122 = vmatpush1.msra.mxu0 0.0
        %3123 = vmatprep.subr.mxu0 0.0
        %3124 = vmatpush1.msra.mxu0 0.0
        %3125 = vmatprep.subr.mxu0 0.0
        %3126 = vmatpush1.msra.mxu0 0.0
        %3127 = vmatprep.subr.mxu0 0.0
        %3128 = vmatpush1.msra.mxu0 0.0
        %3129 = vmatprep.subr.mxu0 0.0
        %3130 = vmatpush1.msra.mxu0 0.0
        %3131 = vmatprep.subr.mxu0 0.0
        %3132 = vmatpush1.msra.mxu0 0.0
        %3133 = vmatprep.subr.mxu0 0.0
        %3134 = vmatpush1.msra.mxu0 0.0
        %3135 = vmatprep.subr.mxu0 0.0
        %3136 = vmatpush1.msra.mxu0 0.0
        %3137 = vmatprep.subr.mxu0 0.0
        %3138 = vmatpush1.msra.mxu0 0.0
        %3139 = vmatprep.subr.mxu0 0.0
        %3140 = vmatpush1.msra.mxu0 0.0
        %3141 = vmatprep.subr.mxu0 0.0
        %3142 = vmatpush1.msra.mxu0 0.0
        %3143 = vmatprep.subr.mxu0 0.0
        %3144 = vmatpush1.msra.mxu0 0.0
        %3145 = vmatprep.subr.mxu0 0.0
        %3146 = vmatpush1.msra.mxu0 0.0
        %3147 = vmatprep.subr.mxu0 0.0
        %3148 = vmatpush1.msra.mxu0 0.0
        %3149 = vmatprep.subr.mxu0 0.0
        %3150 = vmatpush1.msra.mxu0 0.0
        %3151 = vmatprep.subr.mxu0 0.0
        %3152 = vmatpush1.msra.mxu0 0.0
        %3153 = vmatprep.subr.mxu0 0.0
        %3154 = vmatpush1.msra.mxu0 0.0
        %3155 = vmatprep.subr.mxu0 0.0
        %3156 = vmatpush1.msra.mxu0 0.0
        %3157 = vmatprep.subr.mxu0 0.0
        %3158 = vmatpush1.msra.mxu0 0.0
        %3159 = vmatprep.subr.mxu0 0.0
        %3160 = vmatpush1.msra.mxu0 0.0
        %3161 = vmatprep.subr.mxu0 0.0
        %3162 = vmatpush1.msra.mxu0 0.0
        %3163 = vmatprep.subr.mxu0 0.0
        %3164 = vmatpush1.msra.mxu0 0.0
        %3165 = vmatprep.subr.mxu0 0.0
        %3166 = vmatpush1.msra.mxu0 0.0
        %3167 = vmatprep.subr.mxu0 0.0
        %3168 = vmatpush1.msra.mxu0 0.0
        %3169 = vmatprep.subr.mxu0 0.0
        %3170 = vmatpush1.msra.mxu0 0.0
        %3171 = vmatprep.subr.mxu0 0.0
        %3172 = vmatpush1.msra.mxu0 0.0
        %3173 = vmatprep.mubr.f32.mxu0 0.0
        %v3174 = vand.u32 %v3105, 4294901760
        %v3175 = vsub.f32 %v3105, %v3174
        %v3176 = vand.u32 %v3175, 4294901760
        %v3177 = vsub.f32 %v3175, %v3176
        %v3178 = vand.u32 %v3177, 4294901760
        %3179 = vmatmul.mubr.f32.gmra.mrb[0].mxu0 %v3178
        %v3180 = vpop.f32.mrb[0].mxu0
        %v3181 = vadd.f32 0.0, %v3180
        %v3182 = vpop.f32.mrb[0].mxu0
        %3183 = vdwg.mxu0
        %3184 = vmatprep.subr.mxu0 0.0
        %v3185 = vand.u32 %v344, 4294901760
        %v3186 = vsub.f32 %v344, %v3185
        %v3187 = vand.u32 %v3186, 4294901760
        %v3188 = vsub.f32 %v3186, %v3187
        %v3189 = vand.u32 %v3188, 4294901760
        %3190 = vmatpush1.msra.mxu0 %v3189
        %3191 = vmatprep.subr.mxu0 0.0
        %v3192 = vand.u32 %v345, 4294901760
        %v3193 = vsub.f32 %v345, %v3192
        %v3194 = vand.u32 %v3193, 4294901760
        %v3195 = vsub.f32 %v3193, %v3194
        %v3196 = vand.u32 %v3195, 4294901760
        %3197 = vmatpush1.msra.mxu0 %v3196
        %3198 = vmatprep.subr.mxu0 0.0
        %3199 = vmatpush1.msra.mxu0 0.0
        %3200 = vmatprep.subr.mxu0 0.0
        %3201 = vmatpush1.msra.mxu0 0.0
        %3202 = vmatprep.subr.mxu0 0.0
        %3203 = vmatpush1.msra.mxu0 0.0
        %3204 = vmatprep.subr.mxu0 0.0
        %3205 = vmatpush1.msra.mxu0 0.0
        %3206 = vmatprep.subr.mxu0 0.0
        %3207 = vmatpush1.msra.mxu0 0.0
        %3208 = vmatprep.subr.mxu0 0.0
        %3209 = vmatpush1.msra.mxu0 0.0
        %3210 = vmatprep.subr.mxu0 0.0
        %3211 = vmatpush1.msra.mxu0 0.0
        %3212 = vmatprep.subr.mxu0 0.0
        %3213 = vmatpush1.msra.mxu0 0.0
        %3214 = vmatprep.subr.mxu0 0.0
        %3215 = vmatpush1.msra.mxu0 0.0
        %3216 = vmatprep.subr.mxu0 0.0
        %3217 = vmatpush1.msra.mxu0 0.0
        %3218 = vmatprep.subr.mxu0 0.0
        %3219 = vmatpush1.msra.mxu0 0.0
        %3220 = vmatprep.subr.mxu0 0.0
        %3221 = vmatpush1.msra.mxu0 0.0
        %3222 = vmatprep.subr.mxu0 0.0
        %3223 = vmatpush1.msra.mxu0 0.0
        %3224 = vmatprep.subr.mxu0 0.0
        %3225 = vmatpush1.msra.mxu0 0.0
        %3226 = vmatprep.subr.mxu0 0.0
        %3227 = vmatpush1.msra.mxu0 0.0
        %3228 = vmatprep.subr.mxu0 0.0
        %3229 = vmatpush1.msra.mxu0 0.0
        %3230 = vmatprep.subr.mxu0 0.0
        %3231 = vmatpush1.msra.mxu0 0.0
        %3232 = vmatprep.subr.mxu0 0.0
        %3233 = vmatpush1.msra.mxu0 0.0
        %3234 = vmatprep.subr.mxu0 0.0
        %3235 = vmatpush1.msra.mxu0 0.0
        %3236 = vmatprep.subr.mxu0 0.0
        %3237 = vmatpush1.msra.mxu0 0.0
        %3238 = vmatprep.subr.mxu0 0.0
        %3239 = vmatpush1.msra.mxu0 0.0
        %3240 = vmatprep.subr.mxu0 0.0
        %3241 = vmatpush1.msra.mxu0 0.0
        %3242 = vmatprep.subr.mxu0 0.0
        %3243 = vmatpush1.msra.mxu0 0.0
        %3244 = vmatprep.subr.mxu0 0.0
        %3245 = vmatpush1.msra.mxu0 0.0
        %3246 = vmatprep.subr.mxu0 0.0
        %3247 = vmatpush1.msra.mxu0 0.0
        %3248 = vmatprep.subr.mxu0 0.0
        %3249 = vmatpush1.msra.mxu0 0.0
        %3250 = vmatprep.subr.mxu0 0.0
        %3251 = vmatpush1.msra.mxu0 0.0
        %3252 = vmatprep.subr.mxu0 0.0
        %3253 = vmatpush1.msra.mxu0 0.0
        %3254 = vmatprep.subr.mxu0 0.0
        %3255 = vmatpush1.msra.mxu0 0.0
        %3256 = vmatprep.subr.mxu0 0.0
        %3257 = vmatpush1.msra.mxu0 0.0
        %3258 = vmatprep.mubr.f32.mxu0 0.0
        %v3259 = vand.u32 %v3105, 4294901760
        %3260 = vmatmul.mubr.f32.gmra.mrb[0].mxu0 %v3259
        %v3261 = vpop.f32.mrb[0].mxu0
        %v3262 = vadd.f32 %v3181, %v3261
        %v3263 = vpop.f32.mrb[0].mxu0
        %3264 = vdwg.mxu0
        %3265 = vmatprep.subr.mxu0 0.0
        %v3266 = vand.u32 %v344, 4294901760
        %v3267 = vsub.f32 %v344, %v3266
        %3268 = vmatpush1.msra.mxu0 %v3267
        %3269 = vmatprep.subr.mxu0 0.0
        %v3270 = vand.u32 %v345, 4294901760
        %v3271 = vsub.f32 %v345, %v3270
        %3272 = vmatpush1.msra.mxu0 %v3271
        %3273 = vmatprep.subr.mxu0 0.0
        %3274 = vmatpush1.msra.mxu0 0.0
        %3275 = vmatprep.subr.mxu0 0.0
        %3276 = vmatpush1.msra.mxu0 0.0
        %3277 = vmatprep.subr.mxu0 0.0
        %3278 = vmatpush1.msra.mxu0 0.0
        %3279 = vmatprep.subr.mxu0 0.0
        %3280 = vmatpush1.msra.mxu0 0.0
        %3281 = vmatprep.subr.mxu0 0.0
        %3282 = vmatpush1.msra.mxu0 0.0
        %3283 = vmatprep.subr.mxu0 0.0
        %3284 = vmatpush1.msra.mxu0 0.0
        %3285 = vmatprep.subr.mxu0 0.0
        %3286 = vmatpush1.msra.mxu0 0.0
        %3287 = vmatprep.subr.mxu0 0.0
        %3288 = vmatpush1.msra.mxu0 0.0
        %3289 = vmatprep.subr.mxu0 0.0
        %3290 = vmatpush1.msra.mxu0 0.0
        %3291 = vmatprep.subr.mxu0 0.0
        %3292 = vmatpush1.msra.mxu0 0.0
        %3293 = vmatprep.subr.mxu0 0.0
        %3294 = vmatpush1.msra.mxu0 0.0
        %3295 = vmatprep.subr.mxu0 0.0
        %3296 = vmatpush1.msra.mxu0 0.0
        %3297 = vmatprep.subr.mxu0 0.0
        %3298 = vmatpush1.msra.mxu0 0.0
        %3299 = vmatprep.subr.mxu0 0.0
        %3300 = vmatpush1.msra.mxu0 0.0
        %3301 = vmatprep.subr.mxu0 0.0
        %3302 = vmatpush1.msra.mxu0 0.0
        %3303 = vmatprep.subr.mxu0 0.0
        %3304 = vmatpush1.msra.mxu0 0.0
        %3305 = vmatprep.subr.mxu0 0.0
        %3306 = vmatpush1.msra.mxu0 0.0
        %3307 = vmatprep.subr.mxu0 0.0
        %3308 = vmatpush1.msra.mxu0 0.0
        %3309 = vmatprep.subr.mxu0 0.0
        %3310 = vmatpush1.msra.mxu0 0.0
        %3311 = vmatprep.subr.mxu0 0.0
        %3312 = vmatpush1.msra.mxu0 0.0
        %3313 = vmatprep.subr.mxu0 0.0
        %3314 = vmatpush1.msra.mxu0 0.0
        %3315 = vmatprep.subr.mxu0 0.0
        %3316 = vmatpush1.msra.mxu0 0.0
        %3317 = vmatprep.subr.mxu0 0.0
        %3318 = vmatpush1.msra.mxu0 0.0
        %3319 = vmatprep.subr.mxu0 0.0
        %3320 = vmatpush1.msra.mxu0 0.0
        %3321 = vmatprep.subr.mxu0 0.0
        %3322 = vmatpush1.msra.mxu0 0.0
        %3323 = vmatprep.subr.mxu0 0.0
        %3324 = vmatpush1.msra.mxu0 0.0
        %3325 = vmatprep.subr.mxu0 0.0
        %3326 = vmatpush1.msra.mxu0 0.0
        %3327 = vmatprep.subr.mxu0 0.0
        %3328 = vmatpush1.msra.mxu0 0.0
        %3329 = vmatprep.subr.mxu0 0.0
        %3330 = vmatpush1.msra.mxu0 0.0
        %3331 = vmatprep.subr.mxu0 0.0
        %3332 = vmatpush1.msra.mxu0 0.0
        %3333 = vmatprep.mubr.f32.mxu0 0.0
        %v3334 = vand.u32 %v3105, 4294901760
        %v3335 = vsub.f32 %v3105, %v3334
        %3336 = vmatmul.mubr.f32.gmra.mrb[0].mxu0 %v3335
        %v3337 = vpop.f32.mrb[0].mxu0
        %v3338 = vadd.f32 %v3262, %v3337
        %v3339 = vpop.f32.mrb[0].mxu0
        %3340 = vdwg.mxu0
        %3341 = vmatprep.subr.mxu0 0.0
        %v3342 = vand.u32 %v344, 4294901760
        %3343 = vmatpush1.msra.mxu0 %v3342
        %3344 = vmatprep.subr.mxu0 0.0
        %v3345 = vand.u32 %v345, 4294901760
        %3346 = vmatpush1.msra.mxu0 %v3345
        %3347 = vmatprep.subr.mxu0 0.0
        %3348 = vmatpush1.msra.mxu0 0.0
        %3349 = vmatprep.subr.mxu0 0.0
        %3350 = vmatpush1.msra.mxu0 0.0
        %3351 = vmatprep.subr.mxu0 0.0
        %3352 = vmatpush1.msra.mxu0 0.0
        %3353 = vmatprep.subr.mxu0 0.0
        %3354 = vmatpush1.msra.mxu0 0.0
        %3355 = vmatprep.subr.mxu0 0.0
        %3356 = vmatpush1.msra.mxu0 0.0
        %3357 = vmatprep.subr.mxu0 0.0
        %3358 = vmatpush1.msra.mxu0 0.0
        %3359 = vmatprep.subr.mxu0 0.0
        %3360 = vmatpush1.msra.mxu0 0.0
        %3361 = vmatprep.subr.mxu0 0.0
        %3362 = vmatpush1.msra.mxu0 0.0
        %3363 = vmatprep.subr.mxu0 0.0
        %3364 = vmatpush1.msra.mxu0 0.0
        %3365 = vmatprep.subr.mxu0 0.0
        %3366 = vmatpush1.msra.mxu0 0.0
        %3367 = vmatprep.subr.mxu0 0.0
        %3368 = vmatpush1.msra.mxu0 0.0
        %3369 = vmatprep.subr.mxu0 0.0
        %3370 = vmatpush1.msra.mxu0 0.0
        %3371 = vmatprep.subr.mxu0 0.0
        %3372 = vmatpush1.msra.mxu0 0.0
        %3373 = vmatprep.subr.mxu0 0.0
        %3374 = vmatpush1.msra.mxu0 0.0
        %3375 = vmatprep.subr.mxu0 0.0
        %3376 = vmatpush1.msra.mxu0 0.0
        %3377 = vmatprep.subr.mxu0 0.0
        %3378 = vmatpush1.msra.mxu0 0.0
        %3379 = vmatprep.subr.mxu0 0.0
        %3380 = vmatpush1.msra.mxu0 0.0
        %3381 = vmatprep.subr.mxu0 0.0
        %3382 = vmatpush1.msra.mxu0 0.0
        %3383 = vmatprep.subr.mxu0 0.0
        %3384 = vmatpush1.msra.mxu0 0.0
        %3385 = vmatprep.subr.mxu0 0.0
        %3386 = vmatpush1.msra.mxu0 0.0
        %3387 = vmatprep.subr.mxu0 0.0
        %3388 = vmatpush1.msra.mxu0 0.0
        %3389 = vmatprep.subr.mxu0 0.0
        %3390 = vmatpush1.msra.mxu0 0.0
        %3391 = vmatprep.subr.mxu0 0.0
        %3392 = vmatpush1.msra.mxu0 0.0
        %3393 = vmatprep.subr.mxu0 0.0
        %3394 = vmatpush1.msra.mxu0 0.0
        %3395 = vmatprep.subr.mxu0 0.0
        %3396 = vmatpush1.msra.mxu0 0.0
        %3397 = vmatprep.subr.mxu0 0.0
        %3398 = vmatpush1.msra.mxu0 0.0
        %3399 = vmatprep.subr.mxu0 0.0
        %3400 = vmatpush1.msra.mxu0 0.0
        %3401 = vmatprep.subr.mxu0 0.0
        %3402 = vmatpush1.msra.mxu0 0.0
        %3403 = vmatprep.subr.mxu0 0.0
        %3404 = vmatpush1.msra.mxu0 0.0
        %3405 = vmatprep.subr.mxu0 0.0
        %3406 = vmatpush1.msra.mxu0 0.0
        %3407 = vmatprep.mubr.f32.mxu0 0.0
        %v3408 = vand.u32 %v3105, 4294901760
        %v3409 = vsub.f32 %v3105, %v3408
        %v3410 = vand.u32 %v3409, 4294901760
        %3411 = vmatmul.mubr.f32.gmra.mrb[0].mxu0 %v3410
        %v3412 = vpop.f32.mrb[0].mxu0
        %v3413 = vadd.f32 %v3338, %v3412
        %v3414 = vpop.f32.mrb[0].mxu0
        %3415 = vdwg.mxu0
        %3416 = vmatprep.subr.mxu0 0.0
        %v3417 = vand.u32 %v344, 4294901760
        %v3418 = vsub.f32 %v344, %v3417
        %v3419 = vand.u32 %v3418, 4294901760
        %3420 = vmatpush1.msra.mxu0 %v3419
        %3421 = vmatprep.subr.mxu0 0.0
        %v3422 = vand.u32 %v345, 4294901760
        %v3423 = vsub.f32 %v345, %v3422
        %v3424 = vand.u32 %v3423, 4294901760
        %3425 = vmatpush1.msra.mxu0 %v3424
        %3426 = vmatprep.subr.mxu0 0.0
        %3427 = vmatpush1.msra.mxu0 0.0
        %3428 = vmatprep.subr.mxu0 0.0
        %3429 = vmatpush1.msra.mxu0 0.0
        %3430 = vmatprep.subr.mxu0 0.0
        %3431 = vmatpush1.msra.mxu0 0.0
        %3432 = vmatprep.subr.mxu0 0.0
        %3433 = vmatpush1.msra.mxu0 0.0
        %3434 = vmatprep.subr.mxu0 0.0
        %3435 = vmatpush1.msra.mxu0 0.0
        %3436 = vmatprep.subr.mxu0 0.0
        %3437 = vmatpush1.msra.mxu0 0.0
        %3438 = vmatprep.subr.mxu0 0.0
        %3439 = vmatpush1.msra.mxu0 0.0
        %3440 = vmatprep.subr.mxu0 0.0
        %3441 = vmatpush1.msra.mxu0 0.0
        %3442 = vmatprep.subr.mxu0 0.0
        %3443 = vmatpush1.msra.mxu0 0.0
        %3444 = vmatprep.subr.mxu0 0.0
        %3445 = vmatpush1.msra.mxu0 0.0
        %3446 = vmatprep.subr.mxu0 0.0
        %3447 = vmatpush1.msra.mxu0 0.0
        %3448 = vmatprep.subr.mxu0 0.0
        %3449 = vmatpush1.msra.mxu0 0.0
        %3450 = vmatprep.subr.mxu0 0.0
        %3451 = vmatpush1.msra.mxu0 0.0
        %3452 = vmatprep.subr.mxu0 0.0
        %3453 = vmatpush1.msra.mxu0 0.0
        %3454 = vmatprep.subr.mxu0 0.0
        %3455 = vmatpush1.msra.mxu0 0.0
        %3456 = vmatprep.subr.mxu0 0.0
        %3457 = vmatpush1.msra.mxu0 0.0
        %3458 = vmatprep.subr.mxu0 0.0
        %3459 = vmatpush1.msra.mxu0 0.0
        %3460 = vmatprep.subr.mxu0 0.0
        %3461 = vmatpush1.msra.mxu0 0.0
        %3462 = vmatprep.subr.mxu0 0.0
        %3463 = vmatpush1.msra.mxu0 0.0
        %3464 = vmatprep.subr.mxu0 0.0
        %3465 = vmatpush1.msra.mxu0 0.0
        %3466 = vmatprep.subr.mxu0 0.0
        %3467 = vmatpush1.msra.mxu0 0.0
        %3468 = vmatprep.subr.mxu0 0.0
        %3469 = vmatpush1.msra.mxu0 0.0
        %3470 = vmatprep.subr.mxu0 0.0
        %3471 = vmatpush1.msra.mxu0 0.0
        %3472 = vmatprep.subr.mxu0 0.0
        %3473 = vmatpush1.msra.mxu0 0.0
        %3474 = vmatprep.subr.mxu0 0.0
        %3475 = vmatpush1.msra.mxu0 0.0
        %3476 = vmatprep.subr.mxu0 0.0
        %3477 = vmatpush1.msra.mxu0 0.0
        %3478 = vmatprep.subr.mxu0 0.0
        %3479 = vmatpush1.msra.mxu0 0.0
        %3480 = vmatprep.subr.mxu0 0.0
        %3481 = vmatpush1.msra.mxu0 0.0
        %3482 = vmatprep.subr.mxu0 0.0
        %3483 = vmatpush1.msra.mxu0 0.0
        %3484 = vmatprep.subr.mxu0 0.0
        %3485 = vmatpush1.msra.mxu0 0.0
        %3486 = vmatprep.mubr.f32.mxu0 0.0
        %v3487 = vand.u32 %v3105, 4294901760
        %3488 = vmatmul.mubr.f32.gmra.mrb[0].mxu0 %v3487
        %v3489 = vpop.f32.mrb[0].mxu0
        %v3490 = vadd.f32 %v3413, %v3489
        %v3491 = vpop.f32.mrb[0].mxu0
        %3492 = vdwg.mxu0
        %3493 = vmatprep.subr.mxu0 0.0
        %v3494 = vand.u32 %v344, 4294901760
        %3495 = vmatpush1.msra.mxu0 %v3494
        %3496 = vmatprep.subr.mxu0 0.0
        %v3497 = vand.u32 %v345, 4294901760
        %3498 = vmatpush1.msra.mxu0 %v3497
        %3499 = vmatprep.subr.mxu0 0.0
        %3500 = vmatpush1.msra.mxu0 0.0
        %3501 = vmatprep.subr.mxu0 0.0
        %3502 = vmatpush1.msra.mxu0 0.0
        %3503 = vmatprep.subr.mxu0 0.0
        %3504 = vmatpush1.msra.mxu0 0.0
        %3505 = vmatprep.subr.mxu0 0.0
        %3506 = vmatpush1.msra.mxu0 0.0
        %3507 = vmatprep.subr.mxu0 0.0
        %3508 = vmatpush1.msra.mxu0 0.0
        %3509 = vmatprep.subr.mxu0 0.0
        %3510 = vmatpush1.msra.mxu0 0.0
        %3511 = vmatprep.subr.mxu0 0.0
        %3512 = vmatpush1.msra.mxu0 0.0
        %3513 = vmatprep.subr.mxu0 0.0
        %3514 = vmatpush1.msra.mxu0 0.0
        %3515 = vmatprep.subr.mxu0 0.0
        %3516 = vmatpush1.msra.mxu0 0.0
        %3517 = vmatprep.subr.mxu0 0.0
        %3518 = vmatpush1.msra.mxu0 0.0
        %3519 = vmatprep.subr.mxu0 0.0
        %3520 = vmatpush1.msra.mxu0 0.0
        %3521 = vmatprep.subr.mxu0 0.0
        %3522 = vmatpush1.msra.mxu0 0.0
        %3523 = vmatprep.subr.mxu0 0.0
        %3524 = vmatpush1.msra.mxu0 0.0
        %3525 = vmatprep.subr.mxu0 0.0
        %3526 = vmatpush1.msra.mxu0 0.0
        %3527 = vmatprep.subr.mxu0 0.0
        %3528 = vmatpush1.msra.mxu0 0.0
        %3529 = vmatprep.subr.mxu0 0.0
        %3530 = vmatpush1.msra.mxu0 0.0
        %3531 = vmatprep.subr.mxu0 0.0
        %3532 = vmatpush1.msra.mxu0 0.0
        %3533 = vmatprep.subr.mxu0 0.0
        %3534 = vmatpush1.msra.mxu0 0.0
        %3535 = vmatprep.subr.mxu0 0.0
        %3536 = vmatpush1.msra.mxu0 0.0
        %3537 = vmatprep.subr.mxu0 0.0
        %3538 = vmatpush1.msra.mxu0 0.0
        %3539 = vmatprep.subr.mxu0 0.0
        %3540 = vmatpush1.msra.mxu0 0.0
        %3541 = vmatprep.subr.mxu0 0.0
        %3542 = vmatpush1.msra.mxu0 0.0
        %3543 = vmatprep.subr.mxu0 0.0
        %3544 = vmatpush1.msra.mxu0 0.0
        %3545 = vmatprep.subr.mxu0 0.0
        %3546 = vmatpush1.msra.mxu0 0.0
        %3547 = vmatprep.subr.mxu0 0.0
        %3548 = vmatpush1.msra.mxu0 0.0
        %3549 = vmatprep.subr.mxu0 0.0
        %3550 = vmatpush1.msra.mxu0 0.0
        %3551 = vmatprep.subr.mxu0 0.0
        %3552 = vmatpush1.msra.mxu0 0.0
        %3553 = vmatprep.subr.mxu0 0.0
        %3554 = vmatpush1.msra.mxu0 0.0
        %3555 = vmatprep.subr.mxu0 0.0
        %3556 = vmatpush1.msra.mxu0 0.0
        %3557 = vmatprep.subr.mxu0 0.0
        %3558 = vmatpush1.msra.mxu0 0.0
        %3559 = vmatprep.mubr.f32.mxu0 0.0
        %v3560 = vand.u32 %v3105, 4294901760
        %3561 = vmatmul.mubr.f32.gmra.mrb[0].mxu0 %v3560
        %v3562 = vpop.f32.mrb[0].mxu0
        %v3563 = vadd.f32 %v3490, %v3562
        %v3564 = vpop.f32.mrb[0].mxu0
        %3565 = vdwg.mxu0
        %v3567 = vsel %vm346, %v1265, 0
        %3569 = vmatprep.subr.mxu0 0.0
        %v3570 = vand.u32 %v344, 4294901760
        %3571 = vmatpush1.msra.mxu0 %v3570
        %3572 = vmatprep.subr.mxu0 0.0
        %v3573 = vand.u32 %v345, 4294901760
        %3574 = vmatpush1.msra.mxu0 %v3573
        %3575 = vmatprep.subr.mxu0 0.0
        %3576 = vmatpush1.msra.mxu0 0.0
        %3577 = vmatprep.subr.mxu0 0.0
        %3578 = vmatpush1.msra.mxu0 0.0
        %3579 = vmatprep.subr.mxu0 0.0
        %3580 = vmatpush1.msra.mxu0 0.0
        %3581 = vmatprep.subr.mxu0 0.0
        %3582 = vmatpush1.msra.mxu0 0.0
        %3583 = vmatprep.subr.mxu0 0.0
        %3584 = vmatpush1.msra.mxu0 0.0
        %3585 = vmatprep.subr.mxu0 0.0
        %3586 = vmatpush1.msra.mxu0 0.0
        %3587 = vmatprep.subr.mxu0 0.0
        %3588 = vmatpush1.msra.mxu0 0.0
        %3589 = vmatprep.subr.mxu0 0.0
        %3590 = vmatpush1.msra.mxu0 0.0
        %3591 = vmatprep.subr.mxu0 0.0
        %3592 = vmatpush1.msra.mxu0 0.0
        %3593 = vmatprep.subr.mxu0 0.0
        %3594 = vmatpush1.msra.mxu0 0.0
        %3595 = vmatprep.subr.mxu0 0.0
        %3596 = vmatpush1.msra.mxu0 0.0
        %3597 = vmatprep.subr.mxu0 0.0
        %3598 = vmatpush1.msra.mxu0 0.0
        %3599 = vmatprep.subr.mxu0 0.0
        %3600 = vmatpush1.msra.mxu0 0.0
        %3601 = vmatprep.subr.mxu0 0.0
        %3602 = vmatpush1.msra.mxu0 0.0
        %3603 = vmatprep.subr.mxu0 0.0
        %3604 = vmatpush1.msra.mxu0 0.0
        %3605 = vmatprep.subr.mxu0 0.0
        %3606 = vmatpush1.msra.mxu0 0.0
        %3607 = vmatprep.subr.mxu0 0.0
        %3608 = vmatpush1.msra.mxu0 0.0
        %3609 = vmatprep.subr.mxu0 0.0
        %3610 = vmatpush1.msra.mxu0 0.0
        %3611 = vmatprep.subr.mxu0 0.0
        %3612 = vmatpush1.msra.mxu0 0.0
        %3613 = vmatprep.subr.mxu0 0.0
        %3614 = vmatpush1.msra.mxu0 0.0
        %3615 = vmatprep.subr.mxu0 0.0
        %3616 = vmatpush1.msra.mxu0 0.0
        %3617 = vmatprep.subr.mxu0 0.0
        %3618 = vmatpush1.msra.mxu0 0.0
        %3619 = vmatprep.subr.mxu0 0.0
        %3620 = vmatpush1.msra.mxu0 0.0
        %3621 = vmatprep.subr.mxu0 0.0
        %3622 = vmatpush1.msra.mxu0 0.0
        %3623 = vmatprep.subr.mxu0 0.0
        %3624 = vmatpush1.msra.mxu0 0.0
        %3625 = vmatprep.subr.mxu0 0.0
        %3626 = vmatpush1.msra.mxu0 0.0
        %3627 = vmatprep.subr.mxu0 0.0
        %3628 = vmatpush1.msra.mxu0 0.0
        %3629 = vmatprep.subr.mxu0 0.0
        %3630 = vmatpush1.msra.mxu0 0.0
        %3631 = vmatprep.subr.mxu0 0.0
        %3632 = vmatpush1.msra.mxu0 0.0
        %3633 = vmatprep.subr.mxu0 0.0
        %3634 = vmatpush1.msra.mxu0 0.0
        %3635 = vmatprep.mubr.f32.mxu0 0.0
        %v3636 = vand.u32 %v3567, 4294901760
        %v3637 = vsub.f32 %v3567, %v3636
        %v3638 = vand.u32 %v3637, 4294901760
        %v3639 = vsub.f32 %v3637, %v3638
        %v3640 = vand.u32 %v3639, 4294901760
        %3641 = vmatmul.mubr.f32.gmra.mrb[0].mxu0 %v3640
        %v3642 = vpop.f32.mrb[0].mxu0
        %v3643 = vadd.f32 0.0, %v3642
        %v3644 = vpop.f32.mrb[0].mxu0
        %3645 = vdwg.mxu0
        %3646 = vmatprep.subr.mxu0 0.0
        %v3647 = vand.u32 %v344, 4294901760
        %v3648 = vsub.f32 %v344, %v3647
        %v3649 = vand.u32 %v3648, 4294901760
        %v3650 = vsub.f32 %v3648, %v3649
        %v3651 = vand.u32 %v3650, 4294901760
        %3652 = vmatpush1.msra.mxu0 %v3651
        %3653 = vmatprep.subr.mxu0 0.0
        %v3654 = vand.u32 %v345, 4294901760
        %v3655 = vsub.f32 %v345, %v3654
        %v3656 = vand.u32 %v3655, 4294901760
        %v3657 = vsub.f32 %v3655, %v3656
        %v3658 = vand.u32 %v3657, 4294901760
        %3659 = vmatpush1.msra.mxu0 %v3658
        %3660 = vmatprep.subr.mxu0 0.0
        %3661 = vmatpush1.msra.mxu0 0.0
        %3662 = vmatprep.subr.mxu0 0.0
        %3663 = vmatpush1.msra.mxu0 0.0
        %3664 = vmatprep.subr.mxu0 0.0
        %3665 = vmatpush1.msra.mxu0 0.0
        %3666 = vmatprep.subr.mxu0 0.0
        %3667 = vmatpush1.msra.mxu0 0.0
        %3668 = vmatprep.subr.mxu0 0.0
        %3669 = vmatpush1.msra.mxu0 0.0
        %3670 = vmatprep.subr.mxu0 0.0
        %3671 = vmatpush1.msra.mxu0 0.0
        %3672 = vmatprep.subr.mxu0 0.0
        %3673 = vmatpush1.msra.mxu0 0.0
        %3674 = vmatprep.subr.mxu0 0.0
        %3675 = vmatpush1.msra.mxu0 0.0
        %3676 = vmatprep.subr.mxu0 0.0
        %3677 = vmatpush1.msra.mxu0 0.0
        %3678 = vmatprep.subr.mxu0 0.0
        %3679 = vmatpush1.msra.mxu0 0.0
        %3680 = vmatprep.subr.mxu0 0.0
        %3681 = vmatpush1.msra.mxu0 0.0
        %3682 = vmatprep.subr.mxu0 0.0
        %3683 = vmatpush1.msra.mxu0 0.0
        %3684 = vmatprep.subr.mxu0 0.0
        %3685 = vmatpush1.msra.mxu0 0.0
        %3686 = vmatprep.subr.mxu0 0.0
        %3687 = vmatpush1.msra.mxu0 0.0
        %3688 = vmatprep.subr.mxu0 0.0
        %3689 = vmatpush1.msra.mxu0 0.0
        %3690 = vmatprep.subr.mxu0 0.0
        %3691 = vmatpush1.msra.mxu0 0.0
        %3692 = vmatprep.subr.mxu0 0.0
        %3693 = vmatpush1.msra.mxu0 0.0
        %3694 = vmatprep.subr.mxu0 0.0
        %3695 = vmatpush1.msra.mxu0 0.0
        %3696 = vmatprep.subr.mxu0 0.0
        %3697 = vmatpush1.msra.mxu0 0.0
        %3698 = vmatprep.subr.mxu0 0.0
        %3699 = vmatpush1.msra.mxu0 0.0
        %3700 = vmatprep.subr.mxu0 0.0
        %3701 = vmatpush1.msra.mxu0 0.0
        %3702 = vmatprep.subr.mxu0 0.0
        %3703 = vmatpush1.msra.mxu0 0.0
        %3704 = vmatprep.subr.mxu0 0.0
        %3705 = vmatpush1.msra.mxu0 0.0
        %3706 = vmatprep.subr.mxu0 0.0
        %3707 = vmatpush1.msra.mxu0 0.0
        %3708 = vmatprep.subr.mxu0 0.0
        %3709 = vmatpush1.msra.mxu0 0.0
        %3710 = vmatprep.subr.mxu0 0.0
        %3711 = vmatpush1.msra.mxu0 0.0
        %3712 = vmatprep.subr.mxu0 0.0
        %3713 = vmatpush1.msra.mxu0 0.0
        %3714 = vmatprep.subr.mxu0 0.0
        %3715 = vmatpush1.msra.mxu0 0.0
        %3716 = vmatprep.subr.mxu0 0.0
        %3717 = vmatpush1.msra.mxu0 0.0
        %3718 = vmatprep.subr.mxu0 0.0
        %3719 = vmatpush1.msra.mxu0 0.0
        %3720 = vmatprep.mubr.f32.mxu0 0.0
        %v3721 = vand.u32 %v3567, 4294901760
        %3722 = vmatmul.mubr.f32.gmra.mrb[0].mxu0 %v3721
        %v3723 = vpop.f32.mrb[0].mxu0
        %v3724 = vadd.f32 %v3643, %v3723
        %v3725 = vpop.f32.mrb[0].mxu0
        %3726 = vdwg.mxu0
        %3727 = vmatprep.subr.mxu0 0.0
        %v3728 = vand.u32 %v344, 4294901760
        %v3729 = vsub.f32 %v344, %v3728
        %3730 = vmatpush1.msra.mxu0 %v3729
        %3731 = vmatprep.subr.mxu0 0.0
        %v3732 = vand.u32 %v345, 4294901760
        %v3733 = vsub.f32 %v345, %v3732
        %3734 = vmatpush1.msra.mxu0 %v3733
        %3735 = vmatprep.subr.mxu0 0.0
        %3736 = vmatpush1.msra.mxu0 0.0
        %3737 = vmatprep.subr.mxu0 0.0
        %3738 = vmatpush1.msra.mxu0 0.0
        %3739 = vmatprep.subr.mxu0 0.0
        %3740 = vmatpush1.msra.mxu0 0.0
        %3741 = vmatprep.subr.mxu0 0.0
        %3742 = vmatpush1.msra.mxu0 0.0
        %3743 = vmatprep.subr.mxu0 0.0
        %3744 = vmatpush1.msra.mxu0 0.0
        %3745 = vmatprep.subr.mxu0 0.0
        %3746 = vmatpush1.msra.mxu0 0.0
        %3747 = vmatprep.subr.mxu0 0.0
        %3748 = vmatpush1.msra.mxu0 0.0
        %3749 = vmatprep.subr.mxu0 0.0
        %3750 = vmatpush1.msra.mxu0 0.0
        %3751 = vmatprep.subr.mxu0 0.0
        %3752 = vmatpush1.msra.mxu0 0.0
        %3753 = vmatprep.subr.mxu0 0.0
        %3754 = vmatpush1.msra.mxu0 0.0
        %3755 = vmatprep.subr.mxu0 0.0
        %3756 = vmatpush1.msra.mxu0 0.0
        %3757 = vmatprep.subr.mxu0 0.0
        %3758 = vmatpush1.msra.mxu0 0.0
        %3759 = vmatprep.subr.mxu0 0.0
        %3760 = vmatpush1.msra.mxu0 0.0
        %3761 = vmatprep.subr.mxu0 0.0
        %3762 = vmatpush1.msra.mxu0 0.0
        %3763 = vmatprep.subr.mxu0 0.0
        %3764 = vmatpush1.msra.mxu0 0.0
        %3765 = vmatprep.subr.mxu0 0.0
        %3766 = vmatpush1.msra.mxu0 0.0
        %3767 = vmatprep.subr.mxu0 0.0
        %3768 = vmatpush1.msra.mxu0 0.0
        %3769 = vmatprep.subr.mxu0 0.0
        %3770 = vmatpush1.msra.mxu0 0.0
        %3771 = vmatprep.subr.mxu0 0.0
        %3772 = vmatpush1.msra.mxu0 0.0
        %3773 = vmatprep.subr.mxu0 0.0
        %3774 = vmatpush1.msra.mxu0 0.0
        %3775 = vmatprep.subr.mxu0 0.0
        %3776 = vmatpush1.msra.mxu0 0.0
        %3777 = vmatprep.subr.mxu0 0.0
        %3778 = vmatpush1.msra.mxu0 0.0
        %3779 = vmatprep.subr.mxu0 0.0
        %3780 = vmatpush1.msra.mxu0 0.0
        %3781 = vmatprep.subr.mxu0 0.0
        %3782 = vmatpush1.msra.mxu0 0.0
        %3783 = vmatprep.subr.mxu0 0.0
        %3784 = vmatpush1.msra.mxu0 0.0
        %3785 = vmatprep.subr.mxu0 0.0
        %3786 = vmatpush1.msra.mxu0 0.0
        %3787 = vmatprep.subr.mxu0 0.0
        %3788 = vmatpush1.msra.mxu0 0.0
        %3789 = vmatprep.subr.mxu0 0.0
        %3790 = vmatpush1.msra.mxu0 0.0
        %3791 = vmatprep.subr.mxu0 0.0
        %3792 = vmatpush1.msra.mxu0 0.0
        %3793 = vmatprep.subr.mxu0 0.0
        %3794 = vmatpush1.msra.mxu0 0.0
        %3795 = vmatprep.mubr.f32.mxu0 0.0
        %v3796 = vand.u32 %v3567, 4294901760
        %v3797 = vsub.f32 %v3567, %v3796
        %3798 = vmatmul.mubr.f32.gmra.mrb[0].mxu0 %v3797
        %v3799 = vpop.f32.mrb[0].mxu0
        %v3800 = vadd.f32 %v3724, %v3799
        %v3801 = vpop.f32.mrb[0].mxu0
        %3802 = vdwg.mxu0
        %3803 = vmatprep.subr.mxu0 0.0
        %v3804 = vand.u32 %v344, 4294901760
        %3805 = vmatpush1.msra.mxu0 %v3804
        %3806 = vmatprep.subr.mxu0 0.0
        %v3807 = vand.u32 %v345, 4294901760
        %3808 = vmatpush1.msra.mxu0 %v3807
        %3809 = vmatprep.subr.mxu0 0.0
        %3810 = vmatpush1.msra.mxu0 0.0
        %3811 = vmatprep.subr.mxu0 0.0
        %3812 = vmatpush1.msra.mxu0 0.0
        %3813 = vmatprep.subr.mxu0 0.0
        %3814 = vmatpush1.msra.mxu0 0.0
        %3815 = vmatprep.subr.mxu0 0.0
        %3816 = vmatpush1.msra.mxu0 0.0
        %3817 = vmatprep.subr.mxu0 0.0
        %3818 = vmatpush1.msra.mxu0 0.0
        %3819 = vmatprep.subr.mxu0 0.0
        %3820 = vmatpush1.msra.mxu0 0.0
        %3821 = vmatprep.subr.mxu0 0.0
        %3822 = vmatpush1.msra.mxu0 0.0
        %3823 = vmatprep.subr.mxu0 0.0
        %3824 = vmatpush1.msra.mxu0 0.0
        %3825 = vmatprep.subr.mxu0 0.0
        %3826 = vmatpush1.msra.mxu0 0.0
        %3827 = vmatprep.subr.mxu0 0.0
        %3828 = vmatpush1.msra.mxu0 0.0
        %3829 = vmatprep.subr.mxu0 0.0
        %3830 = vmatpush1.msra.mxu0 0.0
        %3831 = vmatprep.subr.mxu0 0.0
        %3832 = vmatpush1.msra.mxu0 0.0
        %3833 = vmatprep.subr.mxu0 0.0
        %3834 = vmatpush1.msra.mxu0 0.0
        %3835 = vmatprep.subr.mxu0 0.0
        %3836 = vmatpush1.msra.mxu0 0.0
        %3837 = vmatprep.subr.mxu0 0.0
        %3838 = vmatpush1.msra.mxu0 0.0
        %3839 = vmatprep.subr.mxu0 0.0
        %3840 = vmatpush1.msra.mxu0 0.0
        %3841 = vmatprep.subr.mxu0 0.0
        %3842 = vmatpush1.msra.mxu0 0.0
        %3843 = vmatprep.subr.mxu0 0.0
        %3844 = vmatpush1.msra.mxu0 0.0
        %3845 = vmatprep.subr.mxu0 0.0
        %3846 = vmatpush1.msra.mxu0 0.0
        %3847 = vmatprep.subr.mxu0 0.0
        %3848 = vmatpush1.msra.mxu0 0.0
        %3849 = vmatprep.subr.mxu0 0.0
        %3850 = vmatpush1.msra.mxu0 0.0
        %3851 = vmatprep.subr.mxu0 0.0
        %3852 = vmatpush1.msra.mxu0 0.0
        %3853 = vmatprep.subr.mxu0 0.0
        %3854 = vmatpush1.msra.mxu0 0.0
        %3855 = vmatprep.subr.mxu0 0.0
        %3856 = vmatpush1.msra.mxu0 0.0
        %3857 = vmatprep.subr.mxu0 0.0
        %3858 = vmatpush1.msra.mxu0 0.0
        %3859 = vmatprep.subr.mxu0 0.0
        %3860 = vmatpush1.msra.mxu0 0.0
        %3861 = vmatprep.subr.mxu0 0.0
        %3862 = vmatpush1.msra.mxu0 0.0
        %3863 = vmatprep.subr.mxu0 0.0
        %3864 = vmatpush1.msra.mxu0 0.0
        %3865 = vmatprep.subr.mxu0 0.0
        %3866 = vmatpush1.msra.mxu0 0.0
        %3867 = vmatprep.subr.mxu0 0.0
        %3868 = vmatpush1.msra.mxu0 0.0
        %3869 = vmatprep.mubr.f32.mxu0 0.0
        %v3870 = vand.u32 %v3567, 4294901760
        %v3871 = vsub.f32 %v3567, %v3870
        %v3872 = vand.u32 %v3871, 4294901760
        %3873 = vmatmul.mubr.f32.gmra.mrb[0].mxu0 %v3872
        %v3874 = vpop.f32.mrb[0].mxu0
        %v3875 = vadd.f32 %v3800, %v3874
        %v3876 = vpop.f32.mrb[0].mxu0
        %3877 = vdwg.mxu0
        %3878 = vmatprep.subr.mxu0 0.0
        %v3879 = vand.u32 %v344, 4294901760
        %v3880 = vsub.f32 %v344, %v3879
        %v3881 = vand.u32 %v3880, 4294901760
        %3882 = vmatpush1.msra.mxu0 %v3881
        %3883 = vmatprep.subr.mxu0 0.0
        %v3884 = vand.u32 %v345, 4294901760
        %v3885 = vsub.f32 %v345, %v3884
        %v3886 = vand.u32 %v3885, 4294901760
        %3887 = vmatpush1.msra.mxu0 %v3886
        %3888 = vmatprep.subr.mxu0 0.0
        %3889 = vmatpush1.msra.mxu0 0.0
        %3890 = vmatprep.subr.mxu0 0.0
        %3891 = vmatpush1.msra.mxu0 0.0
        %3892 = vmatprep.subr.mxu0 0.0
        %3893 = vmatpush1.msra.mxu0 0.0
        %3894 = vmatprep.subr.mxu0 0.0
        %3895 = vmatpush1.msra.mxu0 0.0
        %3896 = vmatprep.subr.mxu0 0.0
        %3897 = vmatpush1.msra.mxu0 0.0
        %3898 = vmatprep.subr.mxu0 0.0
        %3899 = vmatpush1.msra.mxu0 0.0
        %3900 = vmatprep.subr.mxu0 0.0
        %3901 = vmatpush1.msra.mxu0 0.0
        %3902 = vmatprep.subr.mxu0 0.0
        %3903 = vmatpush1.msra.mxu0 0.0
        %3904 = vmatprep.subr.mxu0 0.0
        %3905 = vmatpush1.msra.mxu0 0.0
        %3906 = vmatprep.subr.mxu0 0.0
        %3907 = vmatpush1.msra.mxu0 0.0
        %3908 = vmatprep.subr.mxu0 0.0
        %3909 = vmatpush1.msra.mxu0 0.0
        %3910 = vmatprep.subr.mxu0 0.0
        %3911 = vmatpush1.msra.mxu0 0.0
        %3912 = vmatprep.subr.mxu0 0.0
        %3913 = vmatpush1.msra.mxu0 0.0
        %3914 = vmatprep.subr.mxu0 0.0
        %3915 = vmatpush1.msra.mxu0 0.0
        %3916 = vmatprep.subr.mxu0 0.0
        %3917 = vmatpush1.msra.mxu0 0.0
        %3918 = vmatprep.subr.mxu0 0.0
        %3919 = vmatpush1.msra.mxu0 0.0
        %3920 = vmatprep.subr.mxu0 0.0
        %3921 = vmatpush1.msra.mxu0 0.0
        %3922 = vmatprep.subr.mxu0 0.0
        %3923 = vmatpush1.msra.mxu0 0.0
        %3924 = vmatprep.subr.mxu0 0.0
        %3925 = vmatpush1.msra.mxu0 0.0
        %3926 = vmatprep.subr.mxu0 0.0
        %3927 = vmatpush1.msra.mxu0 0.0
        %3928 = vmatprep.subr.mxu0 0.0
        %3929 = vmatpush1.msra.mxu0 0.0
        %3930 = vmatprep.subr.mxu0 0.0
        %3931 = vmatpush1.msra.mxu0 0.0
        %3932 = vmatprep.subr.mxu0 0.0
        %3933 = vmatpush1.msra.mxu0 0.0
        %3934 = vmatprep.subr.mxu0 0.0
        %3935 = vmatpush1.msra.mxu0 0.0
        %3936 = vmatprep.subr.mxu0 0.0
        %3937 = vmatpush1.msra.mxu0 0.0
        %3938 = vmatprep.subr.mxu0 0.0
        %3939 = vmatpush1.msra.mxu0 0.0
        %3940 = vmatprep.subr.mxu0 0.0
        %3941 = vmatpush1.msra.mxu0 0.0
        %3942 = vmatprep.subr.mxu0 0.0
        %3943 = vmatpush1.msra.mxu0 0.0
        %3944 = vmatprep.subr.mxu0 0.0
        %3945 = vmatpush1.msra.mxu0 0.0
        %3946 = vmatprep.subr.mxu0 0.0
        %3947 = vmatpush1.msra.mxu0 0.0
        %3948 = vmatprep.mubr.f32.mxu0 0.0
        %v3949 = vand.u32 %v3567, 4294901760
        %3950 = vmatmul.mubr.f32.gmra.mrb[0].mxu0 %v3949
        %v3951 = vpop.f32.mrb[0].mxu0
        %v3952 = vadd.f32 %v3875, %v3951
        %v3953 = vpop.f32.mrb[0].mxu0
        %3954 = vdwg.mxu0
        %3955 = vmatprep.subr.mxu0 0.0
        %v3956 = vand.u32 %v344, 4294901760
        %3957 = vmatpush1.msra.mxu0 %v3956
        %3958 = vmatprep.subr.mxu0 0.0
        %v3959 = vand.u32 %v345, 4294901760
        %3960 = vmatpush1.msra.mxu0 %v3959
        %3961 = vmatprep.subr.mxu0 0.0
        %3962 = vmatpush1.msra.mxu0 0.0
        %3963 = vmatprep.subr.mxu0 0.0
        %3964 = vmatpush1.msra.mxu0 0.0
        %3965 = vmatprep.subr.mxu0 0.0
        %3966 = vmatpush1.msra.mxu0 0.0
        %3967 = vmatprep.subr.mxu0 0.0
        %3968 = vmatpush1.msra.mxu0 0.0
        %3969 = vmatprep.subr.mxu0 0.0
        %3970 = vmatpush1.msra.mxu0 0.0
        %3971 = vmatprep.subr.mxu0 0.0
        %3972 = vmatpush1.msra.mxu0 0.0
        %3973 = vmatprep.subr.mxu0 0.0
        %3974 = vmatpush1.msra.mxu0 0.0
        %3975 = vmatprep.subr.mxu0 0.0
        %3976 = vmatpush1.msra.mxu0 0.0
        %3977 = vmatprep.subr.mxu0 0.0
        %3978 = vmatpush1.msra.mxu0 0.0
        %3979 = vmatprep.subr.mxu0 0.0
        %3980 = vmatpush1.msra.mxu0 0.0
        %3981 = vmatprep.subr.mxu0 0.0
        %3982 = vmatpush1.msra.mxu0 0.0
        %3983 = vmatprep.subr.mxu0 0.0
        %3984 = vmatpush1.msra.mxu0 0.0
        %3985 = vmatprep.subr.mxu0 0.0
        %3986 = vmatpush1.msra.mxu0 0.0
        %3987 = vmatprep.subr.mxu0 0.0
        %3988 = vmatpush1.msra.mxu0 0.0
        %3989 = vmatprep.subr.mxu0 0.0
        %3990 = vmatpush1.msra.mxu0 0.0
        %3991 = vmatprep.subr.mxu0 0.0
        %3992 = vmatpush1.msra.mxu0 0.0
        %3993 = vmatprep.subr.mxu0 0.0
        %3994 = vmatpush1.msra.mxu0 0.0
        %3995 = vmatprep.subr.mxu0 0.0
        %3996 = vmatpush1.msra.mxu0 0.0
        %3997 = vmatprep.subr.mxu0 0.0
        %3998 = vmatpush1.msra.mxu0 0.0
        %3999 = vmatprep.subr.mxu0 0.0
        %4000 = vmatpush1.msra.mxu0 0.0
        %4001 = vmatprep.subr.mxu0 0.0
        %4002 = vmatpush1.msra.mxu0 0.0
        %4003 = vmatprep.subr.mxu0 0.0
        %4004 = vmatpush1.msra.mxu0 0.0
        %4005 = vmatprep.subr.mxu0 0.0
        %4006 = vmatpush1.msra.mxu0 0.0
        %4007 = vmatprep.subr.mxu0 0.0
        %4008 = vmatpush1.msra.mxu0 0.0
        %4009 = vmatprep.subr.mxu0 0.0
        %4010 = vmatpush1.msra.mxu0 0.0
        %4011 = vmatprep.subr.mxu0 0.0
        %4012 = vmatpush1.msra.mxu0 0.0
        %4013 = vmatprep.subr.mxu0 0.0
        %4014 = vmatpush1.msra.mxu0 0.0
        %4015 = vmatprep.subr.mxu0 0.0
        %4016 = vmatpush1.msra.mxu0 0.0
        %4017 = vmatprep.subr.mxu0 0.0
        %4018 = vmatpush1.msra.mxu0 0.0
        %4019 = vmatprep.subr.mxu0 0.0
        %4020 = vmatpush1.msra.mxu0 0.0
        %4021 = vmatprep.mubr.f32.mxu0 0.0
        %v4022 = vand.u32 %v3567, 4294901760
        %4023 = vmatmul.mubr.f32.gmra.mrb[0].mxu0 %v4022
        %v4024 = vpop.f32.mrb[0].mxu0
        %v4025 = vadd.f32 %v3952, %v4024
        %v4026 = vpop.f32.mrb[0].mxu0
        %4027 = vdwg.mxu0
        %v4029 = vsel %vm346, %v1724, 0
        %4031 = vmatprep.subr.mxu0 0.0
        %v4032 = vand.u32 %v344, 4294901760
        %4033 = vmatpush1.msra.mxu0 %v4032
        %4034 = vmatprep.subr.mxu0 0.0
        %v4035 = vand.u32 %v345, 4294901760
        %4036 = vmatpush1.msra.mxu0 %v4035
        %4037 = vmatprep.subr.mxu0 0.0
        %4038 = vmatpush1.msra.mxu0 0.0
        %4039 = vmatprep.subr.mxu0 0.0
        %4040 = vmatpush1.msra.mxu0 0.0
        %4041 = vmatprep.subr.mxu0 0.0
        %4042 = vmatpush1.msra.mxu0 0.0
        %4043 = vmatprep.subr.mxu0 0.0
        %4044 = vmatpush1.msra.mxu0 0.0
        %4045 = vmatprep.subr.mxu0 0.0
        %4046 = vmatpush1.msra.mxu0 0.0
        %4047 = vmatprep.subr.mxu0 0.0
        %4048 = vmatpush1.msra.mxu0 0.0
        %4049 = vmatprep.subr.mxu0 0.0
        %4050 = vmatpush1.msra.mxu0 0.0
        %4051 = vmatprep.subr.mxu0 0.0
        %4052 = vmatpush1.msra.mxu0 0.0
        %4053 = vmatprep.subr.mxu0 0.0
        %4054 = vmatpush1.msra.mxu0 0.0
        %4055 = vmatprep.subr.mxu0 0.0
        %4056 = vmatpush1.msra.mxu0 0.0
        %4057 = vmatprep.subr.mxu0 0.0
        %4058 = vmatpush1.msra.mxu0 0.0
        %4059 = vmatprep.subr.mxu0 0.0
        %4060 = vmatpush1.msra.mxu0 0.0
        %4061 = vmatprep.subr.mxu0 0.0
        %4062 = vmatpush1.msra.mxu0 0.0
        %4063 = vmatprep.subr.mxu0 0.0
        %4064 = vmatpush1.msra.mxu0 0.0
        %4065 = vmatprep.subr.mxu0 0.0
        %4066 = vmatpush1.msra.mxu0 0.0
        %4067 = vmatprep.subr.mxu0 0.0
        %4068 = vmatpush1.msra.mxu0 0.0
        %4069 = vmatprep.subr.mxu0 0.0
        %4070 = vmatpush1.msra.mxu0 0.0
        %4071 = vmatprep.subr.mxu0 0.0
        %4072 = vmatpush1.msra.mxu0 0.0
        %4073 = vmatprep.subr.mxu0 0.0
        %4074 = vmatpush1.msra.mxu0 0.0
        %4075 = vmatprep.subr.mxu0 0.0
        %4076 = vmatpush1.msra.mxu0 0.0
        %4077 = vmatprep.subr.mxu0 0.0
        %4078 = vmatpush1.msra.mxu0 0.0
        %4079 = vmatprep.subr.mxu0 0.0
        %4080 = vmatpush1.msra.mxu0 0.0
        %4081 = vmatprep.subr.mxu0 0.0
        %4082 = vmatpush1.msra.mxu0 0.0
        %4083 = vmatprep.subr.mxu0 0.0
        %4084 = vmatpush1.msra.mxu0 0.0
        %4085 = vmatprep.subr.mxu0 0.0
        %4086 = vmatpush1.msra.mxu0 0.0
        %4087 = vmatprep.subr.mxu0 0.0
        %4088 = vmatpush1.msra.mxu0 0.0
        %4089 = vmatprep.subr.mxu0 0.0
        %4090 = vmatpush1.msra.mxu0 0.0
        %4091 = vmatprep.subr.mxu0 0.0
        %4092 = vmatpush1.msra.mxu0 0.0
        %4093 = vmatprep.subr.mxu0 0.0
        %4094 = vmatpush1.msra.mxu0 0.0
        %4095 = vmatprep.subr.mxu0 0.0
        %4096 = vmatpush1.msra.mxu0 0.0
        %4097 = vmatprep.mubr.f32.mxu0 0.0
        %v4098 = vand.u32 %v4029, 4294901760
        %v4099 = vsub.f32 %v4029, %v4098
        %v4100 = vand.u32 %v4099, 4294901760
        %v4101 = vsub.f32 %v4099, %v4100
        %v4102 = vand.u32 %v4101, 4294901760
        %4103 = vmatmul.mubr.f32.gmra.mrb[0].mxu0 %v4102
        %v4104 = vpop.f32.mrb[0].mxu0
        %v4105 = vadd.f32 0.0, %v4104
        %v4106 = vpop.f32.mrb[0].mxu0
        %4107 = vdwg.mxu0
        %4108 = vmatprep.subr.mxu0 0.0
        %v4109 = vand.u32 %v344, 4294901760
        %v4110 = vsub.f32 %v344, %v4109
        %v4111 = vand.u32 %v4110, 4294901760
        %v4112 = vsub.f32 %v4110, %v4111
        %v4113 = vand.u32 %v4112, 4294901760
        %4114 = vmatpush1.msra.mxu0 %v4113
        %4115 = vmatprep.subr.mxu0 0.0
        %v4116 = vand.u32 %v345, 4294901760
        %v4117 = vsub.f32 %v345, %v4116
        %v4118 = vand.u32 %v4117, 4294901760
        %v4119 = vsub.f32 %v4117, %v4118
        %v4120 = vand.u32 %v4119, 4294901760
        %4121 = vmatpush1.msra.mxu0 %v4120
        %4122 = vmatprep.subr.mxu0 0.0
        %4123 = vmatpush1.msra.mxu0 0.0
        %4124 = vmatprep.subr.mxu0 0.0
        %4125 = vmatpush1.msra.mxu0 0.0
        %4126 = vmatprep.subr.mxu0 0.0
        %4127 = vmatpush1.msra.mxu0 0.0
        %4128 = vmatprep.subr.mxu0 0.0
        %4129 = vmatpush1.msra.mxu0 0.0
        %4130 = vmatprep.subr.mxu0 0.0
        %4131 = vmatpush1.msra.mxu0 0.0
        %4132 = vmatprep.subr.mxu0 0.0
        %4133 = vmatpush1.msra.mxu0 0.0
        %4134 = vmatprep.subr.mxu0 0.0
        %4135 = vmatpush1.msra.mxu0 0.0
        %4136 = vmatprep.subr.mxu0 0.0
        %4137 = vmatpush1.msra.mxu0 0.0
        %4138 = vmatprep.subr.mxu0 0.0
        %4139 = vmatpush1.msra.mxu0 0.0
        %4140 = vmatprep.subr.mxu0 0.0
        %4141 = vmatpush1.msra.mxu0 0.0
        %4142 = vmatprep.subr.mxu0 0.0
        %4143 = vmatpush1.msra.mxu0 0.0
        %4144 = vmatprep.subr.mxu0 0.0
        %4145 = vmatpush1.msra.mxu0 0.0
        %4146 = vmatprep.subr.mxu0 0.0
        %4147 = vmatpush1.msra.mxu0 0.0
        %4148 = vmatprep.subr.mxu0 0.0
        %4149 = vmatpush1.msra.mxu0 0.0
        %4150 = vmatprep.subr.mxu0 0.0
        %4151 = vmatpush1.msra.mxu0 0.0
        %4152 = vmatprep.subr.mxu0 0.0
        %4153 = vmatpush1.msra.mxu0 0.0
        %4154 = vmatprep.subr.mxu0 0.0
        %4155 = vmatpush1.msra.mxu0 0.0
        %4156 = vmatprep.subr.mxu0 0.0
        %4157 = vmatpush1.msra.mxu0 0.0
        %4158 = vmatprep.subr.mxu0 0.0
        %4159 = vmatpush1.msra.mxu0 0.0
        %4160 = vmatprep.subr.mxu0 0.0
        %4161 = vmatpush1.msra.mxu0 0.0
        %4162 = vmatprep.subr.mxu0 0.0
        %4163 = vmatpush1.msra.mxu0 0.0
        %4164 = vmatprep.subr.mxu0 0.0
        %4165 = vmatpush1.msra.mxu0 0.0
        %4166 = vmatprep.subr.mxu0 0.0
        %4167 = vmatpush1.msra.mxu0 0.0
        %4168 = vmatprep.subr.mxu0 0.0
        %4169 = vmatpush1.msra.mxu0 0.0
        %4170 = vmatprep.subr.mxu0 0.0
        %4171 = vmatpush1.msra.mxu0 0.0
        %4172 = vmatprep.subr.mxu0 0.0
        %4173 = vmatpush1.msra.mxu0 0.0
        %4174 = vmatprep.subr.mxu0 0.0
        %4175 = vmatpush1.msra.mxu0 0.0
        %4176 = vmatprep.subr.mxu0 0.0
        %4177 = vmatpush1.msra.mxu0 0.0
        %4178 = vmatprep.subr.mxu0 0.0
        %4179 = vmatpush1.msra.mxu0 0.0
        %4180 = vmatprep.subr.mxu0 0.0
        %4181 = vmatpush1.msra.mxu0 0.0
        %4182 = vmatprep.mubr.f32.mxu0 0.0
        %v4183 = vand.u32 %v4029, 4294901760
        %4184 = vmatmul.mubr.f32.gmra.mrb[0].mxu0 %v4183
        %v4185 = vpop.f32.mrb[0].mxu0
        %v4186 = vadd.f32 %v4105, %v4185
        %v4187 = vpop.f32.mrb[0].mxu0
        %4188 = vdwg.mxu0
        %4189 = vmatprep.subr.mxu0 0.0
        %v4190 = vand.u32 %v344, 4294901760
        %v4191 = vsub.f32 %v344, %v4190
        %4192 = vmatpush1.msra.mxu0 %v4191
        %4193 = vmatprep.subr.mxu0 0.0
        %v4194 = vand.u32 %v345, 4294901760
        %v4195 = vsub.f32 %v345, %v4194
        %4196 = vmatpush1.msra.mxu0 %v4195
        %4197 = vmatprep.subr.mxu0 0.0
        %4198 = vmatpush1.msra.mxu0 0.0
        %4199 = vmatprep.subr.mxu0 0.0
        %4200 = vmatpush1.msra.mxu0 0.0
        %4201 = vmatprep.subr.mxu0 0.0
        %4202 = vmatpush1.msra.mxu0 0.0
        %4203 = vmatprep.subr.mxu0 0.0
        %4204 = vmatpush1.msra.mxu0 0.0
        %4205 = vmatprep.subr.mxu0 0.0
        %4206 = vmatpush1.msra.mxu0 0.0
        %4207 = vmatprep.subr.mxu0 0.0
        %4208 = vmatpush1.msra.mxu0 0.0
        %4209 = vmatprep.subr.mxu0 0.0
        %4210 = vmatpush1.msra.mxu0 0.0
        %4211 = vmatprep.subr.mxu0 0.0
        %4212 = vmatpush1.msra.mxu0 0.0
        %4213 = vmatprep.subr.mxu0 0.0
        %4214 = vmatpush1.msra.mxu0 0.0
        %4215 = vmatprep.subr.mxu0 0.0
        %4216 = vmatpush1.msra.mxu0 0.0
        %4217 = vmatprep.subr.mxu0 0.0
        %4218 = vmatpush1.msra.mxu0 0.0
        %4219 = vmatprep.subr.mxu0 0.0
        %4220 = vmatpush1.msra.mxu0 0.0
        %4221 = vmatprep.subr.mxu0 0.0
        %4222 = vmatpush1.msra.mxu0 0.0
        %4223 = vmatprep.subr.mxu0 0.0
        %4224 = vmatpush1.msra.mxu0 0.0
        %4225 = vmatprep.subr.mxu0 0.0
        %4226 = vmatpush1.msra.mxu0 0.0
        %4227 = vmatprep.subr.mxu0 0.0
        %4228 = vmatpush1.msra.mxu0 0.0
        %4229 = vmatprep.subr.mxu0 0.0
        %4230 = vmatpush1.msra.mxu0 0.0
        %4231 = vmatprep.subr.mxu0 0.0
        %4232 = vmatpush1.msra.mxu0 0.0
        %4233 = vmatprep.subr.mxu0 0.0
        %4234 = vmatpush1.msra.mxu0 0.0
        %4235 = vmatprep.subr.mxu0 0.0
        %4236 = vmatpush1.msra.mxu0 0.0
        %4237 = vmatprep.subr.mxu0 0.0
        %4238 = vmatpush1.msra.mxu0 0.0
        %4239 = vmatprep.subr.mxu0 0.0
        %4240 = vmatpush1.msra.mxu0 0.0
        %4241 = vmatprep.subr.mxu0 0.0
        %4242 = vmatpush1.msra.mxu0 0.0
        %4243 = vmatprep.subr.mxu0 0.0
        %4244 = vmatpush1.msra.mxu0 0.0
        %4245 = vmatprep.subr.mxu0 0.0
        %4246 = vmatpush1.msra.mxu0 0.0
        %4247 = vmatprep.subr.mxu0 0.0
        %4248 = vmatpush1.msra.mxu0 0.0
        %4249 = vmatprep.subr.mxu0 0.0
        %4250 = vmatpush1.msra.mxu0 0.0
        %4251 = vmatprep.subr.mxu0 0.0
        %4252 = vmatpush1.msra.mxu0 0.0
        %4253 = vmatprep.subr.mxu0 0.0
        %4254 = vmatpush1.msra.mxu0 0.0
        %4255 = vmatprep.subr.mxu0 0.0
        %4256 = vmatpush1.msra.mxu0 0.0
        %4257 = vmatprep.mubr.f32.mxu0 0.0
        %v4258 = vand.u32 %v4029, 4294901760
        %v4259 = vsub.f32 %v4029, %v4258
        %4260 = vmatmul.mubr.f32.gmra.mrb[0].mxu0 %v4259
        %v4261 = vpop.f32.mrb[0].mxu0
        %v4262 = vadd.f32 %v4186, %v4261
        %v4263 = vpop.f32.mrb[0].mxu0
        %4264 = vdwg.mxu0
        %4265 = vmatprep.subr.mxu0 0.0
        %v4266 = vand.u32 %v344, 4294901760
        %4267 = vmatpush1.msra.mxu0 %v4266
        %4268 = vmatprep.subr.mxu0 0.0
        %v4269 = vand.u32 %v345, 4294901760
        %4270 = vmatpush1.msra.mxu0 %v4269
        %4271 = vmatprep.subr.mxu0 0.0
        %4272 = vmatpush1.msra.mxu0 0.0
        %4273 = vmatprep.subr.mxu0 0.0
        %4274 = vmatpush1.msra.mxu0 0.0
        %4275 = vmatprep.subr.mxu0 0.0
        %4276 = vmatpush1.msra.mxu0 0.0
        %4277 = vmatprep.subr.mxu0 0.0
        %4278 = vmatpush1.msra.mxu0 0.0
        %4279 = vmatprep.subr.mxu0 0.0
        %4280 = vmatpush1.msra.mxu0 0.0
        %4281 = vmatprep.subr.mxu0 0.0
        %4282 = vmatpush1.msra.mxu0 0.0
        %4283 = vmatprep.subr.mxu0 0.0
        %4284 = vmatpush1.msra.mxu0 0.0
        %4285 = vmatprep.subr.mxu0 0.0
        %4286 = vmatpush1.msra.mxu0 0.0
        %4287 = vmatprep.subr.mxu0 0.0
        %4288 = vmatpush1.msra.mxu0 0.0
        %4289 = vmatprep.subr.mxu0 0.0
        %4290 = vmatpush1.msra.mxu0 0.0
        %4291 = vmatprep.subr.mxu0 0.0
        %4292 = vmatpush1.msra.mxu0 0.0
        %4293 = vmatprep.subr.mxu0 0.0
        %4294 = vmatpush1.msra.mxu0 0.0
        %4295 = vmatprep.subr.mxu0 0.0
        %4296 = vmatpush1.msra.mxu0 0.0
        %4297 = vmatprep.subr.mxu0 0.0
        %4298 = vmatpush1.msra.mxu0 0.0
        %4299 = vmatprep.subr.mxu0 0.0
        %4300 = vmatpush1.msra.mxu0 0.0
        %4301 = vmatprep.subr.mxu0 0.0
        %4302 = vmatpush1.msra.mxu0 0.0
        %4303 = vmatprep.subr.mxu0 0.0
        %4304 = vmatpush1.msra.mxu0 0.0
        %4305 = vmatprep.subr.mxu0 0.0
        %4306 = vmatpush1.msra.mxu0 0.0
        %4307 = vmatprep.subr.mxu0 0.0
        %4308 = vmatpush1.msra.mxu0 0.0
        %4309 = vmatprep.subr.mxu0 0.0
        %4310 = vmatpush1.msra.mxu0 0.0
        %4311 = vmatprep.subr.mxu0 0.0
        %4312 = vmatpush1.msra.mxu0 0.0
        %4313 = vmatprep.subr.mxu0 0.0
        %4314 = vmatpush1.msra.mxu0 0.0
        %4315 = vmatprep.subr.mxu0 0.0
        %4316 = vmatpush1.msra.mxu0 0.0
        %4317 = vmatprep.subr.mxu0 0.0
        %4318 = vmatpush1.msra.mxu0 0.0
        %4319 = vmatprep.subr.mxu0 0.0
        %4320 = vmatpush1.msra.mxu0 0.0
        %4321 = vmatprep.subr.mxu0 0.0
        %4322 = vmatpush1.msra.mxu0 0.0
        %4323 = vmatprep.subr.mxu0 0.0
        %4324 = vmatpush1.msra.mxu0 0.0
        %4325 = vmatprep.subr.mxu0 0.0
        %4326 = vmatpush1.msra.mxu0 0.0
        %4327 = vmatprep.subr.mxu0 0.0
        %4328 = vmatpush1.msra.mxu0 0.0
        %4329 = vmatprep.subr.mxu0 0.0
        %4330 = vmatpush1.msra.mxu0 0.0
        %4331 = vmatprep.mubr.f32.mxu0 0.0
        %v4332 = vand.u32 %v4029, 4294901760
        %v4333 = vsub.f32 %v4029, %v4332
        %v4334 = vand.u32 %v4333, 4294901760
        %4335 = vmatmul.mubr.f32.gmra.mrb[0].mxu0 %v4334
        %v4336 = vpop.f32.mrb[0].mxu0
        %v4337 = vadd.f32 %v4262, %v4336
        %v4338 = vpop.f32.mrb[0].mxu0
        %4339 = vdwg.mxu0
        %4340 = vmatprep.subr.mxu0 0.0
        %v4341 = vand.u32 %v344, 4294901760
        %v4342 = vsub.f32 %v344, %v4341
        %v4343 = vand.u32 %v4342, 4294901760
        %4344 = vmatpush1.msra.mxu0 %v4343
        %4345 = vmatprep.subr.mxu0 0.0
        %v4346 = vand.u32 %v345, 4294901760
        %v4347 = vsub.f32 %v345, %v4346
        %v4348 = vand.u32 %v4347, 4294901760
        %4349 = vmatpush1.msra.mxu0 %v4348
        %4350 = vmatprep.subr.mxu0 0.0
        %4351 = vmatpush1.msra.mxu0 0.0
        %4352 = vmatprep.subr.mxu0 0.0
        %4353 = vmatpush1.msra.mxu0 0.0
        %4354 = vmatprep.subr.mxu0 0.0
        %4355 = vmatpush1.msra.mxu0 0.0
        %4356 = vmatprep.subr.mxu0 0.0
        %4357 = vmatpush1.msra.mxu0 0.0
        %4358 = vmatprep.subr.mxu0 0.0
        %4359 = vmatpush1.msra.mxu0 0.0
        %4360 = vmatprep.subr.mxu0 0.0
        %4361 = vmatpush1.msra.mxu0 0.0
        %4362 = vmatprep.subr.mxu0 0.0
        %4363 = vmatpush1.msra.mxu0 0.0
        %4364 = vmatprep.subr.mxu0 0.0
        %4365 = vmatpush1.msra.mxu0 0.0
        %4366 = vmatprep.subr.mxu0 0.0
        %4367 = vmatpush1.msra.mxu0 0.0
        %4368 = vmatprep.subr.mxu0 0.0
        %4369 = vmatpush1.msra.mxu0 0.0
        %4370 = vmatprep.subr.mxu0 0.0
        %4371 = vmatpush1.msra.mxu0 0.0
        %4372 = vmatprep.subr.mxu0 0.0
        %4373 = vmatpush1.msra.mxu0 0.0
        %4374 = vmatprep.subr.mxu0 0.0
        %4375 = vmatpush1.msra.mxu0 0.0
        %4376 = vmatprep.subr.mxu0 0.0
        %4377 = vmatpush1.msra.mxu0 0.0
        %4378 = vmatprep.subr.mxu0 0.0
        %4379 = vmatpush1.msra.mxu0 0.0
        %4380 = vmatprep.subr.mxu0 0.0
        %4381 = vmatpush1.msra.mxu0 0.0
        %4382 = vmatprep.subr.mxu0 0.0
        %4383 = vmatpush1.msra.mxu0 0.0
        %4384 = vmatprep.subr.mxu0 0.0
        %4385 = vmatpush1.msra.mxu0 0.0
        %4386 = vmatprep.subr.mxu0 0.0
        %4387 = vmatpush1.msra.mxu0 0.0
        %4388 = vmatprep.subr.mxu0 0.0
        %4389 = vmatpush1.msra.mxu0 0.0
        %4390 = vmatprep.subr.mxu0 0.0
        %4391 = vmatpush1.msra.mxu0 0.0
        %4392 = vmatprep.subr.mxu0 0.0
        %4393 = vmatpush1.msra.mxu0 0.0
        %4394 = vmatprep.subr.mxu0 0.0
        %4395 = vmatpush1.msra.mxu0 0.0
        %4396 = vmatprep.subr.mxu0 0.0
        %4397 = vmatpush1.msra.mxu0 0.0
        %4398 = vmatprep.subr.mxu0 0.0
        %4399 = vmatpush1.msra.mxu0 0.0
        %4400 = vmatprep.subr.mxu0 0.0
        %4401 = vmatpush1.msra.mxu0 0.0
        %4402 = vmatprep.subr.mxu0 0.0
        %4403 = vmatpush1.msra.mxu0 0.0
        %4404 = vmatprep.subr.mxu0 0.0
        %4405 = vmatpush1.msra.mxu0 0.0
        %4406 = vmatprep.subr.mxu0 0.0
        %4407 = vmatpush1.msra.mxu0 0.0
        %4408 = vmatprep.subr.mxu0 0.0
        %4409 = vmatpush1.msra.mxu0 0.0
        %4410 = vmatprep.mubr.f32.mxu0 0.0
        %v4411 = vand.u32 %v4029, 4294901760
        %4412 = vmatmul.mubr.f32.gmra.mrb[0].mxu0 %v4411
        %v4413 = vpop.f32.mrb[0].mxu0
        %v4414 = vadd.f32 %v4337, %v4413
        %v4415 = vpop.f32.mrb[0].mxu0
        %4416 = vdwg.mxu0
        %4417 = vmatprep.subr.mxu0 0.0
        %v4418 = vand.u32 %v344, 4294901760
        %4419 = vmatpush1.msra.mxu0 %v4418
        %4420 = vmatprep.subr.mxu0 0.0
        %v4421 = vand.u32 %v345, 4294901760
        %4422 = vmatpush1.msra.mxu0 %v4421
        %4423 = vmatprep.subr.mxu0 0.0
        %4424 = vmatpush1.msra.mxu0 0.0
        %4425 = vmatprep.subr.mxu0 0.0
        %4426 = vmatpush1.msra.mxu0 0.0
        %4427 = vmatprep.subr.mxu0 0.0
        %4428 = vmatpush1.msra.mxu0 0.0
        %4429 = vmatprep.subr.mxu0 0.0
        %4430 = vmatpush1.msra.mxu0 0.0
        %4431 = vmatprep.subr.mxu0 0.0
        %4432 = vmatpush1.msra.mxu0 0.0
        %4433 = vmatprep.subr.mxu0 0.0
        %4434 = vmatpush1.msra.mxu0 0.0
        %4435 = vmatprep.subr.mxu0 0.0
        %4436 = vmatpush1.msra.mxu0 0.0
        %4437 = vmatprep.subr.mxu0 0.0
        %4438 = vmatpush1.msra.mxu0 0.0
        %4439 = vmatprep.subr.mxu0 0.0
        %4440 = vmatpush1.msra.mxu0 0.0
        %4441 = vmatprep.subr.mxu0 0.0
        %4442 = vmatpush1.msra.mxu0 0.0
        %4443 = vmatprep.subr.mxu0 0.0
        %4444 = vmatpush1.msra.mxu0 0.0
        %4445 = vmatprep.subr.mxu0 0.0
        %4446 = vmatpush1.msra.mxu0 0.0
        %4447 = vmatprep.subr.mxu0 0.0
        %4448 = vmatpush1.msra.mxu0 0.0
        %4449 = vmatprep.subr.mxu0 0.0
        %4450 = vmatpush1.msra.mxu0 0.0
        %4451 = vmatprep.subr.mxu0 0.0
        %4452 = vmatpush1.msra.mxu0 0.0
        %4453 = vmatprep.subr.mxu0 0.0
        %4454 = vmatpush1.msra.mxu0 0.0
        %4455 = vmatprep.subr.mxu0 0.0
        %4456 = vmatpush1.msra.mxu0 0.0
        %4457 = vmatprep.subr.mxu0 0.0
        %4458 = vmatpush1.msra.mxu0 0.0
        %4459 = vmatprep.subr.mxu0 0.0
        %4460 = vmatpush1.msra.mxu0 0.0
        %4461 = vmatprep.subr.mxu0 0.0
        %4462 = vmatpush1.msra.mxu0 0.0
        %4463 = vmatprep.subr.mxu0 0.0
        %4464 = vmatpush1.msra.mxu0 0.0
        %4465 = vmatprep.subr.mxu0 0.0
        %4466 = vmatpush1.msra.mxu0 0.0
        %4467 = vmatprep.subr.mxu0 0.0
        %4468 = vmatpush1.msra.mxu0 0.0
        %4469 = vmatprep.subr.mxu0 0.0
        %4470 = vmatpush1.msra.mxu0 0.0
        %4471 = vmatprep.subr.mxu0 0.0
        %4472 = vmatpush1.msra.mxu0 0.0
        %4473 = vmatprep.subr.mxu0 0.0
        %4474 = vmatpush1.msra.mxu0 0.0
        %4475 = vmatprep.subr.mxu0 0.0
        %4476 = vmatpush1.msra.mxu0 0.0
        %4477 = vmatprep.subr.mxu0 0.0
        %4478 = vmatpush1.msra.mxu0 0.0
        %4479 = vmatprep.subr.mxu0 0.0
        %4480 = vmatpush1.msra.mxu0 0.0
        %4481 = vmatprep.subr.mxu0 0.0
        %4482 = vmatpush1.msra.mxu0 0.0
        %4483 = vmatprep.mubr.f32.mxu0 0.0
        %v4484 = vand.u32 %v4029, 4294901760
        %4485 = vmatmul.mubr.f32.gmra.mrb[0].mxu0 %v4484
        %v4486 = vpop.f32.mrb[0].mxu0
        %v4487 = vadd.f32 %v4414, %v4486
        %v4488 = vpop.f32.mrb[0].mxu0
        %4489 = vdwg.mxu0
        %v4491 = vsel %vm346, %v2183, 0
        %4493 = vmatprep.subr.mxu0 0.0
        %v4494 = vand.u32 %v344, 4294901760
        %4495 = vmatpush1.msra.mxu0 %v4494
        %4496 = vmatprep.subr.mxu0 0.0
        %v4497 = vand.u32 %v345, 4294901760
        %4498 = vmatpush1.msra.mxu0 %v4497
        %4499 = vmatprep.subr.mxu0 0.0
        %4500 = vmatpush1.msra.mxu0 0.0
        %4501 = vmatprep.subr.mxu0 0.0
        %4502 = vmatpush1.msra.mxu0 0.0
        %4503 = vmatprep.subr.mxu0 0.0
        %4504 = vmatpush1.msra.mxu0 0.0
        %4505 = vmatprep.subr.mxu0 0.0
        %4506 = vmatpush1.msra.mxu0 0.0
        %4507 = vmatprep.subr.mxu0 0.0
        %4508 = vmatpush1.msra.mxu0 0.0
        %4509 = vmatprep.subr.mxu0 0.0
        %4510 = vmatpush1.msra.mxu0 0.0
        %4511 = vmatprep.subr.mxu0 0.0
        %4512 = vmatpush1.msra.mxu0 0.0
        %4513 = vmatprep.subr.mxu0 0.0
        %4514 = vmatpush1.msra.mxu0 0.0
        %4515 = vmatprep.subr.mxu0 0.0
        %4516 = vmatpush1.msra.mxu0 0.0
        %4517 = vmatprep.subr.mxu0 0.0
        %4518 = vmatpush1.msra.mxu0 0.0
        %4519 = vmatprep.subr.mxu0 0.0
        %4520 = vmatpush1.msra.mxu0 0.0
        %4521 = vmatprep.subr.mxu0 0.0
        %4522 = vmatpush1.msra.mxu0 0.0
        %4523 = vmatprep.subr.mxu0 0.0
        %4524 = vmatpush1.msra.mxu0 0.0
        %4525 = vmatprep.subr.mxu0 0.0
        %4526 = vmatpush1.msra.mxu0 0.0
        %4527 = vmatprep.subr.mxu0 0.0
        %4528 = vmatpush1.msra.mxu0 0.0
        %4529 = vmatprep.subr.mxu0 0.0
        %4530 = vmatpush1.msra.mxu0 0.0
        %4531 = vmatprep.subr.mxu0 0.0
        %4532 = vmatpush1.msra.mxu0 0.0
        %4533 = vmatprep.subr.mxu0 0.0
        %4534 = vmatpush1.msra.mxu0 0.0
        %4535 = vmatprep.subr.mxu0 0.0
        %4536 = vmatpush1.msra.mxu0 0.0
        %4537 = vmatprep.subr.mxu0 0.0
        %4538 = vmatpush1.msra.mxu0 0.0
        %4539 = vmatprep.subr.mxu0 0.0
        %4540 = vmatpush1.msra.mxu0 0.0
        %4541 = vmatprep.subr.mxu0 0.0
        %4542 = vmatpush1.msra.mxu0 0.0
        %4543 = vmatprep.subr.mxu0 0.0
        %4544 = vmatpush1.msra.mxu0 0.0
        %4545 = vmatprep.subr.mxu0 0.0
        %4546 = vmatpush1.msra.mxu0 0.0
        %4547 = vmatprep.subr.mxu0 0.0
        %4548 = vmatpush1.msra.mxu0 0.0
        %4549 = vmatprep.subr.mxu0 0.0
        %4550 = vmatpush1.msra.mxu0 0.0
        %4551 = vmatprep.subr.mxu0 0.0
        %4552 = vmatpush1.msra.mxu0 0.0
        %4553 = vmatprep.subr.mxu0 0.0
        %4554 = vmatpush1.msra.mxu0 0.0
        %4555 = vmatprep.subr.mxu0 0.0
        %4556 = vmatpush1.msra.mxu0 0.0
        %4557 = vmatprep.subr.mxu0 0.0
        %4558 = vmatpush1.msra.mxu0 0.0
        %4559 = vmatprep.mubr.f32.mxu0 0.0
        %v4560 = vand.u32 %v4491, 4294901760
        %v4561 = vsub.f32 %v4491, %v4560
        %v4562 = vand.u32 %v4561, 4294901760
        %v4563 = vsub.f32 %v4561, %v4562
        %v4564 = vand.u32 %v4563, 4294901760
        %4565 = vmatmul.mubr.f32.gmra.mrb[0].mxu0 %v4564
        %v4566 = vpop.f32.mrb[0].mxu0
        %v4567 = vadd.f32 0.0, %v4566
        %v4568 = vpop.f32.mrb[0].mxu0
        %4569 = vdwg.mxu0
        %4570 = vmatprep.subr.mxu0 0.0
        %v4571 = vand.u32 %v344, 4294901760
        %v4572 = vsub.f32 %v344, %v4571
        %v4573 = vand.u32 %v4572, 4294901760
        %v4574 = vsub.f32 %v4572, %v4573
        %v4575 = vand.u32 %v4574, 4294901760
        %4576 = vmatpush1.msra.mxu0 %v4575
        %4577 = vmatprep.subr.mxu0 0.0
        %v4578 = vand.u32 %v345, 4294901760
        %v4579 = vsub.f32 %v345, %v4578
        %v4580 = vand.u32 %v4579, 4294901760
        %v4581 = vsub.f32 %v4579, %v4580
        %v4582 = vand.u32 %v4581, 4294901760
        %4583 = vmatpush1.msra.mxu0 %v4582
        %4584 = vmatprep.subr.mxu0 0.0
        %4585 = vmatpush1.msra.mxu0 0.0
        %4586 = vmatprep.subr.mxu0 0.0
        %4587 = vmatpush1.msra.mxu0 0.0
        %4588 = vmatprep.subr.mxu0 0.0
        %4589 = vmatpush1.msra.mxu0 0.0
        %4590 = vmatprep.subr.mxu0 0.0
        %4591 = vmatpush1.msra.mxu0 0.0
        %4592 = vmatprep.subr.mxu0 0.0
        %4593 = vmatpush1.msra.mxu0 0.0
        %4594 = vmatprep.subr.mxu0 0.0
        %4595 = vmatpush1.msra.mxu0 0.0
        %4596 = vmatprep.subr.mxu0 0.0
        %4597 = vmatpush1.msra.mxu0 0.0
        %4598 = vmatprep.subr.mxu0 0.0
        %4599 = vmatpush1.msra.mxu0 0.0
        %4600 = vmatprep.subr.mxu0 0.0
        %4601 = vmatpush1.msra.mxu0 0.0
        %4602 = vmatprep.subr.mxu0 0.0
        %4603 = vmatpush1.msra.mxu0 0.0
        %4604 = vmatprep.subr.mxu0 0.0
        %4605 = vmatpush1.msra.mxu0 0.0
        %4606 = vmatprep.subr.mxu0 0.0
        %4607 = vmatpush1.msra.mxu0 0.0
        %4608 = vmatprep.subr.mxu0 0.0
        %4609 = vmatpush1.msra.mxu0 0.0
        %4610 = vmatprep.subr.mxu0 0.0
        %4611 = vmatpush1.msra.mxu0 0.0
        %4612 = vmatprep.subr.mxu0 0.0
        %4613 = vmatpush1.msra.mxu0 0.0
        %4614 = vmatprep.subr.mxu0 0.0
        %4615 = vmatpush1.msra.mxu0 0.0
        %4616 = vmatprep.subr.mxu0 0.0
        %4617 = vmatpush1.msra.mxu0 0.0
        %4618 = vmatprep.subr.mxu0 0.0
        %4619 = vmatpush1.msra.mxu0 0.0
        %4620 = vmatprep.subr.mxu0 0.0
        %4621 = vmatpush1.msra.mxu0 0.0
        %4622 = vmatprep.subr.mxu0 0.0
        %4623 = vmatpush1.msra.mxu0 0.0
        %4624 = vmatprep.subr.mxu0 0.0
        %4625 = vmatpush1.msra.mxu0 0.0
        %4626 = vmatprep.subr.mxu0 0.0
        %4627 = vmatpush1.msra.mxu0 0.0
        %4628 = vmatprep.subr.mxu0 0.0
        %4629 = vmatpush1.msra.mxu0 0.0
        %4630 = vmatprep.subr.mxu0 0.0
        %4631 = vmatpush1.msra.mxu0 0.0
        %4632 = vmatprep.subr.mxu0 0.0
        %4633 = vmatpush1.msra.mxu0 0.0
        %4634 = vmatprep.subr.mxu0 0.0
        %4635 = vmatpush1.msra.mxu0 0.0
        %4636 = vmatprep.subr.mxu0 0.0
        %4637 = vmatpush1.msra.mxu0 0.0
        %4638 = vmatprep.subr.mxu0 0.0
        %4639 = vmatpush1.msra.mxu0 0.0
        %4640 = vmatprep.subr.mxu0 0.0
        %4641 = vmatpush1.msra.mxu0 0.0
        %4642 = vmatprep.subr.mxu0 0.0
        %4643 = vmatpush1.msra.mxu0 0.0
        %4644 = vmatprep.mubr.f32.mxu0 0.0
        %v4645 = vand.u32 %v4491, 4294901760
        %4646 = vmatmul.mubr.f32.gmra.mrb[0].mxu0 %v4645
        %v4647 = vpop.f32.mrb[0].mxu0
        %v4648 = vadd.f32 %v4567, %v4647
        %v4649 = vpop.f32.mrb[0].mxu0
        %4650 = vdwg.mxu0
        %4651 = vmatprep.subr.mxu0 0.0
        %v4652 = vand.u32 %v344, 4294901760
        %v4653 = vsub.f32 %v344, %v4652
        %4654 = vmatpush1.msra.mxu0 %v4653
        %4655 = vmatprep.subr.mxu0 0.0
        %v4656 = vand.u32 %v345, 4294901760
        %v4657 = vsub.f32 %v345, %v4656
        %4658 = vmatpush1.msra.mxu0 %v4657
        %4659 = vmatprep.subr.mxu0 0.0
        %4660 = vmatpush1.msra.mxu0 0.0
        %4661 = vmatprep.subr.mxu0 0.0
        %4662 = vmatpush1.msra.mxu0 0.0
        %4663 = vmatprep.subr.mxu0 0.0
        %4664 = vmatpush1.msra.mxu0 0.0
        %4665 = vmatprep.subr.mxu0 0.0
        %4666 = vmatpush1.msra.mxu0 0.0
        %4667 = vmatprep.subr.mxu0 0.0
        %4668 = vmatpush1.msra.mxu0 0.0
        %4669 = vmatprep.subr.mxu0 0.0
        %4670 = vmatpush1.msra.mxu0 0.0
        %4671 = vmatprep.subr.mxu0 0.0
        %4672 = vmatpush1.msra.mxu0 0.0
        %4673 = vmatprep.subr.mxu0 0.0
        %4674 = vmatpush1.msra.mxu0 0.0
        %4675 = vmatprep.subr.mxu0 0.0
        %4676 = vmatpush1.msra.mxu0 0.0
        %4677 = vmatprep.subr.mxu0 0.0
        %4678 = vmatpush1.msra.mxu0 0.0
        %4679 = vmatprep.subr.mxu0 0.0
        %4680 = vmatpush1.msra.mxu0 0.0
        %4681 = vmatprep.subr.mxu0 0.0
        %4682 = vmatpush1.msra.mxu0 0.0
        %4683 = vmatprep.subr.mxu0 0.0
        %4684 = vmatpush1.msra.mxu0 0.0
        %4685 = vmatprep.subr.mxu0 0.0
        %4686 = vmatpush1.msra.mxu0 0.0
        %4687 = vmatprep.subr.mxu0 0.0
        %4688 = vmatpush1.msra.mxu0 0.0
        %4689 = vmatprep.subr.mxu0 0.0
        %4690 = vmatpush1.msra.mxu0 0.0
        %4691 = vmatprep.subr.mxu0 0.0
        %4692 = vmatpush1.msra.mxu0 0.0
        %4693 = vmatprep.subr.mxu0 0.0
        %4694 = vmatpush1.msra.mxu0 0.0
        %4695 = vmatprep.subr.mxu0 0.0
        %4696 = vmatpush1.msra.mxu0 0.0
        %4697 = vmatprep.subr.mxu0 0.0
        %4698 = vmatpush1.msra.mxu0 0.0
        %4699 = vmatprep.subr.mxu0 0.0
        %4700 = vmatpush1.msra.mxu0 0.0
        %4701 = vmatprep.subr.mxu0 0.0
        %4702 = vmatpush1.msra.mxu0 0.0
        %4703 = vmatprep.subr.mxu0 0.0
        %4704 = vmatpush1.msra.mxu0 0.0
        %4705 = vmatprep.subr.mxu0 0.0
        %4706 = vmatpush1.msra.mxu0 0.0
        %4707 = vmatprep.subr.mxu0 0.0
        %4708 = vmatpush1.msra.mxu0 0.0
        %4709 = vmatprep.subr.mxu0 0.0
        %4710 = vmatpush1.msra.mxu0 0.0
        %4711 = vmatprep.subr.mxu0 0.0
        %4712 = vmatpush1.msra.mxu0 0.0
        %4713 = vmatprep.subr.mxu0 0.0
        %4714 = vmatpush1.msra.mxu0 0.0
        %4715 = vmatprep.subr.mxu0 0.0
        %4716 = vmatpush1.msra.mxu0 0.0
        %4717 = vmatprep.subr.mxu0 0.0
        %4718 = vmatpush1.msra.mxu0 0.0
        %4719 = vmatprep.mubr.f32.mxu0 0.0
        %v4720 = vand.u32 %v4491, 4294901760
        %v4721 = vsub.f32 %v4491, %v4720
        %4722 = vmatmul.mubr.f32.gmra.mrb[0].mxu0 %v4721
        %v4723 = vpop.f32.mrb[0].mxu0
        %v4724 = vadd.f32 %v4648, %v4723
        %v4725 = vpop.f32.mrb[0].mxu0
        %4726 = vdwg.mxu0
        %4727 = vmatprep.subr.mxu0 0.0
        %v4728 = vand.u32 %v344, 4294901760
        %4729 = vmatpush1.msra.mxu0 %v4728
        %4730 = vmatprep.subr.mxu0 0.0
        %v4731 = vand.u32 %v345, 4294901760
        %4732 = vmatpush1.msra.mxu0 %v4731
        %4733 = vmatprep.subr.mxu0 0.0
        %4734 = vmatpush1.msra.mxu0 0.0
        %4735 = vmatprep.subr.mxu0 0.0
        %4736 = vmatpush1.msra.mxu0 0.0
        %4737 = vmatprep.subr.mxu0 0.0
        %4738 = vmatpush1.msra.mxu0 0.0
        %4739 = vmatprep.subr.mxu0 0.0
        %4740 = vmatpush1.msra.mxu0 0.0
        %4741 = vmatprep.subr.mxu0 0.0
        %4742 = vmatpush1.msra.mxu0 0.0
        %4743 = vmatprep.subr.mxu0 0.0
        %4744 = vmatpush1.msra.mxu0 0.0
        %4745 = vmatprep.subr.mxu0 0.0
        %4746 = vmatpush1.msra.mxu0 0.0
        %4747 = vmatprep.subr.mxu0 0.0
        %4748 = vmatpush1.msra.mxu0 0.0
        %4749 = vmatprep.subr.mxu0 0.0
        %4750 = vmatpush1.msra.mxu0 0.0
        %4751 = vmatprep.subr.mxu0 0.0
        %4752 = vmatpush1.msra.mxu0 0.0
        %4753 = vmatprep.subr.mxu0 0.0
        %4754 = vmatpush1.msra.mxu0 0.0
        %4755 = vmatprep.subr.mxu0 0.0
        %4756 = vmatpush1.msra.mxu0 0.0
        %4757 = vmatprep.subr.mxu0 0.0
        %4758 = vmatpush1.msra.mxu0 0.0
        %4759 = vmatprep.subr.mxu0 0.0
        %4760 = vmatpush1.msra.mxu0 0.0
        %4761 = vmatprep.subr.mxu0 0.0
        %4762 = vmatpush1.msra.mxu0 0.0
        %4763 = vmatprep.subr.mxu0 0.0
        %4764 = vmatpush1.msra.mxu0 0.0
        %4765 = vmatprep.subr.mxu0 0.0
        %4766 = vmatpush1.msra.mxu0 0.0
        %4767 = vmatprep.subr.mxu0 0.0
        %4768 = vmatpush1.msra.mxu0 0.0
        %4769 = vmatprep.subr.mxu0 0.0
        %4770 = vmatpush1.msra.mxu0 0.0
        %4771 = vmatprep.subr.mxu0 0.0
        %4772 = vmatpush1.msra.mxu0 0.0
        %4773 = vmatprep.subr.mxu0 0.0
        %4774 = vmatpush1.msra.mxu0 0.0
        %4775 = vmatprep.subr.mxu0 0.0
        %4776 = vmatpush1.msra.mxu0 0.0
        %4777 = vmatprep.subr.mxu0 0.0
        %4778 = vmatpush1.msra.mxu0 0.0
        %4779 = vmatprep.subr.mxu0 0.0
        %4780 = vmatpush1.msra.mxu0 0.0
        %4781 = vmatprep.subr.mxu0 0.0
        %4782 = vmatpush1.msra.mxu0 0.0
        %4783 = vmatprep.subr.mxu0 0.0
        %4784 = vmatpush1.msra.mxu0 0.0
        %4785 = vmatprep.subr.mxu0 0.0
        %4786 = vmatpush1.msra.mxu0 0.0
        %4787 = vmatprep.subr.mxu0 0.0
        %4788 = vmatpush1.msra.mxu0 0.0
        %4789 = vmatprep.subr.mxu0 0.0
        %4790 = vmatpush1.msra.mxu0 0.0
        %4791 = vmatprep.subr.mxu0 0.0
        %4792 = vmatpush1.msra.mxu0 0.0
        %4793 = vmatprep.mubr.f32.mxu0 0.0
        %v4794 = vand.u32 %v4491, 4294901760
        %v4795 = vsub.f32 %v4491, %v4794
        %v4796 = vand.u32 %v4795, 4294901760
        %4797 = vmatmul.mubr.f32.gmra.mrb[0].mxu0 %v4796
        %v4798 = vpop.f32.mrb[0].mxu0
        %v4799 = vadd.f32 %v4724, %v4798
        %v4800 = vpop.f32.mrb[0].mxu0
        %4801 = vdwg.mxu0
        %4802 = vmatprep.subr.mxu0 0.0
        %v4803 = vand.u32 %v344, 4294901760
        %v4804 = vsub.f32 %v344, %v4803
        %v4805 = vand.u32 %v4804, 4294901760
        %4806 = vmatpush1.msra.mxu0 %v4805
        %4807 = vmatprep.subr.mxu0 0.0
        %v4808 = vand.u32 %v345, 4294901760
        %v4809 = vsub.f32 %v345, %v4808
        %v4810 = vand.u32 %v4809, 4294901760
        %4811 = vmatpush1.msra.mxu0 %v4810
        %4812 = vmatprep.subr.mxu0 0.0
        %4813 = vmatpush1.msra.mxu0 0.0
        %4814 = vmatprep.subr.mxu0 0.0
        %4815 = vmatpush1.msra.mxu0 0.0
        %4816 = vmatprep.subr.mxu0 0.0
        %4817 = vmatpush1.msra.mxu0 0.0
        %4818 = vmatprep.subr.mxu0 0.0
        %4819 = vmatpush1.msra.mxu0 0.0
        %4820 = vmatprep.subr.mxu0 0.0
        %4821 = vmatpush1.msra.mxu0 0.0
        %4822 = vmatprep.subr.mxu0 0.0
        %4823 = vmatpush1.msra.mxu0 0.0
        %4824 = vmatprep.subr.mxu0 0.0
        %4825 = vmatpush1.msra.mxu0 0.0
        %4826 = vmatprep.subr.mxu0 0.0
        %4827 = vmatpush1.msra.mxu0 0.0
        %4828 = vmatprep.subr.mxu0 0.0
        %4829 = vmatpush1.msra.mxu0 0.0
        %4830 = vmatprep.subr.mxu0 0.0
        %4831 = vmatpush1.msra.mxu0 0.0
        %4832 = vmatprep.subr.mxu0 0.0
        %4833 = vmatpush1.msra.mxu0 0.0
        %4834 = vmatprep.subr.mxu0 0.0
        %4835 = vmatpush1.msra.mxu0 0.0
        %4836 = vmatprep.subr.mxu0 0.0
        %4837 = vmatpush1.msra.mxu0 0.0
        %4838 = vmatprep.subr.mxu0 0.0
        %4839 = vmatpush1.msra.mxu0 0.0
        %4840 = vmatprep.subr.mxu0 0.0
        %4841 = vmatpush1.msra.mxu0 0.0
        %4842 = vmatprep.subr.mxu0 0.0
        %4843 = vmatpush1.msra.mxu0 0.0
        %4844 = vmatprep.subr.mxu0 0.0
        %4845 = vmatpush1.msra.mxu0 0.0
        %4846 = vmatprep.subr.mxu0 0.0
        %4847 = vmatpush1.msra.mxu0 0.0
        %4848 = vmatprep.subr.mxu0 0.0
        %4849 = vmatpush1.msra.mxu0 0.0
        %4850 = vmatprep.subr.mxu0 0.0
        %4851 = vmatpush1.msra.mxu0 0.0
        %4852 = vmatprep.subr.mxu0 0.0
        %4853 = vmatpush1.msra.mxu0 0.0
        %4854 = vmatprep.subr.mxu0 0.0
        %4855 = vmatpush1.msra.mxu0 0.0
        %4856 = vmatprep.subr.mxu0 0.0
        %4857 = vmatpush1.msra.mxu0 0.0
        %4858 = vmatprep.subr.mxu0 0.0
        %4859 = vmatpush1.msra.mxu0 0.0
        %4860 = vmatprep.subr.mxu0 0.0
        %4861 = vmatpush1.msra.mxu0 0.0
        %4862 = vmatprep.subr.mxu0 0.0
        %4863 = vmatpush1.msra.mxu0 0.0
        %4864 = vmatprep.subr.mxu0 0.0
        %4865 = vmatpush1.msra.mxu0 0.0
        %4866 = vmatprep.subr.mxu0 0.0
        %4867 = vmatpush1.msra.mxu0 0.0
        %4868 = vmatprep.subr.mxu0 0.0
        %4869 = vmatpush1.msra.mxu0 0.0
        %4870 = vmatprep.subr.mxu0 0.0
        %4871 = vmatpush1.msra.mxu0 0.0
        %4872 = vmatprep.mubr.f32.mxu0 0.0
        %v4873 = vand.u32 %v4491, 4294901760
        %4874 = vmatmul.mubr.f32.gmra.mrb[0].mxu0 %v4873
        %v4875 = vpop.f32.mrb[0].mxu0
        %v4876 = vadd.f32 %v4799, %v4875
        %v4877 = vpop.f32.mrb[0].mxu0
        %4878 = vdwg.mxu0
        %4879 = vmatprep.subr.mxu0 0.0
        %v4880 = vand.u32 %v344, 4294901760
        %4881 = vmatpush1.msra.mxu0 %v4880
        %4882 = vmatprep.subr.mxu0 0.0
        %v4883 = vand.u32 %v345, 4294901760
        %4884 = vmatpush1.msra.mxu0 %v4883
        %4885 = vmatprep.subr.mxu0 0.0
        %4886 = vmatpush1.msra.mxu0 0.0
        %4887 = vmatprep.subr.mxu0 0.0
        %4888 = vmatpush1.msra.mxu0 0.0
        %4889 = vmatprep.subr.mxu0 0.0
        %4890 = vmatpush1.msra.mxu0 0.0
        %4891 = vmatprep.subr.mxu0 0.0
        %4892 = vmatpush1.msra.mxu0 0.0
        %4893 = vmatprep.subr.mxu0 0.0
        %4894 = vmatpush1.msra.mxu0 0.0
        %4895 = vmatprep.subr.mxu0 0.0
        %4896 = vmatpush1.msra.mxu0 0.0
        %4897 = vmatprep.subr.mxu0 0.0
        %4898 = vmatpush1.msra.mxu0 0.0
        %4899 = vmatprep.subr.mxu0 0.0
        %4900 = vmatpush1.msra.mxu0 0.0
        %4901 = vmatprep.subr.mxu0 0.0
        %4902 = vmatpush1.msra.mxu0 0.0
        %4903 = vmatprep.subr.mxu0 0.0
        %4904 = vmatpush1.msra.mxu0 0.0
        %4905 = vmatprep.subr.mxu0 0.0
        %4906 = vmatpush1.msra.mxu0 0.0
        %4907 = vmatprep.subr.mxu0 0.0
        %4908 = vmatpush1.msra.mxu0 0.0
        %4909 = vmatprep.subr.mxu0 0.0
        %4910 = vmatpush1.msra.mxu0 0.0
        %4911 = vmatprep.subr.mxu0 0.0
        %4912 = vmatpush1.msra.mxu0 0.0
        %4913 = vmatprep.subr.mxu0 0.0
        %4914 = vmatpush1.msra.mxu0 0.0
        %4915 = vmatprep.subr.mxu0 0.0
        %4916 = vmatpush1.msra.mxu0 0.0
        %4917 = vmatprep.subr.mxu0 0.0
        %4918 = vmatpush1.msra.mxu0 0.0
        %4919 = vmatprep.subr.mxu0 0.0
        %4920 = vmatpush1.msra.mxu0 0.0
        %4921 = vmatprep.subr.mxu0 0.0
        %4922 = vmatpush1.msra.mxu0 0.0
        %4923 = vmatprep.subr.mxu0 0.0
        %4924 = vmatpush1.msra.mxu0 0.0
        %4925 = vmatprep.subr.mxu0 0.0
        %4926 = vmatpush1.msra.mxu0 0.0
        %4927 = vmatprep.subr.mxu0 0.0
        %4928 = vmatpush1.msra.mxu0 0.0
        %4929 = vmatprep.subr.mxu0 0.0
        %4930 = vmatpush1.msra.mxu0 0.0
        %4931 = vmatprep.subr.mxu0 0.0
        %4932 = vmatpush1.msra.mxu0 0.0
        %4933 = vmatprep.subr.mxu0 0.0
        %4934 = vmatpush1.msra.mxu0 0.0
        %4935 = vmatprep.subr.mxu0 0.0
        %4936 = vmatpush1.msra.mxu0 0.0
        %4937 = vmatprep.subr.mxu0 0.0
        %4938 = vmatpush1.msra.mxu0 0.0
        %4939 = vmatprep.subr.mxu0 0.0
        %4940 = vmatpush1.msra.mxu0 0.0
        %4941 = vmatprep.subr.mxu0 0.0
        %4942 = vmatpush1.msra.mxu0 0.0
        %4943 = vmatprep.subr.mxu0 0.0
        %4944 = vmatpush1.msra.mxu0 0.0
        %4945 = vmatprep.mubr.f32.mxu0 0.0
        %v4946 = vand.u32 %v4491, 4294901760
        %4947 = vmatmul.mubr.f32.gmra.mrb[0].mxu0 %v4946
        %v4948 = vpop.f32.mrb[0].mxu0
        %v4949 = vadd.f32 %v4876, %v4948
        %v4950 = vpop.f32.mrb[0].mxu0
        %4951 = vdwg.mxu0
        %v4953 = vsel %vm346, %v2642, 0
        %4955 = vmatprep.subr.mxu0 0.0
        %v4956 = vand.u32 %v344, 4294901760
        %4957 = vmatpush1.msra.mxu0 %v4956
        %4958 = vmatprep.subr.mxu0 0.0
        %v4959 = vand.u32 %v345, 4294901760
        %4960 = vmatpush1.msra.mxu0 %v4959
        %4961 = vmatprep.subr.mxu0 0.0
        %4962 = vmatpush1.msra.mxu0 0.0
        %4963 = vmatprep.subr.mxu0 0.0
        %4964 = vmatpush1.msra.mxu0 0.0
        %4965 = vmatprep.subr.mxu0 0.0
        %4966 = vmatpush1.msra.mxu0 0.0
        %4967 = vmatprep.subr.mxu0 0.0
        %4968 = vmatpush1.msra.mxu0 0.0
        %4969 = vmatprep.subr.mxu0 0.0
        %4970 = vmatpush1.msra.mxu0 0.0
        %4971 = vmatprep.subr.mxu0 0.0
        %4972 = vmatpush1.msra.mxu0 0.0
        %4973 = vmatprep.subr.mxu0 0.0
        %4974 = vmatpush1.msra.mxu0 0.0
        %4975 = vmatprep.subr.mxu0 0.0
        %4976 = vmatpush1.msra.mxu0 0.0
        %4977 = vmatprep.subr.mxu0 0.0
        %4978 = vmatpush1.msra.mxu0 0.0
        %4979 = vmatprep.subr.mxu0 0.0
        %4980 = vmatpush1.msra.mxu0 0.0
        %4981 = vmatprep.subr.mxu0 0.0
        %4982 = vmatpush1.msra.mxu0 0.0
        %4983 = vmatprep.subr.mxu0 0.0
        %4984 = vmatpush1.msra.mxu0 0.0
        %4985 = vmatprep.subr.mxu0 0.0
        %4986 = vmatpush1.msra.mxu0 0.0
        %4987 = vmatprep.subr.mxu0 0.0
        %4988 = vmatpush1.msra.mxu0 0.0
        %4989 = vmatprep.subr.mxu0 0.0
        %4990 = vmatpush1.msra.mxu0 0.0
        %4991 = vmatprep.subr.mxu0 0.0
        %4992 = vmatpush1.msra.mxu0 0.0
        %4993 = vmatprep.subr.mxu0 0.0
        %4994 = vmatpush1.msra.mxu0 0.0
        %4995 = vmatprep.subr.mxu0 0.0
        %4996 = vmatpush1.msra.mxu0 0.0
        %4997 = vmatprep.subr.mxu0 0.0
        %4998 = vmatpush1.msra.mxu0 0.0
        %4999 = vmatprep.subr.mxu0 0.0
        %5000 = vmatpush1.msra.mxu0 0.0
        %5001 = vmatprep.subr.mxu0 0.0
        %5002 = vmatpush1.msra.mxu0 0.0
        %5003 = vmatprep.subr.mxu0 0.0
        %5004 = vmatpush1.msra.mxu0 0.0
        %5005 = vmatprep.subr.mxu0 0.0
        %5006 = vmatpush1.msra.mxu0 0.0
        %5007 = vmatprep.subr.mxu0 0.0
        %5008 = vmatpush1.msra.mxu0 0.0
        %5009 = vmatprep.subr.mxu0 0.0
        %5010 = vmatpush1.msra.mxu0 0.0
        %5011 = vmatprep.subr.mxu0 0.0
        %5012 = vmatpush1.msra.mxu0 0.0
        %5013 = vmatprep.subr.mxu0 0.0
        %5014 = vmatpush1.msra.mxu0 0.0
        %5015 = vmatprep.subr.mxu0 0.0
        %5016 = vmatpush1.msra.mxu0 0.0
        %5017 = vmatprep.subr.mxu0 0.0
        %5018 = vmatpush1.msra.mxu0 0.0
        %5019 = vmatprep.subr.mxu0 0.0
        %5020 = vmatpush1.msra.mxu0 0.0
        %5021 = vmatprep.mubr.f32.mxu0 0.0
        %v5022 = vand.u32 %v4953, 4294901760
        %v5023 = vsub.f32 %v4953, %v5022
        %v5024 = vand.u32 %v5023, 4294901760
        %v5025 = vsub.f32 %v5023, %v5024
        %v5026 = vand.u32 %v5025, 4294901760
        %5027 = vmatmul.mubr.f32.gmra.mrb[0].mxu0 %v5026
        %v5028 = vpop.f32.mrb[0].mxu0
        %v5029 = vadd.f32 0.0, %v5028
        %v5030 = vpop.f32.mrb[0].mxu0
        %5031 = vdwg.mxu0
        %5032 = vmatprep.subr.mxu0 0.0
        %v5033 = vand.u32 %v344, 4294901760
        %v5034 = vsub.f32 %v344, %v5033
        %v5035 = vand.u32 %v5034, 4294901760
        %v5036 = vsub.f32 %v5034, %v5035
        %v5037 = vand.u32 %v5036, 4294901760
        %5038 = vmatpush1.msra.mxu0 %v5037
        %5039 = vmatprep.subr.mxu0 0.0
        %v5040 = vand.u32 %v345, 4294901760
        %v5041 = vsub.f32 %v345, %v5040
        %v5042 = vand.u32 %v5041, 4294901760
        %v5043 = vsub.f32 %v5041, %v5042
        %v5044 = vand.u32 %v5043, 4294901760
        %5045 = vmatpush1.msra.mxu0 %v5044
        %5046 = vmatprep.subr.mxu0 0.0
        %5047 = vmatpush1.msra.mxu0 0.0
        %5048 = vmatprep.subr.mxu0 0.0
        %5049 = vmatpush1.msra.mxu0 0.0
        %5050 = vmatprep.subr.mxu0 0.0
        %5051 = vmatpush1.msra.mxu0 0.0
        %5052 = vmatprep.subr.mxu0 0.0
        %5053 = vmatpush1.msra.mxu0 0.0
        %5054 = vmatprep.subr.mxu0 0.0
        %5055 = vmatpush1.msra.mxu0 0.0
        %5056 = vmatprep.subr.mxu0 0.0
        %5057 = vmatpush1.msra.mxu0 0.0
        %5058 = vmatprep.subr.mxu0 0.0
        %5059 = vmatpush1.msra.mxu0 0.0
        %5060 = vmatprep.subr.mxu0 0.0
        %5061 = vmatpush1.msra.mxu0 0.0
        %5062 = vmatprep.subr.mxu0 0.0
        %5063 = vmatpush1.msra.mxu0 0.0
        %5064 = vmatprep.subr.mxu0 0.0
        %5065 = vmatpush1.msra.mxu0 0.0
        %5066 = vmatprep.subr.mxu0 0.0
        %5067 = vmatpush1.msra.mxu0 0.0
        %5068 = vmatprep.subr.mxu0 0.0
        %5069 = vmatpush1.msra.mxu0 0.0
        %5070 = vmatprep.subr.mxu0 0.0
        %5071 = vmatpush1.msra.mxu0 0.0
        %5072 = vmatprep.subr.mxu0 0.0
        %5073 = vmatpush1.msra.mxu0 0.0
        %5074 = vmatprep.subr.mxu0 0.0
        %5075 = vmatpush1.msra.mxu0 0.0
        %5076 = vmatprep.subr.mxu0 0.0
        %5077 = vmatpush1.msra.mxu0 0.0
        %5078 = vmatprep.subr.mxu0 0.0
        %5079 = vmatpush1.msra.mxu0 0.0
        %5080 = vmatprep.subr.mxu0 0.0
        %5081 = vmatpush1.msra.mxu0 0.0
        %5082 = vmatprep.subr.mxu0 0.0
        %5083 = vmatpush1.msra.mxu0 0.0
        %5084 = vmatprep.subr.mxu0 0.0
        %5085 = vmatpush1.msra.mxu0 0.0
        %5086 = vmatprep.subr.mxu0 0.0
        %5087 = vmatpush1.msra.mxu0 0.0
        %5088 = vmatprep.subr.mxu0 0.0
        %5089 = vmatpush1.msra.mxu0 0.0
        %5090 = vmatprep.subr.mxu0 0.0
        %5091 = vmatpush1.msra.mxu0 0.0
        %5092 = vmatprep.subr.mxu0 0.0
        %5093 = vmatpush1.msra.mxu0 0.0
        %5094 = vmatprep.subr.mxu0 0.0
        %5095 = vmatpush1.msra.mxu0 0.0
        %5096 = vmatprep.subr.mxu0 0.0
        %5097 = vmatpush1.msra.mxu0 0.0
        %5098 = vmatprep.subr.mxu0 0.0
        %5099 = vmatpush1.msra.mxu0 0.0
        %5100 = vmatprep.subr.mxu0 0.0
        %5101 = vmatpush1.msra.mxu0 0.0
        %5102 = vmatprep.subr.mxu0 0.0
        %5103 = vmatpush1.msra.mxu0 0.0
        %5104 = vmatprep.subr.mxu0 0.0
        %5105 = vmatpush1.msra.mxu0 0.0
        %5106 = vmatprep.mubr.f32.mxu0 0.0
        %v5107 = vand.u32 %v4953, 4294901760
        %5108 = vmatmul.mubr.f32.gmra.mrb[0].mxu0 %v5107
        %v5109 = vpop.f32.mrb[0].mxu0
        %v5110 = vadd.f32 %v5029, %v5109
        %v5111 = vpop.f32.mrb[0].mxu0
        %5112 = vdwg.mxu0
        %5113 = vmatprep.subr.mxu0 0.0
        %v5114 = vand.u32 %v344, 4294901760
        %v5115 = vsub.f32 %v344, %v5114
        %5116 = vmatpush1.msra.mxu0 %v5115
        %5117 = vmatprep.subr.mxu0 0.0
        %v5118 = vand.u32 %v345, 4294901760
        %v5119 = vsub.f32 %v345, %v5118
        %5120 = vmatpush1.msra.mxu0 %v5119
        %5121 = vmatprep.subr.mxu0 0.0
        %5122 = vmatpush1.msra.mxu0 0.0
        %5123 = vmatprep.subr.mxu0 0.0
        %5124 = vmatpush1.msra.mxu0 0.0
        %5125 = vmatprep.subr.mxu0 0.0
        %5126 = vmatpush1.msra.mxu0 0.0
        %5127 = vmatprep.subr.mxu0 0.0
        %5128 = vmatpush1.msra.mxu0 0.0
        %5129 = vmatprep.subr.mxu0 0.0
        %5130 = vmatpush1.msra.mxu0 0.0
        %5131 = vmatprep.subr.mxu0 0.0
        %5132 = vmatpush1.msra.mxu0 0.0
        %5133 = vmatprep.subr.mxu0 0.0
        %5134 = vmatpush1.msra.mxu0 0.0
        %5135 = vmatprep.subr.mxu0 0.0
        %5136 = vmatpush1.msra.mxu0 0.0
        %5137 = vmatprep.subr.mxu0 0.0
        %5138 = vmatpush1.msra.mxu0 0.0
        %5139 = vmatprep.subr.mxu0 0.0
        %5140 = vmatpush1.msra.mxu0 0.0
        %5141 = vmatprep.subr.mxu0 0.0
        %5142 = vmatpush1.msra.mxu0 0.0
        %5143 = vmatprep.subr.mxu0 0.0
        %5144 = vmatpush1.msra.mxu0 0.0
        %5145 = vmatprep.subr.mxu0 0.0
        %5146 = vmatpush1.msra.mxu0 0.0
        %5147 = vmatprep.subr.mxu0 0.0
        %5148 = vmatpush1.msra.mxu0 0.0
        %5149 = vmatprep.subr.mxu0 0.0
        %5150 = vmatpush1.msra.mxu0 0.0
        %5151 = vmatprep.subr.mxu0 0.0
        %5152 = vmatpush1.msra.mxu0 0.0
        %5153 = vmatprep.subr.mxu0 0.0
        %5154 = vmatpush1.msra.mxu0 0.0
        %5155 = vmatprep.subr.mxu0 0.0
        %5156 = vmatpush1.msra.mxu0 0.0
        %5157 = vmatprep.subr.mxu0 0.0
        %5158 = vmatpush1.msra.mxu0 0.0
        %5159 = vmatprep.subr.mxu0 0.0
        %5160 = vmatpush1.msra.mxu0 0.0
        %5161 = vmatprep.subr.mxu0 0.0
        %5162 = vmatpush1.msra.mxu0 0.0
        %5163 = vmatprep.subr.mxu0 0.0
        %5164 = vmatpush1.msra.mxu0 0.0
        %5165 = vmatprep.subr.mxu0 0.0
        %5166 = vmatpush1.msra.mxu0 0.0
        %5167 = vmatprep.subr.mxu0 0.0
        %5168 = vmatpush1.msra.mxu0 0.0
        %5169 = vmatprep.subr.mxu0 0.0
        %5170 = vmatpush1.msra.mxu0 0.0
        %5171 = vmatprep.subr.mxu0 0.0
        %5172 = vmatpush1.msra.mxu0 0.0
        %5173 = vmatprep.subr.mxu0 0.0
        %5174 = vmatpush1.msra.mxu0 0.0
        %5175 = vmatprep.subr.mxu0 0.0
        %5176 = vmatpush1.msra.mxu0 0.0
        %5177 = vmatprep.subr.mxu0 0.0
        %5178 = vmatpush1.msra.mxu0 0.0
        %5179 = vmatprep.subr.mxu0 0.0
        %5180 = vmatpush1.msra.mxu0 0.0
        %5181 = vmatprep.mubr.f32.mxu0 0.0
        %v5182 = vand.u32 %v4953, 4294901760
        %v5183 = vsub.f32 %v4953, %v5182
        %5184 = vmatmul.mubr.f32.gmra.mrb[0].mxu0 %v5183
        %v5185 = vpop.f32.mrb[0].mxu0
        %v5186 = vadd.f32 %v5110, %v5185
        %v5187 = vpop.f32.mrb[0].mxu0
        %5188 = vdwg.mxu0
        %5189 = vmatprep.subr.mxu0 0.0
        %v5190 = vand.u32 %v344, 4294901760
        %5191 = vmatpush1.msra.mxu0 %v5190
        %5192 = vmatprep.subr.mxu0 0.0
        %v5193 = vand.u32 %v345, 4294901760
        %5194 = vmatpush1.msra.mxu0 %v5193
        %5195 = vmatprep.subr.mxu0 0.0
        %5196 = vmatpush1.msra.mxu0 0.0
        %5197 = vmatprep.subr.mxu0 0.0
        %5198 = vmatpush1.msra.mxu0 0.0
        %5199 = vmatprep.subr.mxu0 0.0
        %5200 = vmatpush1.msra.mxu0 0.0
        %5201 = vmatprep.subr.mxu0 0.0
        %5202 = vmatpush1.msra.mxu0 0.0
        %5203 = vmatprep.subr.mxu0 0.0
        %5204 = vmatpush1.msra.mxu0 0.0
        %5205 = vmatprep.subr.mxu0 0.0
        %5206 = vmatpush1.msra.mxu0 0.0
        %5207 = vmatprep.subr.mxu0 0.0
        %5208 = vmatpush1.msra.mxu0 0.0
        %5209 = vmatprep.subr.mxu0 0.0
        %5210 = vmatpush1.msra.mxu0 0.0
        %5211 = vmatprep.subr.mxu0 0.0
        %5212 = vmatpush1.msra.mxu0 0.0
        %5213 = vmatprep.subr.mxu0 0.0
        %5214 = vmatpush1.msra.mxu0 0.0
        %5215 = vmatprep.subr.mxu0 0.0
        %5216 = vmatpush1.msra.mxu0 0.0
        %5217 = vmatprep.subr.mxu0 0.0
        %5218 = vmatpush1.msra.mxu0 0.0
        %5219 = vmatprep.subr.mxu0 0.0
        %5220 = vmatpush1.msra.mxu0 0.0
        %5221 = vmatprep.subr.mxu0 0.0
        %5222 = vmatpush1.msra.mxu0 0.0
        %5223 = vmatprep.subr.mxu0 0.0
        %5224 = vmatpush1.msra.mxu0 0.0
        %5225 = vmatprep.subr.mxu0 0.0
        %5226 = vmatpush1.msra.mxu0 0.0
        %5227 = vmatprep.subr.mxu0 0.0
        %5228 = vmatpush1.msra.mxu0 0.0
        %5229 = vmatprep.subr.mxu0 0.0
        %5230 = vmatpush1.msra.mxu0 0.0
        %5231 = vmatprep.subr.mxu0 0.0
        %5232 = vmatpush1.msra.mxu0 0.0
        %5233 = vmatprep.subr.mxu0 0.0
        %5234 = vmatpush1.msra.mxu0 0.0
        %5235 = vmatprep.subr.mxu0 0.0
        %5236 = vmatpush1.msra.mxu0 0.0
        %5237 = vmatprep.subr.mxu0 0.0
        %5238 = vmatpush1.msra.mxu0 0.0
        %5239 = vmatprep.subr.mxu0 0.0
        %5240 = vmatpush1.msra.mxu0 0.0
        %5241 = vmatprep.subr.mxu0 0.0
        %5242 = vmatpush1.msra.mxu0 0.0
        %5243 = vmatprep.subr.mxu0 0.0
        %5244 = vmatpush1.msra.mxu0 0.0
        %5245 = vmatprep.subr.mxu0 0.0
        %5246 = vmatpush1.msra.mxu0 0.0
        %5247 = vmatprep.subr.mxu0 0.0
        %5248 = vmatpush1.msra.mxu0 0.0
        %5249 = vmatprep.subr.mxu0 0.0
        %5250 = vmatpush1.msra.mxu0 0.0
        %5251 = vmatprep.subr.mxu0 0.0
        %5252 = vmatpush1.msra.mxu0 0.0
        %5253 = vmatprep.subr.mxu0 0.0
        %5254 = vmatpush1.msra.mxu0 0.0
        %5255 = vmatprep.mubr.f32.mxu0 0.0
        %v5256 = vand.u32 %v4953, 4294901760
        %v5257 = vsub.f32 %v4953, %v5256
        %v5258 = vand.u32 %v5257, 4294901760
        %5259 = vmatmul.mubr.f32.gmra.mrb[0].mxu0 %v5258
        %v5260 = vpop.f32.mrb[0].mxu0
        %v5261 = vadd.f32 %v5186, %v5260
        %v5262 = vpop.f32.mrb[0].mxu0
        %5263 = vdwg.mxu0
        %5264 = vmatprep.subr.mxu0 0.0
        %v5265 = vand.u32 %v344, 4294901760
        %v5266 = vsub.f32 %v344, %v5265
        %v5267 = vand.u32 %v5266, 4294901760
        %5268 = vmatpush1.msra.mxu0 %v5267
        %5269 = vmatprep.subr.mxu0 0.0
        %v5270 = vand.u32 %v345, 4294901760
        %v5271 = vsub.f32 %v345, %v5270
        %v5272 = vand.u32 %v5271, 4294901760
        %5273 = vmatpush1.msra.mxu0 %v5272
        %5274 = vmatprep.subr.mxu0 0.0
        %5275 = vmatpush1.msra.mxu0 0.0
        %5276 = vmatprep.subr.mxu0 0.0
        %5277 = vmatpush1.msra.mxu0 0.0
        %5278 = vmatprep.subr.mxu0 0.0
        %5279 = vmatpush1.msra.mxu0 0.0
        %5280 = vmatprep.subr.mxu0 0.0
        %5281 = vmatpush1.msra.mxu0 0.0
        %5282 = vmatprep.subr.mxu0 0.0
        %5283 = vmatpush1.msra.mxu0 0.0
        %5284 = vmatprep.subr.mxu0 0.0
        %5285 = vmatpush1.msra.mxu0 0.0
        %5286 = vmatprep.subr.mxu0 0.0
        %5287 = vmatpush1.msra.mxu0 0.0
        %5288 = vmatprep.subr.mxu0 0.0
        %5289 = vmatpush1.msra.mxu0 0.0
        %5290 = vmatprep.subr.mxu0 0.0
        %5291 = vmatpush1.msra.mxu0 0.0
        %5292 = vmatprep.subr.mxu0 0.0
        %5293 = vmatpush1.msra.mxu0 0.0
        %5294 = vmatprep.subr.mxu0 0.0
        %5295 = vmatpush1.msra.mxu0 0.0
        %5296 = vmatprep.subr.mxu0 0.0
        %5297 = vmatpush1.msra.mxu0 0.0
        %5298 = vmatprep.subr.mxu0 0.0
        %5299 = vmatpush1.msra.mxu0 0.0
        %5300 = vmatprep.subr.mxu0 0.0
        %5301 = vmatpush1.msra.mxu0 0.0
        %5302 = vmatprep.subr.mxu0 0.0
        %5303 = vmatpush1.msra.mxu0 0.0
        %5304 = vmatprep.subr.mxu0 0.0
        %5305 = vmatpush1.msra.mxu0 0.0
        %5306 = vmatprep.subr.mxu0 0.0
        %5307 = vmatpush1.msra.mxu0 0.0
        %5308 = vmatprep.subr.mxu0 0.0
        %5309 = vmatpush1.msra.mxu0 0.0
        %5310 = vmatprep.subr.mxu0 0.0
        %5311 = vmatpush1.msra.mxu0 0.0
        %5312 = vmatprep.subr.mxu0 0.0
        %5313 = vmatpush1.msra.mxu0 0.0
        %5314 = vmatprep.subr.mxu0 0.0
        %5315 = vmatpush1.msra.mxu0 0.0
        %5316 = vmatprep.subr.mxu0 0.0
        %5317 = vmatpush1.msra.mxu0 0.0
        %5318 = vmatprep.subr.mxu0 0.0
        %5319 = vmatpush1.msra.mxu0 0.0
        %5320 = vmatprep.subr.mxu0 0.0
        %5321 = vmatpush1.msra.mxu0 0.0
        %5322 = vmatprep.subr.mxu0 0.0
        %5323 = vmatpush1.msra.mxu0 0.0
        %5324 = vmatprep.subr.mxu0 0.0
        %5325 = vmatpush1.msra.mxu0 0.0
        %5326 = vmatprep.subr.mxu0 0.0
        %5327 = vmatpush1.msra.mxu0 0.0
        %5328 = vmatprep.subr.mxu0 0.0
        %5329 = vmatpush1.msra.mxu0 0.0
        %5330 = vmatprep.subr.mxu0 0.0
        %5331 = vmatpush1.msra.mxu0 0.0
        %5332 = vmatprep.subr.mxu0 0.0
        %5333 = vmatpush1.msra.mxu0 0.0
        %5334 = vmatprep.mubr.f32.mxu0 0.0
        %v5335 = vand.u32 %v4953, 4294901760
        %5336 = vmatmul.mubr.f32.gmra.mrb[0].mxu0 %v5335
        %v5337 = vpop.f32.mrb[0].mxu0
        %v5338 = vadd.f32 %v5261, %v5337
        %v5339 = vpop.f32.mrb[0].mxu0
        %5340 = vdwg.mxu0
        %5341 = vmatprep.subr.mxu0 0.0
        %v5342 = vand.u32 %v344, 4294901760
        %5343 = vmatpush1.msra.mxu0 %v5342
        %5344 = vmatprep.subr.mxu0 0.0
        %v5345 = vand.u32 %v345, 4294901760
        %5346 = vmatpush1.msra.mxu0 %v5345
        %5347 = vmatprep.subr.mxu0 0.0
        %5348 = vmatpush1.msra.mxu0 0.0
        %5349 = vmatprep.subr.mxu0 0.0
        %5350 = vmatpush1.msra.mxu0 0.0
        %5351 = vmatprep.subr.mxu0 0.0
        %5352 = vmatpush1.msra.mxu0 0.0
        %5353 = vmatprep.subr.mxu0 0.0
        %5354 = vmatpush1.msra.mxu0 0.0
        %5355 = vmatprep.subr.mxu0 0.0
        %5356 = vmatpush1.msra.mxu0 0.0
        %5357 = vmatprep.subr.mxu0 0.0
        %5358 = vmatpush1.msra.mxu0 0.0
        %5359 = vmatprep.subr.mxu0 0.0
        %5360 = vmatpush1.msra.mxu0 0.0
        %5361 = vmatprep.subr.mxu0 0.0
        %5362 = vmatpush1.msra.mxu0 0.0
        %5363 = vmatprep.subr.mxu0 0.0
        %5364 = vmatpush1.msra.mxu0 0.0
        %5365 = vmatprep.subr.mxu0 0.0
        %5366 = vmatpush1.msra.mxu0 0.0
        %5367 = vmatprep.subr.mxu0 0.0
        %5368 = vmatpush1.msra.mxu0 0.0
        %5369 = vmatprep.subr.mxu0 0.0
        %5370 = vmatpush1.msra.mxu0 0.0
        %5371 = vmatprep.subr.mxu0 0.0
        %5372 = vmatpush1.msra.mxu0 0.0
        %5373 = vmatprep.subr.mxu0 0.0
        %5374 = vmatpush1.msra.mxu0 0.0
        %5375 = vmatprep.subr.mxu0 0.0
        %5376 = vmatpush1.msra.mxu0 0.0
        %5377 = vmatprep.subr.mxu0 0.0
        %5378 = vmatpush1.msra.mxu0 0.0
        %5379 = vmatprep.subr.mxu0 0.0
        %5380 = vmatpush1.msra.mxu0 0.0
        %5381 = vmatprep.subr.mxu0 0.0
        %5382 = vmatpush1.msra.mxu0 0.0
        %5383 = vmatprep.subr.mxu0 0.0
        %5384 = vmatpush1.msra.mxu0 0.0
        %5385 = vmatprep.subr.mxu0 0.0
        %5386 = vmatpush1.msra.mxu0 0.0
        %5387 = vmatprep.subr.mxu0 0.0
        %5388 = vmatpush1.msra.mxu0 0.0
        %5389 = vmatprep.subr.mxu0 0.0
        %5390 = vmatpush1.msra.mxu0 0.0
        %5391 = vmatprep.subr.mxu0 0.0
        %5392 = vmatpush1.msra.mxu0 0.0
        %5393 = vmatprep.subr.mxu0 0.0
        %5394 = vmatpush1.msra.mxu0 0.0
        %5395 = vmatprep.subr.mxu0 0.0
        %5396 = vmatpush1.msra.mxu0 0.0
        %5397 = vmatprep.subr.mxu0 0.0
        %5398 = vmatpush1.msra.mxu0 0.0
        %5399 = vmatprep.subr.mxu0 0.0
        %5400 = vmatpush1.msra.mxu0 0.0
        %5401 = vmatprep.subr.mxu0 0.0
        %5402 = vmatpush1.msra.mxu0 0.0
        %5403 = vmatprep.subr.mxu0 0.0
        %5404 = vmatpush1.msra.mxu0 0.0
        %5405 = vmatprep.subr.mxu0 0.0
        %5406 = vmatpush1.msra.mxu0 0.0
        %5407 = vmatprep.mubr.f32.mxu0 0.0
        %v5408 = vand.u32 %v4953, 4294901760
        %5409 = vmatmul.mubr.f32.gmra.mrb[0].mxu0 %v5408
        %v5410 = vpop.f32.mrb[0].mxu0
        %v5411 = vadd.f32 %v5338, %v5410
        %v5412 = vpop.f32.mrb[0].mxu0
        %5413 = vdwg.mxu0
        %v5415 = vsel %vm346, %v3101, 0
        %5417 = vmatprep.subr.mxu0 0.0
        %v5418 = vand.u32 %v344, 4294901760
        %5419 = vmatpush1.msra.mxu0 %v5418
        %5420 = vmatprep.subr.mxu0 0.0
        %v5421 = vand.u32 %v345, 4294901760
        %5422 = vmatpush1.msra.mxu0 %v5421
        %5423 = vmatprep.subr.mxu0 0.0
        %5424 = vmatpush1.msra.mxu0 0.0
        %5425 = vmatprep.subr.mxu0 0.0
        %5426 = vmatpush1.msra.mxu0 0.0
        %5427 = vmatprep.subr.mxu0 0.0
        %5428 = vmatpush1.msra.mxu0 0.0
        %5429 = vmatprep.subr.mxu0 0.0
        %5430 = vmatpush1.msra.mxu0 0.0
        %5431 = vmatprep.subr.mxu0 0.0
        %5432 = vmatpush1.msra.mxu0 0.0
        %5433 = vmatprep.subr.mxu0 0.0
        %5434 = vmatpush1.msra.mxu0 0.0
        %5435 = vmatprep.subr.mxu0 0.0
        %5436 = vmatpush1.msra.mxu0 0.0
        %5437 = vmatprep.subr.mxu0 0.0
        %5438 = vmatpush1.msra.mxu0 0.0
        %5439 = vmatprep.subr.mxu0 0.0
        %5440 = vmatpush1.msra.mxu0 0.0
        %5441 = vmatprep.subr.mxu0 0.0
        %5442 = vmatpush1.msra.mxu0 0.0
        %5443 = vmatprep.subr.mxu0 0.0
        %5444 = vmatpush1.msra.mxu0 0.0
        %5445 = vmatprep.subr.mxu0 0.0
        %5446 = vmatpush1.msra.mxu0 0.0
        %5447 = vmatprep.subr.mxu0 0.0
        %5448 = vmatpush1.msra.mxu0 0.0
        %5449 = vmatprep.subr.mxu0 0.0
        %5450 = vmatpush1.msra.mxu0 0.0
        %5451 = vmatprep.subr.mxu0 0.0
        %5452 = vmatpush1.msra.mxu0 0.0
        %5453 = vmatprep.subr.mxu0 0.0
        %5454 = vmatpush1.msra.mxu0 0.0
        %5455 = vmatprep.subr.mxu0 0.0
        %5456 = vmatpush1.msra.mxu0 0.0
        %5457 = vmatprep.subr.mxu0 0.0
        %5458 = vmatpush1.msra.mxu0 0.0
        %5459 = vmatprep.subr.mxu0 0.0
        %5460 = vmatpush1.msra.mxu0 0.0
        %5461 = vmatprep.subr.mxu0 0.0
        %5462 = vmatpush1.msra.mxu0 0.0
        %5463 = vmatprep.subr.mxu0 0.0
        %5464 = vmatpush1.msra.mxu0 0.0
        %5465 = vmatprep.subr.mxu0 0.0
        %5466 = vmatpush1.msra.mxu0 0.0
        %5467 = vmatprep.subr.mxu0 0.0
        %5468 = vmatpush1.msra.mxu0 0.0
        %5469 = vmatprep.subr.mxu0 0.0
        %5470 = vmatpush1.msra.mxu0 0.0
        %5471 = vmatprep.subr.mxu0 0.0
        %5472 = vmatpush1.msra.mxu0 0.0
        %5473 = vmatprep.subr.mxu0 0.0
        %5474 = vmatpush1.msra.mxu0 0.0
        %5475 = vmatprep.subr.mxu0 0.0
        %5476 = vmatpush1.msra.mxu0 0.0
        %5477 = vmatprep.subr.mxu0 0.0
        %5478 = vmatpush1.msra.mxu0 0.0
        %5479 = vmatprep.subr.mxu0 0.0
        %5480 = vmatpush1.msra.mxu0 0.0
        %5481 = vmatprep.subr.mxu0 0.0
        %5482 = vmatpush1.msra.mxu0 0.0
        %5483 = vmatprep.mubr.f32.mxu0 0.0
        %v5484 = vand.u32 %v5415, 4294901760
        %v5485 = vsub.f32 %v5415, %v5484
        %v5486 = vand.u32 %v5485, 4294901760
        %v5487 = vsub.f32 %v5485, %v5486
        %v5488 = vand.u32 %v5487, 4294901760
        %5489 = vmatmul.mubr.f32.gmra.mrb[0].mxu0 %v5488
        %v5490 = vpop.f32.mrb[0].mxu0
        %v5491 = vadd.f32 0.0, %v5490
        %v5492 = vpop.f32.mrb[0].mxu0
        %5493 = vdwg.mxu0
        %5494 = vmatprep.subr.mxu0 0.0
        %v5495 = vand.u32 %v344, 4294901760
        %v5496 = vsub.f32 %v344, %v5495
        %v5497 = vand.u32 %v5496, 4294901760
        %v5498 = vsub.f32 %v5496, %v5497
        %v5499 = vand.u32 %v5498, 4294901760
        %5500 = vmatpush1.msra.mxu0 %v5499
        %5501 = vmatprep.subr.mxu0 0.0
        %v5502 = vand.u32 %v345, 4294901760
        %v5503 = vsub.f32 %v345, %v5502
        %v5504 = vand.u32 %v5503, 4294901760
        %v5505 = vsub.f32 %v5503, %v5504
        %v5506 = vand.u32 %v5505, 4294901760
        %5507 = vmatpush1.msra.mxu0 %v5506
        %5508 = vmatprep.subr.mxu0 0.0
        %5509 = vmatpush1.msra.mxu0 0.0
        %5510 = vmatprep.subr.mxu0 0.0
        %5511 = vmatpush1.msra.mxu0 0.0
        %5512 = vmatprep.subr.mxu0 0.0
        %5513 = vmatpush1.msra.mxu0 0.0
        %5514 = vmatprep.subr.mxu0 0.0
        %5515 = vmatpush1.msra.mxu0 0.0
        %5516 = vmatprep.subr.mxu0 0.0
        %5517 = vmatpush1.msra.mxu0 0.0
        %5518 = vmatprep.subr.mxu0 0.0
        %5519 = vmatpush1.msra.mxu0 0.0
        %5520 = vmatprep.subr.mxu0 0.0
        %5521 = vmatpush1.msra.mxu0 0.0
        %5522 = vmatprep.subr.mxu0 0.0
        %5523 = vmatpush1.msra.mxu0 0.0
        %5524 = vmatprep.subr.mxu0 0.0
        %5525 = vmatpush1.msra.mxu0 0.0
        %5526 = vmatprep.subr.mxu0 0.0
        %5527 = vmatpush1.msra.mxu0 0.0
        %5528 = vmatprep.subr.mxu0 0.0
        %5529 = vmatpush1.msra.mxu0 0.0
        %5530 = vmatprep.subr.mxu0 0.0
        %5531 = vmatpush1.msra.mxu0 0.0
        %5532 = vmatprep.subr.mxu0 0.0
        %5533 = vmatpush1.msra.mxu0 0.0
        %5534 = vmatprep.subr.mxu0 0.0
        %5535 = vmatpush1.msra.mxu0 0.0
        %5536 = vmatprep.subr.mxu0 0.0
        %5537 = vmatpush1.msra.mxu0 0.0
        %5538 = vmatprep.subr.mxu0 0.0
        %5539 = vmatpush1.msra.mxu0 0.0
        %5540 = vmatprep.subr.mxu0 0.0
        %5541 = vmatpush1.msra.mxu0 0.0
        %5542 = vmatprep.subr.mxu0 0.0
        %5543 = vmatpush1.msra.mxu0 0.0
        %5544 = vmatprep.subr.mxu0 0.0
        %5545 = vmatpush1.msra.mxu0 0.0
        %5546 = vmatprep.subr.mxu0 0.0
        %5547 = vmatpush1.msra.mxu0 0.0
        %5548 = vmatprep.subr.mxu0 0.0
        %5549 = vmatpush1.msra.mxu0 0.0
        %5550 = vmatprep.subr.mxu0 0.0
        %5551 = vmatpush1.msra.mxu0 0.0
        %5552 = vmatprep.subr.mxu0 0.0
        %5553 = vmatpush1.msra.mxu0 0.0
        %5554 = vmatprep.subr.mxu0 0.0
        %5555 = vmatpush1.msra.mxu0 0.0
        %5556 = vmatprep.subr.mxu0 0.0
        %5557 = vmatpush1.msra.mxu0 0.0
        %5558 = vmatprep.subr.mxu0 0.0
        %5559 = vmatpush1.msra.mxu0 0.0
        %5560 = vmatprep.subr.mxu0 0.0
        %5561 = vmatpush1.msra.mxu0 0.0
        %5562 = vmatprep.subr.mxu0 0.0
        %5563 = vmatpush1.msra.mxu0 0.0
        %5564 = vmatprep.subr.mxu0 0.0
        %5565 = vmatpush1.msra.mxu0 0.0
        %5566 = vmatprep.subr.mxu0 0.0
        %5567 = vmatpush1.msra.mxu0 0.0
        %5568 = vmatprep.mubr.f32.mxu0 0.0
        %v5569 = vand.u32 %v5415, 4294901760
        %5570 = vmatmul.mubr.f32.gmra.mrb[0].mxu0 %v5569
        %v5571 = vpop.f32.mrb[0].mxu0
        %v5572 = vadd.f32 %v5491, %v5571
        %v5573 = vpop.f32.mrb[0].mxu0
        %5574 = vdwg.mxu0
        %5575 = vmatprep.subr.mxu0 0.0
        %v5576 = vand.u32 %v344, 4294901760
        %v5577 = vsub.f32 %v344, %v5576
        %5578 = vmatpush1.msra.mxu0 %v5577
        %5579 = vmatprep.subr.mxu0 0.0
        %v5580 = vand.u32 %v345, 4294901760
        %v5581 = vsub.f32 %v345, %v5580
        %5582 = vmatpush1.msra.mxu0 %v5581
        %5583 = vmatprep.subr.mxu0 0.0
        %5584 = vmatpush1.msra.mxu0 0.0
        %5585 = vmatprep.subr.mxu0 0.0
        %5586 = vmatpush1.msra.mxu0 0.0
        %5587 = vmatprep.subr.mxu0 0.0
        %5588 = vmatpush1.msra.mxu0 0.0
        %5589 = vmatprep.subr.mxu0 0.0
        %5590 = vmatpush1.msra.mxu0 0.0
        %5591 = vmatprep.subr.mxu0 0.0
        %5592 = vmatpush1.msra.mxu0 0.0
        %5593 = vmatprep.subr.mxu0 0.0
        %5594 = vmatpush1.msra.mxu0 0.0
        %5595 = vmatprep.subr.mxu0 0.0
        %5596 = vmatpush1.msra.mxu0 0.0
        %5597 = vmatprep.subr.mxu0 0.0
        %5598 = vmatpush1.msra.mxu0 0.0
        %5599 = vmatprep.subr.mxu0 0.0
        %5600 = vmatpush1.msra.mxu0 0.0
        %5601 = vmatprep.subr.mxu0 0.0
        %5602 = vmatpush1.msra.mxu0 0.0
        %5603 = vmatprep.subr.mxu0 0.0
        %5604 = vmatpush1.msra.mxu0 0.0
        %5605 = vmatprep.subr.mxu0 0.0
        %5606 = vmatpush1.msra.mxu0 0.0
        %5607 = vmatprep.subr.mxu0 0.0
        %5608 = vmatpush1.msra.mxu0 0.0
        %5609 = vmatprep.subr.mxu0 0.0
        %5610 = vmatpush1.msra.mxu0 0.0
        %5611 = vmatprep.subr.mxu0 0.0
        %5612 = vmatpush1.msra.mxu0 0.0
        %5613 = vmatprep.subr.mxu0 0.0
        %5614 = vmatpush1.msra.mxu0 0.0
        %5615 = vmatprep.subr.mxu0 0.0
        %5616 = vmatpush1.msra.mxu0 0.0
        %5617 = vmatprep.subr.mxu0 0.0
        %5618 = vmatpush1.msra.mxu0 0.0
        %5619 = vmatprep.subr.mxu0 0.0
        %5620 = vmatpush1.msra.mxu0 0.0
        %5621 = vmatprep.subr.mxu0 0.0
        %5622 = vmatpush1.msra.mxu0 0.0
        %5623 = vmatprep.subr.mxu0 0.0
        %5624 = vmatpush1.msra.mxu0 0.0
        %5625 = vmatprep.subr.mxu0 0.0
        %5626 = vmatpush1.msra.mxu0 0.0
        %5627 = vmatprep.subr.mxu0 0.0
        %5628 = vmatpush1.msra.mxu0 0.0
        %5629 = vmatprep.subr.mxu0 0.0
        %5630 = vmatpush1.msra.mxu0 0.0
        %5631 = vmatprep.subr.mxu0 0.0
        %5632 = vmatpush1.msra.mxu0 0.0
        %5633 = vmatprep.subr.mxu0 0.0
        %5634 = vmatpush1.msra.mxu0 0.0
        %5635 = vmatprep.subr.mxu0 0.0
        %5636 = vmatpush1.msra.mxu0 0.0
        %5637 = vmatprep.subr.mxu0 0.0
        %5638 = vmatpush1.msra.mxu0 0.0
        %5639 = vmatprep.subr.mxu0 0.0
        %5640 = vmatpush1.msra.mxu0 0.0
        %5641 = vmatprep.subr.mxu0 0.0
        %5642 = vmatpush1.msra.mxu0 0.0
        %5643 = vmatprep.mubr.f32.mxu0 0.0
        %v5644 = vand.u32 %v5415, 4294901760
        %v5645 = vsub.f32 %v5415, %v5644
        %5646 = vmatmul.mubr.f32.gmra.mrb[0].mxu0 %v5645
        %v5647 = vpop.f32.mrb[0].mxu0
        %v5648 = vadd.f32 %v5572, %v5647
        %v5649 = vpop.f32.mrb[0].mxu0
        %5650 = vdwg.mxu0
        %5651 = vmatprep.subr.mxu0 0.0
        %v5652 = vand.u32 %v344, 4294901760
        %5653 = vmatpush1.msra.mxu0 %v5652
        %5654 = vmatprep.subr.mxu0 0.0
        %v5655 = vand.u32 %v345, 4294901760
        %5656 = vmatpush1.msra.mxu0 %v5655
        %5657 = vmatprep.subr.mxu0 0.0
        %5658 = vmatpush1.msra.mxu0 0.0
        %5659 = vmatprep.subr.mxu0 0.0
        %5660 = vmatpush1.msra.mxu0 0.0
        %5661 = vmatprep.subr.mxu0 0.0
        %5662 = vmatpush1.msra.mxu0 0.0
        %5663 = vmatprep.subr.mxu0 0.0
        %5664 = vmatpush1.msra.mxu0 0.0
        %5665 = vmatprep.subr.mxu0 0.0
        %5666 = vmatpush1.msra.mxu0 0.0
        %5667 = vmatprep.subr.mxu0 0.0
        %5668 = vmatpush1.msra.mxu0 0.0
        %5669 = vmatprep.subr.mxu0 0.0
        %5670 = vmatpush1.msra.mxu0 0.0
        %5671 = vmatprep.subr.mxu0 0.0
        %5672 = vmatpush1.msra.mxu0 0.0
        %5673 = vmatprep.subr.mxu0 0.0
        %5674 = vmatpush1.msra.mxu0 0.0
        %5675 = vmatprep.subr.mxu0 0.0
        %5676 = vmatpush1.msra.mxu0 0.0
        %5677 = vmatprep.subr.mxu0 0.0
        %5678 = vmatpush1.msra.mxu0 0.0
        %5679 = vmatprep.subr.mxu0 0.0
        %5680 = vmatpush1.msra.mxu0 0.0
        %5681 = vmatprep.subr.mxu0 0.0
        %5682 = vmatpush1.msra.mxu0 0.0
        %5683 = vmatprep.subr.mxu0 0.0
        %5684 = vmatpush1.msra.mxu0 0.0
        %5685 = vmatprep.subr.mxu0 0.0
        %5686 = vmatpush1.msra.mxu0 0.0
        %5687 = vmatprep.subr.mxu0 0.0
        %5688 = vmatpush1.msra.mxu0 0.0
        %5689 = vmatprep.subr.mxu0 0.0
        %5690 = vmatpush1.msra.mxu0 0.0
        %5691 = vmatprep.subr.mxu0 0.0
        %5692 = vmatpush1.msra.mxu0 0.0
        %5693 = vmatprep.subr.mxu0 0.0
        %5694 = vmatpush1.msra.mxu0 0.0
        %5695 = vmatprep.subr.mxu0 0.0
        %5696 = vmatpush1.msra.mxu0 0.0
        %5697 = vmatprep.subr.mxu0 0.0
        %5698 = vmatpush1.msra.mxu0 0.0
        %5699 = vmatprep.subr.mxu0 0.0
        %5700 = vmatpush1.msra.mxu0 0.0
        %5701 = vmatprep.subr.mxu0 0.0
        %5702 = vmatpush1.msra.mxu0 0.0
        %5703 = vmatprep.subr.mxu0 0.0
        %5704 = vmatpush1.msra.mxu0 0.0
        %5705 = vmatprep.subr.mxu0 0.0
        %5706 = vmatpush1.msra.mxu0 0.0
        %5707 = vmatprep.subr.mxu0 0.0
        %5708 = vmatpush1.msra.mxu0 0.0
        %5709 = vmatprep.subr.mxu0 0.0
        %5710 = vmatpush1.msra.mxu0 0.0
        %5711 = vmatprep.subr.mxu0 0.0
        %5712 = vmatpush1.msra.mxu0 0.0
        %5713 = vmatprep.subr.mxu0 0.0
        %5714 = vmatpush1.msra.mxu0 0.0
        %5715 = vmatprep.subr.mxu0 0.0
        %5716 = vmatpush1.msra.mxu0 0.0
        %5717 = vmatprep.mubr.f32.mxu0 0.0
        %v5718 = vand.u32 %v5415, 4294901760
        %v5719 = vsub.f32 %v5415, %v5718
        %v5720 = vand.u32 %v5719, 4294901760
        %5721 = vmatmul.mubr.f32.gmra.mrb[0].mxu0 %v5720
        %v5722 = vpop.f32.mrb[0].mxu0
        %v5723 = vadd.f32 %v5648, %v5722
        %v5724 = vpop.f32.mrb[0].mxu0
        %5725 = vdwg.mxu0
        %5726 = vmatprep.subr.mxu0 0.0
        %v5727 = vand.u32 %v344, 4294901760
        %v5728 = vsub.f32 %v344, %v5727
        %v5729 = vand.u32 %v5728, 4294901760
        %5730 = vmatpush1.msra.mxu0 %v5729
        %5731 = vmatprep.subr.mxu0 0.0
        %v5732 = vand.u32 %v345, 4294901760
        %v5733 = vsub.f32 %v345, %v5732
        %v5734 = vand.u32 %v5733, 4294901760
        %5735 = vmatpush1.msra.mxu0 %v5734
        %5736 = vmatprep.subr.mxu0 0.0
        %5737 = vmatpush1.msra.mxu0 0.0
        %5738 = vmatprep.subr.mxu0 0.0
        %5739 = vmatpush1.msra.mxu0 0.0
        %5740 = vmatprep.subr.mxu0 0.0
        %5741 = vmatpush1.msra.mxu0 0.0
        %5742 = vmatprep.subr.mxu0 0.0
        %5743 = vmatpush1.msra.mxu0 0.0
        %5744 = vmatprep.subr.mxu0 0.0
        %5745 = vmatpush1.msra.mxu0 0.0
        %5746 = vmatprep.subr.mxu0 0.0
        %5747 = vmatpush1.msra.mxu0 0.0
        %5748 = vmatprep.subr.mxu0 0.0
        %5749 = vmatpush1.msra.mxu0 0.0
        %5750 = vmatprep.subr.mxu0 0.0
        %5751 = vmatpush1.msra.mxu0 0.0
        %5752 = vmatprep.subr.mxu0 0.0
        %5753 = vmatpush1.msra.mxu0 0.0
        %5754 = vmatprep.subr.mxu0 0.0
        %5755 = vmatpush1.msra.mxu0 0.0
        %5756 = vmatprep.subr.mxu0 0.0
        %5757 = vmatpush1.msra.mxu0 0.0
        %5758 = vmatprep.subr.mxu0 0.0
        %5759 = vmatpush1.msra.mxu0 0.0
        %5760 = vmatprep.subr.mxu0 0.0
        %5761 = vmatpush1.msra.mxu0 0.0
        %5762 = vmatprep.subr.mxu0 0.0
        %5763 = vmatpush1.msra.mxu0 0.0
        %5764 = vmatprep.subr.mxu0 0.0
        %5765 = vmatpush1.msra.mxu0 0.0
        %5766 = vmatprep.subr.mxu0 0.0
        %5767 = vmatpush1.msra.mxu0 0.0
        %5768 = vmatprep.subr.mxu0 0.0
        %5769 = vmatpush1.msra.mxu0 0.0
        %5770 = vmatprep.subr.mxu0 0.0
        %5771 = vmatpush1.msra.mxu0 0.0
        %5772 = vmatprep.subr.mxu0 0.0
        %5773 = vmatpush1.msra.mxu0 0.0
        %5774 = vmatprep.subr.mxu0 0.0
        %5775 = vmatpush1.msra.mxu0 0.0
        %5776 = vmatprep.subr.mxu0 0.0
        %5777 = vmatpush1.msra.mxu0 0.0
        %5778 = vmatprep.subr.mxu0 0.0
        %5779 = vmatpush1.msra.mxu0 0.0
        %5780 = vmatprep.subr.mxu0 0.0
        %5781 = vmatpush1.msra.mxu0 0.0
        %5782 = vmatprep.subr.mxu0 0.0
        %5783 = vmatpush1.msra.mxu0 0.0
        %5784 = vmatprep.subr.mxu0 0.0
        %5785 = vmatpush1.msra.mxu0 0.0
        %5786 = vmatprep.subr.mxu0 0.0
        %5787 = vmatpush1.msra.mxu0 0.0
        %5788 = vmatprep.subr.mxu0 0.0
        %5789 = vmatpush1.msra.mxu0 0.0
        %5790 = vmatprep.subr.mxu0 0.0
        %5791 = vmatpush1.msra.mxu0 0.0
        %5792 = vmatprep.subr.mxu0 0.0
        %5793 = vmatpush1.msra.mxu0 0.0
        %5794 = vmatprep.subr.mxu0 0.0
        %5795 = vmatpush1.msra.mxu0 0.0
        %5796 = vmatprep.mubr.f32.mxu0 0.0
        %v5797 = vand.u32 %v5415, 4294901760
        %5798 = vmatmul.mubr.f32.gmra.mrb[0].mxu0 %v5797
        %v5799 = vpop.f32.mrb[0].mxu0
        %v5800 = vadd.f32 %v5723, %v5799
        %v5801 = vpop.f32.mrb[0].mxu0
        %5802 = vdwg.mxu0
        %5803 = vmatprep.subr.mxu0 0.0
        %v5804 = vand.u32 %v344, 4294901760
        %5805 = vmatpush1.msra.mxu0 %v5804
        %5806 = vmatprep.subr.mxu0 0.0
        %v5807 = vand.u32 %v345, 4294901760
        %5808 = vmatpush1.msra.mxu0 %v5807
        %5809 = vmatprep.subr.mxu0 0.0
        %5810 = vmatpush1.msra.mxu0 0.0
        %5811 = vmatprep.subr.mxu0 0.0
        %5812 = vmatpush1.msra.mxu0 0.0
        %5813 = vmatprep.subr.mxu0 0.0
        %5814 = vmatpush1.msra.mxu0 0.0
        %5815 = vmatprep.subr.mxu0 0.0
        %5816 = vmatpush1.msra.mxu0 0.0
        %5817 = vmatprep.subr.mxu0 0.0
        %5818 = vmatpush1.msra.mxu0 0.0
        %5819 = vmatprep.subr.mxu0 0.0
        %5820 = vmatpush1.msra.mxu0 0.0
        %5821 = vmatprep.subr.mxu0 0.0
        %5822 = vmatpush1.msra.mxu0 0.0
        %5823 = vmatprep.subr.mxu0 0.0
        %5824 = vmatpush1.msra.mxu0 0.0
        %5825 = vmatprep.subr.mxu0 0.0
        %5826 = vmatpush1.msra.mxu0 0.0
        %5827 = vmatprep.subr.mxu0 0.0
        %5828 = vmatpush1.msra.mxu0 0.0
        %5829 = vmatprep.subr.mxu0 0.0
        %5830 = vmatpush1.msra.mxu0 0.0
        %5831 = vmatprep.subr.mxu0 0.0
        %5832 = vmatpush1.msra.mxu0 0.0
        %5833 = vmatprep.subr.mxu0 0.0
        %5834 = vmatpush1.msra.mxu0 0.0
        %5835 = vmatprep.subr.mxu0 0.0
        %5836 = vmatpush1.msra.mxu0 0.0
        %5837 = vmatprep.subr.mxu0 0.0
        %5838 = vmatpush1.msra.mxu0 0.0
        %5839 = vmatprep.subr.mxu0 0.0
        %5840 = vmatpush1.msra.mxu0 0.0
        %5841 = vmatprep.subr.mxu0 0.0
        %5842 = vmatpush1.msra.mxu0 0.0
        %5843 = vmatprep.subr.mxu0 0.0
        %5844 = vmatpush1.msra.mxu0 0.0
        %5845 = vmatprep.subr.mxu0 0.0
        %5846 = vmatpush1.msra.mxu0 0.0
        %5847 = vmatprep.subr.mxu0 0.0
        %5848 = vmatpush1.msra.mxu0 0.0
        %5849 = vmatprep.subr.mxu0 0.0
        %5850 = vmatpush1.msra.mxu0 0.0
        %5851 = vmatprep.subr.mxu0 0.0
        %5852 = vmatpush1.msra.mxu0 0.0
        %5853 = vmatprep.subr.mxu0 0.0
        %5854 = vmatpush1.msra.mxu0 0.0
        %5855 = vmatprep.subr.mxu0 0.0
        %5856 = vmatpush1.msra.mxu0 0.0
        %5857 = vmatprep.subr.mxu0 0.0
        %5858 = vmatpush1.msra.mxu0 0.0
        %5859 = vmatprep.subr.mxu0 0.0
        %5860 = vmatpush1.msra.mxu0 0.0
        %5861 = vmatprep.subr.mxu0 0.0
        %5862 = vmatpush1.msra.mxu0 0.0
        %5863 = vmatprep.subr.mxu0 0.0
        %5864 = vmatpush1.msra.mxu0 0.0
        %5865 = vmatprep.subr.mxu0 0.0
        %5866 = vmatpush1.msra.mxu0 0.0
        %5867 = vmatprep.subr.mxu0 0.0
        %5868 = vmatpush1.msra.mxu0 0.0
        %5869 = vmatprep.mubr.f32.mxu0 0.0
        %v5870 = vand.u32 %v5415, 4294901760
        %5871 = vmatmul.mubr.f32.gmra.mrb[0].mxu0 %v5870
        %v5872 = vpop.f32.mrb[0].mxu0
        %v5873 = vadd.f32 %v5800, %v5872
        %v5874 = vpop.f32.mrb[0].mxu0
        %5875 = vdwg.mxu0
        %vm5876 = vcmask 64512
        %5877 = vst.msk [vmem:[%s323] sm:$0xff] %vm5876, %v3563
        %5878 = vst.msk [vmem:[%s323 + $0x8] sm:$0xff] %vm5876, %v4025
        %5879 = vst.msk [vmem:[%s323 + $0x10] sm:$0xff] %vm5876, %v4487
        %5880 = vst.msk [vmem:[%s323 + $0x18] sm:$0xff] %vm5876, %v4949
        %5881 = vst.msk [vmem:[%s323 + $0x20] sm:$0xff] %vm5876, %v5411
        %5882 = vst.msk [vmem:[%s323 + $0x28] sm:$0xff] %vm5876, %v5873
        %v5883 = vld [vmem:[%s3] sm:$0xf]
        %v5884 = vld [vmem:[#allocation7] sm:$0xff]
        %v5885 = vld [vmem:[#allocation7 + $0x8] sm:$0xff]
        %v5887 = vsel %vm346, %v5883, 0
        %5889 = vmatprep.subr.mxu0 0.0
        %v5890 = vand.u32 %v331, 4294901760
        %5891 = vmatpush1.msra.mxu0 %v5890
        %5892 = vmatprep.subr.mxu0 0.0
        %v5893 = vand.u32 %v332, 4294901760
        %5894 = vmatpush1.msra.mxu0 %v5893
        %5895 = vmatprep.subr.mxu0 0.0
        %5896 = vmatpush1.msra.mxu0 0.0
        %5897 = vmatprep.subr.mxu0 0.0
        %5898 = vmatpush1.msra.mxu0 0.0
        %5899 = vmatprep.subr.mxu0 0.0
        %5900 = vmatpush1.msra.mxu0 0.0
        %5901 = vmatprep.subr.mxu0 0.0
        %5902 = vmatpush1.msra.mxu0 0.0
        %5903 = vmatprep.subr.mxu0 0.0
        %5904 = vmatpush1.msra.mxu0 0.0
        %5905 = vmatprep.subr.mxu0 0.0
        %5906 = vmatpush1.msra.mxu0 0.0
        %5907 = vmatprep.subr.mxu0 0.0
        %5908 = vmatpush1.msra.mxu0 0.0
        %5909 = vmatprep.subr.mxu0 0.0
        %5910 = vmatpush1.msra.mxu0 0.0
        %5911 = vmatprep.subr.mxu0 0.0
        %5912 = vmatpush1.msra.mxu0 0.0
        %5913 = vmatprep.subr.mxu0 0.0
        %5914 = vmatpush1.msra.mxu0 0.0
        %5915 = vmatprep.subr.mxu0 0.0
        %5916 = vmatpush1.msra.mxu0 0.0
        %5917 = vmatprep.subr.mxu0 0.0
        %5918 = vmatpush1.msra.mxu0 0.0
        %5919 = vmatprep.subr.mxu0 0.0
        %5920 = vmatpush1.msra.mxu0 0.0
        %5921 = vmatprep.subr.mxu0 0.0
        %5922 = vmatpush1.msra.mxu0 0.0
        %5923 = vmatprep.subr.mxu0 0.0
        %5924 = vmatpush1.msra.mxu0 0.0
        %5925 = vmatprep.subr.mxu0 0.0
        %5926 = vmatpush1.msra.mxu0 0.0
        %5927 = vmatprep.subr.mxu0 0.0
        %5928 = vmatpush1.msra.mxu0 0.0
        %5929 = vmatprep.subr.mxu0 0.0
        %5930 = vmatpush1.msra.mxu0 0.0
        %5931 = vmatprep.subr.mxu0 0.0
        %5932 = vmatpush1.msra.mxu0 0.0
        %5933 = vmatprep.subr.mxu0 0.0
        %5934 = vmatpush1.msra.mxu0 0.0
        %5935 = vmatprep.subr.mxu0 0.0
        %5936 = vmatpush1.msra.mxu0 0.0
        %5937 = vmatprep.subr.mxu0 0.0
        %5938 = vmatpush1.msra.mxu0 0.0
        %5939 = vmatprep.subr.mxu0 0.0
        %5940 = vmatpush1.msra.mxu0 0.0
        %5941 = vmatprep.subr.mxu0 0.0
        %5942 = vmatpush1.msra.mxu0 0.0
        %5943 = vmatprep.subr.mxu0 0.0
        %5944 = vmatpush1.msra.mxu0 0.0
        %5945 = vmatprep.subr.mxu0 0.0
        %5946 = vmatpush1.msra.mxu0 0.0
        %5947 = vmatprep.subr.mxu0 0.0
        %5948 = vmatpush1.msra.mxu0 0.0
        %5949 = vmatprep.subr.mxu0 0.0
        %5950 = vmatpush1.msra.mxu0 0.0
        %5951 = vmatprep.subr.mxu0 0.0
        %5952 = vmatpush1.msra.mxu0 0.0
        %5953 = vmatprep.subr.mxu0 0.0
        %5954 = vmatpush1.msra.mxu0 0.0
        %5955 = vmatprep.mubr.f32.mxu0 0.0
        %v5956 = vand.u32 %v5887, 4294901760
        %v5957 = vsub.f32 %v5887, %v5956
        %v5958 = vand.u32 %v5957, 4294901760
        %v5959 = vsub.f32 %v5957, %v5958
        %v5960 = vand.u32 %v5959, 4294901760
        %5961 = vmatmul.mubr.f32.gmra.mrb[0].mxu0 %v5960
        %v5962 = vpop.f32.mrb[0].mxu0
        %v5963 = vadd.f32 0.0, %v5962
        %v5964 = vpop.f32.mrb[0].mxu0
        %5965 = vdwg.mxu0
        %5966 = vmatprep.subr.mxu0 0.0
        %v5967 = vand.u32 %v331, 4294901760
        %v5968 = vsub.f32 %v331, %v5967
        %v5969 = vand.u32 %v5968, 4294901760
        %v5970 = vsub.f32 %v5968, %v5969
        %v5971 = vand.u32 %v5970, 4294901760
        %5972 = vmatpush1.msra.mxu0 %v5971
        %5973 = vmatprep.subr.mxu0 0.0
        %v5974 = vand.u32 %v332, 4294901760
        %v5975 = vsub.f32 %v332, %v5974
        %v5976 = vand.u32 %v5975, 4294901760
        %v5977 = vsub.f32 %v5975, %v5976
        %v5978 = vand.u32 %v5977, 4294901760
        %5979 = vmatpush1.msra.mxu0 %v5978
        %5980 = vmatprep.subr.mxu0 0.0
        %5981 = vmatpush1.msra.mxu0 0.0
        %5982 = vmatprep.subr.mxu0 0.0
        %5983 = vmatpush1.msra.mxu0 0.0
        %5984 = vmatprep.subr.mxu0 0.0
        %5985 = vmatpush1.msra.mxu0 0.0
        %5986 = vmatprep.subr.mxu0 0.0
        %5987 = vmatpush1.msra.mxu0 0.0
        %5988 = vmatprep.subr.mxu0 0.0
        %5989 = vmatpush1.msra.mxu0 0.0
        %5990 = vmatprep.subr.mxu0 0.0
        %5991 = vmatpush1.msra.mxu0 0.0
        %5992 = vmatprep.subr.mxu0 0.0
        %5993 = vmatpush1.msra.mxu0 0.0
        %5994 = vmatprep.subr.mxu0 0.0
        %5995 = vmatpush1.msra.mxu0 0.0
        %5996 = vmatprep.subr.mxu0 0.0
        %5997 = vmatpush1.msra.mxu0 0.0
        %5998 = vmatprep.subr.mxu0 0.0
        %5999 = vmatpush1.msra.mxu0 0.0
        %6000 = vmatprep.subr.mxu0 0.0
        %6001 = vmatpush1.msra.mxu0 0.0
        %6002 = vmatprep.subr.mxu0 0.0
        %6003 = vmatpush1.msra.mxu0 0.0
        %6004 = vmatprep.subr.mxu0 0.0
        %6005 = vmatpush1.msra.mxu0 0.0
        %6006 = vmatprep.subr.mxu0 0.0
        %6007 = vmatpush1.msra.mxu0 0.0
        %6008 = vmatprep.subr.mxu0 0.0
        %6009 = vmatpush1.msra.mxu0 0.0
        %6010 = vmatprep.subr.mxu0 0.0
        %6011 = vmatpush1.msra.mxu0 0.0
        %6012 = vmatprep.subr.mxu0 0.0
        %6013 = vmatpush1.msra.mxu0 0.0
        %6014 = vmatprep.subr.mxu0 0.0
        %6015 = vmatpush1.msra.mxu0 0.0
        %6016 = vmatprep.subr.mxu0 0.0
        %6017 = vmatpush1.msra.mxu0 0.0
        %6018 = vmatprep.subr.mxu0 0.0
        %6019 = vmatpush1.msra.mxu0 0.0
        %6020 = vmatprep.subr.mxu0 0.0
        %6021 = vmatpush1.msra.mxu0 0.0
        %6022 = vmatprep.subr.mxu0 0.0
        %6023 = vmatpush1.msra.mxu0 0.0
        %6024 = vmatprep.subr.mxu0 0.0
        %6025 = vmatpush1.msra.mxu0 0.0
        %6026 = vmatprep.subr.mxu0 0.0
        %6027 = vmatpush1.msra.mxu0 0.0
        %6028 = vmatprep.subr.mxu0 0.0
        %6029 = vmatpush1.msra.mxu0 0.0
        %6030 = vmatprep.subr.mxu0 0.0
        %6031 = vmatpush1.msra.mxu0 0.0
        %6032 = vmatprep.subr.mxu0 0.0
        %6033 = vmatpush1.msra.mxu0 0.0
        %6034 = vmatprep.subr.mxu0 0.0
        %6035 = vmatpush1.msra.mxu0 0.0
        %6036 = vmatprep.subr.mxu0 0.0
        %6037 = vmatpush1.msra.mxu0 0.0
        %6038 = vmatprep.subr.mxu0 0.0
        %6039 = vmatpush1.msra.mxu0 0.0
        %6040 = vmatprep.mubr.f32.mxu0 0.0
        %v6041 = vand.u32 %v5887, 4294901760
        %6042 = vmatmul.mubr.f32.gmra.mrb[0].mxu0 %v6041
        %v6043 = vpop.f32.mrb[0].mxu0
        %v6044 = vadd.f32 %v5963, %v6043
        %v6045 = vpop.f32.mrb[0].mxu0
        %6046 = vdwg.mxu0
        %6047 = vmatprep.subr.mxu0 0.0
        %v6048 = vand.u32 %v331, 4294901760
        %v6049 = vsub.f32 %v331, %v6048
        %6050 = vmatpush1.msra.mxu0 %v6049
        %6051 = vmatprep.subr.mxu0 0.0
        %v6052 = vand.u32 %v332, 4294901760
        %v6053 = vsub.f32 %v332, %v6052
        %6054 = vmatpush1.msra.mxu0 %v6053
        %6055 = vmatprep.subr.mxu0 0.0
        %6056 = vmatpush1.msra.mxu0 0.0
        %6057 = vmatprep.subr.mxu0 0.0
        %6058 = vmatpush1.msra.mxu0 0.0
        %6059 = vmatprep.subr.mxu0 0.0
        %6060 = vmatpush1.msra.mxu0 0.0
        %6061 = vmatprep.subr.mxu0 0.0
        %6062 = vmatpush1.msra.mxu0 0.0
        %6063 = vmatprep.subr.mxu0 0.0
        %6064 = vmatpush1.msra.mxu0 0.0
        %6065 = vmatprep.subr.mxu0 0.0
        %6066 = vmatpush1.msra.mxu0 0.0
        %6067 = vmatprep.subr.mxu0 0.0
        %6068 = vmatpush1.msra.mxu0 0.0
        %6069 = vmatprep.subr.mxu0 0.0
        %6070 = vmatpush1.msra.mxu0 0.0
        %6071 = vmatprep.subr.mxu0 0.0
        %6072 = vmatpush1.msra.mxu0 0.0
        %6073 = vmatprep.subr.mxu0 0.0
        %6074 = vmatpush1.msra.mxu0 0.0
        %6075 = vmatprep.subr.mxu0 0.0
        %6076 = vmatpush1.msra.mxu0 0.0
        %6077 = vmatprep.subr.mxu0 0.0
        %6078 = vmatpush1.msra.mxu0 0.0
        %6079 = vmatprep.subr.mxu0 0.0
        %6080 = vmatpush1.msra.mxu0 0.0
        %6081 = vmatprep.subr.mxu0 0.0
        %6082 = vmatpush1.msra.mxu0 0.0
        %6083 = vmatprep.subr.mxu0 0.0
        %6084 = vmatpush1.msra.mxu0 0.0
        %6085 = vmatprep.subr.mxu0 0.0
        %6086 = vmatpush1.msra.mxu0 0.0
        %6087 = vmatprep.subr.mxu0 0.0
        %6088 = vmatpush1.msra.mxu0 0.0
        %6089 = vmatprep.subr.mxu0 0.0
        %6090 = vmatpush1.msra.mxu0 0.0
        %6091 = vmatprep.subr.mxu0 0.0
        %6092 = vmatpush1.msra.mxu0 0.0
        %6093 = vmatprep.subr.mxu0 0.0
        %6094 = vmatpush1.msra.mxu0 0.0
        %6095 = vmatprep.subr.mxu0 0.0
        %6096 = vmatpush1.msra.mxu0 0.0
        %6097 = vmatprep.subr.mxu0 0.0
        %6098 = vmatpush1.msra.mxu0 0.0
        %6099 = vmatprep.subr.mxu0 0.0
        %6100 = vmatpush1.msra.mxu0 0.0
        %6101 = vmatprep.subr.mxu0 0.0
        %6102 = vmatpush1.msra.mxu0 0.0
        %6103 = vmatprep.subr.mxu0 0.0
        %6104 = vmatpush1.msra.mxu0 0.0
        %6105 = vmatprep.subr.mxu0 0.0
        %6106 = vmatpush1.msra.mxu0 0.0
        %6107 = vmatprep.subr.mxu0 0.0
        %6108 = vmatpush1.msra.mxu0 0.0
        %6109 = vmatprep.subr.mxu0 0.0
        %6110 = vmatpush1.msra.mxu0 0.0
        %6111 = vmatprep.subr.mxu0 0.0
        %6112 = vmatpush1.msra.mxu0 0.0
        %6113 = vmatprep.subr.mxu0 0.0
        %6114 = vmatpush1.msra.mxu0 0.0
        %6115 = vmatprep.mubr.f32.mxu0 0.0
        %v6116 = vand.u32 %v5887, 4294901760
        %v6117 = vsub.f32 %v5887, %v6116
        %6118 = vmatmul.mubr.f32.gmra.mrb[0].mxu0 %v6117
        %v6119 = vpop.f32.mrb[0].mxu0
        %v6120 = vadd.f32 %v6044, %v6119
        %v6121 = vpop.f32.mrb[0].mxu0
        %6122 = vdwg.mxu0
        %6123 = vmatprep.subr.mxu0 0.0
        %v6124 = vand.u32 %v331, 4294901760
        %6125 = vmatpush1.msra.mxu0 %v6124
        %6126 = vmatprep.subr.mxu0 0.0
        %v6127 = vand.u32 %v332, 4294901760
        %6128 = vmatpush1.msra.mxu0 %v6127
        %6129 = vmatprep.subr.mxu0 0.0
        %6130 = vmatpush1.msra.mxu0 0.0
        %6131 = vmatprep.subr.mxu0 0.0
        %6132 = vmatpush1.msra.mxu0 0.0
        %6133 = vmatprep.subr.mxu0 0.0
        %6134 = vmatpush1.msra.mxu0 0.0
        %6135 = vmatprep.subr.mxu0 0.0
        %6136 = vmatpush1.msra.mxu0 0.0
        %6137 = vmatprep.subr.mxu0 0.0
        %6138 = vmatpush1.msra.mxu0 0.0
        %6139 = vmatprep.subr.mxu0 0.0
        %6140 = vmatpush1.msra.mxu0 0.0
        %6141 = vmatprep.subr.mxu0 0.0
        %6142 = vmatpush1.msra.mxu0 0.0
        %6143 = vmatprep.subr.mxu0 0.0
        %6144 = vmatpush1.msra.mxu0 0.0
        %6145 = vmatprep.subr.mxu0 0.0
        %6146 = vmatpush1.msra.mxu0 0.0
        %6147 = vmatprep.subr.mxu0 0.0
        %6148 = vmatpush1.msra.mxu0 0.0
        %6149 = vmatprep.subr.mxu0 0.0
        %6150 = vmatpush1.msra.mxu0 0.0
        %6151 = vmatprep.subr.mxu0 0.0
        %6152 = vmatpush1.msra.mxu0 0.0
        %6153 = vmatprep.subr.mxu0 0.0
        %6154 = vmatpush1.msra.mxu0 0.0
        %6155 = vmatprep.subr.mxu0 0.0
        %6156 = vmatpush1.msra.mxu0 0.0
        %6157 = vmatprep.subr.mxu0 0.0
        %6158 = vmatpush1.msra.mxu0 0.0
        %6159 = vmatprep.subr.mxu0 0.0
        %6160 = vmatpush1.msra.mxu0 0.0
        %6161 = vmatprep.subr.mxu0 0.0
        %6162 = vmatpush1.msra.mxu0 0.0
        %6163 = vmatprep.subr.mxu0 0.0
        %6164 = vmatpush1.msra.mxu0 0.0
        %6165 = vmatprep.subr.mxu0 0.0
        %6166 = vmatpush1.msra.mxu0 0.0
        %6167 = vmatprep.subr.mxu0 0.0
        %6168 = vmatpush1.msra.mxu0 0.0
        %6169 = vmatprep.subr.mxu0 0.0
        %6170 = vmatpush1.msra.mxu0 0.0
        %6171 = vmatprep.subr.mxu0 0.0
        %6172 = vmatpush1.msra.mxu0 0.0
        %6173 = vmatprep.subr.mxu0 0.0
        %6174 = vmatpush1.msra.mxu0 0.0
        %6175 = vmatprep.subr.mxu0 0.0
        %6176 = vmatpush1.msra.mxu0 0.0
        %6177 = vmatprep.subr.mxu0 0.0
        %6178 = vmatpush1.msra.mxu0 0.0
        %6179 = vmatprep.subr.mxu0 0.0
        %6180 = vmatpush1.msra.mxu0 0.0
        %6181 = vmatprep.subr.mxu0 0.0
        %6182 = vmatpush1.msra.mxu0 0.0
        %6183 = vmatprep.subr.mxu0 0.0
        %6184 = vmatpush1.msra.mxu0 0.0
        %6185 = vmatprep.subr.mxu0 0.0
        %6186 = vmatpush1.msra.mxu0 0.0
        %6187 = vmatprep.subr.mxu0 0.0
        %6188 = vmatpush1.msra.mxu0 0.0
        %6189 = vmatprep.mubr.f32.mxu0 0.0
        %v6190 = vand.u32 %v5887, 4294901760
        %v6191 = vsub.f32 %v5887, %v6190
        %v6192 = vand.u32 %v6191, 4294901760
        %6193 = vmatmul.mubr.f32.gmra.mrb[0].mxu0 %v6192
        %v6194 = vpop.f32.mrb[0].mxu0
        %v6195 = vadd.f32 %v6120, %v6194
        %v6196 = vpop.f32.mrb[0].mxu0
        %6197 = vdwg.mxu0
        %6198 = vmatprep.subr.mxu0 0.0
        %v6199 = vand.u32 %v331, 4294901760
        %v6200 = vsub.f32 %v331, %v6199
        %v6201 = vand.u32 %v6200, 4294901760
        %6202 = vmatpush1.msra.mxu0 %v6201
        %6203 = vmatprep.subr.mxu0 0.0
        %v6204 = vand.u32 %v332, 4294901760
        %v6205 = vsub.f32 %v332, %v6204
        %v6206 = vand.u32 %v6205, 4294901760
        %6207 = vmatpush1.msra.mxu0 %v6206
        %6208 = vmatprep.subr.mxu0 0.0
        %6209 = vmatpush1.msra.mxu0 0.0
        %6210 = vmatprep.subr.mxu0 0.0
        %6211 = vmatpush1.msra.mxu0 0.0
        %6212 = vmatprep.subr.mxu0 0.0
        %6213 = vmatpush1.msra.mxu0 0.0
        %6214 = vmatprep.subr.mxu0 0.0
        %6215 = vmatpush1.msra.mxu0 0.0
        %6216 = vmatprep.subr.mxu0 0.0
        %6217 = vmatpush1.msra.mxu0 0.0
        %6218 = vmatprep.subr.mxu0 0.0
        %6219 = vmatpush1.msra.mxu0 0.0
        %6220 = vmatprep.subr.mxu0 0.0
        %6221 = vmatpush1.msra.mxu0 0.0
        %6222 = vmatprep.subr.mxu0 0.0
        %6223 = vmatpush1.msra.mxu0 0.0
        %6224 = vmatprep.subr.mxu0 0.0
        %6225 = vmatpush1.msra.mxu0 0.0
        %6226 = vmatprep.subr.mxu0 0.0
        %6227 = vmatpush1.msra.mxu0 0.0
        %6228 = vmatprep.subr.mxu0 0.0
        %6229 = vmatpush1.msra.mxu0 0.0
        %6230 = vmatprep.subr.mxu0 0.0
        %6231 = vmatpush1.msra.mxu0 0.0
        %6232 = vmatprep.subr.mxu0 0.0
        %6233 = vmatpush1.msra.mxu0 0.0
        %6234 = vmatprep.subr.mxu0 0.0
        %6235 = vmatpush1.msra.mxu0 0.0
        %6236 = vmatprep.subr.mxu0 0.0
        %6237 = vmatpush1.msra.mxu0 0.0
        %6238 = vmatprep.subr.mxu0 0.0
        %6239 = vmatpush1.msra.mxu0 0.0
        %6240 = vmatprep.subr.mxu0 0.0
        %6241 = vmatpush1.msra.mxu0 0.0
        %6242 = vmatprep.subr.mxu0 0.0
        %6243 = vmatpush1.msra.mxu0 0.0
        %6244 = vmatprep.subr.mxu0 0.0
        %6245 = vmatpush1.msra.mxu0 0.0
        %6246 = vmatprep.subr.mxu0 0.0
        %6247 = vmatpush1.msra.mxu0 0.0
        %6248 = vmatprep.subr.mxu0 0.0
        %6249 = vmatpush1.msra.mxu0 0.0
        %6250 = vmatprep.subr.mxu0 0.0
        %6251 = vmatpush1.msra.mxu0 0.0
        %6252 = vmatprep.subr.mxu0 0.0
        %6253 = vmatpush1.msra.mxu0 0.0
        %6254 = vmatprep.subr.mxu0 0.0
        %6255 = vmatpush1.msra.mxu0 0.0
        %6256 = vmatprep.subr.mxu0 0.0
        %6257 = vmatpush1.msra.mxu0 0.0
        %6258 = vmatprep.subr.mxu0 0.0
        %6259 = vmatpush1.msra.mxu0 0.0
        %6260 = vmatprep.subr.mxu0 0.0
        %6261 = vmatpush1.msra.mxu0 0.0
        %6262 = vmatprep.subr.mxu0 0.0
        %6263 = vmatpush1.msra.mxu0 0.0
        %6264 = vmatprep.subr.mxu0 0.0
        %6265 = vmatpush1.msra.mxu0 0.0
        %6266 = vmatprep.subr.mxu0 0.0
        %6267 = vmatpush1.msra.mxu0 0.0
        %6268 = vmatprep.mubr.f32.mxu0 0.0
        %v6269 = vand.u32 %v5887, 4294901760
        %6270 = vmatmul.mubr.f32.gmra.mrb[0].mxu0 %v6269
        %v6271 = vpop.f32.mrb[0].mxu0
        %v6272 = vadd.f32 %v6195, %v6271
        %v6273 = vpop.f32.mrb[0].mxu0
        %6274 = vdwg.mxu0
        %6275 = vmatprep.subr.mxu0 0.0
        %v6276 = vand.u32 %v331, 4294901760
        %6277 = vmatpush1.msra.mxu0 %v6276
        %6278 = vmatprep.subr.mxu0 0.0
        %v6279 = vand.u32 %v332, 4294901760
        %6280 = vmatpush1.msra.mxu0 %v6279
        %6281 = vmatprep.subr.mxu0 0.0
        %6282 = vmatpush1.msra.mxu0 0.0
        %6283 = vmatprep.subr.mxu0 0.0
        %6284 = vmatpush1.msra.mxu0 0.0
        %6285 = vmatprep.subr.mxu0 0.0
        %6286 = vmatpush1.msra.mxu0 0.0
        %6287 = vmatprep.subr.mxu0 0.0
        %6288 = vmatpush1.msra.mxu0 0.0
        %6289 = vmatprep.subr.mxu0 0.0
        %6290 = vmatpush1.msra.mxu0 0.0
        %6291 = vmatprep.subr.mxu0 0.0
        %6292 = vmatpush1.msra.mxu0 0.0
        %6293 = vmatprep.subr.mxu0 0.0
        %6294 = vmatpush1.msra.mxu0 0.0
        %6295 = vmatprep.subr.mxu0 0.0
        %6296 = vmatpush1.msra.mxu0 0.0
        %6297 = vmatprep.subr.mxu0 0.0
        %6298 = vmatpush1.msra.mxu0 0.0
        %6299 = vmatprep.subr.mxu0 0.0
        %6300 = vmatpush1.msra.mxu0 0.0
        %6301 = vmatprep.subr.mxu0 0.0
        %6302 = vmatpush1.msra.mxu0 0.0
        %6303 = vmatprep.subr.mxu0 0.0
        %6304 = vmatpush1.msra.mxu0 0.0
        %6305 = vmatprep.subr.mxu0 0.0
        %6306 = vmatpush1.msra.mxu0 0.0
        %6307 = vmatprep.subr.mxu0 0.0
        %6308 = vmatpush1.msra.mxu0 0.0
        %6309 = vmatprep.subr.mxu0 0.0
        %6310 = vmatpush1.msra.mxu0 0.0
        %6311 = vmatprep.subr.mxu0 0.0
        %6312 = vmatpush1.msra.mxu0 0.0
        %6313 = vmatprep.subr.mxu0 0.0
        %6314 = vmatpush1.msra.mxu0 0.0
        %6315 = vmatprep.subr.mxu0 0.0
        %6316 = vmatpush1.msra.mxu0 0.0
        %6317 = vmatprep.subr.mxu0 0.0
        %6318 = vmatpush1.msra.mxu0 0.0
        %6319 = vmatprep.subr.mxu0 0.0
        %6320 = vmatpush1.msra.mxu0 0.0
        %6321 = vmatprep.subr.mxu0 0.0
        %6322 = vmatpush1.msra.mxu0 0.0
        %6323 = vmatprep.subr.mxu0 0.0
        %6324 = vmatpush1.msra.mxu0 0.0
        %6325 = vmatprep.subr.mxu0 0.0
        %6326 = vmatpush1.msra.mxu0 0.0
        %6327 = vmatprep.subr.mxu0 0.0
        %6328 = vmatpush1.msra.mxu0 0.0
        %6329 = vmatprep.subr.mxu0 0.0
        %6330 = vmatpush1.msra.mxu0 0.0
        %6331 = vmatprep.subr.mxu0 0.0
        %6332 = vmatpush1.msra.mxu0 0.0
        %6333 = vmatprep.subr.mxu0 0.0
        %6334 = vmatpush1.msra.mxu0 0.0
        %6335 = vmatprep.subr.mxu0 0.0
        %6336 = vmatpush1.msra.mxu0 0.0
        %6337 = vmatprep.subr.mxu0 0.0
        %6338 = vmatpush1.msra.mxu0 0.0
        %6339 = vmatprep.subr.mxu0 0.0
        %6340 = vmatpush1.msra.mxu0 0.0
        %6341 = vmatprep.mubr.f32.mxu0 0.0
        %v6342 = vand.u32 %v5887, 4294901760
        %6343 = vmatmul.mubr.f32.gmra.mrb[0].mxu0 %v6342
        %v6344 = vpop.f32.mrb[0].mxu0
        %v6345 = vadd.f32 %v6272, %v6344
        %v6346 = vpop.f32.mrb[0].mxu0
        %6347 = vdwg.mxu0
        %6348 = vmatprep.subr.mxu0 0.0
        %v6349 = vand.u32 %v333, 4294901760
        %6350 = vmatpush1.msra.mxu0 %v6349
        %6351 = vmatprep.subr.mxu0 0.0
        %v6352 = vand.u32 %v334, 4294901760
        %6353 = vmatpush1.msra.mxu0 %v6352
        %6354 = vmatprep.subr.mxu0 0.0
        %6355 = vmatpush1.msra.mxu0 0.0
        %6356 = vmatprep.subr.mxu0 0.0
        %6357 = vmatpush1.msra.mxu0 0.0
        %6358 = vmatprep.subr.mxu0 0.0
        %6359 = vmatpush1.msra.mxu0 0.0
        %6360 = vmatprep.subr.mxu0 0.0
        %6361 = vmatpush1.msra.mxu0 0.0
        %6362 = vmatprep.subr.mxu0 0.0
        %6363 = vmatpush1.msra.mxu0 0.0
        %6364 = vmatprep.subr.mxu0 0.0
        %6365 = vmatpush1.msra.mxu0 0.0
        %6366 = vmatprep.subr.mxu0 0.0
        %6367 = vmatpush1.msra.mxu0 0.0
        %6368 = vmatprep.subr.mxu0 0.0
        %6369 = vmatpush1.msra.mxu0 0.0
        %6370 = vmatprep.subr.mxu0 0.0
        %6371 = vmatpush1.msra.mxu0 0.0
        %6372 = vmatprep.subr.mxu0 0.0
        %6373 = vmatpush1.msra.mxu0 0.0
        %6374 = vmatprep.subr.mxu0 0.0
        %6375 = vmatpush1.msra.mxu0 0.0
        %6376 = vmatprep.subr.mxu0 0.0
        %6377 = vmatpush1.msra.mxu0 0.0
        %6378 = vmatprep.subr.mxu0 0.0
        %6379 = vmatpush1.msra.mxu0 0.0
        %6380 = vmatprep.subr.mxu0 0.0
        %6381 = vmatpush1.msra.mxu0 0.0
        %6382 = vmatprep.subr.mxu0 0.0
        %6383 = vmatpush1.msra.mxu0 0.0
        %6384 = vmatprep.subr.mxu0 0.0
        %6385 = vmatpush1.msra.mxu0 0.0
        %6386 = vmatprep.subr.mxu0 0.0
        %6387 = vmatpush1.msra.mxu0 0.0
        %6388 = vmatprep.subr.mxu0 0.0
        %6389 = vmatpush1.msra.mxu0 0.0
        %6390 = vmatprep.subr.mxu0 0.0
        %6391 = vmatpush1.msra.mxu0 0.0
        %6392 = vmatprep.subr.mxu0 0.0
        %6393 = vmatpush1.msra.mxu0 0.0
        %6394 = vmatprep.subr.mxu0 0.0
        %6395 = vmatpush1.msra.mxu0 0.0
        %6396 = vmatprep.subr.mxu0 0.0
        %6397 = vmatpush1.msra.mxu0 0.0
        %6398 = vmatprep.subr.mxu0 0.0
        %6399 = vmatpush1.msra.mxu0 0.0
        %6400 = vmatprep.subr.mxu0 0.0
        %6401 = vmatpush1.msra.mxu0 0.0
        %6402 = vmatprep.subr.mxu0 0.0
        %6403 = vmatpush1.msra.mxu0 0.0
        %6404 = vmatprep.subr.mxu0 0.0
        %6405 = vmatpush1.msra.mxu0 0.0
        %6406 = vmatprep.subr.mxu0 0.0
        %6407 = vmatpush1.msra.mxu0 0.0
        %6408 = vmatprep.subr.mxu0 0.0
        %6409 = vmatpush1.msra.mxu0 0.0
        %6410 = vmatprep.subr.mxu0 0.0
        %6411 = vmatpush1.msra.mxu0 0.0
        %6412 = vmatprep.subr.mxu0 0.0
        %6413 = vmatpush1.msra.mxu0 0.0
        %6414 = vmatprep.mubr.f32.mxu0 0.0
        %v6415 = vand.u32 %v5887, 4294901760
        %v6416 = vsub.f32 %v5887, %v6415
        %v6417 = vand.u32 %v6416, 4294901760
        %v6418 = vsub.f32 %v6416, %v6417
        %v6419 = vand.u32 %v6418, 4294901760
        %6420 = vmatmul.mubr.f32.gmra.mrb[0].mxu0 %v6419
        %v6421 = vpop.f32.mrb[0].mxu0
        %v6422 = vadd.f32 0.0, %v6421
        %v6423 = vpop.f32.mrb[0].mxu0
        %6424 = vdwg.mxu0
        %6425 = vmatprep.subr.mxu0 0.0
        %v6426 = vand.u32 %v333, 4294901760
        %v6427 = vsub.f32 %v333, %v6426
        %v6428 = vand.u32 %v6427, 4294901760
        %v6429 = vsub.f32 %v6427, %v6428
        %v6430 = vand.u32 %v6429, 4294901760
        %6431 = vmatpush1.msra.mxu0 %v6430
        %6432 = vmatprep.subr.mxu0 0.0
        %v6433 = vand.u32 %v334, 4294901760
        %v6434 = vsub.f32 %v334, %v6433
        %v6435 = vand.u32 %v6434, 4294901760
        %v6436 = vsub.f32 %v6434, %v6435
        %v6437 = vand.u32 %v6436, 4294901760
        %6438 = vmatpush1.msra.mxu0 %v6437
        %6439 = vmatprep.subr.mxu0 0.0
        %6440 = vmatpush1.msra.mxu0 0.0
        %6441 = vmatprep.subr.mxu0 0.0
        %6442 = vmatpush1.msra.mxu0 0.0
        %6443 = vmatprep.subr.mxu0 0.0
        %6444 = vmatpush1.msra.mxu0 0.0
        %6445 = vmatprep.subr.mxu0 0.0
        %6446 = vmatpush1.msra.mxu0 0.0
        %6447 = vmatprep.subr.mxu0 0.0
        %6448 = vmatpush1.msra.mxu0 0.0
        %6449 = vmatprep.subr.mxu0 0.0
        %6450 = vmatpush1.msra.mxu0 0.0
        %6451 = vmatprep.subr.mxu0 0.0
        %6452 = vmatpush1.msra.mxu0 0.0
        %6453 = vmatprep.subr.mxu0 0.0
        %6454 = vmatpush1.msra.mxu0 0.0
        %6455 = vmatprep.subr.mxu0 0.0
        %6456 = vmatpush1.msra.mxu0 0.0
        %6457 = vmatprep.subr.mxu0 0.0
        %6458 = vmatpush1.msra.mxu0 0.0
        %6459 = vmatprep.subr.mxu0 0.0
        %6460 = vmatpush1.msra.mxu0 0.0
        %6461 = vmatprep.subr.mxu0 0.0
        %6462 = vmatpush1.msra.mxu0 0.0
        %6463 = vmatprep.subr.mxu0 0.0
        %6464 = vmatpush1.msra.mxu0 0.0
        %6465 = vmatprep.subr.mxu0 0.0
        %6466 = vmatpush1.msra.mxu0 0.0
        %6467 = vmatprep.subr.mxu0 0.0
        %6468 = vmatpush1.msra.mxu0 0.0
        %6469 = vmatprep.subr.mxu0 0.0
        %6470 = vmatpush1.msra.mxu0 0.0
        %6471 = vmatprep.subr.mxu0 0.0
        %6472 = vmatpush1.msra.mxu0 0.0
        %6473 = vmatprep.subr.mxu0 0.0
        %6474 = vmatpush1.msra.mxu0 0.0
        %6475 = vmatprep.subr.mxu0 0.0
        %6476 = vmatpush1.msra.mxu0 0.0
        %6477 = vmatprep.subr.mxu0 0.0
        %6478 = vmatpush1.msra.mxu0 0.0
        %6479 = vmatprep.subr.mxu0 0.0
        %6480 = vmatpush1.msra.mxu0 0.0
        %6481 = vmatprep.subr.mxu0 0.0
        %6482 = vmatpush1.msra.mxu0 0.0
        %6483 = vmatprep.subr.mxu0 0.0
        %6484 = vmatpush1.msra.mxu0 0.0
        %6485 = vmatprep.subr.mxu0 0.0
        %6486 = vmatpush1.msra.mxu0 0.0
        %6487 = vmatprep.subr.mxu0 0.0
        %6488 = vmatpush1.msra.mxu0 0.0
        %6489 = vmatprep.subr.mxu0 0.0
        %6490 = vmatpush1.msra.mxu0 0.0
        %6491 = vmatprep.subr.mxu0 0.0
        %6492 = vmatpush1.msra.mxu0 0.0
        %6493 = vmatprep.subr.mxu0 0.0
        %6494 = vmatpush1.msra.mxu0 0.0
        %6495 = vmatprep.subr.mxu0 0.0
        %6496 = vmatpush1.msra.mxu0 0.0
        %6497 = vmatprep.subr.mxu0 0.0
        %6498 = vmatpush1.msra.mxu0 0.0
        %6499 = vmatprep.mubr.f32.mxu0 0.0
        %v6500 = vand.u32 %v5887, 4294901760
        %6501 = vmatmul.mubr.f32.gmra.mrb[0].mxu0 %v6500
        %v6502 = vpop.f32.mrb[0].mxu0
        %v6503 = vadd.f32 %v6422, %v6502
        %v6504 = vpop.f32.mrb[0].mxu0
        %6505 = vdwg.mxu0
        %6506 = vmatprep.subr.mxu0 0.0
        %v6507 = vand.u32 %v333, 4294901760
        %v6508 = vsub.f32 %v333, %v6507
        %6509 = vmatpush1.msra.mxu0 %v6508
        %6510 = vmatprep.subr.mxu0 0.0
        %v6511 = vand.u32 %v334, 4294901760
        %v6512 = vsub.f32 %v334, %v6511
        %6513 = vmatpush1.msra.mxu0 %v6512
        %6514 = vmatprep.subr.mxu0 0.0
        %6515 = vmatpush1.msra.mxu0 0.0
        %6516 = vmatprep.subr.mxu0 0.0
        %6517 = vmatpush1.msra.mxu0 0.0
        %6518 = vmatprep.subr.mxu0 0.0
        %6519 = vmatpush1.msra.mxu0 0.0
        %6520 = vmatprep.subr.mxu0 0.0
        %6521 = vmatpush1.msra.mxu0 0.0
        %6522 = vmatprep.subr.mxu0 0.0
        %6523 = vmatpush1.msra.mxu0 0.0
        %6524 = vmatprep.subr.mxu0 0.0
        %6525 = vmatpush1.msra.mxu0 0.0
        %6526 = vmatprep.subr.mxu0 0.0
        %6527 = vmatpush1.msra.mxu0 0.0
        %6528 = vmatprep.subr.mxu0 0.0
        %6529 = vmatpush1.msra.mxu0 0.0
        %6530 = vmatprep.subr.mxu0 0.0
        %6531 = vmatpush1.msra.mxu0 0.0
        %6532 = vmatprep.subr.mxu0 0.0
        %6533 = vmatpush1.msra.mxu0 0.0
        %6534 = vmatprep.subr.mxu0 0.0
        %6535 = vmatpush1.msra.mxu0 0.0
        %6536 = vmatprep.subr.mxu0 0.0
        %6537 = vmatpush1.msra.mxu0 0.0
        %6538 = vmatprep.subr.mxu0 0.0
        %6539 = vmatpush1.msra.mxu0 0.0
        %6540 = vmatprep.subr.mxu0 0.0
        %6541 = vmatpush1.msra.mxu0 0.0
        %6542 = vmatprep.subr.mxu0 0.0
        %6543 = vmatpush1.msra.mxu0 0.0
        %6544 = vmatprep.subr.mxu0 0.0
        %6545 = vmatpush1.msra.mxu0 0.0
        %6546 = vmatprep.subr.mxu0 0.0
        %6547 = vmatpush1.msra.mxu0 0.0
        %6548 = vmatprep.subr.mxu0 0.0
        %6549 = vmatpush1.msra.mxu0 0.0
        %6550 = vmatprep.subr.mxu0 0.0
        %6551 = vmatpush1.msra.mxu0 0.0
        %6552 = vmatprep.subr.mxu0 0.0
        %6553 = vmatpush1.msra.mxu0 0.0
        %6554 = vmatprep.subr.mxu0 0.0
        %6555 = vmatpush1.msra.mxu0 0.0
        %6556 = vmatprep.subr.mxu0 0.0
        %6557 = vmatpush1.msra.mxu0 0.0
        %6558 = vmatprep.subr.mxu0 0.0
        %6559 = vmatpush1.msra.mxu0 0.0
        %6560 = vmatprep.subr.mxu0 0.0
        %6561 = vmatpush1.msra.mxu0 0.0
        %6562 = vmatprep.subr.mxu0 0.0
        %6563 = vmatpush1.msra.mxu0 0.0
        %6564 = vmatprep.subr.mxu0 0.0
        %6565 = vmatpush1.msra.mxu0 0.0
        %6566 = vmatprep.subr.mxu0 0.0
        %6567 = vmatpush1.msra.mxu0 0.0
        %6568 = vmatprep.subr.mxu0 0.0
        %6569 = vmatpush1.msra.mxu0 0.0
        %6570 = vmatprep.subr.mxu0 0.0
        %6571 = vmatpush1.msra.mxu0 0.0
        %6572 = vmatprep.subr.mxu0 0.0
        %6573 = vmatpush1.msra.mxu0 0.0
        %6574 = vmatprep.mubr.f32.mxu0 0.0
        %v6575 = vand.u32 %v5887, 4294901760
        %v6576 = vsub.f32 %v5887, %v6575
        %6577 = vmatmul.mubr.f32.gmra.mrb[0].mxu0 %v6576
        %v6578 = vpop.f32.mrb[0].mxu0
        %v6579 = vadd.f32 %v6503, %v6578
        %v6580 = vpop.f32.mrb[0].mxu0
        %6581 = vdwg.mxu0
        %6582 = vmatprep.subr.mxu0 0.0
        %v6583 = vand.u32 %v333, 4294901760
        %6584 = vmatpush1.msra.mxu0 %v6583
        %6585 = vmatprep.subr.mxu0 0.0
        %v6586 = vand.u32 %v334, 4294901760
        %6587 = vmatpush1.msra.mxu0 %v6586
        %6588 = vmatprep.subr.mxu0 0.0
        %6589 = vmatpush1.msra.mxu0 0.0
        %6590 = vmatprep.subr.mxu0 0.0
        %6591 = vmatpush1.msra.mxu0 0.0
        %6592 = vmatprep.subr.mxu0 0.0
        %6593 = vmatpush1.msra.mxu0 0.0
        %6594 = vmatprep.subr.mxu0 0.0
        %6595 = vmatpush1.msra.mxu0 0.0
        %6596 = vmatprep.subr.mxu0 0.0
        %6597 = vmatpush1.msra.mxu0 0.0
        %6598 = vmatprep.subr.mxu0 0.0
        %6599 = vmatpush1.msra.mxu0 0.0
        %6600 = vmatprep.subr.mxu0 0.0
        %6601 = vmatpush1.msra.mxu0 0.0
        %6602 = vmatprep.subr.mxu0 0.0
        %6603 = vmatpush1.msra.mxu0 0.0
        %6604 = vmatprep.subr.mxu0 0.0
        %6605 = vmatpush1.msra.mxu0 0.0
        %6606 = vmatprep.subr.mxu0 0.0
        %6607 = vmatpush1.msra.mxu0 0.0
        %6608 = vmatprep.subr.mxu0 0.0
        %6609 = vmatpush1.msra.mxu0 0.0
        %6610 = vmatprep.subr.mxu0 0.0
        %6611 = vmatpush1.msra.mxu0 0.0
        %6612 = vmatprep.subr.mxu0 0.0
        %6613 = vmatpush1.msra.mxu0 0.0
        %6614 = vmatprep.subr.mxu0 0.0
        %6615 = vmatpush1.msra.mxu0 0.0
        %6616 = vmatprep.subr.mxu0 0.0
        %6617 = vmatpush1.msra.mxu0 0.0
        %6618 = vmatprep.subr.mxu0 0.0
        %6619 = vmatpush1.msra.mxu0 0.0
        %6620 = vmatprep.subr.mxu0 0.0
        %6621 = vmatpush1.msra.mxu0 0.0
        %6622 = vmatprep.subr.mxu0 0.0
        %6623 = vmatpush1.msra.mxu0 0.0
        %6624 = vmatprep.subr.mxu0 0.0
        %6625 = vmatpush1.msra.mxu0 0.0
        %6626 = vmatprep.subr.mxu0 0.0
        %6627 = vmatpush1.msra.mxu0 0.0
        %6628 = vmatprep.subr.mxu0 0.0
        %6629 = vmatpush1.msra.mxu0 0.0
        %6630 = vmatprep.subr.mxu0 0.0
        %6631 = vmatpush1.msra.mxu0 0.0
        %6632 = vmatprep.subr.mxu0 0.0
        %6633 = vmatpush1.msra.mxu0 0.0
        %6634 = vmatprep.subr.mxu0 0.0
        %6635 = vmatpush1.msra.mxu0 0.0
        %6636 = vmatprep.subr.mxu0 0.0
        %6637 = vmatpush1.msra.mxu0 0.0
        %6638 = vmatprep.subr.mxu0 0.0
        %6639 = vmatpush1.msra.mxu0 0.0
        %6640 = vmatprep.subr.mxu0 0.0
        %6641 = vmatpush1.msra.mxu0 0.0
        %6642 = vmatprep.subr.mxu0 0.0
        %6643 = vmatpush1.msra.mxu0 0.0
        %6644 = vmatprep.subr.mxu0 0.0
        %6645 = vmatpush1.msra.mxu0 0.0
        %6646 = vmatprep.subr.mxu0 0.0
        %6647 = vmatpush1.msra.mxu0 0.0
        %6648 = vmatprep.mubr.f32.mxu0 0.0
        %v6649 = vand.u32 %v5887, 4294901760
        %v6650 = vsub.f32 %v5887, %v6649
        %v6651 = vand.u32 %v6650, 4294901760
        %6652 = vmatmul.mubr.f32.gmra.mrb[0].mxu0 %v6651
        %v6653 = vpop.f32.mrb[0].mxu0
        %v6654 = vadd.f32 %v6579, %v6653
        %v6655 = vpop.f32.mrb[0].mxu0
        %6656 = vdwg.mxu0
        %6657 = vmatprep.subr.mxu0 0.0
        %v6658 = vand.u32 %v333, 4294901760
        %v6659 = vsub.f32 %v333, %v6658
        %v6660 = vand.u32 %v6659, 4294901760
        %6661 = vmatpush1.msra.mxu0 %v6660
        %6662 = vmatprep.subr.mxu0 0.0
        %v6663 = vand.u32 %v334, 4294901760
        %v6664 = vsub.f32 %v334, %v6663
        %v6665 = vand.u32 %v6664, 4294901760
        %6666 = vmatpush1.msra.mxu0 %v6665
        %6667 = vmatprep.subr.mxu0 0.0
        %6668 = vmatpush1.msra.mxu0 0.0
        %6669 = vmatprep.subr.mxu0 0.0
        %6670 = vmatpush1.msra.mxu0 0.0
        %6671 = vmatprep.subr.mxu0 0.0
        %6672 = vmatpush1.msra.mxu0 0.0
        %6673 = vmatprep.subr.mxu0 0.0
        %6674 = vmatpush1.msra.mxu0 0.0
        %6675 = vmatprep.subr.mxu0 0.0
        %6676 = vmatpush1.msra.mxu0 0.0
        %6677 = vmatprep.subr.mxu0 0.0
        %6678 = vmatpush1.msra.mxu0 0.0
        %6679 = vmatprep.subr.mxu0 0.0
        %6680 = vmatpush1.msra.mxu0 0.0
        %6681 = vmatprep.subr.mxu0 0.0
        %6682 = vmatpush1.msra.mxu0 0.0
        %6683 = vmatprep.subr.mxu0 0.0
        %6684 = vmatpush1.msra.mxu0 0.0
        %6685 = vmatprep.subr.mxu0 0.0
        %6686 = vmatpush1.msra.mxu0 0.0
        %6687 = vmatprep.subr.mxu0 0.0
        %6688 = vmatpush1.msra.mxu0 0.0
        %6689 = vmatprep.subr.mxu0 0.0
        %6690 = vmatpush1.msra.mxu0 0.0
        %6691 = vmatprep.subr.mxu0 0.0
        %6692 = vmatpush1.msra.mxu0 0.0
        %6693 = vmatprep.subr.mxu0 0.0
        %6694 = vmatpush1.msra.mxu0 0.0
        %6695 = vmatprep.subr.mxu0 0.0
        %6696 = vmatpush1.msra.mxu0 0.0
        %6697 = vmatprep.subr.mxu0 0.0
        %6698 = vmatpush1.msra.mxu0 0.0
        %6699 = vmatprep.subr.mxu0 0.0
        %6700 = vmatpush1.msra.mxu0 0.0
        %6701 = vmatprep.subr.mxu0 0.0
        %6702 = vmatpush1.msra.mxu0 0.0
        %6703 = vmatprep.subr.mxu0 0.0
        %6704 = vmatpush1.msra.mxu0 0.0
        %6705 = vmatprep.subr.mxu0 0.0
        %6706 = vmatpush1.msra.mxu0 0.0
        %6707 = vmatprep.subr.mxu0 0.0
        %6708 = vmatpush1.msra.mxu0 0.0
        %6709 = vmatprep.subr.mxu0 0.0
        %6710 = vmatpush1.msra.mxu0 0.0
        %6711 = vmatprep.subr.mxu0 0.0
        %6712 = vmatpush1.msra.mxu0 0.0
        %6713 = vmatprep.subr.mxu0 0.0
        %6714 = vmatpush1.msra.mxu0 0.0
        %6715 = vmatprep.subr.mxu0 0.0
        %6716 = vmatpush1.msra.mxu0 0.0
        %6717 = vmatprep.subr.mxu0 0.0
        %6718 = vmatpush1.msra.mxu0 0.0
        %6719 = vmatprep.subr.mxu0 0.0
        %6720 = vmatpush1.msra.mxu0 0.0
        %6721 = vmatprep.subr.mxu0 0.0
        %6722 = vmatpush1.msra.mxu0 0.0
        %6723 = vmatprep.subr.mxu0 0.0
        %6724 = vmatpush1.msra.mxu0 0.0
        %6725 = vmatprep.subr.mxu0 0.0
        %6726 = vmatpush1.msra.mxu0 0.0
        %6727 = vmatprep.mubr.f32.mxu0 0.0
        %v6728 = vand.u32 %v5887, 4294901760
        %6729 = vmatmul.mubr.f32.gmra.mrb[0].mxu0 %v6728
        %v6730 = vpop.f32.mrb[0].mxu0
        %v6731 = vadd.f32 %v6654, %v6730
        %v6732 = vpop.f32.mrb[0].mxu0
        %6733 = vdwg.mxu0
        %6734 = vmatprep.subr.mxu0 0.0
        %v6735 = vand.u32 %v333, 4294901760
        %6736 = vmatpush1.msra.mxu0 %v6735
        %6737 = vmatprep.subr.mxu0 0.0
        %v6738 = vand.u32 %v334, 4294901760
        %6739 = vmatpush1.msra.mxu0 %v6738
        %6740 = vmatprep.subr.mxu0 0.0
        %6741 = vmatpush1.msra.mxu0 0.0
        %6742 = vmatprep.subr.mxu0 0.0
        %6743 = vmatpush1.msra.mxu0 0.0
        %6744 = vmatprep.subr.mxu0 0.0
        %6745 = vmatpush1.msra.mxu0 0.0
        %6746 = vmatprep.subr.mxu0 0.0
        %6747 = vmatpush1.msra.mxu0 0.0
        %6748 = vmatprep.subr.mxu0 0.0
        %6749 = vmatpush1.msra.mxu0 0.0
        %6750 = vmatprep.subr.mxu0 0.0
        %6751 = vmatpush1.msra.mxu0 0.0
        %6752 = vmatprep.subr.mxu0 0.0
        %6753 = vmatpush1.msra.mxu0 0.0
        %6754 = vmatprep.subr.mxu0 0.0
        %6755 = vmatpush1.msra.mxu0 0.0
        %6756 = vmatprep.subr.mxu0 0.0
        %6757 = vmatpush1.msra.mxu0 0.0
        %6758 = vmatprep.subr.mxu0 0.0
        %6759 = vmatpush1.msra.mxu0 0.0
        %6760 = vmatprep.subr.mxu0 0.0
        %6761 = vmatpush1.msra.mxu0 0.0
        %6762 = vmatprep.subr.mxu0 0.0
        %6763 = vmatpush1.msra.mxu0 0.0
        %6764 = vmatprep.subr.mxu0 0.0
        %6765 = vmatpush1.msra.mxu0 0.0
        %6766 = vmatprep.subr.mxu0 0.0
        %6767 = vmatpush1.msra.mxu0 0.0
        %6768 = vmatprep.subr.mxu0 0.0
        %6769 = vmatpush1.msra.mxu0 0.0
        %6770 = vmatprep.subr.mxu0 0.0
        %6771 = vmatpush1.msra.mxu0 0.0
        %6772 = vmatprep.subr.mxu0 0.0
        %6773 = vmatpush1.msra.mxu0 0.0
        %6774 = vmatprep.subr.mxu0 0.0
        %6775 = vmatpush1.msra.mxu0 0.0
        %6776 = vmatprep.subr.mxu0 0.0
        %6777 = vmatpush1.msra.mxu0 0.0
        %6778 = vmatprep.subr.mxu0 0.0
        %6779 = vmatpush1.msra.mxu0 0.0
        %6780 = vmatprep.subr.mxu0 0.0
        %6781 = vmatpush1.msra.mxu0 0.0
        %6782 = vmatprep.subr.mxu0 0.0
        %6783 = vmatpush1.msra.mxu0 0.0
        %6784 = vmatprep.subr.mxu0 0.0
        %6785 = vmatpush1.msra.mxu0 0.0
        %6786 = vmatprep.subr.mxu0 0.0
        %6787 = vmatpush1.msra.mxu0 0.0
        %6788 = vmatprep.subr.mxu0 0.0
        %6789 = vmatpush1.msra.mxu0 0.0
        %6790 = vmatprep.subr.mxu0 0.0
        %6791 = vmatpush1.msra.mxu0 0.0
        %6792 = vmatprep.subr.mxu0 0.0
        %6793 = vmatpush1.msra.mxu0 0.0
        %6794 = vmatprep.subr.mxu0 0.0
        %6795 = vmatpush1.msra.mxu0 0.0
        %6796 = vmatprep.subr.mxu0 0.0
        %6797 = vmatpush1.msra.mxu0 0.0
        %6798 = vmatprep.subr.mxu0 0.0
        %6799 = vmatpush1.msra.mxu0 0.0
        %6800 = vmatprep.mubr.f32.mxu0 0.0
        %v6801 = vand.u32 %v5887, 4294901760
        %6802 = vmatmul.mubr.f32.gmra.mrb[0].mxu0 %v6801
        %v6803 = vpop.f32.mrb[0].mxu0
        %v6804 = vadd.f32 %v6731, %v6803
        %v6805 = vpop.f32.mrb[0].mxu0
        %6806 = vdwg.mxu0
        %6807 = vmatprep.subr.mxu0 0.0
        %v6808 = vand.u32 %v335, 4294901760
        %6809 = vmatpush1.msra.mxu0 %v6808
        %6810 = vmatprep.subr.mxu0 0.0
        %v6811 = vand.u32 %v336, 4294901760
        %6812 = vmatpush1.msra.mxu0 %v6811
        %6813 = vmatprep.subr.mxu0 0.0
        %6814 = vmatpush1.msra.mxu0 0.0
        %6815 = vmatprep.subr.mxu0 0.0
        %6816 = vmatpush1.msra.mxu0 0.0
        %6817 = vmatprep.subr.mxu0 0.0
        %6818 = vmatpush1.msra.mxu0 0.0
        %6819 = vmatprep.subr.mxu0 0.0
        %6820 = vmatpush1.msra.mxu0 0.0
        %6821 = vmatprep.subr.mxu0 0.0
        %6822 = vmatpush1.msra.mxu0 0.0
        %6823 = vmatprep.subr.mxu0 0.0
        %6824 = vmatpush1.msra.mxu0 0.0
        %6825 = vmatprep.subr.mxu0 0.0
        %6826 = vmatpush1.msra.mxu0 0.0
        %6827 = vmatprep.subr.mxu0 0.0
        %6828 = vmatpush1.msra.mxu0 0.0
        %6829 = vmatprep.subr.mxu0 0.0
        %6830 = vmatpush1.msra.mxu0 0.0
        %6831 = vmatprep.subr.mxu0 0.0
        %6832 = vmatpush1.msra.mxu0 0.0
        %6833 = vmatprep.subr.mxu0 0.0
        %6834 = vmatpush1.msra.mxu0 0.0
        %6835 = vmatprep.subr.mxu0 0.0
        %6836 = vmatpush1.msra.mxu0 0.0
        %6837 = vmatprep.subr.mxu0 0.0
        %6838 = vmatpush1.msra.mxu0 0.0
        %6839 = vmatprep.subr.mxu0 0.0
        %6840 = vmatpush1.msra.mxu0 0.0
        %6841 = vmatprep.subr.mxu0 0.0
        %6842 = vmatpush1.msra.mxu0 0.0
        %6843 = vmatprep.subr.mxu0 0.0
        %6844 = vmatpush1.msra.mxu0 0.0
        %6845 = vmatprep.subr.mxu0 0.0
        %6846 = vmatpush1.msra.mxu0 0.0
        %6847 = vmatprep.subr.mxu0 0.0
        %6848 = vmatpush1.msra.mxu0 0.0
        %6849 = vmatprep.subr.mxu0 0.0
        %6850 = vmatpush1.msra.mxu0 0.0
        %6851 = vmatprep.subr.mxu0 0.0
        %6852 = vmatpush1.msra.mxu0 0.0
        %6853 = vmatprep.subr.mxu0 0.0
        %6854 = vmatpush1.msra.mxu0 0.0
        %6855 = vmatprep.subr.mxu0 0.0
        %6856 = vmatpush1.msra.mxu0 0.0
        %6857 = vmatprep.subr.mxu0 0.0
        %6858 = vmatpush1.msra.mxu0 0.0
        %6859 = vmatprep.subr.mxu0 0.0
        %6860 = vmatpush1.msra.mxu0 0.0
        %6861 = vmatprep.subr.mxu0 0.0
        %6862 = vmatpush1.msra.mxu0 0.0
        %6863 = vmatprep.subr.mxu0 0.0
        %6864 = vmatpush1.msra.mxu0 0.0
        %6865 = vmatprep.subr.mxu0 0.0
        %6866 = vmatpush1.msra.mxu0 0.0
        %6867 = vmatprep.subr.mxu0 0.0
        %6868 = vmatpush1.msra.mxu0 0.0
        %6869 = vmatprep.subr.mxu0 0.0
        %6870 = vmatpush1.msra.mxu0 0.0
        %6871 = vmatprep.subr.mxu0 0.0
        %6872 = vmatpush1.msra.mxu0 0.0
        %6873 = vmatprep.mubr.f32.mxu0 0.0
        %v6874 = vand.u32 %v5887, 4294901760
        %v6875 = vsub.f32 %v5887, %v6874
        %v6876 = vand.u32 %v6875, 4294901760
        %v6877 = vsub.f32 %v6875, %v6876
        %v6878 = vand.u32 %v6877, 4294901760
        %6879 = vmatmul.mubr.f32.gmra.mrb[0].mxu0 %v6878
        %v6880 = vpop.f32.mrb[0].mxu0
        %v6881 = vadd.f32 0.0, %v6880
        %v6882 = vpop.f32.mrb[0].mxu0
        %6883 = vdwg.mxu0
        %6884 = vmatprep.subr.mxu0 0.0
        %v6885 = vand.u32 %v335, 4294901760
        %v6886 = vsub.f32 %v335, %v6885
        %v6887 = vand.u32 %v6886, 4294901760
        %v6888 = vsub.f32 %v6886, %v6887
        %v6889 = vand.u32 %v6888, 4294901760
        %6890 = vmatpush1.msra.mxu0 %v6889
        %6891 = vmatprep.subr.mxu0 0.0
        %v6892 = vand.u32 %v336, 4294901760
        %v6893 = vsub.f32 %v336, %v6892
        %v6894 = vand.u32 %v6893, 4294901760
        %v6895 = vsub.f32 %v6893, %v6894
        %v6896 = vand.u32 %v6895, 4294901760
        %6897 = vmatpush1.msra.mxu0 %v6896
        %6898 = vmatprep.subr.mxu0 0.0
        %6899 = vmatpush1.msra.mxu0 0.0
        %6900 = vmatprep.subr.mxu0 0.0
        %6901 = vmatpush1.msra.mxu0 0.0
        %6902 = vmatprep.subr.mxu0 0.0
        %6903 = vmatpush1.msra.mxu0 0.0
        %6904 = vmatprep.subr.mxu0 0.0
        %6905 = vmatpush1.msra.mxu0 0.0
        %6906 = vmatprep.subr.mxu0 0.0
        %6907 = vmatpush1.msra.mxu0 0.0
        %6908 = vmatprep.subr.mxu0 0.0
        %6909 = vmatpush1.msra.mxu0 0.0
        %6910 = vmatprep.subr.mxu0 0.0
        %6911 = vmatpush1.msra.mxu0 0.0
        %6912 = vmatprep.subr.mxu0 0.0
        %6913 = vmatpush1.msra.mxu0 0.0
        %6914 = vmatprep.subr.mxu0 0.0
        %6915 = vmatpush1.msra.mxu0 0.0
        %6916 = vmatprep.subr.mxu0 0.0
        %6917 = vmatpush1.msra.mxu0 0.0
        %6918 = vmatprep.subr.mxu0 0.0
        %6919 = vmatpush1.msra.mxu0 0.0
        %6920 = vmatprep.subr.mxu0 0.0
        %6921 = vmatpush1.msra.mxu0 0.0
        %6922 = vmatprep.subr.mxu0 0.0
        %6923 = vmatpush1.msra.mxu0 0.0
        %6924 = vmatprep.subr.mxu0 0.0
        %6925 = vmatpush1.msra.mxu0 0.0
        %6926 = vmatprep.subr.mxu0 0.0
        %6927 = vmatpush1.msra.mxu0 0.0
        %6928 = vmatprep.subr.mxu0 0.0
        %6929 = vmatpush1.msra.mxu0 0.0
        %6930 = vmatprep.subr.mxu0 0.0
        %6931 = vmatpush1.msra.mxu0 0.0
        %6932 = vmatprep.subr.mxu0 0.0
        %6933 = vmatpush1.msra.mxu0 0.0
        %6934 = vmatprep.subr.mxu0 0.0
        %6935 = vmatpush1.msra.mxu0 0.0
        %6936 = vmatprep.subr.mxu0 0.0
        %6937 = vmatpush1.msra.mxu0 0.0
        %6938 = vmatprep.subr.mxu0 0.0
        %6939 = vmatpush1.msra.mxu0 0.0
        %6940 = vmatprep.subr.mxu0 0.0
        %6941 = vmatpush1.msra.mxu0 0.0
        %6942 = vmatprep.subr.mxu0 0.0
        %6943 = vmatpush1.msra.mxu0 0.0
        %6944 = vmatprep.subr.mxu0 0.0
        %6945 = vmatpush1.msra.mxu0 0.0
        %6946 = vmatprep.subr.mxu0 0.0
        %6947 = vmatpush1.msra.mxu0 0.0
        %6948 = vmatprep.subr.mxu0 0.0
        %6949 = vmatpush1.msra.mxu0 0.0
        %6950 = vmatprep.subr.mxu0 0.0
        %6951 = vmatpush1.msra.mxu0 0.0
        %6952 = vmatprep.subr.mxu0 0.0
        %6953 = vmatpush1.msra.mxu0 0.0
        %6954 = vmatprep.subr.mxu0 0.0
        %6955 = vmatpush1.msra.mxu0 0.0
        %6956 = vmatprep.subr.mxu0 0.0
        %6957 = vmatpush1.msra.mxu0 0.0
        %6958 = vmatprep.mubr.f32.mxu0 0.0
        %v6959 = vand.u32 %v5887, 4294901760
        %6960 = vmatmul.mubr.f32.gmra.mrb[0].mxu0 %v6959
        %v6961 = vpop.f32.mrb[0].mxu0
        %v6962 = vadd.f32 %v6881, %v6961
        %v6963 = vpop.f32.mrb[0].mxu0
        %6964 = vdwg.mxu0
        %6965 = vmatprep.subr.mxu0 0.0
        %v6966 = vand.u32 %v335, 4294901760
        %v6967 = vsub.f32 %v335, %v6966
        %6968 = vmatpush1.msra.mxu0 %v6967
        %6969 = vmatprep.subr.mxu0 0.0
        %v6970 = vand.u32 %v336, 4294901760
        %v6971 = vsub.f32 %v336, %v6970
        %6972 = vmatpush1.msra.mxu0 %v6971
        %6973 = vmatprep.subr.mxu0 0.0
        %6974 = vmatpush1.msra.mxu0 0.0
        %6975 = vmatprep.subr.mxu0 0.0
        %6976 = vmatpush1.msra.mxu0 0.0
        %6977 = vmatprep.subr.mxu0 0.0
        %6978 = vmatpush1.msra.mxu0 0.0
        %6979 = vmatprep.subr.mxu0 0.0
        %6980 = vmatpush1.msra.mxu0 0.0
        %6981 = vmatprep.subr.mxu0 0.0
        %6982 = vmatpush1.msra.mxu0 0.0
        %6983 = vmatprep.subr.mxu0 0.0
        %6984 = vmatpush1.msra.mxu0 0.0
        %6985 = vmatprep.subr.mxu0 0.0
        %6986 = vmatpush1.msra.mxu0 0.0
        %6987 = vmatprep.subr.mxu0 0.0
        %6988 = vmatpush1.msra.mxu0 0.0
        %6989 = vmatprep.subr.mxu0 0.0
        %6990 = vmatpush1.msra.mxu0 0.0
        %6991 = vmatprep.subr.mxu0 0.0
        %6992 = vmatpush1.msra.mxu0 0.0
        %6993 = vmatprep.subr.mxu0 0.0
        %6994 = vmatpush1.msra.mxu0 0.0
        %6995 = vmatprep.subr.mxu0 0.0
        %6996 = vmatpush1.msra.mxu0 0.0
        %6997 = vmatprep.subr.mxu0 0.0
        %6998 = vmatpush1.msra.mxu0 0.0
        %6999 = vmatprep.subr.mxu0 0.0
        %7000 = vmatpush1.msra.mxu0 0.0
        %7001 = vmatprep.subr.mxu0 0.0
        %7002 = vmatpush1.msra.mxu0 0.0
        %7003 = vmatprep.subr.mxu0 0.0
        %7004 = vmatpush1.msra.mxu0 0.0
        %7005 = vmatprep.subr.mxu0 0.0
        %7006 = vmatpush1.msra.mxu0 0.0
        %7007 = vmatprep.subr.mxu0 0.0
        %7008 = vmatpush1.msra.mxu0 0.0
        %7009 = vmatprep.subr.mxu0 0.0
        %7010 = vmatpush1.msra.mxu0 0.0
        %7011 = vmatprep.subr.mxu0 0.0
        %7012 = vmatpush1.msra.mxu0 0.0
        %7013 = vmatprep.subr.mxu0 0.0
        %7014 = vmatpush1.msra.mxu0 0.0
        %7015 = vmatprep.subr.mxu0 0.0
        %7016 = vmatpush1.msra.mxu0 0.0
        %7017 = vmatprep.subr.mxu0 0.0
        %7018 = vmatpush1.msra.mxu0 0.0
        %7019 = vmatprep.subr.mxu0 0.0
        %7020 = vmatpush1.msra.mxu0 0.0
        %7021 = vmatprep.subr.mxu0 0.0
        %7022 = vmatpush1.msra.mxu0 0.0
        %7023 = vmatprep.subr.mxu0 0.0
        %7024 = vmatpush1.msra.mxu0 0.0
        %7025 = vmatprep.subr.mxu0 0.0
        %7026 = vmatpush1.msra.mxu0 0.0
        %7027 = vmatprep.subr.mxu0 0.0
        %7028 = vmatpush1.msra.mxu0 0.0
        %7029 = vmatprep.subr.mxu0 0.0
        %7030 = vmatpush1.msra.mxu0 0.0
        %7031 = vmatprep.subr.mxu0 0.0
        %7032 = vmatpush1.msra.mxu0 0.0
        %7033 = vmatprep.mubr.f32.mxu0 0.0
        %v7034 = vand.u32 %v5887, 4294901760
        %v7035 = vsub.f32 %v5887, %v7034
        %7036 = vmatmul.mubr.f32.gmra.mrb[0].mxu0 %v7035
        %v7037 = vpop.f32.mrb[0].mxu0
        %v7038 = vadd.f32 %v6962, %v7037
        %v7039 = vpop.f32.mrb[0].mxu0
        %7040 = vdwg.mxu0
        %7041 = vmatprep.subr.mxu0 0.0
        %v7042 = vand.u32 %v335, 4294901760
        %7043 = vmatpush1.msra.mxu0 %v7042
        %7044 = vmatprep.subr.mxu0 0.0
        %v7045 = vand.u32 %v336, 4294901760
        %7046 = vmatpush1.msra.mxu0 %v7045
        %7047 = vmatprep.subr.mxu0 0.0
        %7048 = vmatpush1.msra.mxu0 0.0
        %7049 = vmatprep.subr.mxu0 0.0
        %7050 = vmatpush1.msra.mxu0 0.0
        %7051 = vmatprep.subr.mxu0 0.0
        %7052 = vmatpush1.msra.mxu0 0.0
        %7053 = vmatprep.subr.mxu0 0.0
        %7054 = vmatpush1.msra.mxu0 0.0
        %7055 = vmatprep.subr.mxu0 0.0
        %7056 = vmatpush1.msra.mxu0 0.0
        %7057 = vmatprep.subr.mxu0 0.0
        %7058 = vmatpush1.msra.mxu0 0.0
        %7059 = vmatprep.subr.mxu0 0.0
        %7060 = vmatpush1.msra.mxu0 0.0
        %7061 = vmatprep.subr.mxu0 0.0
        %7062 = vmatpush1.msra.mxu0 0.0
        %7063 = vmatprep.subr.mxu0 0.0
        %7064 = vmatpush1.msra.mxu0 0.0
        %7065 = vmatprep.subr.mxu0 0.0
        %7066 = vmatpush1.msra.mxu0 0.0
        %7067 = vmatprep.subr.mxu0 0.0
        %7068 = vmatpush1.msra.mxu0 0.0
        %7069 = vmatprep.subr.mxu0 0.0
        %7070 = vmatpush1.msra.mxu0 0.0
        %7071 = vmatprep.subr.mxu0 0.0
        %7072 = vmatpush1.msra.mxu0 0.0
        %7073 = vmatprep.subr.mxu0 0.0
        %7074 = vmatpush1.msra.mxu0 0.0
        %7075 = vmatprep.subr.mxu0 0.0
        %7076 = vmatpush1.msra.mxu0 0.0
        %7077 = vmatprep.subr.mxu0 0.0
        %7078 = vmatpush1.msra.mxu0 0.0
        %7079 = vmatprep.subr.mxu0 0.0
        %7080 = vmatpush1.msra.mxu0 0.0
        %7081 = vmatprep.subr.mxu0 0.0
        %7082 = vmatpush1.msra.mxu0 0.0
        %7083 = vmatprep.subr.mxu0 0.0
        %7084 = vmatpush1.msra.mxu0 0.0
        %7085 = vmatprep.subr.mxu0 0.0
        %7086 = vmatpush1.msra.mxu0 0.0
        %7087 = vmatprep.subr.mxu0 0.0
        %7088 = vmatpush1.msra.mxu0 0.0
        %7089 = vmatprep.subr.mxu0 0.0
        %7090 = vmatpush1.msra.mxu0 0.0
        %7091 = vmatprep.subr.mxu0 0.0
        %7092 = vmatpush1.msra.mxu0 0.0
        %7093 = vmatprep.subr.mxu0 0.0
        %7094 = vmatpush1.msra.mxu0 0.0
        %7095 = vmatprep.subr.mxu0 0.0
        %7096 = vmatpush1.msra.mxu0 0.0
        %7097 = vmatprep.subr.mxu0 0.0
        %7098 = vmatpush1.msra.mxu0 0.0
        %7099 = vmatprep.subr.mxu0 0.0
        %7100 = vmatpush1.msra.mxu0 0.0
        %7101 = vmatprep.subr.mxu0 0.0
        %7102 = vmatpush1.msra.mxu0 0.0
        %7103 = vmatprep.subr.mxu0 0.0
        %7104 = vmatpush1.msra.mxu0 0.0
        %7105 = vmatprep.subr.mxu0 0.0
        %7106 = vmatpush1.msra.mxu0 0.0
        %7107 = vmatprep.mubr.f32.mxu0 0.0
        %v7108 = vand.u32 %v5887, 4294901760
        %v7109 = vsub.f32 %v5887, %v7108
        %v7110 = vand.u32 %v7109, 4294901760
        %7111 = vmatmul.mubr.f32.gmra.mrb[0].mxu0 %v7110
        %v7112 = vpop.f32.mrb[0].mxu0
        %v7113 = vadd.f32 %v7038, %v7112
        %v7114 = vpop.f32.mrb[0].mxu0
        %7115 = vdwg.mxu0
        %7116 = vmatprep.subr.mxu0 0.0
        %v7117 = vand.u32 %v335, 4294901760
        %v7118 = vsub.f32 %v335, %v7117
        %v7119 = vand.u32 %v7118, 4294901760
        %7120 = vmatpush1.msra.mxu0 %v7119
        %7121 = vmatprep.subr.mxu0 0.0
        %v7122 = vand.u32 %v336, 4294901760
        %v7123 = vsub.f32 %v336, %v7122
        %v7124 = vand.u32 %v7123, 4294901760
        %7125 = vmatpush1.msra.mxu0 %v7124
        %7126 = vmatprep.subr.mxu0 0.0
        %7127 = vmatpush1.msra.mxu0 0.0
        %7128 = vmatprep.subr.mxu0 0.0
        %7129 = vmatpush1.msra.mxu0 0.0
        %7130 = vmatprep.subr.mxu0 0.0
        %7131 = vmatpush1.msra.mxu0 0.0
        %7132 = vmatprep.subr.mxu0 0.0
        %7133 = vmatpush1.msra.mxu0 0.0
        %7134 = vmatprep.subr.mxu0 0.0
        %7135 = vmatpush1.msra.mxu0 0.0
        %7136 = vmatprep.subr.mxu0 0.0
        %7137 = vmatpush1.msra.mxu0 0.0
        %7138 = vmatprep.subr.mxu0 0.0
        %7139 = vmatpush1.msra.mxu0 0.0
        %7140 = vmatprep.subr.mxu0 0.0
        %7141 = vmatpush1.msra.mxu0 0.0
        %7142 = vmatprep.subr.mxu0 0.0
        %7143 = vmatpush1.msra.mxu0 0.0
        %7144 = vmatprep.subr.mxu0 0.0
        %7145 = vmatpush1.msra.mxu0 0.0
        %7146 = vmatprep.subr.mxu0 0.0
        %7147 = vmatpush1.msra.mxu0 0.0
        %7148 = vmatprep.subr.mxu0 0.0
        %7149 = vmatpush1.msra.mxu0 0.0
        %7150 = vmatprep.subr.mxu0 0.0
        %7151 = vmatpush1.msra.mxu0 0.0
        %7152 = vmatprep.subr.mxu0 0.0
        %7153 = vmatpush1.msra.mxu0 0.0
        %7154 = vmatprep.subr.mxu0 0.0
        %7155 = vmatpush1.msra.mxu0 0.0
        %7156 = vmatprep.subr.mxu0 0.0
        %7157 = vmatpush1.msra.mxu0 0.0
        %7158 = vmatprep.subr.mxu0 0.0
        %7159 = vmatpush1.msra.mxu0 0.0
        %7160 = vmatprep.subr.mxu0 0.0
        %7161 = vmatpush1.msra.mxu0 0.0
        %7162 = vmatprep.subr.mxu0 0.0
        %7163 = vmatpush1.msra.mxu0 0.0
        %7164 = vmatprep.subr.mxu0 0.0
        %7165 = vmatpush1.msra.mxu0 0.0
        %7166 = vmatprep.subr.mxu0 0.0
        %7167 = vmatpush1.msra.mxu0 0.0
        %7168 = vmatprep.subr.mxu0 0.0
        %7169 = vmatpush1.msra.mxu0 0.0
        %7170 = vmatprep.subr.mxu0 0.0
        %7171 = vmatpush1.msra.mxu0 0.0
        %7172 = vmatprep.subr.mxu0 0.0
        %7173 = vmatpush1.msra.mxu0 0.0
        %7174 = vmatprep.subr.mxu0 0.0
        %7175 = vmatpush1.msra.mxu0 0.0
        %7176 = vmatprep.subr.mxu0 0.0
        %7177 = vmatpush1.msra.mxu0 0.0
        %7178 = vmatprep.subr.mxu0 0.0
        %7179 = vmatpush1.msra.mxu0 0.0
        %7180 = vmatprep.subr.mxu0 0.0
        %7181 = vmatpush1.msra.mxu0 0.0
        %7182 = vmatprep.subr.mxu0 0.0
        %7183 = vmatpush1.msra.mxu0 0.0
        %7184 = vmatprep.subr.mxu0 0.0
        %7185 = vmatpush1.msra.mxu0 0.0
        %7186 = vmatprep.mubr.f32.mxu0 0.0
        %v7187 = vand.u32 %v5887, 4294901760
        %7188 = vmatmul.mubr.f32.gmra.mrb[0].mxu0 %v7187
        %v7189 = vpop.f32.mrb[0].mxu0
        %v7190 = vadd.f32 %v7113, %v7189
        %v7191 = vpop.f32.mrb[0].mxu0
        %7192 = vdwg.mxu0
        %7193 = vmatprep.subr.mxu0 0.0
        %v7194 = vand.u32 %v335, 4294901760
        %7195 = vmatpush1.msra.mxu0 %v7194
        %7196 = vmatprep.subr.mxu0 0.0
        %v7197 = vand.u32 %v336, 4294901760
        %7198 = vmatpush1.msra.mxu0 %v7197
        %7199 = vmatprep.subr.mxu0 0.0
        %7200 = vmatpush1.msra.mxu0 0.0
        %7201 = vmatprep.subr.mxu0 0.0
        %7202 = vmatpush1.msra.mxu0 0.0
        %7203 = vmatprep.subr.mxu0 0.0
        %7204 = vmatpush1.msra.mxu0 0.0
        %7205 = vmatprep.subr.mxu0 0.0
        %7206 = vmatpush1.msra.mxu0 0.0
        %7207 = vmatprep.subr.mxu0 0.0
        %7208 = vmatpush1.msra.mxu0 0.0
        %7209 = vmatprep.subr.mxu0 0.0
        %7210 = vmatpush1.msra.mxu0 0.0
        %7211 = vmatprep.subr.mxu0 0.0
        %7212 = vmatpush1.msra.mxu0 0.0
        %7213 = vmatprep.subr.mxu0 0.0
        %7214 = vmatpush1.msra.mxu0 0.0
        %7215 = vmatprep.subr.mxu0 0.0
        %7216 = vmatpush1.msra.mxu0 0.0
        %7217 = vmatprep.subr.mxu0 0.0
        %7218 = vmatpush1.msra.mxu0 0.0
        %7219 = vmatprep.subr.mxu0 0.0
        %7220 = vmatpush1.msra.mxu0 0.0
        %7221 = vmatprep.subr.mxu0 0.0
        %7222 = vmatpush1.msra.mxu0 0.0
        %7223 = vmatprep.subr.mxu0 0.0
        %7224 = vmatpush1.msra.mxu0 0.0
        %7225 = vmatprep.subr.mxu0 0.0
        %7226 = vmatpush1.msra.mxu0 0.0
        %7227 = vmatprep.subr.mxu0 0.0
        %7228 = vmatpush1.msra.mxu0 0.0
        %7229 = vmatprep.subr.mxu0 0.0
        %7230 = vmatpush1.msra.mxu0 0.0
        %7231 = vmatprep.subr.mxu0 0.0
        %7232 = vmatpush1.msra.mxu0 0.0
        %7233 = vmatprep.subr.mxu0 0.0
        %7234 = vmatpush1.msra.mxu0 0.0
        %7235 = vmatprep.subr.mxu0 0.0
        %7236 = vmatpush1.msra.mxu0 0.0
        %7237 = vmatprep.subr.mxu0 0.0
        %7238 = vmatpush1.msra.mxu0 0.0
        %7239 = vmatprep.subr.mxu0 0.0
        %7240 = vmatpush1.msra.mxu0 0.0
        %7241 = vmatprep.subr.mxu0 0.0
        %7242 = vmatpush1.msra.mxu0 0.0
        %7243 = vmatprep.subr.mxu0 0.0
        %7244 = vmatpush1.msra.mxu0 0.0
        %7245 = vmatprep.subr.mxu0 0.0
        %7246 = vmatpush1.msra.mxu0 0.0
        %7247 = vmatprep.subr.mxu0 0.0
        %7248 = vmatpush1.msra.mxu0 0.0
        %7249 = vmatprep.subr.mxu0 0.0
        %7250 = vmatpush1.msra.mxu0 0.0
        %7251 = vmatprep.subr.mxu0 0.0
        %7252 = vmatpush1.msra.mxu0 0.0
        %7253 = vmatprep.subr.mxu0 0.0
        %7254 = vmatpush1.msra.mxu0 0.0
        %7255 = vmatprep.subr.mxu0 0.0
        %7256 = vmatpush1.msra.mxu0 0.0
        %7257 = vmatprep.subr.mxu0 0.0
        %7258 = vmatpush1.msra.mxu0 0.0
        %7259 = vmatprep.mubr.f32.mxu0 0.0
        %v7260 = vand.u32 %v5887, 4294901760
        %7261 = vmatmul.mubr.f32.gmra.mrb[0].mxu0 %v7260
        %v7262 = vpop.f32.mrb[0].mxu0
        %v7263 = vadd.f32 %v7190, %v7262
        %v7264 = vpop.f32.mrb[0].mxu0
        %7265 = vdwg.mxu0
        %7266 = vmatprep.subr.mxu0 0.0
        %v7267 = vand.u32 %v337, 4294901760
        %7268 = vmatpush1.msra.mxu0 %v7267
        %7269 = vmatprep.subr.mxu0 0.0
        %v7270 = vand.u32 %v338, 4294901760
        %7271 = vmatpush1.msra.mxu0 %v7270
        %7272 = vmatprep.subr.mxu0 0.0
        %7273 = vmatpush1.msra.mxu0 0.0
        %7274 = vmatprep.subr.mxu0 0.0
        %7275 = vmatpush1.msra.mxu0 0.0
        %7276 = vmatprep.subr.mxu0 0.0
        %7277 = vmatpush1.msra.mxu0 0.0
        %7278 = vmatprep.subr.mxu0 0.0
        %7279 = vmatpush1.msra.mxu0 0.0
        %7280 = vmatprep.subr.mxu0 0.0
        %7281 = vmatpush1.msra.mxu0 0.0
        %7282 = vmatprep.subr.mxu0 0.0
        %7283 = vmatpush1.msra.mxu0 0.0
        %7284 = vmatprep.subr.mxu0 0.0
        %7285 = vmatpush1.msra.mxu0 0.0
        %7286 = vmatprep.subr.mxu0 0.0
        %7287 = vmatpush1.msra.mxu0 0.0
        %7288 = vmatprep.subr.mxu0 0.0
        %7289 = vmatpush1.msra.mxu0 0.0
        %7290 = vmatprep.subr.mxu0 0.0
        %7291 = vmatpush1.msra.mxu0 0.0
        %7292 = vmatprep.subr.mxu0 0.0
        %7293 = vmatpush1.msra.mxu0 0.0
        %7294 = vmatprep.subr.mxu0 0.0
        %7295 = vmatpush1.msra.mxu0 0.0
        %7296 = vmatprep.subr.mxu0 0.0
        %7297 = vmatpush1.msra.mxu0 0.0
        %7298 = vmatprep.subr.mxu0 0.0
        %7299 = vmatpush1.msra.mxu0 0.0
        %7300 = vmatprep.subr.mxu0 0.0
        %7301 = vmatpush1.msra.mxu0 0.0
        %7302 = vmatprep.subr.mxu0 0.0
        %7303 = vmatpush1.msra.mxu0 0.0
        %7304 = vmatprep.subr.mxu0 0.0
        %7305 = vmatpush1.msra.mxu0 0.0
        %7306 = vmatprep.subr.mxu0 0.0
        %7307 = vmatpush1.msra.mxu0 0.0
        %7308 = vmatprep.subr.mxu0 0.0
        %7309 = vmatpush1.msra.mxu0 0.0
        %7310 = vmatprep.subr.mxu0 0.0
        %7311 = vmatpush1.msra.mxu0 0.0
        %7312 = vmatprep.subr.mxu0 0.0
        %7313 = vmatpush1.msra.mxu0 0.0
        %7314 = vmatprep.subr.mxu0 0.0
        %7315 = vmatpush1.msra.mxu0 0.0
        %7316 = vmatprep.subr.mxu0 0.0
        %7317 = vmatpush1.msra.mxu0 0.0
        %7318 = vmatprep.subr.mxu0 0.0
        %7319 = vmatpush1.msra.mxu0 0.0
        %7320 = vmatprep.subr.mxu0 0.0
        %7321 = vmatpush1.msra.mxu0 0.0
        %7322 = vmatprep.subr.mxu0 0.0
        %7323 = vmatpush1.msra.mxu0 0.0
        %7324 = vmatprep.subr.mxu0 0.0
        %7325 = vmatpush1.msra.mxu0 0.0
        %7326 = vmatprep.subr.mxu0 0.0
        %7327 = vmatpush1.msra.mxu0 0.0
        %7328 = vmatprep.subr.mxu0 0.0
        %7329 = vmatpush1.msra.mxu0 0.0
        %7330 = vmatprep.subr.mxu0 0.0
        %7331 = vmatpush1.msra.mxu0 0.0
        %7332 = vmatprep.mubr.f32.mxu0 0.0
        %v7333 = vand.u32 %v5887, 4294901760
        %v7334 = vsub.f32 %v5887, %v7333
        %v7335 = vand.u32 %v7334, 4294901760
        %v7336 = vsub.f32 %v7334, %v7335
        %v7337 = vand.u32 %v7336, 4294901760
        %7338 = vmatmul.mubr.f32.gmra.mrb[0].mxu0 %v7337
        %v7339 = vpop.f32.mrb[0].mxu0
        %v7340 = vadd.f32 0.0, %v7339
        %v7341 = vpop.f32.mrb[0].mxu0
        %7342 = vdwg.mxu0
        %7343 = vmatprep.subr.mxu0 0.0
        %v7344 = vand.u32 %v337, 4294901760
        %v7345 = vsub.f32 %v337, %v7344
        %v7346 = vand.u32 %v7345, 4294901760
        %v7347 = vsub.f32 %v7345, %v7346
        %v7348 = vand.u32 %v7347, 4294901760
        %7349 = vmatpush1.msra.mxu0 %v7348
        %7350 = vmatprep.subr.mxu0 0.0
        %v7351 = vand.u32 %v338, 4294901760
        %v7352 = vsub.f32 %v338, %v7351
        %v7353 = vand.u32 %v7352, 4294901760
        %v7354 = vsub.f32 %v7352, %v7353
        %v7355 = vand.u32 %v7354, 4294901760
        %7356 = vmatpush1.msra.mxu0 %v7355
        %7357 = vmatprep.subr.mxu0 0.0
        %7358 = vmatpush1.msra.mxu0 0.0
        %7359 = vmatprep.subr.mxu0 0.0
        %7360 = vmatpush1.msra.mxu0 0.0
        %7361 = vmatprep.subr.mxu0 0.0
        %7362 = vmatpush1.msra.mxu0 0.0
        %7363 = vmatprep.subr.mxu0 0.0
        %7364 = vmatpush1.msra.mxu0 0.0
        %7365 = vmatprep.subr.mxu0 0.0
        %7366 = vmatpush1.msra.mxu0 0.0
        %7367 = vmatprep.subr.mxu0 0.0
        %7368 = vmatpush1.msra.mxu0 0.0
        %7369 = vmatprep.subr.mxu0 0.0
        %7370 = vmatpush1.msra.mxu0 0.0
        %7371 = vmatprep.subr.mxu0 0.0
        %7372 = vmatpush1.msra.mxu0 0.0
        %7373 = vmatprep.subr.mxu0 0.0
        %7374 = vmatpush1.msra.mxu0 0.0
        %7375 = vmatprep.subr.mxu0 0.0
        %7376 = vmatpush1.msra.mxu0 0.0
        %7377 = vmatprep.subr.mxu0 0.0
        %7378 = vmatpush1.msra.mxu0 0.0
        %7379 = vmatprep.subr.mxu0 0.0
        %7380 = vmatpush1.msra.mxu0 0.0
        %7381 = vmatprep.subr.mxu0 0.0
        %7382 = vmatpush1.msra.mxu0 0.0
        %7383 = vmatprep.subr.mxu0 0.0
        %7384 = vmatpush1.msra.mxu0 0.0
        %7385 = vmatprep.subr.mxu0 0.0
        %7386 = vmatpush1.msra.mxu0 0.0
        %7387 = vmatprep.subr.mxu0 0.0
        %7388 = vmatpush1.msra.mxu0 0.0
        %7389 = vmatprep.subr.mxu0 0.0
        %7390 = vmatpush1.msra.mxu0 0.0
        %7391 = vmatprep.subr.mxu0 0.0
        %7392 = vmatpush1.msra.mxu0 0.0
        %7393 = vmatprep.subr.mxu0 0.0
        %7394 = vmatpush1.msra.mxu0 0.0
        %7395 = vmatprep.subr.mxu0 0.0
        %7396 = vmatpush1.msra.mxu0 0.0
        %7397 = vmatprep.subr.mxu0 0.0
        %7398 = vmatpush1.msra.mxu0 0.0
        %7399 = vmatprep.subr.mxu0 0.0
        %7400 = vmatpush1.msra.mxu0 0.0
        %7401 = vmatprep.subr.mxu0 0.0
        %7402 = vmatpush1.msra.mxu0 0.0
        %7403 = vmatprep.subr.mxu0 0.0
        %7404 = vmatpush1.msra.mxu0 0.0
        %7405 = vmatprep.subr.mxu0 0.0
        %7406 = vmatpush1.msra.mxu0 0.0
        %7407 = vmatprep.subr.mxu0 0.0
        %7408 = vmatpush1.msra.mxu0 0.0
        %7409 = vmatprep.subr.mxu0 0.0
        %7410 = vmatpush1.msra.mxu0 0.0
        %7411 = vmatprep.subr.mxu0 0.0
        %7412 = vmatpush1.msra.mxu0 0.0
        %7413 = vmatprep.subr.mxu0 0.0
        %7414 = vmatpush1.msra.mxu0 0.0
        %7415 = vmatprep.subr.mxu0 0.0
        %7416 = vmatpush1.msra.mxu0 0.0
        %7417 = vmatprep.mubr.f32.mxu0 0.0
        %v7418 = vand.u32 %v5887, 4294901760
        %7419 = vmatmul.mubr.f32.gmra.mrb[0].mxu0 %v7418
        %v7420 = vpop.f32.mrb[0].mxu0
        %v7421 = vadd.f32 %v7340, %v7420
        %v7422 = vpop.f32.mrb[0].mxu0
        %7423 = vdwg.mxu0
        %7424 = vmatprep.subr.mxu0 0.0
        %v7425 = vand.u32 %v337, 4294901760
        %v7426 = vsub.f32 %v337, %v7425
        %7427 = vmatpush1.msra.mxu0 %v7426
        %7428 = vmatprep.subr.mxu0 0.0
        %v7429 = vand.u32 %v338, 4294901760
        %v7430 = vsub.f32 %v338, %v7429
        %7431 = vmatpush1.msra.mxu0 %v7430
        %7432 = vmatprep.subr.mxu0 0.0
        %7433 = vmatpush1.msra.mxu0 0.0
        %7434 = vmatprep.subr.mxu0 0.0
        %7435 = vmatpush1.msra.mxu0 0.0
        %7436 = vmatprep.subr.mxu0 0.0
        %7437 = vmatpush1.msra.mxu0 0.0
        %7438 = vmatprep.subr.mxu0 0.0
        %7439 = vmatpush1.msra.mxu0 0.0
        %7440 = vmatprep.subr.mxu0 0.0
        %7441 = vmatpush1.msra.mxu0 0.0
        %7442 = vmatprep.subr.mxu0 0.0
        %7443 = vmatpush1.msra.mxu0 0.0
        %7444 = vmatprep.subr.mxu0 0.0
        %7445 = vmatpush1.msra.mxu0 0.0
        %7446 = vmatprep.subr.mxu0 0.0
        %7447 = vmatpush1.msra.mxu0 0.0
        %7448 = vmatprep.subr.mxu0 0.0
        %7449 = vmatpush1.msra.mxu0 0.0
        %7450 = vmatprep.subr.mxu0 0.0
        %7451 = vmatpush1.msra.mxu0 0.0
        %7452 = vmatprep.subr.mxu0 0.0
        %7453 = vmatpush1.msra.mxu0 0.0
        %7454 = vmatprep.subr.mxu0 0.0
        %7455 = vmatpush1.msra.mxu0 0.0
        %7456 = vmatprep.subr.mxu0 0.0
        %7457 = vmatpush1.msra.mxu0 0.0
        %7458 = vmatprep.subr.mxu0 0.0
        %7459 = vmatpush1.msra.mxu0 0.0
        %7460 = vmatprep.subr.mxu0 0.0
        %7461 = vmatpush1.msra.mxu0 0.0
        %7462 = vmatprep.subr.mxu0 0.0
        %7463 = vmatpush1.msra.mxu0 0.0
        %7464 = vmatprep.subr.mxu0 0.0
        %7465 = vmatpush1.msra.mxu0 0.0
        %7466 = vmatprep.subr.mxu0 0.0
        %7467 = vmatpush1.msra.mxu0 0.0
        %7468 = vmatprep.subr.mxu0 0.0
        %7469 = vmatpush1.msra.mxu0 0.0
        %7470 = vmatprep.subr.mxu0 0.0
        %7471 = vmatpush1.msra.mxu0 0.0
        %7472 = vmatprep.subr.mxu0 0.0
        %7473 = vmatpush1.msra.mxu0 0.0
        %7474 = vmatprep.subr.mxu0 0.0
        %7475 = vmatpush1.msra.mxu0 0.0
        %7476 = vmatprep.subr.mxu0 0.0
        %7477 = vmatpush1.msra.mxu0 0.0
        %7478 = vmatprep.subr.mxu0 0.0
        %7479 = vmatpush1.msra.mxu0 0.0
        %7480 = vmatprep.subr.mxu0 0.0
        %7481 = vmatpush1.msra.mxu0 0.0
        %7482 = vmatprep.subr.mxu0 0.0
        %7483 = vmatpush1.msra.mxu0 0.0
        %7484 = vmatprep.subr.mxu0 0.0
        %7485 = vmatpush1.msra.mxu0 0.0
        %7486 = vmatprep.subr.mxu0 0.0
        %7487 = vmatpush1.msra.mxu0 0.0
        %7488 = vmatprep.subr.mxu0 0.0
        %7489 = vmatpush1.msra.mxu0 0.0
        %7490 = vmatprep.subr.mxu0 0.0
        %7491 = vmatpush1.msra.mxu0 0.0
        %7492 = vmatprep.mubr.f32.mxu0 0.0
        %v7493 = vand.u32 %v5887, 4294901760
        %v7494 = vsub.f32 %v5887, %v7493
        %7495 = vmatmul.mubr.f32.gmra.mrb[0].mxu0 %v7494
        %v7496 = vpop.f32.mrb[0].mxu0
        %v7497 = vadd.f32 %v7421, %v7496
        %v7498 = vpop.f32.mrb[0].mxu0
        %7499 = vdwg.mxu0
        %7500 = vmatprep.subr.mxu0 0.0
        %v7501 = vand.u32 %v337, 4294901760
        %7502 = vmatpush1.msra.mxu0 %v7501
        %7503 = vmatprep.subr.mxu0 0.0
        %v7504 = vand.u32 %v338, 4294901760
        %7505 = vmatpush1.msra.mxu0 %v7504
        %7506 = vmatprep.subr.mxu0 0.0
        %7507 = vmatpush1.msra.mxu0 0.0
        %7508 = vmatprep.subr.mxu0 0.0
        %7509 = vmatpush1.msra.mxu0 0.0
        %7510 = vmatprep.subr.mxu0 0.0
        %7511 = vmatpush1.msra.mxu0 0.0
        %7512 = vmatprep.subr.mxu0 0.0
        %7513 = vmatpush1.msra.mxu0 0.0
        %7514 = vmatprep.subr.mxu0 0.0
        %7515 = vmatpush1.msra.mxu0 0.0
        %7516 = vmatprep.subr.mxu0 0.0
        %7517 = vmatpush1.msra.mxu0 0.0
        %7518 = vmatprep.subr.mxu0 0.0
        %7519 = vmatpush1.msra.mxu0 0.0
        %7520 = vmatprep.subr.mxu0 0.0
        %7521 = vmatpush1.msra.mxu0 0.0
        %7522 = vmatprep.subr.mxu0 0.0
        %7523 = vmatpush1.msra.mxu0 0.0
        %7524 = vmatprep.subr.mxu0 0.0
        %7525 = vmatpush1.msra.mxu0 0.0
        %7526 = vmatprep.subr.mxu0 0.0
        %7527 = vmatpush1.msra.mxu0 0.0
        %7528 = vmatprep.subr.mxu0 0.0
        %7529 = vmatpush1.msra.mxu0 0.0
        %7530 = vmatprep.subr.mxu0 0.0
        %7531 = vmatpush1.msra.mxu0 0.0
        %7532 = vmatprep.subr.mxu0 0.0
        %7533 = vmatpush1.msra.mxu0 0.0
        %7534 = vmatprep.subr.mxu0 0.0
        %7535 = vmatpush1.msra.mxu0 0.0
        %7536 = vmatprep.subr.mxu0 0.0
        %7537 = vmatpush1.msra.mxu0 0.0
        %7538 = vmatprep.subr.mxu0 0.0
        %7539 = vmatpush1.msra.mxu0 0.0
        %7540 = vmatprep.subr.mxu0 0.0
        %7541 = vmatpush1.msra.mxu0 0.0
        %7542 = vmatprep.subr.mxu0 0.0
        %7543 = vmatpush1.msra.mxu0 0.0
        %7544 = vmatprep.subr.mxu0 0.0
        %7545 = vmatpush1.msra.mxu0 0.0
        %7546 = vmatprep.subr.mxu0 0.0
        %7547 = vmatpush1.msra.mxu0 0.0
        %7548 = vmatprep.subr.mxu0 0.0
        %7549 = vmatpush1.msra.mxu0 0.0
        %7550 = vmatprep.subr.mxu0 0.0
        %7551 = vmatpush1.msra.mxu0 0.0
        %7552 = vmatprep.subr.mxu0 0.0
        %7553 = vmatpush1.msra.mxu0 0.0
        %7554 = vmatprep.subr.mxu0 0.0
        %7555 = vmatpush1.msra.mxu0 0.0
        %7556 = vmatprep.subr.mxu0 0.0
        %7557 = vmatpush1.msra.mxu0 0.0
        %7558 = vmatprep.subr.mxu0 0.0
        %7559 = vmatpush1.msra.mxu0 0.0
        %7560 = vmatprep.subr.mxu0 0.0
        %7561 = vmatpush1.msra.mxu0 0.0
        %7562 = vmatprep.subr.mxu0 0.0
        %7563 = vmatpush1.msra.mxu0 0.0
        %7564 = vmatprep.subr.mxu0 0.0
        %7565 = vmatpush1.msra.mxu0 0.0
        %7566 = vmatprep.mubr.f32.mxu0 0.0
        %v7567 = vand.u32 %v5887, 4294901760
        %v7568 = vsub.f32 %v5887, %v7567
        %v7569 = vand.u32 %v7568, 4294901760
        %7570 = vmatmul.mubr.f32.gmra.mrb[0].mxu0 %v7569
        %v7571 = vpop.f32.mrb[0].mxu0
        %v7572 = vadd.f32 %v7497, %v7571
        %v7573 = vpop.f32.mrb[0].mxu0
        %7574 = vdwg.mxu0
        %7575 = vmatprep.subr.mxu0 0.0
        %v7576 = vand.u32 %v337, 4294901760
        %v7577 = vsub.f32 %v337, %v7576
        %v7578 = vand.u32 %v7577, 4294901760
        %7579 = vmatpush1.msra.mxu0 %v7578
        %7580 = vmatprep.subr.mxu0 0.0
        %v7581 = vand.u32 %v338, 4294901760
        %v7582 = vsub.f32 %v338, %v7581
        %v7583 = vand.u32 %v7582, 4294901760
        %7584 = vmatpush1.msra.mxu0 %v7583
        %7585 = vmatprep.subr.mxu0 0.0
        %7586 = vmatpush1.msra.mxu0 0.0
        %7587 = vmatprep.subr.mxu0 0.0
        %7588 = vmatpush1.msra.mxu0 0.0
        %7589 = vmatprep.subr.mxu0 0.0
        %7590 = vmatpush1.msra.mxu0 0.0
        %7591 = vmatprep.subr.mxu0 0.0
        %7592 = vmatpush1.msra.mxu0 0.0
        %7593 = vmatprep.subr.mxu0 0.0
        %7594 = vmatpush1.msra.mxu0 0.0
        %7595 = vmatprep.subr.mxu0 0.0
        %7596 = vmatpush1.msra.mxu0 0.0
        %7597 = vmatprep.subr.mxu0 0.0
        %7598 = vmatpush1.msra.mxu0 0.0
        %7599 = vmatprep.subr.mxu0 0.0
        %7600 = vmatpush1.msra.mxu0 0.0
        %7601 = vmatprep.subr.mxu0 0.0
        %7602 = vmatpush1.msra.mxu0 0.0
        %7603 = vmatprep.subr.mxu0 0.0
        %7604 = vmatpush1.msra.mxu0 0.0
        %7605 = vmatprep.subr.mxu0 0.0
        %7606 = vmatpush1.msra.mxu0 0.0
        %7607 = vmatprep.subr.mxu0 0.0
        %7608 = vmatpush1.msra.mxu0 0.0
        %7609 = vmatprep.subr.mxu0 0.0
        %7610 = vmatpush1.msra.mxu0 0.0
        %7611 = vmatprep.subr.mxu0 0.0
        %7612 = vmatpush1.msra.mxu0 0.0
        %7613 = vmatprep.subr.mxu0 0.0
        %7614 = vmatpush1.msra.mxu0 0.0
        %7615 = vmatprep.subr.mxu0 0.0
        %7616 = vmatpush1.msra.mxu0 0.0
        %7617 = vmatprep.subr.mxu0 0.0
        %7618 = vmatpush1.msra.mxu0 0.0
        %7619 = vmatprep.subr.mxu0 0.0
        %7620 = vmatpush1.msra.mxu0 0.0
        %7621 = vmatprep.subr.mxu0 0.0
        %7622 = vmatpush1.msra.mxu0 0.0
        %7623 = vmatprep.subr.mxu0 0.0
        %7624 = vmatpush1.msra.mxu0 0.0
        %7625 = vmatprep.subr.mxu0 0.0
        %7626 = vmatpush1.msra.mxu0 0.0
        %7627 = vmatprep.subr.mxu0 0.0
        %7628 = vmatpush1.msra.mxu0 0.0
        %7629 = vmatprep.subr.mxu0 0.0
        %7630 = vmatpush1.msra.mxu0 0.0
        %7631 = vmatprep.subr.mxu0 0.0
        %7632 = vmatpush1.msra.mxu0 0.0
        %7633 = vmatprep.subr.mxu0 0.0
        %7634 = vmatpush1.msra.mxu0 0.0
        %7635 = vmatprep.subr.mxu0 0.0
        %7636 = vmatpush1.msra.mxu0 0.0
        %7637 = vmatprep.subr.mxu0 0.0
        %7638 = vmatpush1.msra.mxu0 0.0
        %7639 = vmatprep.subr.mxu0 0.0
        %7640 = vmatpush1.msra.mxu0 0.0
        %7641 = vmatprep.subr.mxu0 0.0
        %7642 = vmatpush1.msra.mxu0 0.0
        %7643 = vmatprep.subr.mxu0 0.0
        %7644 = vmatpush1.msra.mxu0 0.0
        %7645 = vmatprep.mubr.f32.mxu0 0.0
        %v7646 = vand.u32 %v5887, 4294901760
        %7647 = vmatmul.mubr.f32.gmra.mrb[0].mxu0 %v7646
        %v7648 = vpop.f32.mrb[0].mxu0
        %v7649 = vadd.f32 %v7572, %v7648
        %v7650 = vpop.f32.mrb[0].mxu0
        %7651 = vdwg.mxu0
        %7652 = vmatprep.subr.mxu0 0.0
        %v7653 = vand.u32 %v337, 4294901760
        %7654 = vmatpush1.msra.mxu0 %v7653
        %7655 = vmatprep.subr.mxu0 0.0
        %v7656 = vand.u32 %v338, 4294901760
        %7657 = vmatpush1.msra.mxu0 %v7656
        %7658 = vmatprep.subr.mxu0 0.0
        %7659 = vmatpush1.msra.mxu0 0.0
        %7660 = vmatprep.subr.mxu0 0.0
        %7661 = vmatpush1.msra.mxu0 0.0
        %7662 = vmatprep.subr.mxu0 0.0
        %7663 = vmatpush1.msra.mxu0 0.0
        %7664 = vmatprep.subr.mxu0 0.0
        %7665 = vmatpush1.msra.mxu0 0.0
        %7666 = vmatprep.subr.mxu0 0.0
        %7667 = vmatpush1.msra.mxu0 0.0
        %7668 = vmatprep.subr.mxu0 0.0
        %7669 = vmatpush1.msra.mxu0 0.0
        %7670 = vmatprep.subr.mxu0 0.0
        %7671 = vmatpush1.msra.mxu0 0.0
        %7672 = vmatprep.subr.mxu0 0.0
        %7673 = vmatpush1.msra.mxu0 0.0
        %7674 = vmatprep.subr.mxu0 0.0
        %7675 = vmatpush1.msra.mxu0 0.0
        %7676 = vmatprep.subr.mxu0 0.0
        %7677 = vmatpush1.msra.mxu0 0.0
        %7678 = vmatprep.subr.mxu0 0.0
        %7679 = vmatpush1.msra.mxu0 0.0
        %7680 = vmatprep.subr.mxu0 0.0
        %7681 = vmatpush1.msra.mxu0 0.0
        %7682 = vmatprep.subr.mxu0 0.0
        %7683 = vmatpush1.msra.mxu0 0.0
        %7684 = vmatprep.subr.mxu0 0.0
        %7685 = vmatpush1.msra.mxu0 0.0
        %7686 = vmatprep.subr.mxu0 0.0
        %7687 = vmatpush1.msra.mxu0 0.0
        %7688 = vmatprep.subr.mxu0 0.0
        %7689 = vmatpush1.msra.mxu0 0.0
        %7690 = vmatprep.subr.mxu0 0.0
        %7691 = vmatpush1.msra.mxu0 0.0
        %7692 = vmatprep.subr.mxu0 0.0
        %7693 = vmatpush1.msra.mxu0 0.0
        %7694 = vmatprep.subr.mxu0 0.0
        %7695 = vmatpush1.msra.mxu0 0.0
        %7696 = vmatprep.subr.mxu0 0.0
        %7697 = vmatpush1.msra.mxu0 0.0
        %7698 = vmatprep.subr.mxu0 0.0
        %7699 = vmatpush1.msra.mxu0 0.0
        %7700 = vmatprep.subr.mxu0 0.0
        %7701 = vmatpush1.msra.mxu0 0.0
        %7702 = vmatprep.subr.mxu0 0.0
        %7703 = vmatpush1.msra.mxu0 0.0
        %7704 = vmatprep.subr.mxu0 0.0
        %7705 = vmatpush1.msra.mxu0 0.0
        %7706 = vmatprep.subr.mxu0 0.0
        %7707 = vmatpush1.msra.mxu0 0.0
        %7708 = vmatprep.subr.mxu0 0.0
        %7709 = vmatpush1.msra.mxu0 0.0
        %7710 = vmatprep.subr.mxu0 0.0
        %7711 = vmatpush1.msra.mxu0 0.0
        %7712 = vmatprep.subr.mxu0 0.0
        %7713 = vmatpush1.msra.mxu0 0.0
        %7714 = vmatprep.subr.mxu0 0.0
        %7715 = vmatpush1.msra.mxu0 0.0
        %7716 = vmatprep.subr.mxu0 0.0
        %7717 = vmatpush1.msra.mxu0 0.0
        %7718 = vmatprep.mubr.f32.mxu0 0.0
        %v7719 = vand.u32 %v5887, 4294901760
        %7720 = vmatmul.mubr.f32.gmra.mrb[0].mxu0 %v7719
        %v7721 = vpop.f32.mrb[0].mxu0
        %v7722 = vadd.f32 %v7649, %v7721
        %v7723 = vpop.f32.mrb[0].mxu0
        %7724 = vdwg.mxu0
        %7725 = vmatprep.subr.mxu0 0.0
        %v7726 = vand.u32 %v339, 4294901760
        %7727 = vmatpush1.msra.mxu0 %v7726
        %7728 = vmatprep.subr.mxu0 0.0
        %v7729 = vand.u32 %v340, 4294901760
        %7730 = vmatpush1.msra.mxu0 %v7729
        %7731 = vmatprep.subr.mxu0 0.0
        %7732 = vmatpush1.msra.mxu0 0.0
        %7733 = vmatprep.subr.mxu0 0.0
        %7734 = vmatpush1.msra.mxu0 0.0
        %7735 = vmatprep.subr.mxu0 0.0
        %7736 = vmatpush1.msra.mxu0 0.0
        %7737 = vmatprep.subr.mxu0 0.0
        %7738 = vmatpush1.msra.mxu0 0.0
        %7739 = vmatprep.subr.mxu0 0.0
        %7740 = vmatpush1.msra.mxu0 0.0
        %7741 = vmatprep.subr.mxu0 0.0
        %7742 = vmatpush1.msra.mxu0 0.0
        %7743 = vmatprep.subr.mxu0 0.0
        %7744 = vmatpush1.msra.mxu0 0.0
        %7745 = vmatprep.subr.mxu0 0.0
        %7746 = vmatpush1.msra.mxu0 0.0
        %7747 = vmatprep.subr.mxu0 0.0
        %7748 = vmatpush1.msra.mxu0 0.0
        %7749 = vmatprep.subr.mxu0 0.0
        %7750 = vmatpush1.msra.mxu0 0.0
        %7751 = vmatprep.subr.mxu0 0.0
        %7752 = vmatpush1.msra.mxu0 0.0
        %7753 = vmatprep.subr.mxu0 0.0
        %7754 = vmatpush1.msra.mxu0 0.0
        %7755 = vmatprep.subr.mxu0 0.0
        %7756 = vmatpush1.msra.mxu0 0.0
        %7757 = vmatprep.subr.mxu0 0.0
        %7758 = vmatpush1.msra.mxu0 0.0
        %7759 = vmatprep.subr.mxu0 0.0
        %7760 = vmatpush1.msra.mxu0 0.0
        %7761 = vmatprep.subr.mxu0 0.0
        %7762 = vmatpush1.msra.mxu0 0.0
        %7763 = vmatprep.subr.mxu0 0.0
        %7764 = vmatpush1.msra.mxu0 0.0
        %7765 = vmatprep.subr.mxu0 0.0
        %7766 = vmatpush1.msra.mxu0 0.0
        %7767 = vmatprep.subr.mxu0 0.0
        %7768 = vmatpush1.msra.mxu0 0.0
        %7769 = vmatprep.subr.mxu0 0.0
        %7770 = vmatpush1.msra.mxu0 0.0
        %7771 = vmatprep.subr.mxu0 0.0
        %7772 = vmatpush1.msra.mxu0 0.0
        %7773 = vmatprep.subr.mxu0 0.0
        %7774 = vmatpush1.msra.mxu0 0.0
        %7775 = vmatprep.subr.mxu0 0.0
        %7776 = vmatpush1.msra.mxu0 0.0
        %7777 = vmatprep.subr.mxu0 0.0
        %7778 = vmatpush1.msra.mxu0 0.0
        %7779 = vmatprep.subr.mxu0 0.0
        %7780 = vmatpush1.msra.mxu0 0.0
        %7781 = vmatprep.subr.mxu0 0.0
        %7782 = vmatpush1.msra.mxu0 0.0
        %7783 = vmatprep.subr.mxu0 0.0
        %7784 = vmatpush1.msra.mxu0 0.0
        %7785 = vmatprep.subr.mxu0 0.0
        %7786 = vmatpush1.msra.mxu0 0.0
        %7787 = vmatprep.subr.mxu0 0.0
        %7788 = vmatpush1.msra.mxu0 0.0
        %7789 = vmatprep.subr.mxu0 0.0
        %7790 = vmatpush1.msra.mxu0 0.0
        %7791 = vmatprep.mubr.f32.mxu0 0.0
        %v7792 = vand.u32 %v5887, 4294901760
        %v7793 = vsub.f32 %v5887, %v7792
        %v7794 = vand.u32 %v7793, 4294901760
        %v7795 = vsub.f32 %v7793, %v7794
        %v7796 = vand.u32 %v7795, 4294901760
        %7797 = vmatmul.mubr.f32.gmra.mrb[0].mxu0 %v7796
        %v7798 = vpop.f32.mrb[0].mxu0
        %v7799 = vadd.f32 0.0, %v7798
        %v7800 = vpop.f32.mrb[0].mxu0
        %7801 = vdwg.mxu0
        %7802 = vmatprep.subr.mxu0 0.0
        %v7803 = vand.u32 %v339, 4294901760
        %v7804 = vsub.f32 %v339, %v7803
        %v7805 = vand.u32 %v7804, 4294901760
        %v7806 = vsub.f32 %v7804, %v7805
        %v7807 = vand.u32 %v7806, 4294901760
        %7808 = vmatpush1.msra.mxu0 %v7807
        %7809 = vmatprep.subr.mxu0 0.0
        %v7810 = vand.u32 %v340, 4294901760
        %v7811 = vsub.f32 %v340, %v7810
        %v7812 = vand.u32 %v7811, 4294901760
        %v7813 = vsub.f32 %v7811, %v7812
        %v7814 = vand.u32 %v7813, 4294901760
        %7815 = vmatpush1.msra.mxu0 %v7814
        %7816 = vmatprep.subr.mxu0 0.0
        %7817 = vmatpush1.msra.mxu0 0.0
        %7818 = vmatprep.subr.mxu0 0.0
        %7819 = vmatpush1.msra.mxu0 0.0
        %7820 = vmatprep.subr.mxu0 0.0
        %7821 = vmatpush1.msra.mxu0 0.0
        %7822 = vmatprep.subr.mxu0 0.0
        %7823 = vmatpush1.msra.mxu0 0.0
        %7824 = vmatprep.subr.mxu0 0.0
        %7825 = vmatpush1.msra.mxu0 0.0
        %7826 = vmatprep.subr.mxu0 0.0
        %7827 = vmatpush1.msra.mxu0 0.0
        %7828 = vmatprep.subr.mxu0 0.0
        %7829 = vmatpush1.msra.mxu0 0.0
        %7830 = vmatprep.subr.mxu0 0.0
        %7831 = vmatpush1.msra.mxu0 0.0
        %7832 = vmatprep.subr.mxu0 0.0
        %7833 = vmatpush1.msra.mxu0 0.0
        %7834 = vmatprep.subr.mxu0 0.0
        %7835 = vmatpush1.msra.mxu0 0.0
        %7836 = vmatprep.subr.mxu0 0.0
        %7837 = vmatpush1.msra.mxu0 0.0
        %7838 = vmatprep.subr.mxu0 0.0
        %7839 = vmatpush1.msra.mxu0 0.0
        %7840 = vmatprep.subr.mxu0 0.0
        %7841 = vmatpush1.msra.mxu0 0.0
        %7842 = vmatprep.subr.mxu0 0.0
        %7843 = vmatpush1.msra.mxu0 0.0
        %7844 = vmatprep.subr.mxu0 0.0
        %7845 = vmatpush1.msra.mxu0 0.0
        %7846 = vmatprep.subr.mxu0 0.0
        %7847 = vmatpush1.msra.mxu0 0.0
        %7848 = vmatprep.subr.mxu0 0.0
        %7849 = vmatpush1.msra.mxu0 0.0
        %7850 = vmatprep.subr.mxu0 0.0
        %7851 = vmatpush1.msra.mxu0 0.0
        %7852 = vmatprep.subr.mxu0 0.0
        %7853 = vmatpush1.msra.mxu0 0.0
        %7854 = vmatprep.subr.mxu0 0.0
        %7855 = vmatpush1.msra.mxu0 0.0
        %7856 = vmatprep.subr.mxu0 0.0
        %7857 = vmatpush1.msra.mxu0 0.0
        %7858 = vmatprep.subr.mxu0 0.0
        %7859 = vmatpush1.msra.mxu0 0.0
        %7860 = vmatprep.subr.mxu0 0.0
        %7861 = vmatpush1.msra.mxu0 0.0
        %7862 = vmatprep.subr.mxu0 0.0
        %7863 = vmatpush1.msra.mxu0 0.0
        %7864 = vmatprep.subr.mxu0 0.0
        %7865 = vmatpush1.msra.mxu0 0.0
        %7866 = vmatprep.subr.mxu0 0.0
        %7867 = vmatpush1.msra.mxu0 0.0
        %7868 = vmatprep.subr.mxu0 0.0
        %7869 = vmatpush1.msra.mxu0 0.0
        %7870 = vmatprep.subr.mxu0 0.0
        %7871 = vmatpush1.msra.mxu0 0.0
        %7872 = vmatprep.subr.mxu0 0.0
        %7873 = vmatpush1.msra.mxu0 0.0
        %7874 = vmatprep.subr.mxu0 0.0
        %7875 = vmatpush1.msra.mxu0 0.0
        %7876 = vmatprep.mubr.f32.mxu0 0.0
        %v7877 = vand.u32 %v5887, 4294901760
        %7878 = vmatmul.mubr.f32.gmra.mrb[0].mxu0 %v7877
        %v7879 = vpop.f32.mrb[0].mxu0
        %v7880 = vadd.f32 %v7799, %v7879
        %v7881 = vpop.f32.mrb[0].mxu0
        %7882 = vdwg.mxu0
        %7883 = vmatprep.subr.mxu0 0.0
        %v7884 = vand.u32 %v339, 4294901760
        %v7885 = vsub.f32 %v339, %v7884
        %7886 = vmatpush1.msra.mxu0 %v7885
        %7887 = vmatprep.subr.mxu0 0.0
        %v7888 = vand.u32 %v340, 4294901760
        %v7889 = vsub.f32 %v340, %v7888
        %7890 = vmatpush1.msra.mxu0 %v7889
        %7891 = vmatprep.subr.mxu0 0.0
        %7892 = vmatpush1.msra.mxu0 0.0
        %7893 = vmatprep.subr.mxu0 0.0
        %7894 = vmatpush1.msra.mxu0 0.0
        %7895 = vmatprep.subr.mxu0 0.0
        %7896 = vmatpush1.msra.mxu0 0.0
        %7897 = vmatprep.subr.mxu0 0.0
        %7898 = vmatpush1.msra.mxu0 0.0
        %7899 = vmatprep.subr.mxu0 0.0
        %7900 = vmatpush1.msra.mxu0 0.0
        %7901 = vmatprep.subr.mxu0 0.0
        %7902 = vmatpush1.msra.mxu0 0.0
        %7903 = vmatprep.subr.mxu0 0.0
        %7904 = vmatpush1.msra.mxu0 0.0
        %7905 = vmatprep.subr.mxu0 0.0
        %7906 = vmatpush1.msra.mxu0 0.0
        %7907 = vmatprep.subr.mxu0 0.0
        %7908 = vmatpush1.msra.mxu0 0.0
        %7909 = vmatprep.subr.mxu0 0.0
        %7910 = vmatpush1.msra.mxu0 0.0
        %7911 = vmatprep.subr.mxu0 0.0
        %7912 = vmatpush1.msra.mxu0 0.0
        %7913 = vmatprep.subr.mxu0 0.0
        %7914 = vmatpush1.msra.mxu0 0.0
        %7915 = vmatprep.subr.mxu0 0.0
        %7916 = vmatpush1.msra.mxu0 0.0
        %7917 = vmatprep.subr.mxu0 0.0
        %7918 = vmatpush1.msra.mxu0 0.0
        %7919 = vmatprep.subr.mxu0 0.0
        %7920 = vmatpush1.msra.mxu0 0.0
        %7921 = vmatprep.subr.mxu0 0.0
        %7922 = vmatpush1.msra.mxu0 0.0
        %7923 = vmatprep.subr.mxu0 0.0
        %7924 = vmatpush1.msra.mxu0 0.0
        %7925 = vmatprep.subr.mxu0 0.0
        %7926 = vmatpush1.msra.mxu0 0.0
        %7927 = vmatprep.subr.mxu0 0.0
        %7928 = vmatpush1.msra.mxu0 0.0
        %7929 = vmatprep.subr.mxu0 0.0
        %7930 = vmatpush1.msra.mxu0 0.0
        %7931 = vmatprep.subr.mxu0 0.0
        %7932 = vmatpush1.msra.mxu0 0.0
        %7933 = vmatprep.subr.mxu0 0.0
        %7934 = vmatpush1.msra.mxu0 0.0
        %7935 = vmatprep.subr.mxu0 0.0
        %7936 = vmatpush1.msra.mxu0 0.0
        %7937 = vmatprep.subr.mxu0 0.0
        %7938 = vmatpush1.msra.mxu0 0.0
        %7939 = vmatprep.subr.mxu0 0.0
        %7940 = vmatpush1.msra.mxu0 0.0
        %7941 = vmatprep.subr.mxu0 0.0
        %7942 = vmatpush1.msra.mxu0 0.0
        %7943 = vmatprep.subr.mxu0 0.0
        %7944 = vmatpush1.msra.mxu0 0.0
        %7945 = vmatprep.subr.mxu0 0.0
        %7946 = vmatpush1.msra.mxu0 0.0
        %7947 = vmatprep.subr.mxu0 0.0
        %7948 = vmatpush1.msra.mxu0 0.0
        %7949 = vmatprep.subr.mxu0 0.0
        %7950 = vmatpush1.msra.mxu0 0.0
        %7951 = vmatprep.mubr.f32.mxu0 0.0
        %v7952 = vand.u32 %v5887, 4294901760
        %v7953 = vsub.f32 %v5887, %v7952
        %7954 = vmatmul.mubr.f32.gmra.mrb[0].mxu0 %v7953
        %v7955 = vpop.f32.mrb[0].mxu0
        %v7956 = vadd.f32 %v7880, %v7955
        %v7957 = vpop.f32.mrb[0].mxu0
        %7958 = vdwg.mxu0
        %7959 = vmatprep.subr.mxu0 0.0
        %v7960 = vand.u32 %v339, 4294901760
        %7961 = vmatpush1.msra.mxu0 %v7960
        %7962 = vmatprep.subr.mxu0 0.0
        %v7963 = vand.u32 %v340, 4294901760
        %7964 = vmatpush1.msra.mxu0 %v7963
        %7965 = vmatprep.subr.mxu0 0.0
        %7966 = vmatpush1.msra.mxu0 0.0
        %7967 = vmatprep.subr.mxu0 0.0
        %7968 = vmatpush1.msra.mxu0 0.0
        %7969 = vmatprep.subr.mxu0 0.0
        %7970 = vmatpush1.msra.mxu0 0.0
        %7971 = vmatprep.subr.mxu0 0.0
        %7972 = vmatpush1.msra.mxu0 0.0
        %7973 = vmatprep.subr.mxu0 0.0
        %7974 = vmatpush1.msra.mxu0 0.0
        %7975 = vmatprep.subr.mxu0 0.0
        %7976 = vmatpush1.msra.mxu0 0.0
        %7977 = vmatprep.subr.mxu0 0.0
        %7978 = vmatpush1.msra.mxu0 0.0
        %7979 = vmatprep.subr.mxu0 0.0
        %7980 = vmatpush1.msra.mxu0 0.0
        %7981 = vmatprep.subr.mxu0 0.0
        %7982 = vmatpush1.msra.mxu0 0.0
        %7983 = vmatprep.subr.mxu0 0.0
        %7984 = vmatpush1.msra.mxu0 0.0
        %7985 = vmatprep.subr.mxu0 0.0
        %7986 = vmatpush1.msra.mxu0 0.0
        %7987 = vmatprep.subr.mxu0 0.0
        %7988 = vmatpush1.msra.mxu0 0.0
        %7989 = vmatprep.subr.mxu0 0.0
        %7990 = vmatpush1.msra.mxu0 0.0
        %7991 = vmatprep.subr.mxu0 0.0
        %7992 = vmatpush1.msra.mxu0 0.0
        %7993 = vmatprep.subr.mxu0 0.0
        %7994 = vmatpush1.msra.mxu0 0.0
        %7995 = vmatprep.subr.mxu0 0.0
        %7996 = vmatpush1.msra.mxu0 0.0
        %7997 = vmatprep.subr.mxu0 0.0
        %7998 = vmatpush1.msra.mxu0 0.0
        %7999 = vmatprep.subr.mxu0 0.0
        %8000 = vmatpush1.msra.mxu0 0.0
        %8001 = vmatprep.subr.mxu0 0.0
        %8002 = vmatpush1.msra.mxu0 0.0
        %8003 = vmatprep.subr.mxu0 0.0
        %8004 = vmatpush1.msra.mxu0 0.0
        %8005 = vmatprep.subr.mxu0 0.0
        %8006 = vmatpush1.msra.mxu0 0.0
        %8007 = vmatprep.subr.mxu0 0.0
        %8008 = vmatpush1.msra.mxu0 0.0
        %8009 = vmatprep.subr.mxu0 0.0
        %8010 = vmatpush1.msra.mxu0 0.0
        %8011 = vmatprep.subr.mxu0 0.0
        %8012 = vmatpush1.msra.mxu0 0.0
        %8013 = vmatprep.subr.mxu0 0.0
        %8014 = vmatpush1.msra.mxu0 0.0
        %8015 = vmatprep.subr.mxu0 0.0
        %8016 = vmatpush1.msra.mxu0 0.0
        %8017 = vmatprep.subr.mxu0 0.0
        %8018 = vmatpush1.msra.mxu0 0.0
        %8019 = vmatprep.subr.mxu0 0.0
        %8020 = vmatpush1.msra.mxu0 0.0
        %8021 = vmatprep.subr.mxu0 0.0
        %8022 = vmatpush1.msra.mxu0 0.0
        %8023 = vmatprep.subr.mxu0 0.0
        %8024 = vmatpush1.msra.mxu0 0.0
        %8025 = vmatprep.mubr.f32.mxu0 0.0
        %v8026 = vand.u32 %v5887, 4294901760
        %v8027 = vsub.f32 %v5887, %v8026
        %v8028 = vand.u32 %v8027, 4294901760
        %8029 = vmatmul.mubr.f32.gmra.mrb[0].mxu0 %v8028
        %v8030 = vpop.f32.mrb[0].mxu0
        %v8031 = vadd.f32 %v7956, %v8030
        %v8032 = vpop.f32.mrb[0].mxu0
        %8033 = vdwg.mxu0
        %8034 = vmatprep.subr.mxu0 0.0
        %v8035 = vand.u32 %v339, 4294901760
        %v8036 = vsub.f32 %v339, %v8035
        %v8037 = vand.u32 %v8036, 4294901760
        %8038 = vmatpush1.msra.mxu0 %v8037
        %8039 = vmatprep.subr.mxu0 0.0
        %v8040 = vand.u32 %v340, 4294901760
        %v8041 = vsub.f32 %v340, %v8040
        %v8042 = vand.u32 %v8041, 4294901760
        %8043 = vmatpush1.msra.mxu0 %v8042
        %8044 = vmatprep.subr.mxu0 0.0
        %8045 = vmatpush1.msra.mxu0 0.0
        %8046 = vmatprep.subr.mxu0 0.0
        %8047 = vmatpush1.msra.mxu0 0.0
        %8048 = vmatprep.subr.mxu0 0.0
        %8049 = vmatpush1.msra.mxu0 0.0
        %8050 = vmatprep.subr.mxu0 0.0
        %8051 = vmatpush1.msra.mxu0 0.0
        %8052 = vmatprep.subr.mxu0 0.0
        %8053 = vmatpush1.msra.mxu0 0.0
        %8054 = vmatprep.subr.mxu0 0.0
        %8055 = vmatpush1.msra.mxu0 0.0
        %8056 = vmatprep.subr.mxu0 0.0
        %8057 = vmatpush1.msra.mxu0 0.0
        %8058 = vmatprep.subr.mxu0 0.0
        %8059 = vmatpush1.msra.mxu0 0.0
        %8060 = vmatprep.subr.mxu0 0.0
        %8061 = vmatpush1.msra.mxu0 0.0
        %8062 = vmatprep.subr.mxu0 0.0
        %8063 = vmatpush1.msra.mxu0 0.0
        %8064 = vmatprep.subr.mxu0 0.0
        %8065 = vmatpush1.msra.mxu0 0.0
        %8066 = vmatprep.subr.mxu0 0.0
        %8067 = vmatpush1.msra.mxu0 0.0
        %8068 = vmatprep.subr.mxu0 0.0
        %8069 = vmatpush1.msra.mxu0 0.0
        %8070 = vmatprep.subr.mxu0 0.0
        %8071 = vmatpush1.msra.mxu0 0.0
        %8072 = vmatprep.subr.mxu0 0.0
        %8073 = vmatpush1.msra.mxu0 0.0
        %8074 = vmatprep.subr.mxu0 0.0
        %8075 = vmatpush1.msra.mxu0 0.0
        %8076 = vmatprep.subr.mxu0 0.0
        %8077 = vmatpush1.msra.mxu0 0.0
        %8078 = vmatprep.subr.mxu0 0.0
        %8079 = vmatpush1.msra.mxu0 0.0
        %8080 = vmatprep.subr.mxu0 0.0
        %8081 = vmatpush1.msra.mxu0 0.0
        %8082 = vmatprep.subr.mxu0 0.0
        %8083 = vmatpush1.msra.mxu0 0.0
        %8084 = vmatprep.subr.mxu0 0.0
        %8085 = vmatpush1.msra.mxu0 0.0
        %8086 = vmatprep.subr.mxu0 0.0
        %8087 = vmatpush1.msra.mxu0 0.0
        %8088 = vmatprep.subr.mxu0 0.0
        %8089 = vmatpush1.msra.mxu0 0.0
        %8090 = vmatprep.subr.mxu0 0.0
        %8091 = vmatpush1.msra.mxu0 0.0
        %8092 = vmatprep.subr.mxu0 0.0
        %8093 = vmatpush1.msra.mxu0 0.0
        %8094 = vmatprep.subr.mxu0 0.0
        %8095 = vmatpush1.msra.mxu0 0.0
        %8096 = vmatprep.subr.mxu0 0.0
        %8097 = vmatpush1.msra.mxu0 0.0
        %8098 = vmatprep.subr.mxu0 0.0
        %8099 = vmatpush1.msra.mxu0 0.0
        %8100 = vmatprep.subr.mxu0 0.0
        %8101 = vmatpush1.msra.mxu0 0.0
        %8102 = vmatprep.subr.mxu0 0.0
        %8103 = vmatpush1.msra.mxu0 0.0
        %8104 = vmatprep.mubr.f32.mxu0 0.0
        %v8105 = vand.u32 %v5887, 4294901760
        %8106 = vmatmul.mubr.f32.gmra.mrb[0].mxu0 %v8105
        %v8107 = vpop.f32.mrb[0].mxu0
        %v8108 = vadd.f32 %v8031, %v8107
        %v8109 = vpop.f32.mrb[0].mxu0
        %8110 = vdwg.mxu0
        %8111 = vmatprep.subr.mxu0 0.0
        %v8112 = vand.u32 %v339, 4294901760
        %8113 = vmatpush1.msra.mxu0 %v8112
        %8114 = vmatprep.subr.mxu0 0.0
        %v8115 = vand.u32 %v340, 4294901760
        %8116 = vmatpush1.msra.mxu0 %v8115
        %8117 = vmatprep.subr.mxu0 0.0
        %8118 = vmatpush1.msra.mxu0 0.0
        %8119 = vmatprep.subr.mxu0 0.0
        %8120 = vmatpush1.msra.mxu0 0.0
        %8121 = vmatprep.subr.mxu0 0.0
        %8122 = vmatpush1.msra.mxu0 0.0
        %8123 = vmatprep.subr.mxu0 0.0
        %8124 = vmatpush1.msra.mxu0 0.0
        %8125 = vmatprep.subr.mxu0 0.0
        %8126 = vmatpush1.msra.mxu0 0.0
        %8127 = vmatprep.subr.mxu0 0.0
        %8128 = vmatpush1.msra.mxu0 0.0
        %8129 = vmatprep.subr.mxu0 0.0
        %8130 = vmatpush1.msra.mxu0 0.0
        %8131 = vmatprep.subr.mxu0 0.0
        %8132 = vmatpush1.msra.mxu0 0.0
        %8133 = vmatprep.subr.mxu0 0.0
        %8134 = vmatpush1.msra.mxu0 0.0
        %8135 = vmatprep.subr.mxu0 0.0
        %8136 = vmatpush1.msra.mxu0 0.0
        %8137 = vmatprep.subr.mxu0 0.0
        %8138 = vmatpush1.msra.mxu0 0.0
        %8139 = vmatprep.subr.mxu0 0.0
        %8140 = vmatpush1.msra.mxu0 0.0
        %8141 = vmatprep.subr.mxu0 0.0
        %8142 = vmatpush1.msra.mxu0 0.0
        %8143 = vmatprep.subr.mxu0 0.0
        %8144 = vmatpush1.msra.mxu0 0.0
        %8145 = vmatprep.subr.mxu0 0.0
        %8146 = vmatpush1.msra.mxu0 0.0
        %8147 = vmatprep.subr.mxu0 0.0
        %8148 = vmatpush1.msra.mxu0 0.0
        %8149 = vmatprep.subr.mxu0 0.0
        %8150 = vmatpush1.msra.mxu0 0.0
        %8151 = vmatprep.subr.mxu0 0.0
        %8152 = vmatpush1.msra.mxu0 0.0
        %8153 = vmatprep.subr.mxu0 0.0
        %8154 = vmatpush1.msra.mxu0 0.0
        %8155 = vmatprep.subr.mxu0 0.0
        %8156 = vmatpush1.msra.mxu0 0.0
        %8157 = vmatprep.subr.mxu0 0.0
        %8158 = vmatpush1.msra.mxu0 0.0
        %8159 = vmatprep.subr.mxu0 0.0
        %8160 = vmatpush1.msra.mxu0 0.0
        %8161 = vmatprep.subr.mxu0 0.0
        %8162 = vmatpush1.msra.mxu0 0.0
        %8163 = vmatprep.subr.mxu0 0.0
        %8164 = vmatpush1.msra.mxu0 0.0
        %8165 = vmatprep.subr.mxu0 0.0
        %8166 = vmatpush1.msra.mxu0 0.0
        %8167 = vmatprep.subr.mxu0 0.0
        %8168 = vmatpush1.msra.mxu0 0.0
        %8169 = vmatprep.subr.mxu0 0.0
        %8170 = vmatpush1.msra.mxu0 0.0
        %8171 = vmatprep.subr.mxu0 0.0
        %8172 = vmatpush1.msra.mxu0 0.0
        %8173 = vmatprep.subr.mxu0 0.0
        %8174 = vmatpush1.msra.mxu0 0.0
        %8175 = vmatprep.subr.mxu0 0.0
        %8176 = vmatpush1.msra.mxu0 0.0
        %8177 = vmatprep.mubr.f32.mxu0 0.0
        %v8178 = vand.u32 %v5887, 4294901760
        %8179 = vmatmul.mubr.f32.gmra.mrb[0].mxu0 %v8178
        %v8180 = vpop.f32.mrb[0].mxu0
        %v8181 = vadd.f32 %v8108, %v8180
        %v8182 = vpop.f32.mrb[0].mxu0
        %8183 = vdwg.mxu0
        %8184 = vmatprep.subr.mxu0 0.0
        %v8185 = vand.u32 %v341, 4294901760
        %8186 = vmatpush1.msra.mxu0 %v8185
        %8187 = vmatprep.subr.mxu0 0.0
        %v8188 = vand.u32 %v342, 4294901760
        %8189 = vmatpush1.msra.mxu0 %v8188
        %8190 = vmatprep.subr.mxu0 0.0
        %8191 = vmatpush1.msra.mxu0 0.0
        %8192 = vmatprep.subr.mxu0 0.0
        %8193 = vmatpush1.msra.mxu0 0.0
        %8194 = vmatprep.subr.mxu0 0.0
        %8195 = vmatpush1.msra.mxu0 0.0
        %8196 = vmatprep.subr.mxu0 0.0
        %8197 = vmatpush1.msra.mxu0 0.0
        %8198 = vmatprep.subr.mxu0 0.0
        %8199 = vmatpush1.msra.mxu0 0.0
        %8200 = vmatprep.subr.mxu0 0.0
        %8201 = vmatpush1.msra.mxu0 0.0
        %8202 = vmatprep.subr.mxu0 0.0
        %8203 = vmatpush1.msra.mxu0 0.0
        %8204 = vmatprep.subr.mxu0 0.0
        %8205 = vmatpush1.msra.mxu0 0.0
        %8206 = vmatprep.subr.mxu0 0.0
        %8207 = vmatpush1.msra.mxu0 0.0
        %8208 = vmatprep.subr.mxu0 0.0
        %8209 = vmatpush1.msra.mxu0 0.0
        %8210 = vmatprep.subr.mxu0 0.0
        %8211 = vmatpush1.msra.mxu0 0.0
        %8212 = vmatprep.subr.mxu0 0.0
        %8213 = vmatpush1.msra.mxu0 0.0
        %8214 = vmatprep.subr.mxu0 0.0
        %8215 = vmatpush1.msra.mxu0 0.0
        %8216 = vmatprep.subr.mxu0 0.0
        %8217 = vmatpush1.msra.mxu0 0.0
        %8218 = vmatprep.subr.mxu0 0.0
        %8219 = vmatpush1.msra.mxu0 0.0
        %8220 = vmatprep.subr.mxu0 0.0
        %8221 = vmatpush1.msra.mxu0 0.0
        %8222 = vmatprep.subr.mxu0 0.0
        %8223 = vmatpush1.msra.mxu0 0.0
        %8224 = vmatprep.subr.mxu0 0.0
        %8225 = vmatpush1.msra.mxu0 0.0
        %8226 = vmatprep.subr.mxu0 0.0
        %8227 = vmatpush1.msra.mxu0 0.0
        %8228 = vmatprep.subr.mxu0 0.0
        %8229 = vmatpush1.msra.mxu0 0.0
        %8230 = vmatprep.subr.mxu0 0.0
        %8231 = vmatpush1.msra.mxu0 0.0
        %8232 = vmatprep.subr.mxu0 0.0
        %8233 = vmatpush1.msra.mxu0 0.0
        %8234 = vmatprep.subr.mxu0 0.0
        %8235 = vmatpush1.msra.mxu0 0.0
        %8236 = vmatprep.subr.mxu0 0.0
        %8237 = vmatpush1.msra.mxu0 0.0
        %8238 = vmatprep.subr.mxu0 0.0
        %8239 = vmatpush1.msra.mxu0 0.0
        %8240 = vmatprep.subr.mxu0 0.0
        %8241 = vmatpush1.msra.mxu0 0.0
        %8242 = vmatprep.subr.mxu0 0.0
        %8243 = vmatpush1.msra.mxu0 0.0
        %8244 = vmatprep.subr.mxu0 0.0
        %8245 = vmatpush1.msra.mxu0 0.0
        %8246 = vmatprep.subr.mxu0 0.0
        %8247 = vmatpush1.msra.mxu0 0.0
        %8248 = vmatprep.subr.mxu0 0.0
        %8249 = vmatpush1.msra.mxu0 0.0
        %8250 = vmatprep.mubr.f32.mxu0 0.0
        %v8251 = vand.u32 %v5887, 4294901760
        %v8252 = vsub.f32 %v5887, %v8251
        %v8253 = vand.u32 %v8252, 4294901760
        %v8254 = vsub.f32 %v8252, %v8253
        %v8255 = vand.u32 %v8254, 4294901760
        %8256 = vmatmul.mubr.f32.gmra.mrb[0].mxu0 %v8255
        %v8257 = vpop.f32.mrb[0].mxu0
        %v8258 = vadd.f32 0.0, %v8257
        %v8259 = vpop.f32.mrb[0].mxu0
        %8260 = vdwg.mxu0
        %8261 = vmatprep.subr.mxu0 0.0
        %v8262 = vand.u32 %v341, 4294901760
        %v8263 = vsub.f32 %v341, %v8262
        %v8264 = vand.u32 %v8263, 4294901760
        %v8265 = vsub.f32 %v8263, %v8264
        %v8266 = vand.u32 %v8265, 4294901760
        %8267 = vmatpush1.msra.mxu0 %v8266
        %8268 = vmatprep.subr.mxu0 0.0
        %v8269 = vand.u32 %v342, 4294901760
        %v8270 = vsub.f32 %v342, %v8269
        %v8271 = vand.u32 %v8270, 4294901760
        %v8272 = vsub.f32 %v8270, %v8271
        %v8273 = vand.u32 %v8272, 4294901760
        %8274 = vmatpush1.msra.mxu0 %v8273
        %8275 = vmatprep.subr.mxu0 0.0
        %8276 = vmatpush1.msra.mxu0 0.0
        %8277 = vmatprep.subr.mxu0 0.0
        %8278 = vmatpush1.msra.mxu0 0.0
        %8279 = vmatprep.subr.mxu0 0.0
        %8280 = vmatpush1.msra.mxu0 0.0
        %8281 = vmatprep.subr.mxu0 0.0
        %8282 = vmatpush1.msra.mxu0 0.0
        %8283 = vmatprep.subr.mxu0 0.0
        %8284 = vmatpush1.msra.mxu0 0.0
        %8285 = vmatprep.subr.mxu0 0.0
        %8286 = vmatpush1.msra.mxu0 0.0
        %8287 = vmatprep.subr.mxu0 0.0
        %8288 = vmatpush1.msra.mxu0 0.0
        %8289 = vmatprep.subr.mxu0 0.0
        %8290 = vmatpush1.msra.mxu0 0.0
        %8291 = vmatprep.subr.mxu0 0.0
        %8292 = vmatpush1.msra.mxu0 0.0
        %8293 = vmatprep.subr.mxu0 0.0
        %8294 = vmatpush1.msra.mxu0 0.0
        %8295 = vmatprep.subr.mxu0 0.0
        %8296 = vmatpush1.msra.mxu0 0.0
        %8297 = vmatprep.subr.mxu0 0.0
        %8298 = vmatpush1.msra.mxu0 0.0
        %8299 = vmatprep.subr.mxu0 0.0
        %8300 = vmatpush1.msra.mxu0 0.0
        %8301 = vmatprep.subr.mxu0 0.0
        %8302 = vmatpush1.msra.mxu0 0.0
        %8303 = vmatprep.subr.mxu0 0.0
        %8304 = vmatpush1.msra.mxu0 0.0
        %8305 = vmatprep.subr.mxu0 0.0
        %8306 = vmatpush1.msra.mxu0 0.0
        %8307 = vmatprep.subr.mxu0 0.0
        %8308 = vmatpush1.msra.mxu0 0.0
        %8309 = vmatprep.subr.mxu0 0.0
        %8310 = vmatpush1.msra.mxu0 0.0
        %8311 = vmatprep.subr.mxu0 0.0
        %8312 = vmatpush1.msra.mxu0 0.0
        %8313 = vmatprep.subr.mxu0 0.0
        %8314 = vmatpush1.msra.mxu0 0.0
        %8315 = vmatprep.subr.mxu0 0.0
        %8316 = vmatpush1.msra.mxu0 0.0
        %8317 = vmatprep.subr.mxu0 0.0
        %8318 = vmatpush1.msra.mxu0 0.0
        %8319 = vmatprep.subr.mxu0 0.0
        %8320 = vmatpush1.msra.mxu0 0.0
        %8321 = vmatprep.subr.mxu0 0.0
        %8322 = vmatpush1.msra.mxu0 0.0
        %8323 = vmatprep.subr.mxu0 0.0
        %8324 = vmatpush1.msra.mxu0 0.0
        %8325 = vmatprep.subr.mxu0 0.0
        %8326 = vmatpush1.msra.mxu0 0.0
        %8327 = vmatprep.subr.mxu0 0.0
        %8328 = vmatpush1.msra.mxu0 0.0
        %8329 = vmatprep.subr.mxu0 0.0
        %8330 = vmatpush1.msra.mxu0 0.0
        %8331 = vmatprep.subr.mxu0 0.0
        %8332 = vmatpush1.msra.mxu0 0.0
        %8333 = vmatprep.subr.mxu0 0.0
        %8334 = vmatpush1.msra.mxu0 0.0
        %8335 = vmatprep.mubr.f32.mxu0 0.0
        %v8336 = vand.u32 %v5887, 4294901760
        %8337 = vmatmul.mubr.f32.gmra.mrb[0].mxu0 %v8336
        %v8338 = vpop.f32.mrb[0].mxu0
        %v8339 = vadd.f32 %v8258, %v8338
        %v8340 = vpop.f32.mrb[0].mxu0
        %8341 = vdwg.mxu0
        %8342 = vmatprep.subr.mxu0 0.0
        %v8343 = vand.u32 %v341, 4294901760
        %v8344 = vsub.f32 %v341, %v8343
        %8345 = vmatpush1.msra.mxu0 %v8344
        %8346 = vmatprep.subr.mxu0 0.0
        %v8347 = vand.u32 %v342, 4294901760
        %v8348 = vsub.f32 %v342, %v8347
        %8349 = vmatpush1.msra.mxu0 %v8348
        %8350 = vmatprep.subr.mxu0 0.0
        %8351 = vmatpush1.msra.mxu0 0.0
        %8352 = vmatprep.subr.mxu0 0.0
        %8353 = vmatpush1.msra.mxu0 0.0
        %8354 = vmatprep.subr.mxu0 0.0
        %8355 = vmatpush1.msra.mxu0 0.0
        %8356 = vmatprep.subr.mxu0 0.0
        %8357 = vmatpush1.msra.mxu0 0.0
        %8358 = vmatprep.subr.mxu0 0.0
        %8359 = vmatpush1.msra.mxu0 0.0
        %8360 = vmatprep.subr.mxu0 0.0
        %8361 = vmatpush1.msra.mxu0 0.0
        %8362 = vmatprep.subr.mxu0 0.0
        %8363 = vmatpush1.msra.mxu0 0.0
        %8364 = vmatprep.subr.mxu0 0.0
        %8365 = vmatpush1.msra.mxu0 0.0
        %8366 = vmatprep.subr.mxu0 0.0
        %8367 = vmatpush1.msra.mxu0 0.0
        %8368 = vmatprep.subr.mxu0 0.0
        %8369 = vmatpush1.msra.mxu0 0.0
        %8370 = vmatprep.subr.mxu0 0.0
        %8371 = vmatpush1.msra.mxu0 0.0
        %8372 = vmatprep.subr.mxu0 0.0
        %8373 = vmatpush1.msra.mxu0 0.0
        %8374 = vmatprep.subr.mxu0 0.0
        %8375 = vmatpush1.msra.mxu0 0.0
        %8376 = vmatprep.subr.mxu0 0.0
        %8377 = vmatpush1.msra.mxu0 0.0
        %8378 = vmatprep.subr.mxu0 0.0
        %8379 = vmatpush1.msra.mxu0 0.0
        %8380 = vmatprep.subr.mxu0 0.0
        %8381 = vmatpush1.msra.mxu0 0.0
        %8382 = vmatprep.subr.mxu0 0.0
        %8383 = vmatpush1.msra.mxu0 0.0
        %8384 = vmatprep.subr.mxu0 0.0
        %8385 = vmatpush1.msra.mxu0 0.0
        %8386 = vmatprep.subr.mxu0 0.0
        %8387 = vmatpush1.msra.mxu0 0.0
        %8388 = vmatprep.subr.mxu0 0.0
        %8389 = vmatpush1.msra.mxu0 0.0
        %8390 = vmatprep.subr.mxu0 0.0
        %8391 = vmatpush1.msra.mxu0 0.0
        %8392 = vmatprep.subr.mxu0 0.0
        %8393 = vmatpush1.msra.mxu0 0.0
        %8394 = vmatprep.subr.mxu0 0.0
        %8395 = vmatpush1.msra.mxu0 0.0
        %8396 = vmatprep.subr.mxu0 0.0
        %8397 = vmatpush1.msra.mxu0 0.0
        %8398 = vmatprep.subr.mxu0 0.0
        %8399 = vmatpush1.msra.mxu0 0.0
        %8400 = vmatprep.subr.mxu0 0.0
        %8401 = vmatpush1.msra.mxu0 0.0
        %8402 = vmatprep.subr.mxu0 0.0
        %8403 = vmatpush1.msra.mxu0 0.0
        %8404 = vmatprep.subr.mxu0 0.0
        %8405 = vmatpush1.msra.mxu0 0.0
        %8406 = vmatprep.subr.mxu0 0.0
        %8407 = vmatpush1.msra.mxu0 0.0
        %8408 = vmatprep.subr.mxu0 0.0
        %8409 = vmatpush1.msra.mxu0 0.0
        %8410 = vmatprep.mubr.f32.mxu0 0.0
        %v8411 = vand.u32 %v5887, 4294901760
        %v8412 = vsub.f32 %v5887, %v8411
        %8413 = vmatmul.mubr.f32.gmra.mrb[0].mxu0 %v8412
        %v8414 = vpop.f32.mrb[0].mxu0
        %v8415 = vadd.f32 %v8339, %v8414
        %v8416 = vpop.f32.mrb[0].mxu0
        %8417 = vdwg.mxu0
        %8418 = vmatprep.subr.mxu0 0.0
        %v8419 = vand.u32 %v341, 4294901760
        %8420 = vmatpush1.msra.mxu0 %v8419
        %8421 = vmatprep.subr.mxu0 0.0
        %v8422 = vand.u32 %v342, 4294901760
        %8423 = vmatpush1.msra.mxu0 %v8422
        %8424 = vmatprep.subr.mxu0 0.0
        %8425 = vmatpush1.msra.mxu0 0.0
        %8426 = vmatprep.subr.mxu0 0.0
        %8427 = vmatpush1.msra.mxu0 0.0
        %8428 = vmatprep.subr.mxu0 0.0
        %8429 = vmatpush1.msra.mxu0 0.0
        %8430 = vmatprep.subr.mxu0 0.0
        %8431 = vmatpush1.msra.mxu0 0.0
        %8432 = vmatprep.subr.mxu0 0.0
        %8433 = vmatpush1.msra.mxu0 0.0
        %8434 = vmatprep.subr.mxu0 0.0
        %8435 = vmatpush1.msra.mxu0 0.0
        %8436 = vmatprep.subr.mxu0 0.0
        %8437 = vmatpush1.msra.mxu0 0.0
        %8438 = vmatprep.subr.mxu0 0.0
        %8439 = vmatpush1.msra.mxu0 0.0
        %8440 = vmatprep.subr.mxu0 0.0
        %8441 = vmatpush1.msra.mxu0 0.0
        %8442 = vmatprep.subr.mxu0 0.0
        %8443 = vmatpush1.msra.mxu0 0.0
        %8444 = vmatprep.subr.mxu0 0.0
        %8445 = vmatpush1.msra.mxu0 0.0
        %8446 = vmatprep.subr.mxu0 0.0
        %8447 = vmatpush1.msra.mxu0 0.0
        %8448 = vmatprep.subr.mxu0 0.0
        %8449 = vmatpush1.msra.mxu0 0.0
        %8450 = vmatprep.subr.mxu0 0.0
        %8451 = vmatpush1.msra.mxu0 0.0
        %8452 = vmatprep.subr.mxu0 0.0
        %8453 = vmatpush1.msra.mxu0 0.0
        %8454 = vmatprep.subr.mxu0 0.0
        %8455 = vmatpush1.msra.mxu0 0.0
        %8456 = vmatprep.subr.mxu0 0.0
        %8457 = vmatpush1.msra.mxu0 0.0
        %8458 = vmatprep.subr.mxu0 0.0
        %8459 = vmatpush1.msra.mxu0 0.0
        %8460 = vmatprep.subr.mxu0 0.0
        %8461 = vmatpush1.msra.mxu0 0.0
        %8462 = vmatprep.subr.mxu0 0.0
        %8463 = vmatpush1.msra.mxu0 0.0
        %8464 = vmatprep.subr.mxu0 0.0
        %8465 = vmatpush1.msra.mxu0 0.0
        %8466 = vmatprep.subr.mxu0 0.0
        %8467 = vmatpush1.msra.mxu0 0.0
        %8468 = vmatprep.subr.mxu0 0.0
        %8469 = vmatpush1.msra.mxu0 0.0
        %8470 = vmatprep.subr.mxu0 0.0
        %8471 = vmatpush1.msra.mxu0 0.0
        %8472 = vmatprep.subr.mxu0 0.0
        %8473 = vmatpush1.msra.mxu0 0.0
        %8474 = vmatprep.subr.mxu0 0.0
        %8475 = vmatpush1.msra.mxu0 0.0
        %8476 = vmatprep.subr.mxu0 0.0
        %8477 = vmatpush1.msra.mxu0 0.0
        %8478 = vmatprep.subr.mxu0 0.0
        %8479 = vmatpush1.msra.mxu0 0.0
        %8480 = vmatprep.subr.mxu0 0.0
        %8481 = vmatpush1.msra.mxu0 0.0
        %8482 = vmatprep.subr.mxu0 0.0
        %8483 = vmatpush1.msra.mxu0 0.0
        %8484 = vmatprep.mubr.f32.mxu0 0.0
        %v8485 = vand.u32 %v5887, 4294901760
        %v8486 = vsub.f32 %v5887, %v8485
        %v8487 = vand.u32 %v8486, 4294901760
        %8488 = vmatmul.mubr.f32.gmra.mrb[0].mxu0 %v8487
        %v8489 = vpop.f32.mrb[0].mxu0
        %v8490 = vadd.f32 %v8415, %v8489
        %v8491 = vpop.f32.mrb[0].mxu0
        %8492 = vdwg.mxu0
        %8493 = vmatprep.subr.mxu0 0.0
        %v8494 = vand.u32 %v341, 4294901760
        %v8495 = vsub.f32 %v341, %v8494
        %v8496 = vand.u32 %v8495, 4294901760
        %8497 = vmatpush1.msra.mxu0 %v8496
        %8498 = vmatprep.subr.mxu0 0.0
        %v8499 = vand.u32 %v342, 4294901760
        %v8500 = vsub.f32 %v342, %v8499
        %v8501 = vand.u32 %v8500, 4294901760
        %8502 = vmatpush1.msra.mxu0 %v8501
        %8503 = vmatprep.subr.mxu0 0.0
        %8504 = vmatpush1.msra.mxu0 0.0
        %8505 = vmatprep.subr.mxu0 0.0
        %8506 = vmatpush1.msra.mxu0 0.0
        %8507 = vmatprep.subr.mxu0 0.0
        %8508 = vmatpush1.msra.mxu0 0.0
        %8509 = vmatprep.subr.mxu0 0.0
        %8510 = vmatpush1.msra.mxu0 0.0
        %8511 = vmatprep.subr.mxu0 0.0
        %8512 = vmatpush1.msra.mxu0 0.0
        %8513 = vmatprep.subr.mxu0 0.0
        %8514 = vmatpush1.msra.mxu0 0.0
        %8515 = vmatprep.subr.mxu0 0.0
        %8516 = vmatpush1.msra.mxu0 0.0
        %8517 = vmatprep.subr.mxu0 0.0
        %8518 = vmatpush1.msra.mxu0 0.0
        %8519 = vmatprep.subr.mxu0 0.0
        %8520 = vmatpush1.msra.mxu0 0.0
        %8521 = vmatprep.subr.mxu0 0.0
        %8522 = vmatpush1.msra.mxu0 0.0
        %8523 = vmatprep.subr.mxu0 0.0
        %8524 = vmatpush1.msra.mxu0 0.0
        %8525 = vmatprep.subr.mxu0 0.0
        %8526 = vmatpush1.msra.mxu0 0.0
        %8527 = vmatprep.subr.mxu0 0.0
        %8528 = vmatpush1.msra.mxu0 0.0
        %8529 = vmatprep.subr.mxu0 0.0
        %8530 = vmatpush1.msra.mxu0 0.0
        %8531 = vmatprep.subr.mxu0 0.0
        %8532 = vmatpush1.msra.mxu0 0.0
        %8533 = vmatprep.subr.mxu0 0.0
        %8534 = vmatpush1.msra.mxu0 0.0
        %8535 = vmatprep.subr.mxu0 0.0
        %8536 = vmatpush1.msra.mxu0 0.0
        %8537 = vmatprep.subr.mxu0 0.0
        %8538 = vmatpush1.msra.mxu0 0.0
        %8539 = vmatprep.subr.mxu0 0.0
        %8540 = vmatpush1.msra.mxu0 0.0
        %8541 = vmatprep.subr.mxu0 0.0
        %8542 = vmatpush1.msra.mxu0 0.0
        %8543 = vmatprep.subr.mxu0 0.0
        %8544 = vmatpush1.msra.mxu0 0.0
        %8545 = vmatprep.subr.mxu0 0.0
        %8546 = vmatpush1.msra.mxu0 0.0
        %8547 = vmatprep.subr.mxu0 0.0
        %8548 = vmatpush1.msra.mxu0 0.0
        %8549 = vmatprep.subr.mxu0 0.0
        %8550 = vmatpush1.msra.mxu0 0.0
        %8551 = vmatprep.subr.mxu0 0.0
        %8552 = vmatpush1.msra.mxu0 0.0
        %8553 = vmatprep.subr.mxu0 0.0
        %8554 = vmatpush1.msra.mxu0 0.0
        %8555 = vmatprep.subr.mxu0 0.0
        %8556 = vmatpush1.msra.mxu0 0.0
        %8557 = vmatprep.subr.mxu0 0.0
        %8558 = vmatpush1.msra.mxu0 0.0
        %8559 = vmatprep.subr.mxu0 0.0
        %8560 = vmatpush1.msra.mxu0 0.0
        %8561 = vmatprep.subr.mxu0 0.0
        %8562 = vmatpush1.msra.mxu0 0.0
        %8563 = vmatprep.mubr.f32.mxu0 0.0
        %v8564 = vand.u32 %v5887, 4294901760
        %8565 = vmatmul.mubr.f32.gmra.mrb[0].mxu0 %v8564
        %v8566 = vpop.f32.mrb[0].mxu0
        %v8567 = vadd.f32 %v8490, %v8566
        %v8568 = vpop.f32.mrb[0].mxu0
        %8569 = vdwg.mxu0
        %8570 = vmatprep.subr.mxu0 0.0
        %v8571 = vand.u32 %v341, 4294901760
        %8572 = vmatpush1.msra.mxu0 %v8571
        %8573 = vmatprep.subr.mxu0 0.0
        %v8574 = vand.u32 %v342, 4294901760
        %8575 = vmatpush1.msra.mxu0 %v8574
        %8576 = vmatprep.subr.mxu0 0.0
        %8577 = vmatpush1.msra.mxu0 0.0
        %8578 = vmatprep.subr.mxu0 0.0
        %8579 = vmatpush1.msra.mxu0 0.0
        %8580 = vmatprep.subr.mxu0 0.0
        %8581 = vmatpush1.msra.mxu0 0.0
        %8582 = vmatprep.subr.mxu0 0.0
        %8583 = vmatpush1.msra.mxu0 0.0
        %8584 = vmatprep.subr.mxu0 0.0
        %8585 = vmatpush1.msra.mxu0 0.0
        %8586 = vmatprep.subr.mxu0 0.0
        %8587 = vmatpush1.msra.mxu0 0.0
        %8588 = vmatprep.subr.mxu0 0.0
        %8589 = vmatpush1.msra.mxu0 0.0
        %8590 = vmatprep.subr.mxu0 0.0
        %8591 = vmatpush1.msra.mxu0 0.0
        %8592 = vmatprep.subr.mxu0 0.0
        %8593 = vmatpush1.msra.mxu0 0.0
        %8594 = vmatprep.subr.mxu0 0.0
        %8595 = vmatpush1.msra.mxu0 0.0
        %8596 = vmatprep.subr.mxu0 0.0
        %8597 = vmatpush1.msra.mxu0 0.0
        %8598 = vmatprep.subr.mxu0 0.0
        %8599 = vmatpush1.msra.mxu0 0.0
        %8600 = vmatprep.subr.mxu0 0.0
        %8601 = vmatpush1.msra.mxu0 0.0
        %8602 = vmatprep.subr.mxu0 0.0
        %8603 = vmatpush1.msra.mxu0 0.0
        %8604 = vmatprep.subr.mxu0 0.0
        %8605 = vmatpush1.msra.mxu0 0.0
        %8606 = vmatprep.subr.mxu0 0.0
        %8607 = vmatpush1.msra.mxu0 0.0
        %8608 = vmatprep.subr.mxu0 0.0
        %8609 = vmatpush1.msra.mxu0 0.0
        %8610 = vmatprep.subr.mxu0 0.0
        %8611 = vmatpush1.msra.mxu0 0.0
        %8612 = vmatprep.subr.mxu0 0.0
        %8613 = vmatpush1.msra.mxu0 0.0
        %8614 = vmatprep.subr.mxu0 0.0
        %8615 = vmatpush1.msra.mxu0 0.0
        %8616 = vmatprep.subr.mxu0 0.0
        %8617 = vmatpush1.msra.mxu0 0.0
        %8618 = vmatprep.subr.mxu0 0.0
        %8619 = vmatpush1.msra.mxu0 0.0
        %8620 = vmatprep.subr.mxu0 0.0
        %8621 = vmatpush1.msra.mxu0 0.0
        %8622 = vmatprep.subr.mxu0 0.0
        %8623 = vmatpush1.msra.mxu0 0.0
        %8624 = vmatprep.subr.mxu0 0.0
        %8625 = vmatpush1.msra.mxu0 0.0
        %8626 = vmatprep.subr.mxu0 0.0
        %8627 = vmatpush1.msra.mxu0 0.0
        %8628 = vmatprep.subr.mxu0 0.0
        %8629 = vmatpush1.msra.mxu0 0.0
        %8630 = vmatprep.subr.mxu0 0.0
        %8631 = vmatpush1.msra.mxu0 0.0
        %8632 = vmatprep.subr.mxu0 0.0
        %8633 = vmatpush1.msra.mxu0 0.0
        %8634 = vmatprep.subr.mxu0 0.0
        %8635 = vmatpush1.msra.mxu0 0.0
        %8636 = vmatprep.mubr.f32.mxu0 0.0
        %v8637 = vand.u32 %v5887, 4294901760
        %8638 = vmatmul.mubr.f32.gmra.mrb[0].mxu0 %v8637
        %v8639 = vpop.f32.mrb[0].mxu0
        %v8640 = vadd.f32 %v8567, %v8639
        %v8641 = vpop.f32.mrb[0].mxu0
        %8642 = vdwg.mxu0
        %v8644 = vsel %vm346, %v6345, 0
        %8646 = vmatprep.subr.mxu0 0.0
        %v8647 = vand.u32 %v5884, 4294901760
        %8648 = vmatpush1.msra.mxu0 %v8647
        %8649 = vmatprep.subr.mxu0 0.0
        %v8650 = vand.u32 %v5885, 4294901760
        %8651 = vmatpush1.msra.mxu0 %v8650
        %8652 = vmatprep.subr.mxu0 0.0
        %8653 = vmatpush1.msra.mxu0 0.0
        %8654 = vmatprep.subr.mxu0 0.0
        %8655 = vmatpush1.msra.mxu0 0.0
        %8656 = vmatprep.subr.mxu0 0.0
        %8657 = vmatpush1.msra.mxu0 0.0
        %8658 = vmatprep.subr.mxu0 0.0
        %8659 = vmatpush1.msra.mxu0 0.0
        %8660 = vmatprep.subr.mxu0 0.0
        %8661 = vmatpush1.msra.mxu0 0.0
        %8662 = vmatprep.subr.mxu0 0.0
        %8663 = vmatpush1.msra.mxu0 0.0
        %8664 = vmatprep.subr.mxu0 0.0
        %8665 = vmatpush1.msra.mxu0 0.0
        %8666 = vmatprep.subr.mxu0 0.0
        %8667 = vmatpush1.msra.mxu0 0.0
        %8668 = vmatprep.subr.mxu0 0.0
        %8669 = vmatpush1.msra.mxu0 0.0
        %8670 = vmatprep.subr.mxu0 0.0
        %8671 = vmatpush1.msra.mxu0 0.0
        %8672 = vmatprep.subr.mxu0 0.0
        %8673 = vmatpush1.msra.mxu0 0.0
        %8674 = vmatprep.subr.mxu0 0.0
        %8675 = vmatpush1.msra.mxu0 0.0
        %8676 = vmatprep.subr.mxu0 0.0
        %8677 = vmatpush1.msra.mxu0 0.0
        %8678 = vmatprep.subr.mxu0 0.0
        %8679 = vmatpush1.msra.mxu0 0.0
        %8680 = vmatprep.subr.mxu0 0.0
        %8681 = vmatpush1.msra.mxu0 0.0
        %8682 = vmatprep.subr.mxu0 0.0
        %8683 = vmatpush1.msra.mxu0 0.0
        %8684 = vmatprep.subr.mxu0 0.0
        %8685 = vmatpush1.msra.mxu0 0.0
        %8686 = vmatprep.subr.mxu0 0.0
        %8687 = vmatpush1.msra.mxu0 0.0
        %8688 = vmatprep.subr.mxu0 0.0
        %8689 = vmatpush1.msra.mxu0 0.0
        %8690 = vmatprep.subr.mxu0 0.0
        %8691 = vmatpush1.msra.mxu0 0.0
        %8692 = vmatprep.subr.mxu0 0.0
        %8693 = vmatpush1.msra.mxu0 0.0
        %8694 = vmatprep.subr.mxu0 0.0
        %8695 = vmatpush1.msra.mxu0 0.0
        %8696 = vmatprep.subr.mxu0 0.0
        %8697 = vmatpush1.msra.mxu0 0.0
        %8698 = vmatprep.subr.mxu0 0.0
        %8699 = vmatpush1.msra.mxu0 0.0
        %8700 = vmatprep.subr.mxu0 0.0
        %8701 = vmatpush1.msra.mxu0 0.0
        %8702 = vmatprep.subr.mxu0 0.0
        %8703 = vmatpush1.msra.mxu0 0.0
        %8704 = vmatprep.subr.mxu0 0.0
        %8705 = vmatpush1.msra.mxu0 0.0
        %8706 = vmatprep.subr.mxu0 0.0
        %8707 = vmatpush1.msra.mxu0 0.0
        %8708 = vmatprep.subr.mxu0 0.0
        %8709 = vmatpush1.msra.mxu0 0.0
        %8710 = vmatprep.subr.mxu0 0.0
        %8711 = vmatpush1.msra.mxu0 0.0
        %8712 = vmatprep.mubr.f32.mxu0 0.0
        %v8713 = vand.u32 %v8644, 4294901760
        %v8714 = vsub.f32 %v8644, %v8713
        %v8715 = vand.u32 %v8714, 4294901760
        %v8716 = vsub.f32 %v8714, %v8715
        %v8717 = vand.u32 %v8716, 4294901760
        %8718 = vmatmul.mubr.f32.gmra.mrb[0].mxu0 %v8717
        %v8719 = vpop.f32.mrb[0].mxu0
        %v8720 = vadd.f32 0.0, %v8719
        %v8721 = vpop.f32.mrb[0].mxu0
        %8722 = vdwg.mxu0
        %8723 = vmatprep.subr.mxu0 0.0
        %v8724 = vand.u32 %v5884, 4294901760
        %v8725 = vsub.f32 %v5884, %v8724
        %v8726 = vand.u32 %v8725, 4294901760
        %v8727 = vsub.f32 %v8725, %v8726
        %v8728 = vand.u32 %v8727, 4294901760
        %8729 = vmatpush1.msra.mxu0 %v8728
        %8730 = vmatprep.subr.mxu0 0.0
        %v8731 = vand.u32 %v5885, 4294901760
        %v8732 = vsub.f32 %v5885, %v8731
        %v8733 = vand.u32 %v8732, 4294901760
        %v8734 = vsub.f32 %v8732, %v8733
        %v8735 = vand.u32 %v8734, 4294901760
        %8736 = vmatpush1.msra.mxu0 %v8735
        %8737 = vmatprep.subr.mxu0 0.0
        %8738 = vmatpush1.msra.mxu0 0.0
        %8739 = vmatprep.subr.mxu0 0.0
        %8740 = vmatpush1.msra.mxu0 0.0
        %8741 = vmatprep.subr.mxu0 0.0
        %8742 = vmatpush1.msra.mxu0 0.0
        %8743 = vmatprep.subr.mxu0 0.0
        %8744 = vmatpush1.msra.mxu0 0.0
        %8745 = vmatprep.subr.mxu0 0.0
        %8746 = vmatpush1.msra.mxu0 0.0
        %8747 = vmatprep.subr.mxu0 0.0
        %8748 = vmatpush1.msra.mxu0 0.0
        %8749 = vmatprep.subr.mxu0 0.0
        %8750 = vmatpush1.msra.mxu0 0.0
        %8751 = vmatprep.subr.mxu0 0.0
        %8752 = vmatpush1.msra.mxu0 0.0
        %8753 = vmatprep.subr.mxu0 0.0
        %8754 = vmatpush1.msra.mxu0 0.0
        %8755 = vmatprep.subr.mxu0 0.0
        %8756 = vmatpush1.msra.mxu0 0.0
        %8757 = vmatprep.subr.mxu0 0.0
        %8758 = vmatpush1.msra.mxu0 0.0
        %8759 = vmatprep.subr.mxu0 0.0
        %8760 = vmatpush1.msra.mxu0 0.0
        %8761 = vmatprep.subr.mxu0 0.0
        %8762 = vmatpush1.msra.mxu0 0.0
        %8763 = vmatprep.subr.mxu0 0.0
        %8764 = vmatpush1.msra.mxu0 0.0
        %8765 = vmatprep.subr.mxu0 0.0
        %8766 = vmatpush1.msra.mxu0 0.0
        %8767 = vmatprep.subr.mxu0 0.0
        %8768 = vmatpush1.msra.mxu0 0.0
        %8769 = vmatprep.subr.mxu0 0.0
        %8770 = vmatpush1.msra.mxu0 0.0
        %8771 = vmatprep.subr.mxu0 0.0
        %8772 = vmatpush1.msra.mxu0 0.0
        %8773 = vmatprep.subr.mxu0 0.0
        %8774 = vmatpush1.msra.mxu0 0.0
        %8775 = vmatprep.subr.mxu0 0.0
        %8776 = vmatpush1.msra.mxu0 0.0
        %8777 = vmatprep.subr.mxu0 0.0
        %8778 = vmatpush1.msra.mxu0 0.0
        %8779 = vmatprep.subr.mxu0 0.0
        %8780 = vmatpush1.msra.mxu0 0.0
        %8781 = vmatprep.subr.mxu0 0.0
        %8782 = vmatpush1.msra.mxu0 0.0
        %8783 = vmatprep.subr.mxu0 0.0
        %8784 = vmatpush1.msra.mxu0 0.0
        %8785 = vmatprep.subr.mxu0 0.0
        %8786 = vmatpush1.msra.mxu0 0.0
        %8787 = vmatprep.subr.mxu0 0.0
        %8788 = vmatpush1.msra.mxu0 0.0
        %8789 = vmatprep.subr.mxu0 0.0
        %8790 = vmatpush1.msra.mxu0 0.0
        %8791 = vmatprep.subr.mxu0 0.0
        %8792 = vmatpush1.msra.mxu0 0.0
        %8793 = vmatprep.subr.mxu0 0.0
        %8794 = vmatpush1.msra.mxu0 0.0
        %8795 = vmatprep.subr.mxu0 0.0
        %8796 = vmatpush1.msra.mxu0 0.0
        %8797 = vmatprep.mubr.f32.mxu0 0.0
        %v8798 = vand.u32 %v8644, 4294901760
        %8799 = vmatmul.mubr.f32.gmra.mrb[0].mxu0 %v8798
        %v8800 = vpop.f32.mrb[0].mxu0
        %v8801 = vadd.f32 %v8720, %v8800
        %v8802 = vpop.f32.mrb[0].mxu0
        %8803 = vdwg.mxu0
        %8804 = vmatprep.subr.mxu0 0.0
        %v8805 = vand.u32 %v5884, 4294901760
        %v8806 = vsub.f32 %v5884, %v8805
        %8807 = vmatpush1.msra.mxu0 %v8806
        %8808 = vmatprep.subr.mxu0 0.0
        %v8809 = vand.u32 %v5885, 4294901760
        %v8810 = vsub.f32 %v5885, %v8809
        %8811 = vmatpush1.msra.mxu0 %v8810
        %8812 = vmatprep.subr.mxu0 0.0
        %8813 = vmatpush1.msra.mxu0 0.0
        %8814 = vmatprep.subr.mxu0 0.0
        %8815 = vmatpush1.msra.mxu0 0.0
        %8816 = vmatprep.subr.mxu0 0.0
        %8817 = vmatpush1.msra.mxu0 0.0
        %8818 = vmatprep.subr.mxu0 0.0
        %8819 = vmatpush1.msra.mxu0 0.0
        %8820 = vmatprep.subr.mxu0 0.0
        %8821 = vmatpush1.msra.mxu0 0.0
        %8822 = vmatprep.subr.mxu0 0.0
        %8823 = vmatpush1.msra.mxu0 0.0
        %8824 = vmatprep.subr.mxu0 0.0
        %8825 = vmatpush1.msra.mxu0 0.0
        %8826 = vmatprep.subr.mxu0 0.0
        %8827 = vmatpush1.msra.mxu0 0.0
        %8828 = vmatprep.subr.mxu0 0.0
        %8829 = vmatpush1.msra.mxu0 0.0
        %8830 = vmatprep.subr.mxu0 0.0
        %8831 = vmatpush1.msra.mxu0 0.0
        %8832 = vmatprep.subr.mxu0 0.0
        %8833 = vmatpush1.msra.mxu0 0.0
        %8834 = vmatprep.subr.mxu0 0.0
        %8835 = vmatpush1.msra.mxu0 0.0
        %8836 = vmatprep.subr.mxu0 0.0
        %8837 = vmatpush1.msra.mxu0 0.0
        %8838 = vmatprep.subr.mxu0 0.0
        %8839 = vmatpush1.msra.mxu0 0.0
        %8840 = vmatprep.subr.mxu0 0.0
        %8841 = vmatpush1.msra.mxu0 0.0
        %8842 = vmatprep.subr.mxu0 0.0
        %8843 = vmatpush1.msra.mxu0 0.0
        %8844 = vmatprep.subr.mxu0 0.0
        %8845 = vmatpush1.msra.mxu0 0.0
        %8846 = vmatprep.subr.mxu0 0.0
        %8847 = vmatpush1.msra.mxu0 0.0
        %8848 = vmatprep.subr.mxu0 0.0
        %8849 = vmatpush1.msra.mxu0 0.0
        %8850 = vmatprep.subr.mxu0 0.0
        %8851 = vmatpush1.msra.mxu0 0.0
        %8852 = vmatprep.subr.mxu0 0.0
        %8853 = vmatpush1.msra.mxu0 0.0
        %8854 = vmatprep.subr.mxu0 0.0
        %8855 = vmatpush1.msra.mxu0 0.0
        %8856 = vmatprep.subr.mxu0 0.0
        %8857 = vmatpush1.msra.mxu0 0.0
        %8858 = vmatprep.subr.mxu0 0.0
        %8859 = vmatpush1.msra.mxu0 0.0
        %8860 = vmatprep.subr.mxu0 0.0
        %8861 = vmatpush1.msra.mxu0 0.0
        %8862 = vmatprep.subr.mxu0 0.0
        %8863 = vmatpush1.msra.mxu0 0.0
        %8864 = vmatprep.subr.mxu0 0.0
        %8865 = vmatpush1.msra.mxu0 0.0
        %8866 = vmatprep.subr.mxu0 0.0
        %8867 = vmatpush1.msra.mxu0 0.0
        %8868 = vmatprep.subr.mxu0 0.0
        %8869 = vmatpush1.msra.mxu0 0.0
        %8870 = vmatprep.subr.mxu0 0.0
        %8871 = vmatpush1.msra.mxu0 0.0
        %8872 = vmatprep.mubr.f32.mxu0 0.0
        %v8873 = vand.u32 %v8644, 4294901760
        %v8874 = vsub.f32 %v8644, %v8873
        %8875 = vmatmul.mubr.f32.gmra.mrb[0].mxu0 %v8874
        %v8876 = vpop.f32.mrb[0].mxu0
        %v8877 = vadd.f32 %v8801, %v8876
        %v8878 = vpop.f32.mrb[0].mxu0
        %8879 = vdwg.mxu0
        %8880 = vmatprep.subr.mxu0 0.0
        %v8881 = vand.u32 %v5884, 4294901760
        %8882 = vmatpush1.msra.mxu0 %v8881
        %8883 = vmatprep.subr.mxu0 0.0
        %v8884 = vand.u32 %v5885, 4294901760
        %8885 = vmatpush1.msra.mxu0 %v8884
        %8886 = vmatprep.subr.mxu0 0.0
        %8887 = vmatpush1.msra.mxu0 0.0
        %8888 = vmatprep.subr.mxu0 0.0
        %8889 = vmatpush1.msra.mxu0 0.0
        %8890 = vmatprep.subr.mxu0 0.0
        %8891 = vmatpush1.msra.mxu0 0.0
        %8892 = vmatprep.subr.mxu0 0.0
        %8893 = vmatpush1.msra.mxu0 0.0
        %8894 = vmatprep.subr.mxu0 0.0
        %8895 = vmatpush1.msra.mxu0 0.0
        %8896 = vmatprep.subr.mxu0 0.0
        %8897 = vmatpush1.msra.mxu0 0.0
        %8898 = vmatprep.subr.mxu0 0.0
        %8899 = vmatpush1.msra.mxu0 0.0
        %8900 = vmatprep.subr.mxu0 0.0
        %8901 = vmatpush1.msra.mxu0 0.0
        %8902 = vmatprep.subr.mxu0 0.0
        %8903 = vmatpush1.msra.mxu0 0.0
        %8904 = vmatprep.subr.mxu0 0.0
        %8905 = vmatpush1.msra.mxu0 0.0
        %8906 = vmatprep.subr.mxu0 0.0
        %8907 = vmatpush1.msra.mxu0 0.0
        %8908 = vmatprep.subr.mxu0 0.0
        %8909 = vmatpush1.msra.mxu0 0.0
        %8910 = vmatprep.subr.mxu0 0.0
        %8911 = vmatpush1.msra.mxu0 0.0
        %8912 = vmatprep.subr.mxu0 0.0
        %8913 = vmatpush1.msra.mxu0 0.0
        %8914 = vmatprep.subr.mxu0 0.0
        %8915 = vmatpush1.msra.mxu0 0.0
        %8916 = vmatprep.subr.mxu0 0.0
        %8917 = vmatpush1.msra.mxu0 0.0
        %8918 = vmatprep.subr.mxu0 0.0
        %8919 = vmatpush1.msra.mxu0 0.0
        %8920 = vmatprep.subr.mxu0 0.0
        %8921 = vmatpush1.msra.mxu0 0.0
        %8922 = vmatprep.subr.mxu0 0.0
        %8923 = vmatpush1.msra.mxu0 0.0
        %8924 = vmatprep.subr.mxu0 0.0
        %8925 = vmatpush1.msra.mxu0 0.0
        %8926 = vmatprep.subr.mxu0 0.0
        %8927 = vmatpush1.msra.mxu0 0.0
        %8928 = vmatprep.subr.mxu0 0.0
        %8929 = vmatpush1.msra.mxu0 0.0
        %8930 = vmatprep.subr.mxu0 0.0
        %8931 = vmatpush1.msra.mxu0 0.0
        %8932 = vmatprep.subr.mxu0 0.0
        %8933 = vmatpush1.msra.mxu0 0.0
        %8934 = vmatprep.subr.mxu0 0.0
        %8935 = vmatpush1.msra.mxu0 0.0
        %8936 = vmatprep.subr.mxu0 0.0
        %8937 = vmatpush1.msra.mxu0 0.0
        %8938 = vmatprep.subr.mxu0 0.0
        %8939 = vmatpush1.msra.mxu0 0.0
        %8940 = vmatprep.subr.mxu0 0.0
        %8941 = vmatpush1.msra.mxu0 0.0
        %8942 = vmatprep.subr.mxu0 0.0
        %8943 = vmatpush1.msra.mxu0 0.0
        %8944 = vmatprep.subr.mxu0 0.0
        %8945 = vmatpush1.msra.mxu0 0.0
        %8946 = vmatprep.mubr.f32.mxu0 0.0
        %v8947 = vand.u32 %v8644, 4294901760
        %v8948 = vsub.f32 %v8644, %v8947
        %v8949 = vand.u32 %v8948, 4294901760
        %8950 = vmatmul.mubr.f32.gmra.mrb[0].mxu0 %v8949
        %v8951 = vpop.f32.mrb[0].mxu0
        %v8952 = vadd.f32 %v8877, %v8951
        %v8953 = vpop.f32.mrb[0].mxu0
        %8954 = vdwg.mxu0
        %8955 = vmatprep.subr.mxu0 0.0
        %v8956 = vand.u32 %v5884, 4294901760
        %v8957 = vsub.f32 %v5884, %v8956
        %v8958 = vand.u32 %v8957, 4294901760
        %8959 = vmatpush1.msra.mxu0 %v8958
        %8960 = vmatprep.subr.mxu0 0.0
        %v8961 = vand.u32 %v5885, 4294901760
        %v8962 = vsub.f32 %v5885, %v8961
        %v8963 = vand.u32 %v8962, 4294901760
        %8964 = vmatpush1.msra.mxu0 %v8963
        %8965 = vmatprep.subr.mxu0 0.0
        %8966 = vmatpush1.msra.mxu0 0.0
        %8967 = vmatprep.subr.mxu0 0.0
        %8968 = vmatpush1.msra.mxu0 0.0
        %8969 = vmatprep.subr.mxu0 0.0
        %8970 = vmatpush1.msra.mxu0 0.0
        %8971 = vmatprep.subr.mxu0 0.0
        %8972 = vmatpush1.msra.mxu0 0.0
        %8973 = vmatprep.subr.mxu0 0.0
        %8974 = vmatpush1.msra.mxu0 0.0
        %8975 = vmatprep.subr.mxu0 0.0
        %8976 = vmatpush1.msra.mxu0 0.0
        %8977 = vmatprep.subr.mxu0 0.0
        %8978 = vmatpush1.msra.mxu0 0.0
        %8979 = vmatprep.subr.mxu0 0.0
        %8980 = vmatpush1.msra.mxu0 0.0
        %8981 = vmatprep.subr.mxu0 0.0
        %8982 = vmatpush1.msra.mxu0 0.0
        %8983 = vmatprep.subr.mxu0 0.0
        %8984 = vmatpush1.msra.mxu0 0.0
        %8985 = vmatprep.subr.mxu0 0.0
        %8986 = vmatpush1.msra.mxu0 0.0
        %8987 = vmatprep.subr.mxu0 0.0
        %8988 = vmatpush1.msra.mxu0 0.0
        %8989 = vmatprep.subr.mxu0 0.0
        %8990 = vmatpush1.msra.mxu0 0.0
        %8991 = vmatprep.subr.mxu0 0.0
        %8992 = vmatpush1.msra.mxu0 0.0
        %8993 = vmatprep.subr.mxu0 0.0
        %8994 = vmatpush1.msra.mxu0 0.0
        %8995 = vmatprep.subr.mxu0 0.0
        %8996 = vmatpush1.msra.mxu0 0.0
        %8997 = vmatprep.subr.mxu0 0.0
        %8998 = vmatpush1.msra.mxu0 0.0
        %8999 = vmatprep.subr.mxu0 0.0
        %9000 = vmatpush1.msra.mxu0 0.0
        %9001 = vmatprep.subr.mxu0 0.0
        %9002 = vmatpush1.msra.mxu0 0.0
        %9003 = vmatprep.subr.mxu0 0.0
        %9004 = vmatpush1.msra.mxu0 0.0
        %9005 = vmatprep.subr.mxu0 0.0
        %9006 = vmatpush1.msra.mxu0 0.0
        %9007 = vmatprep.subr.mxu0 0.0
        %9008 = vmatpush1.msra.mxu0 0.0
        %9009 = vmatprep.subr.mxu0 0.0
        %9010 = vmatpush1.msra.mxu0 0.0
        %9011 = vmatprep.subr.mxu0 0.0
        %9012 = vmatpush1.msra.mxu0 0.0
        %9013 = vmatprep.subr.mxu0 0.0
        %9014 = vmatpush1.msra.mxu0 0.0
        %9015 = vmatprep.subr.mxu0 0.0
        %9016 = vmatpush1.msra.mxu0 0.0
        %9017 = vmatprep.subr.mxu0 0.0
        %9018 = vmatpush1.msra.mxu0 0.0
        %9019 = vmatprep.subr.mxu0 0.0
        %9020 = vmatpush1.msra.mxu0 0.0
        %9021 = vmatprep.subr.mxu0 0.0
        %9022 = vmatpush1.msra.mxu0 0.0
        %9023 = vmatprep.subr.mxu0 0.0
        %9024 = vmatpush1.msra.mxu0 0.0
        %9025 = vmatprep.mubr.f32.mxu0 0.0
        %v9026 = vand.u32 %v8644, 4294901760
        %9027 = vmatmul.mubr.f32.gmra.mrb[0].mxu0 %v9026
        %v9028 = vpop.f32.mrb[0].mxu0
        %v9029 = vadd.f32 %v8952, %v9028
        %v9030 = vpop.f32.mrb[0].mxu0
        %9031 = vdwg.mxu0
        %9032 = vmatprep.subr.mxu0 0.0
        %v9033 = vand.u32 %v5884, 4294901760
        %9034 = vmatpush1.msra.mxu0 %v9033
        %9035 = vmatprep.subr.mxu0 0.0
        %v9036 = vand.u32 %v5885, 4294901760
        %9037 = vmatpush1.msra.mxu0 %v9036
        %9038 = vmatprep.subr.mxu0 0.0
        %9039 = vmatpush1.msra.mxu0 0.0
        %9040 = vmatprep.subr.mxu0 0.0
        %9041 = vmatpush1.msra.mxu0 0.0
        %9042 = vmatprep.subr.mxu0 0.0
        %9043 = vmatpush1.msra.mxu0 0.0
        %9044 = vmatprep.subr.mxu0 0.0
        %9045 = vmatpush1.msra.mxu0 0.0
        %9046 = vmatprep.subr.mxu0 0.0
        %9047 = vmatpush1.msra.mxu0 0.0
        %9048 = vmatprep.subr.mxu0 0.0
        %9049 = vmatpush1.msra.mxu0 0.0
        %9050 = vmatprep.subr.mxu0 0.0
        %9051 = vmatpush1.msra.mxu0 0.0
        %9052 = vmatprep.subr.mxu0 0.0
        %9053 = vmatpush1.msra.mxu0 0.0
        %9054 = vmatprep.subr.mxu0 0.0
        %9055 = vmatpush1.msra.mxu0 0.0
        %9056 = vmatprep.subr.mxu0 0.0
        %9057 = vmatpush1.msra.mxu0 0.0
        %9058 = vmatprep.subr.mxu0 0.0
        %9059 = vmatpush1.msra.mxu0 0.0
        %9060 = vmatprep.subr.mxu0 0.0
        %9061 = vmatpush1.msra.mxu0 0.0
        %9062 = vmatprep.subr.mxu0 0.0
        %9063 = vmatpush1.msra.mxu0 0.0
        %9064 = vmatprep.subr.mxu0 0.0
        %9065 = vmatpush1.msra.mxu0 0.0
        %9066 = vmatprep.subr.mxu0 0.0
        %9067 = vmatpush1.msra.mxu0 0.0
        %9068 = vmatprep.subr.mxu0 0.0
        %9069 = vmatpush1.msra.mxu0 0.0
        %9070 = vmatprep.subr.mxu0 0.0
        %9071 = vmatpush1.msra.mxu0 0.0
        %9072 = vmatprep.subr.mxu0 0.0
        %9073 = vmatpush1.msra.mxu0 0.0
        %9074 = vmatprep.subr.mxu0 0.0
        %9075 = vmatpush1.msra.mxu0 0.0
        %9076 = vmatprep.subr.mxu0 0.0
        %9077 = vmatpush1.msra.mxu0 0.0
        %9078 = vmatprep.subr.mxu0 0.0
        %9079 = vmatpush1.msra.mxu0 0.0
        %9080 = vmatprep.subr.mxu0 0.0
        %9081 = vmatpush1.msra.mxu0 0.0
        %9082 = vmatprep.subr.mxu0 0.0
        %9083 = vmatpush1.msra.mxu0 0.0
        %9084 = vmatprep.subr.mxu0 0.0
        %9085 = vmatpush1.msra.mxu0 0.0
        %9086 = vmatprep.subr.mxu0 0.0
        %9087 = vmatpush1.msra.mxu0 0.0
        %9088 = vmatprep.subr.mxu0 0.0
        %9089 = vmatpush1.msra.mxu0 0.0
        %9090 = vmatprep.subr.mxu0 0.0
        %9091 = vmatpush1.msra.mxu0 0.0
        %9092 = vmatprep.subr.mxu0 0.0
        %9093 = vmatpush1.msra.mxu0 0.0
        %9094 = vmatprep.subr.mxu0 0.0
        %9095 = vmatpush1.msra.mxu0 0.0
        %9096 = vmatprep.subr.mxu0 0.0
        %9097 = vmatpush1.msra.mxu0 0.0
        %9098 = vmatprep.mubr.f32.mxu0 0.0
        %v9099 = vand.u32 %v8644, 4294901760
        %9100 = vmatmul.mubr.f32.gmra.mrb[0].mxu0 %v9099
        %v9101 = vpop.f32.mrb[0].mxu0
        %v9102 = vadd.f32 %v9029, %v9101
        %v9103 = vpop.f32.mrb[0].mxu0
        %9104 = vdwg.mxu0
        %v9106 = vsel %vm346, %v6804, 0
        %9108 = vmatprep.subr.mxu0 0.0
        %v9109 = vand.u32 %v5884, 4294901760
        %9110 = vmatpush1.msra.mxu0 %v9109
        %9111 = vmatprep.subr.mxu0 0.0
        %v9112 = vand.u32 %v5885, 4294901760
        %9113 = vmatpush1.msra.mxu0 %v9112
        %9114 = vmatprep.subr.mxu0 0.0
        %9115 = vmatpush1.msra.mxu0 0.0
        %9116 = vmatprep.subr.mxu0 0.0
        %9117 = vmatpush1.msra.mxu0 0.0
        %9118 = vmatprep.subr.mxu0 0.0
        %9119 = vmatpush1.msra.mxu0 0.0
        %9120 = vmatprep.subr.mxu0 0.0
        %9121 = vmatpush1.msra.mxu0 0.0
        %9122 = vmatprep.subr.mxu0 0.0
        %9123 = vmatpush1.msra.mxu0 0.0
        %9124 = vmatprep.subr.mxu0 0.0
        %9125 = vmatpush1.msra.mxu0 0.0
        %9126 = vmatprep.subr.mxu0 0.0
        %9127 = vmatpush1.msra.mxu0 0.0
        %9128 = vmatprep.subr.mxu0 0.0
        %9129 = vmatpush1.msra.mxu0 0.0
        %9130 = vmatprep.subr.mxu0 0.0
        %9131 = vmatpush1.msra.mxu0 0.0
        %9132 = vmatprep.subr.mxu0 0.0
        %9133 = vmatpush1.msra.mxu0 0.0
        %9134 = vmatprep.subr.mxu0 0.0
        %9135 = vmatpush1.msra.mxu0 0.0
        %9136 = vmatprep.subr.mxu0 0.0
        %9137 = vmatpush1.msra.mxu0 0.0
        %9138 = vmatprep.subr.mxu0 0.0
        %9139 = vmatpush1.msra.mxu0 0.0
        %9140 = vmatprep.subr.mxu0 0.0
        %9141 = vmatpush1.msra.mxu0 0.0
        %9142 = vmatprep.subr.mxu0 0.0
        %9143 = vmatpush1.msra.mxu0 0.0
        %9144 = vmatprep.subr.mxu0 0.0
        %9145 = vmatpush1.msra.mxu0 0.0
        %9146 = vmatprep.subr.mxu0 0.0
        %9147 = vmatpush1.msra.mxu0 0.0
        %9148 = vmatprep.subr.mxu0 0.0
        %9149 = vmatpush1.msra.mxu0 0.0
        %9150 = vmatprep.subr.mxu0 0.0
        %9151 = vmatpush1.msra.mxu0 0.0
        %9152 = vmatprep.subr.mxu0 0.0
        %9153 = vmatpush1.msra.mxu0 0.0
        %9154 = vmatprep.subr.mxu0 0.0
        %9155 = vmatpush1.msra.mxu0 0.0
        %9156 = vmatprep.subr.mxu0 0.0
        %9157 = vmatpush1.msra.mxu0 0.0
        %9158 = vmatprep.subr.mxu0 0.0
        %9159 = vmatpush1.msra.mxu0 0.0
        %9160 = vmatprep.subr.mxu0 0.0
        %9161 = vmatpush1.msra.mxu0 0.0
        %9162 = vmatprep.subr.mxu0 0.0
        %9163 = vmatpush1.msra.mxu0 0.0
        %9164 = vmatprep.subr.mxu0 0.0
        %9165 = vmatpush1.msra.mxu0 0.0
        %9166 = vmatprep.subr.mxu0 0.0
        %9167 = vmatpush1.msra.mxu0 0.0
        %9168 = vmatprep.subr.mxu0 0.0
        %9169 = vmatpush1.msra.mxu0 0.0
        %9170 = vmatprep.subr.mxu0 0.0
        %9171 = vmatpush1.msra.mxu0 0.0
        %9172 = vmatprep.subr.mxu0 0.0
        %9173 = vmatpush1.msra.mxu0 0.0
        %9174 = vmatprep.mubr.f32.mxu0 0.0
        %v9175 = vand.u32 %v9106, 4294901760
        %v9176 = vsub.f32 %v9106, %v9175
        %v9177 = vand.u32 %v9176, 4294901760
        %v9178 = vsub.f32 %v9176, %v9177
        %v9179 = vand.u32 %v9178, 4294901760
        %9180 = vmatmul.mubr.f32.gmra.mrb[0].mxu0 %v9179
        %v9181 = vpop.f32.mrb[0].mxu0
        %v9182 = vadd.f32 0.0, %v9181
        %v9183 = vpop.f32.mrb[0].mxu0
        %9184 = vdwg.mxu0
        %9185 = vmatprep.subr.mxu0 0.0
        %v9186 = vand.u32 %v5884, 4294901760
        %v9187 = vsub.f32 %v5884, %v9186
        %v9188 = vand.u32 %v9187, 4294901760
        %v9189 = vsub.f32 %v9187, %v9188
        %v9190 = vand.u32 %v9189, 4294901760
        %9191 = vmatpush1.msra.mxu0 %v9190
        %9192 = vmatprep.subr.mxu0 0.0
        %v9193 = vand.u32 %v5885, 4294901760
        %v9194 = vsub.f32 %v5885, %v9193
        %v9195 = vand.u32 %v9194, 4294901760
        %v9196 = vsub.f32 %v9194, %v9195
        %v9197 = vand.u32 %v9196, 4294901760
        %9198 = vmatpush1.msra.mxu0 %v9197
        %9199 = vmatprep.subr.mxu0 0.0
        %9200 = vmatpush1.msra.mxu0 0.0
        %9201 = vmatprep.subr.mxu0 0.0
        %9202 = vmatpush1.msra.mxu0 0.0
        %9203 = vmatprep.subr.mxu0 0.0
        %9204 = vmatpush1.msra.mxu0 0.0
        %9205 = vmatprep.subr.mxu0 0.0
        %9206 = vmatpush1.msra.mxu0 0.0
        %9207 = vmatprep.subr.mxu0 0.0
        %9208 = vmatpush1.msra.mxu0 0.0
        %9209 = vmatprep.subr.mxu0 0.0
        %9210 = vmatpush1.msra.mxu0 0.0
        %9211 = vmatprep.subr.mxu0 0.0
        %9212 = vmatpush1.msra.mxu0 0.0
        %9213 = vmatprep.subr.mxu0 0.0
        %9214 = vmatpush1.msra.mxu0 0.0
        %9215 = vmatprep.subr.mxu0 0.0
        %9216 = vmatpush1.msra.mxu0 0.0
        %9217 = vmatprep.subr.mxu0 0.0
        %9218 = vmatpush1.msra.mxu0 0.0
        %9219 = vmatprep.subr.mxu0 0.0
        %9220 = vmatpush1.msra.mxu0 0.0
        %9221 = vmatprep.subr.mxu0 0.0
        %9222 = vmatpush1.msra.mxu0 0.0
        %9223 = vmatprep.subr.mxu0 0.0
        %9224 = vmatpush1.msra.mxu0 0.0
        %9225 = vmatprep.subr.mxu0 0.0
        %9226 = vmatpush1.msra.mxu0 0.0
        %9227 = vmatprep.subr.mxu0 0.0
        %9228 = vmatpush1.msra.mxu0 0.0
        %9229 = vmatprep.subr.mxu0 0.0
        %9230 = vmatpush1.msra.mxu0 0.0
        %9231 = vmatprep.subr.mxu0 0.0
        %9232 = vmatpush1.msra.mxu0 0.0
        %9233 = vmatprep.subr.mxu0 0.0
        %9234 = vmatpush1.msra.mxu0 0.0
        %9235 = vmatprep.subr.mxu0 0.0
        %9236 = vmatpush1.msra.mxu0 0.0
        %9237 = vmatprep.subr.mxu0 0.0
        %9238 = vmatpush1.msra.mxu0 0.0
        %9239 = vmatprep.subr.mxu0 0.0
        %9240 = vmatpush1.msra.mxu0 0.0
        %9241 = vmatprep.subr.mxu0 0.0
        %9242 = vmatpush1.msra.mxu0 0.0
        %9243 = vmatprep.subr.mxu0 0.0
        %9244 = vmatpush1.msra.mxu0 0.0
        %9245 = vmatprep.subr.mxu0 0.0
        %9246 = vmatpush1.msra.mxu0 0.0
        %9247 = vmatprep.subr.mxu0 0.0
        %9248 = vmatpush1.msra.mxu0 0.0
        %9249 = vmatprep.subr.mxu0 0.0
        %9250 = vmatpush1.msra.mxu0 0.0
        %9251 = vmatprep.subr.mxu0 0.0
        %9252 = vmatpush1.msra.mxu0 0.0
        %9253 = vmatprep.subr.mxu0 0.0
        %9254 = vmatpush1.msra.mxu0 0.0
        %9255 = vmatprep.subr.mxu0 0.0
        %9256 = vmatpush1.msra.mxu0 0.0
        %9257 = vmatprep.subr.mxu0 0.0
        %9258 = vmatpush1.msra.mxu0 0.0
        %9259 = vmatprep.mubr.f32.mxu0 0.0
        %v9260 = vand.u32 %v9106, 4294901760
        %9261 = vmatmul.mubr.f32.gmra.mrb[0].mxu0 %v9260
        %v9262 = vpop.f32.mrb[0].mxu0
        %v9263 = vadd.f32 %v9182, %v9262
        %v9264 = vpop.f32.mrb[0].mxu0
        %9265 = vdwg.mxu0
        %9266 = vmatprep.subr.mxu0 0.0
        %v9267 = vand.u32 %v5884, 4294901760
        %v9268 = vsub.f32 %v5884, %v9267
        %9269 = vmatpush1.msra.mxu0 %v9268
        %9270 = vmatprep.subr.mxu0 0.0
        %v9271 = vand.u32 %v5885, 4294901760
        %v9272 = vsub.f32 %v5885, %v9271
        %9273 = vmatpush1.msra.mxu0 %v9272
        %9274 = vmatprep.subr.mxu0 0.0
        %9275 = vmatpush1.msra.mxu0 0.0
        %9276 = vmatprep.subr.mxu0 0.0
        %9277 = vmatpush1.msra.mxu0 0.0
        %9278 = vmatprep.subr.mxu0 0.0
        %9279 = vmatpush1.msra.mxu0 0.0
        %9280 = vmatprep.subr.mxu0 0.0
        %9281 = vmatpush1.msra.mxu0 0.0
        %9282 = vmatprep.subr.mxu0 0.0
        %9283 = vmatpush1.msra.mxu0 0.0
        %9284 = vmatprep.subr.mxu0 0.0
        %9285 = vmatpush1.msra.mxu0 0.0
        %9286 = vmatprep.subr.mxu0 0.0
        %9287 = vmatpush1.msra.mxu0 0.0
        %9288 = vmatprep.subr.mxu0 0.0
        %9289 = vmatpush1.msra.mxu0 0.0
        %9290 = vmatprep.subr.mxu0 0.0
        %9291 = vmatpush1.msra.mxu0 0.0
        %9292 = vmatprep.subr.mxu0 0.0
        %9293 = vmatpush1.msra.mxu0 0.0
        %9294 = vmatprep.subr.mxu0 0.0
        %9295 = vmatpush1.msra.mxu0 0.0
        %9296 = vmatprep.subr.mxu0 0.0
        %9297 = vmatpush1.msra.mxu0 0.0
        %9298 = vmatprep.subr.mxu0 0.0
        %9299 = vmatpush1.msra.mxu0 0.0
        %9300 = vmatprep.subr.mxu0 0.0
        %9301 = vmatpush1.msra.mxu0 0.0
        %9302 = vmatprep.subr.mxu0 0.0
        %9303 = vmatpush1.msra.mxu0 0.0
        %9304 = vmatprep.subr.mxu0 0.0
        %9305 = vmatpush1.msra.mxu0 0.0
        %9306 = vmatprep.subr.mxu0 0.0
        %9307 = vmatpush1.msra.mxu0 0.0
        %9308 = vmatprep.subr.mxu0 0.0
        %9309 = vmatpush1.msra.mxu0 0.0
        %9310 = vmatprep.subr.mxu0 0.0
        %9311 = vmatpush1.msra.mxu0 0.0
        %9312 = vmatprep.subr.mxu0 0.0
        %9313 = vmatpush1.msra.mxu0 0.0
        %9314 = vmatprep.subr.mxu0 0.0
        %9315 = vmatpush1.msra.mxu0 0.0
        %9316 = vmatprep.subr.mxu0 0.0
        %9317 = vmatpush1.msra.mxu0 0.0
        %9318 = vmatprep.subr.mxu0 0.0
        %9319 = vmatpush1.msra.mxu0 0.0
        %9320 = vmatprep.subr.mxu0 0.0
        %9321 = vmatpush1.msra.mxu0 0.0
        %9322 = vmatprep.subr.mxu0 0.0
        %9323 = vmatpush1.msra.mxu0 0.0
        %9324 = vmatprep.subr.mxu0 0.0
        %9325 = vmatpush1.msra.mxu0 0.0
        %9326 = vmatprep.subr.mxu0 0.0
        %9327 = vmatpush1.msra.mxu0 0.0
        %9328 = vmatprep.subr.mxu0 0.0
        %9329 = vmatpush1.msra.mxu0 0.0
        %9330 = vmatprep.subr.mxu0 0.0
        %9331 = vmatpush1.msra.mxu0 0.0
        %9332 = vmatprep.subr.mxu0 0.0
        %9333 = vmatpush1.msra.mxu0 0.0
        %9334 = vmatprep.mubr.f32.mxu0 0.0
        %v9335 = vand.u32 %v9106, 4294901760
        %v9336 = vsub.f32 %v9106, %v9335
        %9337 = vmatmul.mubr.f32.gmra.mrb[0].mxu0 %v9336
        %v9338 = vpop.f32.mrb[0].mxu0
        %v9339 = vadd.f32 %v9263, %v9338
        %v9340 = vpop.f32.mrb[0].mxu0
        %9341 = vdwg.mxu0
        %9342 = vmatprep.subr.mxu0 0.0
        %v9343 = vand.u32 %v5884, 4294901760
        %9344 = vmatpush1.msra.mxu0 %v9343
        %9345 = vmatprep.subr.mxu0 0.0
        %v9346 = vand.u32 %v5885, 4294901760
        %9347 = vmatpush1.msra.mxu0 %v9346
        %9348 = vmatprep.subr.mxu0 0.0
        %9349 = vmatpush1.msra.mxu0 0.0
        %9350 = vmatprep.subr.mxu0 0.0
        %9351 = vmatpush1.msra.mxu0 0.0
        %9352 = vmatprep.subr.mxu0 0.0
        %9353 = vmatpush1.msra.mxu0 0.0
        %9354 = vmatprep.subr.mxu0 0.0
        %9355 = vmatpush1.msra.mxu0 0.0
        %9356 = vmatprep.subr.mxu0 0.0
        %9357 = vmatpush1.msra.mxu0 0.0
        %9358 = vmatprep.subr.mxu0 0.0
        %9359 = vmatpush1.msra.mxu0 0.0
        %9360 = vmatprep.subr.mxu0 0.0
        %9361 = vmatpush1.msra.mxu0 0.0
        %9362 = vmatprep.subr.mxu0 0.0
        %9363 = vmatpush1.msra.mxu0 0.0
        %9364 = vmatprep.subr.mxu0 0.0
        %9365 = vmatpush1.msra.mxu0 0.0
        %9366 = vmatprep.subr.mxu0 0.0
        %9367 = vmatpush1.msra.mxu0 0.0
        %9368 = vmatprep.subr.mxu0 0.0
        %9369 = vmatpush1.msra.mxu0 0.0
        %9370 = vmatprep.subr.mxu0 0.0
        %9371 = vmatpush1.msra.mxu0 0.0
        %9372 = vmatprep.subr.mxu0 0.0
        %9373 = vmatpush1.msra.mxu0 0.0
        %9374 = vmatprep.subr.mxu0 0.0
        %9375 = vmatpush1.msra.mxu0 0.0
        %9376 = vmatprep.subr.mxu0 0.0
        %9377 = vmatpush1.msra.mxu0 0.0
        %9378 = vmatprep.subr.mxu0 0.0
        %9379 = vmatpush1.msra.mxu0 0.0
        %9380 = vmatprep.subr.mxu0 0.0
        %9381 = vmatpush1.msra.mxu0 0.0
        %9382 = vmatprep.subr.mxu0 0.0
        %9383 = vmatpush1.msra.mxu0 0.0
        %9384 = vmatprep.subr.mxu0 0.0
        %9385 = vmatpush1.msra.mxu0 0.0
        %9386 = vmatprep.subr.mxu0 0.0
        %9387 = vmatpush1.msra.mxu0 0.0
        %9388 = vmatprep.subr.mxu0 0.0
        %9389 = vmatpush1.msra.mxu0 0.0
        %9390 = vmatprep.subr.mxu0 0.0
        %9391 = vmatpush1.msra.mxu0 0.0
        %9392 = vmatprep.subr.mxu0 0.0
        %9393 = vmatpush1.msra.mxu0 0.0
        %9394 = vmatprep.subr.mxu0 0.0
        %9395 = vmatpush1.msra.mxu0 0.0
        %9396 = vmatprep.subr.mxu0 0.0
        %9397 = vmatpush1.msra.mxu0 0.0
        %9398 = vmatprep.subr.mxu0 0.0
        %9399 = vmatpush1.msra.mxu0 0.0
        %9400 = vmatprep.subr.mxu0 0.0
        %9401 = vmatpush1.msra.mxu0 0.0
        %9402 = vmatprep.subr.mxu0 0.0
        %9403 = vmatpush1.msra.mxu0 0.0
        %9404 = vmatprep.subr.mxu0 0.0
        %9405 = vmatpush1.msra.mxu0 0.0
        %9406 = vmatprep.subr.mxu0 0.0
        %9407 = vmatpush1.msra.mxu0 0.0
        %9408 = vmatprep.mubr.f32.mxu0 0.0
        %v9409 = vand.u32 %v9106, 4294901760
        %v9410 = vsub.f32 %v9106, %v9409
        %v9411 = vand.u32 %v9410, 4294901760
        %9412 = vmatmul.mubr.f32.gmra.mrb[0].mxu0 %v9411
        %v9413 = vpop.f32.mrb[0].mxu0
        %v9414 = vadd.f32 %v9339, %v9413
        %v9415 = vpop.f32.mrb[0].mxu0
        %9416 = vdwg.mxu0
        %9417 = vmatprep.subr.mxu0 0.0
        %v9418 = vand.u32 %v5884, 4294901760
        %v9419 = vsub.f32 %v5884, %v9418
        %v9420 = vand.u32 %v9419, 4294901760
        %9421 = vmatpush1.msra.mxu0 %v9420
        %9422 = vmatprep.subr.mxu0 0.0
        %v9423 = vand.u32 %v5885, 4294901760
        %v9424 = vsub.f32 %v5885, %v9423
        %v9425 = vand.u32 %v9424, 4294901760
        %9426 = vmatpush1.msra.mxu0 %v9425
        %9427 = vmatprep.subr.mxu0 0.0
        %9428 = vmatpush1.msra.mxu0 0.0
        %9429 = vmatprep.subr.mxu0 0.0
        %9430 = vmatpush1.msra.mxu0 0.0
        %9431 = vmatprep.subr.mxu0 0.0
        %9432 = vmatpush1.msra.mxu0 0.0
        %9433 = vmatprep.subr.mxu0 0.0
        %9434 = vmatpush1.msra.mxu0 0.0
        %9435 = vmatprep.subr.mxu0 0.0
        %9436 = vmatpush1.msra.mxu0 0.0
        %9437 = vmatprep.subr.mxu0 0.0
        %9438 = vmatpush1.msra.mxu0 0.0
        %9439 = vmatprep.subr.mxu0 0.0
        %9440 = vmatpush1.msra.mxu0 0.0
        %9441 = vmatprep.subr.mxu0 0.0
        %9442 = vmatpush1.msra.mxu0 0.0
        %9443 = vmatprep.subr.mxu0 0.0
        %9444 = vmatpush1.msra.mxu0 0.0
        %9445 = vmatprep.subr.mxu0 0.0
        %9446 = vmatpush1.msra.mxu0 0.0
        %9447 = vmatprep.subr.mxu0 0.0
        %9448 = vmatpush1.msra.mxu0 0.0
        %9449 = vmatprep.subr.mxu0 0.0
        %9450 = vmatpush1.msra.mxu0 0.0
        %9451 = vmatprep.subr.mxu0 0.0
        %9452 = vmatpush1.msra.mxu0 0.0
        %9453 = vmatprep.subr.mxu0 0.0
        %9454 = vmatpush1.msra.mxu0 0.0
        %9455 = vmatprep.subr.mxu0 0.0
        %9456 = vmatpush1.msra.mxu0 0.0
        %9457 = vmatprep.subr.mxu0 0.0
        %9458 = vmatpush1.msra.mxu0 0.0
        %9459 = vmatprep.subr.mxu0 0.0
        %9460 = vmatpush1.msra.mxu0 0.0
        %9461 = vmatprep.subr.mxu0 0.0
        %9462 = vmatpush1.msra.mxu0 0.0
        %9463 = vmatprep.subr.mxu0 0.0
        %9464 = vmatpush1.msra.mxu0 0.0
        %9465 = vmatprep.subr.mxu0 0.0
        %9466 = vmatpush1.msra.mxu0 0.0
        %9467 = vmatprep.subr.mxu0 0.0
        %9468 = vmatpush1.msra.mxu0 0.0
        %9469 = vmatprep.subr.mxu0 0.0
        %9470 = vmatpush1.msra.mxu0 0.0
        %9471 = vmatprep.subr.mxu0 0.0
        %9472 = vmatpush1.msra.mxu0 0.0
        %9473 = vmatprep.subr.mxu0 0.0
        %9474 = vmatpush1.msra.mxu0 0.0
        %9475 = vmatprep.subr.mxu0 0.0
        %9476 = vmatpush1.msra.mxu0 0.0
        %9477 = vmatprep.subr.mxu0 0.0
        %9478 = vmatpush1.msra.mxu0 0.0
        %9479 = vmatprep.subr.mxu0 0.0
        %9480 = vmatpush1.msra.mxu0 0.0
        %9481 = vmatprep.subr.mxu0 0.0
        %9482 = vmatpush1.msra.mxu0 0.0
        %9483 = vmatprep.subr.mxu0 0.0
        %9484 = vmatpush1.msra.mxu0 0.0
        %9485 = vmatprep.subr.mxu0 0.0
        %9486 = vmatpush1.msra.mxu0 0.0
        %9487 = vmatprep.mubr.f32.mxu0 0.0
        %v9488 = vand.u32 %v9106, 4294901760
        %9489 = vmatmul.mubr.f32.gmra.mrb[0].mxu0 %v9488
        %v9490 = vpop.f32.mrb[0].mxu0
        %v9491 = vadd.f32 %v9414, %v9490
        %v9492 = vpop.f32.mrb[0].mxu0
        %9493 = vdwg.mxu0
        %9494 = vmatprep.subr.mxu0 0.0
        %v9495 = vand.u32 %v5884, 4294901760
        %9496 = vmatpush1.msra.mxu0 %v9495
        %9497 = vmatprep.subr.mxu0 0.0
        %v9498 = vand.u32 %v5885, 4294901760
        %9499 = vmatpush1.msra.mxu0 %v9498
        %9500 = vmatprep.subr.mxu0 0.0
        %9501 = vmatpush1.msra.mxu0 0.0
        %9502 = vmatprep.subr.mxu0 0.0
        %9503 = vmatpush1.msra.mxu0 0.0
        %9504 = vmatprep.subr.mxu0 0.0
        %9505 = vmatpush1.msra.mxu0 0.0
        %9506 = vmatprep.subr.mxu0 0.0
        %9507 = vmatpush1.msra.mxu0 0.0
        %9508 = vmatprep.subr.mxu0 0.0
        %9509 = vmatpush1.msra.mxu0 0.0
        %9510 = vmatprep.subr.mxu0 0.0
        %9511 = vmatpush1.msra.mxu0 0.0
        %9512 = vmatprep.subr.mxu0 0.0
        %9513 = vmatpush1.msra.mxu0 0.0
        %9514 = vmatprep.subr.mxu0 0.0
        %9515 = vmatpush1.msra.mxu0 0.0
        %9516 = vmatprep.subr.mxu0 0.0
        %9517 = vmatpush1.msra.mxu0 0.0
        %9518 = vmatprep.subr.mxu0 0.0
        %9519 = vmatpush1.msra.mxu0 0.0
        %9520 = vmatprep.subr.mxu0 0.0
        %9521 = vmatpush1.msra.mxu0 0.0
        %9522 = vmatprep.subr.mxu0 0.0
        %9523 = vmatpush1.msra.mxu0 0.0
        %9524 = vmatprep.subr.mxu0 0.0
        %9525 = vmatpush1.msra.mxu0 0.0
        %9526 = vmatprep.subr.mxu0 0.0
        %9527 = vmatpush1.msra.mxu0 0.0
        %9528 = vmatprep.subr.mxu0 0.0
        %9529 = vmatpush1.msra.mxu0 0.0
        %9530 = vmatprep.subr.mxu0 0.0
        %9531 = vmatpush1.msra.mxu0 0.0
        %9532 = vmatprep.subr.mxu0 0.0
        %9533 = vmatpush1.msra.mxu0 0.0
        %9534 = vmatprep.subr.mxu0 0.0
        %9535 = vmatpush1.msra.mxu0 0.0
        %9536 = vmatprep.subr.mxu0 0.0
        %9537 = vmatpush1.msra.mxu0 0.0
        %9538 = vmatprep.subr.mxu0 0.0
        %9539 = vmatpush1.msra.mxu0 0.0
        %9540 = vmatprep.subr.mxu0 0.0
        %9541 = vmatpush1.msra.mxu0 0.0
        %9542 = vmatprep.subr.mxu0 0.0
        %9543 = vmatpush1.msra.mxu0 0.0
        %9544 = vmatprep.subr.mxu0 0.0
        %9545 = vmatpush1.msra.mxu0 0.0
        %9546 = vmatprep.subr.mxu0 0.0
        %9547 = vmatpush1.msra.mxu0 0.0
        %9548 = vmatprep.subr.mxu0 0.0
        %9549 = vmatpush1.msra.mxu0 0.0
        %9550 = vmatprep.subr.mxu0 0.0
        %9551 = vmatpush1.msra.mxu0 0.0
        %9552 = vmatprep.subr.mxu0 0.0
        %9553 = vmatpush1.msra.mxu0 0.0
        %9554 = vmatprep.subr.mxu0 0.0
        %9555 = vmatpush1.msra.mxu0 0.0
        %9556 = vmatprep.subr.mxu0 0.0
        %9557 = vmatpush1.msra.mxu0 0.0
        %9558 = vmatprep.subr.mxu0 0.0
        %9559 = vmatpush1.msra.mxu0 0.0
        %9560 = vmatprep.mubr.f32.mxu0 0.0
        %v9561 = vand.u32 %v9106, 4294901760
        %9562 = vmatmul.mubr.f32.gmra.mrb[0].mxu0 %v9561
        %v9563 = vpop.f32.mrb[0].mxu0
        %v9564 = vadd.f32 %v9491, %v9563
        %v9565 = vpop.f32.mrb[0].mxu0
        %9566 = vdwg.mxu0
        %v9568 = vsel %vm346, %v7263, 0
        %9570 = vmatprep.subr.mxu0 0.0
        %v9571 = vand.u32 %v5884, 4294901760
        %9572 = vmatpush1.msra.mxu0 %v9571
        %9573 = vmatprep.subr.mxu0 0.0
        %v9574 = vand.u32 %v5885, 4294901760
        %9575 = vmatpush1.msra.mxu0 %v9574
        %9576 = vmatprep.subr.mxu0 0.0
        %9577 = vmatpush1.msra.mxu0 0.0
        %9578 = vmatprep.subr.mxu0 0.0
        %9579 = vmatpush1.msra.mxu0 0.0
        %9580 = vmatprep.subr.mxu0 0.0
        %9581 = vmatpush1.msra.mxu0 0.0
        %9582 = vmatprep.subr.mxu0 0.0
        %9583 = vmatpush1.msra.mxu0 0.0
        %9584 = vmatprep.subr.mxu0 0.0
        %9585 = vmatpush1.msra.mxu0 0.0
        %9586 = vmatprep.subr.mxu0 0.0
        %9587 = vmatpush1.msra.mxu0 0.0
        %9588 = vmatprep.subr.mxu0 0.0
        %9589 = vmatpush1.msra.mxu0 0.0
        %9590 = vmatprep.subr.mxu0 0.0
        %9591 = vmatpush1.msra.mxu0 0.0
        %9592 = vmatprep.subr.mxu0 0.0
        %9593 = vmatpush1.msra.mxu0 0.0
        %9594 = vmatprep.subr.mxu0 0.0
        %9595 = vmatpush1.msra.mxu0 0.0
        %9596 = vmatprep.subr.mxu0 0.0
        %9597 = vmatpush1.msra.mxu0 0.0
        %9598 = vmatprep.subr.mxu0 0.0
        %9599 = vmatpush1.msra.mxu0 0.0
        %9600 = vmatprep.subr.mxu0 0.0
        %9601 = vmatpush1.msra.mxu0 0.0
        %9602 = vmatprep.subr.mxu0 0.0
        %9603 = vmatpush1.msra.mxu0 0.0
        %9604 = vmatprep.subr.mxu0 0.0
        %9605 = vmatpush1.msra.mxu0 0.0
        %9606 = vmatprep.subr.mxu0 0.0
        %9607 = vmatpush1.msra.mxu0 0.0
        %9608 = vmatprep.subr.mxu0 0.0
        %9609 = vmatpush1.msra.mxu0 0.0
        %9610 = vmatprep.subr.mxu0 0.0
        %9611 = vmatpush1.msra.mxu0 0.0
        %9612 = vmatprep.subr.mxu0 0.0
        %9613 = vmatpush1.msra.mxu0 0.0
        %9614 = vmatprep.subr.mxu0 0.0
        %9615 = vmatpush1.msra.mxu0 0.0
        %9616 = vmatprep.subr.mxu0 0.0
        %9617 = vmatpush1.msra.mxu0 0.0
        %9618 = vmatprep.subr.mxu0 0.0
        %9619 = vmatpush1.msra.mxu0 0.0
        %9620 = vmatprep.subr.mxu0 0.0
        %9621 = vmatpush1.msra.mxu0 0.0
        %9622 = vmatprep.subr.mxu0 0.0
        %9623 = vmatpush1.msra.mxu0 0.0
        %9624 = vmatprep.subr.mxu0 0.0
        %9625 = vmatpush1.msra.mxu0 0.0
        %9626 = vmatprep.subr.mxu0 0.0
        %9627 = vmatpush1.msra.mxu0 0.0
        %9628 = vmatprep.subr.mxu0 0.0
        %9629 = vmatpush1.msra.mxu0 0.0
        %9630 = vmatprep.subr.mxu0 0.0
        %9631 = vmatpush1.msra.mxu0 0.0
        %9632 = vmatprep.subr.mxu0 0.0
        %9633 = vmatpush1.msra.mxu0 0.0
        %9634 = vmatprep.subr.mxu0 0.0
        %9635 = vmatpush1.msra.mxu0 0.0
        %9636 = vmatprep.mubr.f32.mxu0 0.0
        %v9637 = vand.u32 %v9568, 4294901760
        %v9638 = vsub.f32 %v9568, %v9637
        %v9639 = vand.u32 %v9638, 4294901760
        %v9640 = vsub.f32 %v9638, %v9639
        %v9641 = vand.u32 %v9640, 4294901760
        %9642 = vmatmul.mubr.f32.gmra.mrb[0].mxu0 %v9641
        %v9643 = vpop.f32.mrb[0].mxu0
        %v9644 = vadd.f32 0.0, %v9643
        %v9645 = vpop.f32.mrb[0].mxu0
        %9646 = vdwg.mxu0
        %9647 = vmatprep.subr.mxu0 0.0
        %v9648 = vand.u32 %v5884, 4294901760
        %v9649 = vsub.f32 %v5884, %v9648
        %v9650 = vand.u32 %v9649, 4294901760
        %v9651 = vsub.f32 %v9649, %v9650
        %v9652 = vand.u32 %v9651, 4294901760
        %9653 = vmatpush1.msra.mxu0 %v9652
        %9654 = vmatprep.subr.mxu0 0.0
        %v9655 = vand.u32 %v5885, 4294901760
        %v9656 = vsub.f32 %v5885, %v9655
        %v9657 = vand.u32 %v9656, 4294901760
        %v9658 = vsub.f32 %v9656, %v9657
        %v9659 = vand.u32 %v9658, 4294901760
        %9660 = vmatpush1.msra.mxu0 %v9659
        %9661 = vmatprep.subr.mxu0 0.0
        %9662 = vmatpush1.msra.mxu0 0.0
        %9663 = vmatprep.subr.mxu0 0.0
        %9664 = vmatpush1.msra.mxu0 0.0
        %9665 = vmatprep.subr.mxu0 0.0
        %9666 = vmatpush1.msra.mxu0 0.0
        %9667 = vmatprep.subr.mxu0 0.0
        %9668 = vmatpush1.msra.mxu0 0.0
        %9669 = vmatprep.subr.mxu0 0.0
        %9670 = vmatpush1.msra.mxu0 0.0
        %9671 = vmatprep.subr.mxu0 0.0
        %9672 = vmatpush1.msra.mxu0 0.0
        %9673 = vmatprep.subr.mxu0 0.0
        %9674 = vmatpush1.msra.mxu0 0.0
        %9675 = vmatprep.subr.mxu0 0.0
        %9676 = vmatpush1.msra.mxu0 0.0
        %9677 = vmatprep.subr.mxu0 0.0
        %9678 = vmatpush1.msra.mxu0 0.0
        %9679 = vmatprep.subr.mxu0 0.0
        %9680 = vmatpush1.msra.mxu0 0.0
        %9681 = vmatprep.subr.mxu0 0.0
        %9682 = vmatpush1.msra.mxu0 0.0
        %9683 = vmatprep.subr.mxu0 0.0
        %9684 = vmatpush1.msra.mxu0 0.0
        %9685 = vmatprep.subr.mxu0 0.0
        %9686 = vmatpush1.msra.mxu0 0.0
        %9687 = vmatprep.subr.mxu0 0.0
        %9688 = vmatpush1.msra.mxu0 0.0
        %9689 = vmatprep.subr.mxu0 0.0
        %9690 = vmatpush1.msra.mxu0 0.0
        %9691 = vmatprep.subr.mxu0 0.0
        %9692 = vmatpush1.msra.mxu0 0.0
        %9693 = vmatprep.subr.mxu0 0.0
        %9694 = vmatpush1.msra.mxu0 0.0
        %9695 = vmatprep.subr.mxu0 0.0
        %9696 = vmatpush1.msra.mxu0 0.0
        %9697 = vmatprep.subr.mxu0 0.0
        %9698 = vmatpush1.msra.mxu0 0.0
        %9699 = vmatprep.subr.mxu0 0.0
        %9700 = vmatpush1.msra.mxu0 0.0
        %9701 = vmatprep.subr.mxu0 0.0
        %9702 = vmatpush1.msra.mxu0 0.0
        %9703 = vmatprep.subr.mxu0 0.0
        %9704 = vmatpush1.msra.mxu0 0.0
        %9705 = vmatprep.subr.mxu0 0.0
        %9706 = vmatpush1.msra.mxu0 0.0
        %9707 = vmatprep.subr.mxu0 0.0
        %9708 = vmatpush1.msra.mxu0 0.0
        %9709 = vmatprep.subr.mxu0 0.0
        %9710 = vmatpush1.msra.mxu0 0.0
        %9711 = vmatprep.subr.mxu0 0.0
        %9712 = vmatpush1.msra.mxu0 0.0
        %9713 = vmatprep.subr.mxu0 0.0
        %9714 = vmatpush1.msra.mxu0 0.0
        %9715 = vmatprep.subr.mxu0 0.0
        %9716 = vmatpush1.msra.mxu0 0.0
        %9717 = vmatprep.subr.mxu0 0.0
        %9718 = vmatpush1.msra.mxu0 0.0
        %9719 = vmatprep.subr.mxu0 0.0
        %9720 = vmatpush1.msra.mxu0 0.0
        %9721 = vmatprep.mubr.f32.mxu0 0.0
        %v9722 = vand.u32 %v9568, 4294901760
        %9723 = vmatmul.mubr.f32.gmra.mrb[0].mxu0 %v9722
        %v9724 = vpop.f32.mrb[0].mxu0
        %v9725 = vadd.f32 %v9644, %v9724
        %v9726 = vpop.f32.mrb[0].mxu0
        %9727 = vdwg.mxu0
        %9728 = vmatprep.subr.mxu0 0.0
        %v9729 = vand.u32 %v5884, 4294901760
        %v9730 = vsub.f32 %v5884, %v9729
        %9731 = vmatpush1.msra.mxu0 %v9730
        %9732 = vmatprep.subr.mxu0 0.0
        %v9733 = vand.u32 %v5885, 4294901760
        %v9734 = vsub.f32 %v5885, %v9733
        %9735 = vmatpush1.msra.mxu0 %v9734
        %9736 = vmatprep.subr.mxu0 0.0
        %9737 = vmatpush1.msra.mxu0 0.0
        %9738 = vmatprep.subr.mxu0 0.0
        %9739 = vmatpush1.msra.mxu0 0.0
        %9740 = vmatprep.subr.mxu0 0.0
        %9741 = vmatpush1.msra.mxu0 0.0
        %9742 = vmatprep.subr.mxu0 0.0
        %9743 = vmatpush1.msra.mxu0 0.0
        %9744 = vmatprep.subr.mxu0 0.0
        %9745 = vmatpush1.msra.mxu0 0.0
        %9746 = vmatprep.subr.mxu0 0.0
        %9747 = vmatpush1.msra.mxu0 0.0
        %9748 = vmatprep.subr.mxu0 0.0
        %9749 = vmatpush1.msra.mxu0 0.0
        %9750 = vmatprep.subr.mxu0 0.0
        %9751 = vmatpush1.msra.mxu0 0.0
        %9752 = vmatprep.subr.mxu0 0.0
        %9753 = vmatpush1.msra.mxu0 0.0
        %9754 = vmatprep.subr.mxu0 0.0
        %9755 = vmatpush1.msra.mxu0 0.0
        %9756 = vmatprep.subr.mxu0 0.0
        %9757 = vmatpush1.msra.mxu0 0.0
        %9758 = vmatprep.subr.mxu0 0.0
        %9759 = vmatpush1.msra.mxu0 0.0
        %9760 = vmatprep.subr.mxu0 0.0
        %9761 = vmatpush1.msra.mxu0 0.0
        %9762 = vmatprep.subr.mxu0 0.0
        %9763 = vmatpush1.msra.mxu0 0.0
        %9764 = vmatprep.subr.mxu0 0.0
        %9765 = vmatpush1.msra.mxu0 0.0
        %9766 = vmatprep.subr.mxu0 0.0
        %9767 = vmatpush1.msra.mxu0 0.0
        %9768 = vmatprep.subr.mxu0 0.0
        %9769 = vmatpush1.msra.mxu0 0.0
        %9770 = vmatprep.subr.mxu0 0.0
        %9771 = vmatpush1.msra.mxu0 0.0
        %9772 = vmatprep.subr.mxu0 0.0
        %9773 = vmatpush1.msra.mxu0 0.0
        %9774 = vmatprep.subr.mxu0 0.0
        %9775 = vmatpush1.msra.mxu0 0.0
        %9776 = vmatprep.subr.mxu0 0.0
        %9777 = vmatpush1.msra.mxu0 0.0
        %9778 = vmatprep.subr.mxu0 0.0
        %9779 = vmatpush1.msra.mxu0 0.0
        %9780 = vmatprep.subr.mxu0 0.0
        %9781 = vmatpush1.msra.mxu0 0.0
        %9782 = vmatprep.subr.mxu0 0.0
        %9783 = vmatpush1.msra.mxu0 0.0
        %9784 = vmatprep.subr.mxu0 0.0
        %9785 = vmatpush1.msra.mxu0 0.0
        %9786 = vmatprep.subr.mxu0 0.0
        %9787 = vmatpush1.msra.mxu0 0.0
        %9788 = vmatprep.subr.mxu0 0.0
        %9789 = vmatpush1.msra.mxu0 0.0
        %9790 = vmatprep.subr.mxu0 0.0
        %9791 = vmatpush1.msra.mxu0 0.0
        %9792 = vmatprep.subr.mxu0 0.0
        %9793 = vmatpush1.msra.mxu0 0.0
        %9794 = vmatprep.subr.mxu0 0.0
        %9795 = vmatpush1.msra.mxu0 0.0
        %9796 = vmatprep.mubr.f32.mxu0 0.0
        %v9797 = vand.u32 %v9568, 4294901760
        %v9798 = vsub.f32 %v9568, %v9797
        %9799 = vmatmul.mubr.f32.gmra.mrb[0].mxu0 %v9798
        %v9800 = vpop.f32.mrb[0].mxu0
        %v9801 = vadd.f32 %v9725, %v9800
        %v9802 = vpop.f32.mrb[0].mxu0
        %9803 = vdwg.mxu0
        %9804 = vmatprep.subr.mxu0 0.0
        %v9805 = vand.u32 %v5884, 4294901760
        %9806 = vmatpush1.msra.mxu0 %v9805
        %9807 = vmatprep.subr.mxu0 0.0
        %v9808 = vand.u32 %v5885, 4294901760
        %9809 = vmatpush1.msra.mxu0 %v9808
        %9810 = vmatprep.subr.mxu0 0.0
        %9811 = vmatpush1.msra.mxu0 0.0
        %9812 = vmatprep.subr.mxu0 0.0
        %9813 = vmatpush1.msra.mxu0 0.0
        %9814 = vmatprep.subr.mxu0 0.0
        %9815 = vmatpush1.msra.mxu0 0.0
        %9816 = vmatprep.subr.mxu0 0.0
        %9817 = vmatpush1.msra.mxu0 0.0
        %9818 = vmatprep.subr.mxu0 0.0
        %9819 = vmatpush1.msra.mxu0 0.0
        %9820 = vmatprep.subr.mxu0 0.0
        %9821 = vmatpush1.msra.mxu0 0.0
        %9822 = vmatprep.subr.mxu0 0.0
        %9823 = vmatpush1.msra.mxu0 0.0
        %9824 = vmatprep.subr.mxu0 0.0
        %9825 = vmatpush1.msra.mxu0 0.0
        %9826 = vmatprep.subr.mxu0 0.0
        %9827 = vmatpush1.msra.mxu0 0.0
        %9828 = vmatprep.subr.mxu0 0.0
        %9829 = vmatpush1.msra.mxu0 0.0
        %9830 = vmatprep.subr.mxu0 0.0
        %9831 = vmatpush1.msra.mxu0 0.0
        %9832 = vmatprep.subr.mxu0 0.0
        %9833 = vmatpush1.msra.mxu0 0.0
        %9834 = vmatprep.subr.mxu0 0.0
        %9835 = vmatpush1.msra.mxu0 0.0
        %9836 = vmatprep.subr.mxu0 0.0
        %9837 = vmatpush1.msra.mxu0 0.0
        %9838 = vmatprep.subr.mxu0 0.0
        %9839 = vmatpush1.msra.mxu0 0.0
        %9840 = vmatprep.subr.mxu0 0.0
        %9841 = vmatpush1.msra.mxu0 0.0
        %9842 = vmatprep.subr.mxu0 0.0
        %9843 = vmatpush1.msra.mxu0 0.0
        %9844 = vmatprep.subr.mxu0 0.0
        %9845 = vmatpush1.msra.mxu0 0.0
        %9846 = vmatprep.subr.mxu0 0.0
        %9847 = vmatpush1.msra.mxu0 0.0
        %9848 = vmatprep.subr.mxu0 0.0
        %9849 = vmatpush1.msra.mxu0 0.0
        %9850 = vmatprep.subr.mxu0 0.0
        %9851 = vmatpush1.msra.mxu0 0.0
        %9852 = vmatprep.subr.mxu0 0.0
        %9853 = vmatpush1.msra.mxu0 0.0
        %9854 = vmatprep.subr.mxu0 0.0
        %9855 = vmatpush1.msra.mxu0 0.0
        %9856 = vmatprep.subr.mxu0 0.0
        %9857 = vmatpush1.msra.mxu0 0.0
        %9858 = vmatprep.subr.mxu0 0.0
        %9859 = vmatpush1.msra.mxu0 0.0
        %9860 = vmatprep.subr.mxu0 0.0
        %9861 = vmatpush1.msra.mxu0 0.0
        %9862 = vmatprep.subr.mxu0 0.0
        %9863 = vmatpush1.msra.mxu0 0.0
        %9864 = vmatprep.subr.mxu0 0.0
        %9865 = vmatpush1.msra.mxu0 0.0
        %9866 = vmatprep.subr.mxu0 0.0
        %9867 = vmatpush1.msra.mxu0 0.0
        %9868 = vmatprep.subr.mxu0 0.0
        %9869 = vmatpush1.msra.mxu0 0.0
        %9870 = vmatprep.mubr.f32.mxu0 0.0
        %v9871 = vand.u32 %v9568, 4294901760
        %v9872 = vsub.f32 %v9568, %v9871
        %v9873 = vand.u32 %v9872, 4294901760
        %9874 = vmatmul.mubr.f32.gmra.mrb[0].mxu0 %v9873
        %v9875 = vpop.f32.mrb[0].mxu0
        %v9876 = vadd.f32 %v9801, %v9875
        %v9877 = vpop.f32.mrb[0].mxu0
        %9878 = vdwg.mxu0
        %9879 = vmatprep.subr.mxu0 0.0
        %v9880 = vand.u32 %v5884, 4294901760
        %v9881 = vsub.f32 %v5884, %v9880
        %v9882 = vand.u32 %v9881, 4294901760
        %9883 = vmatpush1.msra.mxu0 %v9882
        %9884 = vmatprep.subr.mxu0 0.0
        %v9885 = vand.u32 %v5885, 4294901760
        %v9886 = vsub.f32 %v5885, %v9885
        %v9887 = vand.u32 %v9886, 4294901760
        %9888 = vmatpush1.msra.mxu0 %v9887
        %9889 = vmatprep.subr.mxu0 0.0
        %9890 = vmatpush1.msra.mxu0 0.0
        %9891 = vmatprep.subr.mxu0 0.0
        %9892 = vmatpush1.msra.mxu0 0.0
        %9893 = vmatprep.subr.mxu0 0.0
        %9894 = vmatpush1.msra.mxu0 0.0
        %9895 = vmatprep.subr.mxu0 0.0
        %9896 = vmatpush1.msra.mxu0 0.0
        %9897 = vmatprep.subr.mxu0 0.0
        %9898 = vmatpush1.msra.mxu0 0.0
        %9899 = vmatprep.subr.mxu0 0.0
        %9900 = vmatpush1.msra.mxu0 0.0
        %9901 = vmatprep.subr.mxu0 0.0
        %9902 = vmatpush1.msra.mxu0 0.0
        %9903 = vmatprep.subr.mxu0 0.0
        %9904 = vmatpush1.msra.mxu0 0.0
        %9905 = vmatprep.subr.mxu0 0.0
        %9906 = vmatpush1.msra.mxu0 0.0
        %9907 = vmatprep.subr.mxu0 0.0
        %9908 = vmatpush1.msra.mxu0 0.0
        %9909 = vmatprep.subr.mxu0 0.0
        %9910 = vmatpush1.msra.mxu0 0.0
        %9911 = vmatprep.subr.mxu0 0.0
        %9912 = vmatpush1.msra.mxu0 0.0
        %9913 = vmatprep.subr.mxu0 0.0
        %9914 = vmatpush1.msra.mxu0 0.0
        %9915 = vmatprep.subr.mxu0 0.0
        %9916 = vmatpush1.msra.mxu0 0.0
        %9917 = vmatprep.subr.mxu0 0.0
        %9918 = vmatpush1.msra.mxu0 0.0
        %9919 = vmatprep.subr.mxu0 0.0
        %9920 = vmatpush1.msra.mxu0 0.0
        %9921 = vmatprep.subr.mxu0 0.0
        %9922 = vmatpush1.msra.mxu0 0.0
        %9923 = vmatprep.subr.mxu0 0.0
        %9924 = vmatpush1.msra.mxu0 0.0
        %9925 = vmatprep.subr.mxu0 0.0
        %9926 = vmatpush1.msra.mxu0 0.0
        %9927 = vmatprep.subr.mxu0 0.0
        %9928 = vmatpush1.msra.mxu0 0.0
        %9929 = vmatprep.subr.mxu0 0.0
        %9930 = vmatpush1.msra.mxu0 0.0
        %9931 = vmatprep.subr.mxu0 0.0
        %9932 = vmatpush1.msra.mxu0 0.0
        %9933 = vmatprep.subr.mxu0 0.0
        %9934 = vmatpush1.msra.mxu0 0.0
        %9935 = vmatprep.subr.mxu0 0.0
        %9936 = vmatpush1.msra.mxu0 0.0
        %9937 = vmatprep.subr.mxu0 0.0
        %9938 = vmatpush1.msra.mxu0 0.0
        %9939 = vmatprep.subr.mxu0 0.0
        %9940 = vmatpush1.msra.mxu0 0.0
        %9941 = vmatprep.subr.mxu0 0.0
        %9942 = vmatpush1.msra.mxu0 0.0
        %9943 = vmatprep.subr.mxu0 0.0
        %9944 = vmatpush1.msra.mxu0 0.0
        %9945 = vmatprep.subr.mxu0 0.0
        %9946 = vmatpush1.msra.mxu0 0.0
        %9947 = vmatprep.subr.mxu0 0.0
        %9948 = vmatpush1.msra.mxu0 0.0
        %9949 = vmatprep.mubr.f32.mxu0 0.0
        %v9950 = vand.u32 %v9568, 4294901760
        %9951 = vmatmul.mubr.f32.gmra.mrb[0].mxu0 %v9950
        %v9952 = vpop.f32.mrb[0].mxu0
        %v9953 = vadd.f32 %v9876, %v9952
        %v9954 = vpop.f32.mrb[0].mxu0
        %9955 = vdwg.mxu0
        %9956 = vmatprep.subr.mxu0 0.0
        %v9957 = vand.u32 %v5884, 4294901760
        %9958 = vmatpush1.msra.mxu0 %v9957
        %9959 = vmatprep.subr.mxu0 0.0
        %v9960 = vand.u32 %v5885, 4294901760
        %9961 = vmatpush1.msra.mxu0 %v9960
        %9962 = vmatprep.subr.mxu0 0.0
        %9963 = vmatpush1.msra.mxu0 0.0
        %9964 = vmatprep.subr.mxu0 0.0
        %9965 = vmatpush1.msra.mxu0 0.0
        %9966 = vmatprep.subr.mxu0 0.0
        %9967 = vmatpush1.msra.mxu0 0.0
        %9968 = vmatprep.subr.mxu0 0.0
        %9969 = vmatpush1.msra.mxu0 0.0
        %9970 = vmatprep.subr.mxu0 0.0
        %9971 = vmatpush1.msra.mxu0 0.0
        %9972 = vmatprep.subr.mxu0 0.0
        %9973 = vmatpush1.msra.mxu0 0.0
        %9974 = vmatprep.subr.mxu0 0.0
        %9975 = vmatpush1.msra.mxu0 0.0
        %9976 = vmatprep.subr.mxu0 0.0
        %9977 = vmatpush1.msra.mxu0 0.0
        %9978 = vmatprep.subr.mxu0 0.0
        %9979 = vmatpush1.msra.mxu0 0.0
        %9980 = vmatprep.subr.mxu0 0.0
        %9981 = vmatpush1.msra.mxu0 0.0
        %9982 = vmatprep.subr.mxu0 0.0
        %9983 = vmatpush1.msra.mxu0 0.0
        %9984 = vmatprep.subr.mxu0 0.0
        %9985 = vmatpush1.msra.mxu0 0.0
        %9986 = vmatprep.subr.mxu0 0.0
        %9987 = vmatpush1.msra.mxu0 0.0
        %9988 = vmatprep.subr.mxu0 0.0
        %9989 = vmatpush1.msra.mxu0 0.0
        %9990 = vmatprep.subr.mxu0 0.0
        %9991 = vmatpush1.msra.mxu0 0.0
        %9992 = vmatprep.subr.mxu0 0.0
        %9993 = vmatpush1.msra.mxu0 0.0
        %9994 = vmatprep.subr.mxu0 0.0
        %9995 = vmatpush1.msra.mxu0 0.0
        %9996 = vmatprep.subr.mxu0 0.0
        %9997 = vmatpush1.msra.mxu0 0.0
        %9998 = vmatprep.subr.mxu0 0.0
        %9999 = vmatpush1.msra.mxu0 0.0
        %10000 = vmatprep.subr.mxu0 0.0
        %10001 = vmatpush1.msra.mxu0 0.0
        %10002 = vmatprep.subr.mxu0 0.0
        %10003 = vmatpush1.msra.mxu0 0.0
        %10004 = vmatprep.subr.mxu0 0.0
        %10005 = vmatpush1.msra.mxu0 0.0
        %10006 = vmatprep.subr.mxu0 0.0
        %10007 = vmatpush1.msra.mxu0 0.0
        %10008 = vmatprep.subr.mxu0 0.0
        %10009 = vmatpush1.msra.mxu0 0.0
        %10010 = vmatprep.subr.mxu0 0.0
        %10011 = vmatpush1.msra.mxu0 0.0
        %10012 = vmatprep.subr.mxu0 0.0
        %10013 = vmatpush1.msra.mxu0 0.0
        %10014 = vmatprep.subr.mxu0 0.0
        %10015 = vmatpush1.msra.mxu0 0.0
        %10016 = vmatprep.subr.mxu0 0.0
        %10017 = vmatpush1.msra.mxu0 0.0
        %10018 = vmatprep.subr.mxu0 0.0
        %10019 = vmatpush1.msra.mxu0 0.0
        %10020 = vmatprep.subr.mxu0 0.0
        %10021 = vmatpush1.msra.mxu0 0.0
        %10022 = vmatprep.mubr.f32.mxu0 0.0
        %v10023 = vand.u32 %v9568, 4294901760
        %10024 = vmatmul.mubr.f32.gmra.mrb[0].mxu0 %v10023
        %v10025 = vpop.f32.mrb[0].mxu0
        %v10026 = vadd.f32 %v9953, %v10025
        %v10027 = vpop.f32.mrb[0].mxu0
        %10028 = vdwg.mxu0
        %v10030 = vsel %vm346, %v7722, 0
        %10032 = vmatprep.subr.mxu0 0.0
        %v10033 = vand.u32 %v5884, 4294901760
        %10034 = vmatpush1.msra.mxu0 %v10033
        %10035 = vmatprep.subr.mxu0 0.0
        %v10036 = vand.u32 %v5885, 4294901760
        %10037 = vmatpush1.msra.mxu0 %v10036
        %10038 = vmatprep.subr.mxu0 0.0
        %10039 = vmatpush1.msra.mxu0 0.0
        %10040 = vmatprep.subr.mxu0 0.0
        %10041 = vmatpush1.msra.mxu0 0.0
        %10042 = vmatprep.subr.mxu0 0.0
        %10043 = vmatpush1.msra.mxu0 0.0
        %10044 = vmatprep.subr.mxu0 0.0
        %10045 = vmatpush1.msra.mxu0 0.0
        %10046 = vmatprep.subr.mxu0 0.0
        %10047 = vmatpush1.msra.mxu0 0.0
        %10048 = vmatprep.subr.mxu0 0.0
        %10049 = vmatpush1.msra.mxu0 0.0
        %10050 = vmatprep.subr.mxu0 0.0
        %10051 = vmatpush1.msra.mxu0 0.0
        %10052 = vmatprep.subr.mxu0 0.0
        %10053 = vmatpush1.msra.mxu0 0.0
        %10054 = vmatprep.subr.mxu0 0.0
        %10055 = vmatpush1.msra.mxu0 0.0
        %10056 = vmatprep.subr.mxu0 0.0
        %10057 = vmatpush1.msra.mxu0 0.0
        %10058 = vmatprep.subr.mxu0 0.0
        %10059 = vmatpush1.msra.mxu0 0.0
        %10060 = vmatprep.subr.mxu0 0.0
        %10061 = vmatpush1.msra.mxu0 0.0
        %10062 = vmatprep.subr.mxu0 0.0
        %10063 = vmatpush1.msra.mxu0 0.0
        %10064 = vmatprep.subr.mxu0 0.0
        %10065 = vmatpush1.msra.mxu0 0.0
        %10066 = vmatprep.subr.mxu0 0.0
        %10067 = vmatpush1.msra.mxu0 0.0
        %10068 = vmatprep.subr.mxu0 0.0
        %10069 = vmatpush1.msra.mxu0 0.0
        %10070 = vmatprep.subr.mxu0 0.0
        %10071 = vmatpush1.msra.mxu0 0.0
        %10072 = vmatprep.subr.mxu0 0.0
        %10073 = vmatpush1.msra.mxu0 0.0
        %10074 = vmatprep.subr.mxu0 0.0
        %10075 = vmatpush1.msra.mxu0 0.0
        %10076 = vmatprep.subr.mxu0 0.0
        %10077 = vmatpush1.msra.mxu0 0.0
        %10078 = vmatprep.subr.mxu0 0.0
        %10079 = vmatpush1.msra.mxu0 0.0
        %10080 = vmatprep.subr.mxu0 0.0
        %10081 = vmatpush1.msra.mxu0 0.0
        %10082 = vmatprep.subr.mxu0 0.0
        %10083 = vmatpush1.msra.mxu0 0.0
        %10084 = vmatprep.subr.mxu0 0.0
        %10085 = vmatpush1.msra.mxu0 0.0
        %10086 = vmatprep.subr.mxu0 0.0
        %10087 = vmatpush1.msra.mxu0 0.0
        %10088 = vmatprep.subr.mxu0 0.0
        %10089 = vmatpush1.msra.mxu0 0.0
        %10090 = vmatprep.subr.mxu0 0.0
        %10091 = vmatpush1.msra.mxu0 0.0
        %10092 = vmatprep.subr.mxu0 0.0
        %10093 = vmatpush1.msra.mxu0 0.0
        %10094 = vmatprep.subr.mxu0 0.0
        %10095 = vmatpush1.msra.mxu0 0.0
        %10096 = vmatprep.subr.mxu0 0.0
        %10097 = vmatpush1.msra.mxu0 0.0
        %10098 = vmatprep.mubr.f32.mxu0 0.0
        %v10099 = vand.u32 %v10030, 4294901760
        %v10100 = vsub.f32 %v10030, %v10099
        %v10101 = vand.u32 %v10100, 4294901760
        %v10102 = vsub.f32 %v10100, %v10101
        %v10103 = vand.u32 %v10102, 4294901760
        %10104 = vmatmul.mubr.f32.gmra.mrb[0].mxu0 %v10103
        %v10105 = vpop.f32.mrb[0].mxu0
        %v10106 = vadd.f32 0.0, %v10105
        %v10107 = vpop.f32.mrb[0].mxu0
        %10108 = vdwg.mxu0
        %10109 = vmatprep.subr.mxu0 0.0
        %v10110 = vand.u32 %v5884, 4294901760
        %v10111 = vsub.f32 %v5884, %v10110
        %v10112 = vand.u32 %v10111, 4294901760
        %v10113 = vsub.f32 %v10111, %v10112
        %v10114 = vand.u32 %v10113, 4294901760
        %10115 = vmatpush1.msra.mxu0 %v10114
        %10116 = vmatprep.subr.mxu0 0.0
        %v10117 = vand.u32 %v5885, 4294901760
        %v10118 = vsub.f32 %v5885, %v10117
        %v10119 = vand.u32 %v10118, 4294901760
        %v10120 = vsub.f32 %v10118, %v10119
        %v10121 = vand.u32 %v10120, 4294901760
        %10122 = vmatpush1.msra.mxu0 %v10121
        %10123 = vmatprep.subr.mxu0 0.0
        %10124 = vmatpush1.msra.mxu0 0.0
        %10125 = vmatprep.subr.mxu0 0.0
        %10126 = vmatpush1.msra.mxu0 0.0
        %10127 = vmatprep.subr.mxu0 0.0
        %10128 = vmatpush1.msra.mxu0 0.0
        %10129 = vmatprep.subr.mxu0 0.0
        %10130 = vmatpush1.msra.mxu0 0.0
        %10131 = vmatprep.subr.mxu0 0.0
        %10132 = vmatpush1.msra.mxu0 0.0
        %10133 = vmatprep.subr.mxu0 0.0
        %10134 = vmatpush1.msra.mxu0 0.0
        %10135 = vmatprep.subr.mxu0 0.0
        %10136 = vmatpush1.msra.mxu0 0.0
        %10137 = vmatprep.subr.mxu0 0.0
        %10138 = vmatpush1.msra.mxu0 0.0
        %10139 = vmatprep.subr.mxu0 0.0
        %10140 = vmatpush1.msra.mxu0 0.0
        %10141 = vmatprep.subr.mxu0 0.0
        %10142 = vmatpush1.msra.mxu0 0.0
        %10143 = vmatprep.subr.mxu0 0.0
        %10144 = vmatpush1.msra.mxu0 0.0
        %10145 = vmatprep.subr.mxu0 0.0
        %10146 = vmatpush1.msra.mxu0 0.0
        %10147 = vmatprep.subr.mxu0 0.0
        %10148 = vmatpush1.msra.mxu0 0.0
        %10149 = vmatprep.subr.mxu0 0.0
        %10150 = vmatpush1.msra.mxu0 0.0
        %10151 = vmatprep.subr.mxu0 0.0
        %10152 = vmatpush1.msra.mxu0 0.0
        %10153 = vmatprep.subr.mxu0 0.0
        %10154 = vmatpush1.msra.mxu0 0.0
        %10155 = vmatprep.subr.mxu0 0.0
        %10156 = vmatpush1.msra.mxu0 0.0
        %10157 = vmatprep.subr.mxu0 0.0
        %10158 = vmatpush1.msra.mxu0 0.0
        %10159 = vmatprep.subr.mxu0 0.0
        %10160 = vmatpush1.msra.mxu0 0.0
        %10161 = vmatprep.subr.mxu0 0.0
        %10162 = vmatpush1.msra.mxu0 0.0
        %10163 = vmatprep.subr.mxu0 0.0
        %10164 = vmatpush1.msra.mxu0 0.0
        %10165 = vmatprep.subr.mxu0 0.0
        %10166 = vmatpush1.msra.mxu0 0.0
        %10167 = vmatprep.subr.mxu0 0.0
        %10168 = vmatpush1.msra.mxu0 0.0
        %10169 = vmatprep.subr.mxu0 0.0
        %10170 = vmatpush1.msra.mxu0 0.0
        %10171 = vmatprep.subr.mxu0 0.0
        %10172 = vmatpush1.msra.mxu0 0.0
        %10173 = vmatprep.subr.mxu0 0.0
        %10174 = vmatpush1.msra.mxu0 0.0
        %10175 = vmatprep.subr.mxu0 0.0
        %10176 = vmatpush1.msra.mxu0 0.0
        %10177 = vmatprep.subr.mxu0 0.0
        %10178 = vmatpush1.msra.mxu0 0.0
        %10179 = vmatprep.subr.mxu0 0.0
        %10180 = vmatpush1.msra.mxu0 0.0
        %10181 = vmatprep.subr.mxu0 0.0
        %10182 = vmatpush1.msra.mxu0 0.0
        %10183 = vmatprep.mubr.f32.mxu0 0.0
        %v10184 = vand.u32 %v10030, 4294901760
        %10185 = vmatmul.mubr.f32.gmra.mrb[0].mxu0 %v10184
        %v10186 = vpop.f32.mrb[0].mxu0
        %v10187 = vadd.f32 %v10106, %v10186
        %v10188 = vpop.f32.mrb[0].mxu0
        %10189 = vdwg.mxu0
        %10190 = vmatprep.subr.mxu0 0.0
        %v10191 = vand.u32 %v5884, 4294901760
        %v10192 = vsub.f32 %v5884, %v10191
        %10193 = vmatpush1.msra.mxu0 %v10192
        %10194 = vmatprep.subr.mxu0 0.0
        %v10195 = vand.u32 %v5885, 4294901760
        %v10196 = vsub.f32 %v5885, %v10195
        %10197 = vmatpush1.msra.mxu0 %v10196
        %10198 = vmatprep.subr.mxu0 0.0
        %10199 = vmatpush1.msra.mxu0 0.0
        %10200 = vmatprep.subr.mxu0 0.0
        %10201 = vmatpush1.msra.mxu0 0.0
        %10202 = vmatprep.subr.mxu0 0.0
        %10203 = vmatpush1.msra.mxu0 0.0
        %10204 = vmatprep.subr.mxu0 0.0
        %10205 = vmatpush1.msra.mxu0 0.0
        %10206 = vmatprep.subr.mxu0 0.0
        %10207 = vmatpush1.msra.mxu0 0.0
        %10208 = vmatprep.subr.mxu0 0.0
        %10209 = vmatpush1.msra.mxu0 0.0
        %10210 = vmatprep.subr.mxu0 0.0
        %10211 = vmatpush1.msra.mxu0 0.0
        %10212 = vmatprep.subr.mxu0 0.0
        %10213 = vmatpush1.msra.mxu0 0.0
        %10214 = vmatprep.subr.mxu0 0.0
        %10215 = vmatpush1.msra.mxu0 0.0
        %10216 = vmatprep.subr.mxu0 0.0
        %10217 = vmatpush1.msra.mxu0 0.0
        %10218 = vmatprep.subr.mxu0 0.0
        %10219 = vmatpush1.msra.mxu0 0.0
        %10220 = vmatprep.subr.mxu0 0.0
        %10221 = vmatpush1.msra.mxu0 0.0
        %10222 = vmatprep.subr.mxu0 0.0
        %10223 = vmatpush1.msra.mxu0 0.0
        %10224 = vmatprep.subr.mxu0 0.0
        %10225 = vmatpush1.msra.mxu0 0.0
        %10226 = vmatprep.subr.mxu0 0.0
        %10227 = vmatpush1.msra.mxu0 0.0
        %10228 = vmatprep.subr.mxu0 0.0
        %10229 = vmatpush1.msra.mxu0 0.0
        %10230 = vmatprep.subr.mxu0 0.0
        %10231 = vmatpush1.msra.mxu0 0.0
        %10232 = vmatprep.subr.mxu0 0.0
        %10233 = vmatpush1.msra.mxu0 0.0
        %10234 = vmatprep.subr.mxu0 0.0
        %10235 = vmatpush1.msra.mxu0 0.0
        %10236 = vmatprep.subr.mxu0 0.0
        %10237 = vmatpush1.msra.mxu0 0.0
        %10238 = vmatprep.subr.mxu0 0.0
        %10239 = vmatpush1.msra.mxu0 0.0
        %10240 = vmatprep.subr.mxu0 0.0
        %10241 = vmatpush1.msra.mxu0 0.0
        %10242 = vmatprep.subr.mxu0 0.0
        %10243 = vmatpush1.msra.mxu0 0.0
        %10244 = vmatprep.subr.mxu0 0.0
        %10245 = vmatpush1.msra.mxu0 0.0
        %10246 = vmatprep.subr.mxu0 0.0
        %10247 = vmatpush1.msra.mxu0 0.0
        %10248 = vmatprep.subr.mxu0 0.0
        %10249 = vmatpush1.msra.mxu0 0.0
        %10250 = vmatprep.subr.mxu0 0.0
        %10251 = vmatpush1.msra.mxu0 0.0
        %10252 = vmatprep.subr.mxu0 0.0
        %10253 = vmatpush1.msra.mxu0 0.0
        %10254 = vmatprep.subr.mxu0 0.0
        %10255 = vmatpush1.msra.mxu0 0.0
        %10256 = vmatprep.subr.mxu0 0.0
        %10257 = vmatpush1.msra.mxu0 0.0
        %10258 = vmatprep.mubr.f32.mxu0 0.0
        %v10259 = vand.u32 %v10030, 4294901760
        %v10260 = vsub.f32 %v10030, %v10259
        %10261 = vmatmul.mubr.f32.gmra.mrb[0].mxu0 %v10260
        %v10262 = vpop.f32.mrb[0].mxu0
        %v10263 = vadd.f32 %v10187, %v10262
        %v10264 = vpop.f32.mrb[0].mxu0
        %10265 = vdwg.mxu0
        %10266 = vmatprep.subr.mxu0 0.0
        %v10267 = vand.u32 %v5884, 4294901760
        %10268 = vmatpush1.msra.mxu0 %v10267
        %10269 = vmatprep.subr.mxu0 0.0
        %v10270 = vand.u32 %v5885, 4294901760
        %10271 = vmatpush1.msra.mxu0 %v10270
        %10272 = vmatprep.subr.mxu0 0.0
        %10273 = vmatpush1.msra.mxu0 0.0
        %10274 = vmatprep.subr.mxu0 0.0
        %10275 = vmatpush1.msra.mxu0 0.0
        %10276 = vmatprep.subr.mxu0 0.0
        %10277 = vmatpush1.msra.mxu0 0.0
        %10278 = vmatprep.subr.mxu0 0.0
        %10279 = vmatpush1.msra.mxu0 0.0
        %10280 = vmatprep.subr.mxu0 0.0
        %10281 = vmatpush1.msra.mxu0 0.0
        %10282 = vmatprep.subr.mxu0 0.0
        %10283 = vmatpush1.msra.mxu0 0.0
        %10284 = vmatprep.subr.mxu0 0.0
        %10285 = vmatpush1.msra.mxu0 0.0
        %10286 = vmatprep.subr.mxu0 0.0
        %10287 = vmatpush1.msra.mxu0 0.0
        %10288 = vmatprep.subr.mxu0 0.0
        %10289 = vmatpush1.msra.mxu0 0.0
        %10290 = vmatprep.subr.mxu0 0.0
        %10291 = vmatpush1.msra.mxu0 0.0
        %10292 = vmatprep.subr.mxu0 0.0
        %10293 = vmatpush1.msra.mxu0 0.0
        %10294 = vmatprep.subr.mxu0 0.0
        %10295 = vmatpush1.msra.mxu0 0.0
        %10296 = vmatprep.subr.mxu0 0.0
        %10297 = vmatpush1.msra.mxu0 0.0
        %10298 = vmatprep.subr.mxu0 0.0
        %10299 = vmatpush1.msra.mxu0 0.0
        %10300 = vmatprep.subr.mxu0 0.0
        %10301 = vmatpush1.msra.mxu0 0.0
        %10302 = vmatprep.subr.mxu0 0.0
        %10303 = vmatpush1.msra.mxu0 0.0
        %10304 = vmatprep.subr.mxu0 0.0
        %10305 = vmatpush1.msra.mxu0 0.0
        %10306 = vmatprep.subr.mxu0 0.0
        %10307 = vmatpush1.msra.mxu0 0.0
        %10308 = vmatprep.subr.mxu0 0.0
        %10309 = vmatpush1.msra.mxu0 0.0
        %10310 = vmatprep.subr.mxu0 0.0
        %10311 = vmatpush1.msra.mxu0 0.0
        %10312 = vmatprep.subr.mxu0 0.0
        %10313 = vmatpush1.msra.mxu0 0.0
        %10314 = vmatprep.subr.mxu0 0.0
        %10315 = vmatpush1.msra.mxu0 0.0
        %10316 = vmatprep.subr.mxu0 0.0
        %10317 = vmatpush1.msra.mxu0 0.0
        %10318 = vmatprep.subr.mxu0 0.0
        %10319 = vmatpush1.msra.mxu0 0.0
        %10320 = vmatprep.subr.mxu0 0.0
        %10321 = vmatpush1.msra.mxu0 0.0
        %10322 = vmatprep.subr.mxu0 0.0
        %10323 = vmatpush1.msra.mxu0 0.0
        %10324 = vmatprep.subr.mxu0 0.0
        %10325 = vmatpush1.msra.mxu0 0.0
        %10326 = vmatprep.subr.mxu0 0.0
        %10327 = vmatpush1.msra.mxu0 0.0
        %10328 = vmatprep.subr.mxu0 0.0
        %10329 = vmatpush1.msra.mxu0 0.0
        %10330 = vmatprep.subr.mxu0 0.0
        %10331 = vmatpush1.msra.mxu0 0.0
        %10332 = vmatprep.mubr.f32.mxu0 0.0
        %v10333 = vand.u32 %v10030, 4294901760
        %v10334 = vsub.f32 %v10030, %v10333
        %v10335 = vand.u32 %v10334, 4294901760
        %10336 = vmatmul.mubr.f32.gmra.mrb[0].mxu0 %v10335
        %v10337 = vpop.f32.mrb[0].mxu0
        %v10338 = vadd.f32 %v10263, %v10337
        %v10339 = vpop.f32.mrb[0].mxu0
        %10340 = vdwg.mxu0
        %10341 = vmatprep.subr.mxu0 0.0
        %v10342 = vand.u32 %v5884, 4294901760
        %v10343 = vsub.f32 %v5884, %v10342
        %v10344 = vand.u32 %v10343, 4294901760
        %10345 = vmatpush1.msra.mxu0 %v10344
        %10346 = vmatprep.subr.mxu0 0.0
        %v10347 = vand.u32 %v5885, 4294901760
        %v10348 = vsub.f32 %v5885, %v10347
        %v10349 = vand.u32 %v10348, 4294901760
        %10350 = vmatpush1.msra.mxu0 %v10349
        %10351 = vmatprep.subr.mxu0 0.0
        %10352 = vmatpush1.msra.mxu0 0.0
        %10353 = vmatprep.subr.mxu0 0.0
        %10354 = vmatpush1.msra.mxu0 0.0
        %10355 = vmatprep.subr.mxu0 0.0
        %10356 = vmatpush1.msra.mxu0 0.0
        %10357 = vmatprep.subr.mxu0 0.0
        %10358 = vmatpush1.msra.mxu0 0.0
        %10359 = vmatprep.subr.mxu0 0.0
        %10360 = vmatpush1.msra.mxu0 0.0
        %10361 = vmatprep.subr.mxu0 0.0
        %10362 = vmatpush1.msra.mxu0 0.0
        %10363 = vmatprep.subr.mxu0 0.0
        %10364 = vmatpush1.msra.mxu0 0.0
        %10365 = vmatprep.subr.mxu0 0.0
        %10366 = vmatpush1.msra.mxu0 0.0
        %10367 = vmatprep.subr.mxu0 0.0
        %10368 = vmatpush1.msra.mxu0 0.0
        %10369 = vmatprep.subr.mxu0 0.0
        %10370 = vmatpush1.msra.mxu0 0.0
        %10371 = vmatprep.subr.mxu0 0.0
        %10372 = vmatpush1.msra.mxu0 0.0
        %10373 = vmatprep.subr.mxu0 0.0
        %10374 = vmatpush1.msra.mxu0 0.0
        %10375 = vmatprep.subr.mxu0 0.0
        %10376 = vmatpush1.msra.mxu0 0.0
        %10377 = vmatprep.subr.mxu0 0.0
        %10378 = vmatpush1.msra.mxu0 0.0
        %10379 = vmatprep.subr.mxu0 0.0
        %10380 = vmatpush1.msra.mxu0 0.0
        %10381 = vmatprep.subr.mxu0 0.0
        %10382 = vmatpush1.msra.mxu0 0.0
        %10383 = vmatprep.subr.mxu0 0.0
        %10384 = vmatpush1.msra.mxu0 0.0
        %10385 = vmatprep.subr.mxu0 0.0
        %10386 = vmatpush1.msra.mxu0 0.0
        %10387 = vmatprep.subr.mxu0 0.0
        %10388 = vmatpush1.msra.mxu0 0.0
        %10389 = vmatprep.subr.mxu0 0.0
        %10390 = vmatpush1.msra.mxu0 0.0
        %10391 = vmatprep.subr.mxu0 0.0
        %10392 = vmatpush1.msra.mxu0 0.0
        %10393 = vmatprep.subr.mxu0 0.0
        %10394 = vmatpush1.msra.mxu0 0.0
        %10395 = vmatprep.subr.mxu0 0.0
        %10396 = vmatpush1.msra.mxu0 0.0
        %10397 = vmatprep.subr.mxu0 0.0
        %10398 = vmatpush1.msra.mxu0 0.0
        %10399 = vmatprep.subr.mxu0 0.0
        %10400 = vmatpush1.msra.mxu0 0.0
        %10401 = vmatprep.subr.mxu0 0.0
        %10402 = vmatpush1.msra.mxu0 0.0
        %10403 = vmatprep.subr.mxu0 0.0
        %10404 = vmatpush1.msra.mxu0 0.0
        %10405 = vmatprep.subr.mxu0 0.0
        %10406 = vmatpush1.msra.mxu0 0.0
        %10407 = vmatprep.subr.mxu0 0.0
        %10408 = vmatpush1.msra.mxu0 0.0
        %10409 = vmatprep.subr.mxu0 0.0
        %10410 = vmatpush1.msra.mxu0 0.0
        %10411 = vmatprep.mubr.f32.mxu0 0.0
        %v10412 = vand.u32 %v10030, 4294901760
        %10413 = vmatmul.mubr.f32.gmra.mrb[0].mxu0 %v10412
        %v10414 = vpop.f32.mrb[0].mxu0
        %v10415 = vadd.f32 %v10338, %v10414
        %v10416 = vpop.f32.mrb[0].mxu0
        %10417 = vdwg.mxu0
        %10418 = vmatprep.subr.mxu0 0.0
        %v10419 = vand.u32 %v5884, 4294901760
        %10420 = vmatpush1.msra.mxu0 %v10419
        %10421 = vmatprep.subr.mxu0 0.0
        %v10422 = vand.u32 %v5885, 4294901760
        %10423 = vmatpush1.msra.mxu0 %v10422
        %10424 = vmatprep.subr.mxu0 0.0
        %10425 = vmatpush1.msra.mxu0 0.0
        %10426 = vmatprep.subr.mxu0 0.0
        %10427 = vmatpush1.msra.mxu0 0.0
        %10428 = vmatprep.subr.mxu0 0.0
        %10429 = vmatpush1.msra.mxu0 0.0
        %10430 = vmatprep.subr.mxu0 0.0
        %10431 = vmatpush1.msra.mxu0 0.0
        %10432 = vmatprep.subr.mxu0 0.0
        %10433 = vmatpush1.msra.mxu0 0.0
        %10434 = vmatprep.subr.mxu0 0.0
        %10435 = vmatpush1.msra.mxu0 0.0
        %10436 = vmatprep.subr.mxu0 0.0
        %10437 = vmatpush1.msra.mxu0 0.0
        %10438 = vmatprep.subr.mxu0 0.0
        %10439 = vmatpush1.msra.mxu0 0.0
        %10440 = vmatprep.subr.mxu0 0.0
        %10441 = vmatpush1.msra.mxu0 0.0
        %10442 = vmatprep.subr.mxu0 0.0
        %10443 = vmatpush1.msra.mxu0 0.0
        %10444 = vmatprep.subr.mxu0 0.0
        %10445 = vmatpush1.msra.mxu0 0.0
        %10446 = vmatprep.subr.mxu0 0.0
        %10447 = vmatpush1.msra.mxu0 0.0
        %10448 = vmatprep.subr.mxu0 0.0
        %10449 = vmatpush1.msra.mxu0 0.0
        %10450 = vmatprep.subr.mxu0 0.0
        %10451 = vmatpush1.msra.mxu0 0.0
        %10452 = vmatprep.subr.mxu0 0.0
        %10453 = vmatpush1.msra.mxu0 0.0
        %10454 = vmatprep.subr.mxu0 0.0
        %10455 = vmatpush1.msra.mxu0 0.0
        %10456 = vmatprep.subr.mxu0 0.0
        %10457 = vmatpush1.msra.mxu0 0.0
        %10458 = vmatprep.subr.mxu0 0.0
        %10459 = vmatpush1.msra.mxu0 0.0
        %10460 = vmatprep.subr.mxu0 0.0
        %10461 = vmatpush1.msra.mxu0 0.0
        %10462 = vmatprep.subr.mxu0 0.0
        %10463 = vmatpush1.msra.mxu0 0.0
        %10464 = vmatprep.subr.mxu0 0.0
        %10465 = vmatpush1.msra.mxu0 0.0
        %10466 = vmatprep.subr.mxu0 0.0
        %10467 = vmatpush1.msra.mxu0 0.0
        %10468 = vmatprep.subr.mxu0 0.0
        %10469 = vmatpush1.msra.mxu0 0.0
        %10470 = vmatprep.subr.mxu0 0.0
        %10471 = vmatpush1.msra.mxu0 0.0
        %10472 = vmatprep.subr.mxu0 0.0
        %10473 = vmatpush1.msra.mxu0 0.0
        %10474 = vmatprep.subr.mxu0 0.0
        %10475 = vmatpush1.msra.mxu0 0.0
        %10476 = vmatprep.subr.mxu0 0.0
        %10477 = vmatpush1.msra.mxu0 0.0
        %10478 = vmatprep.subr.mxu0 0.0
        %10479 = vmatpush1.msra.mxu0 0.0
        %10480 = vmatprep.subr.mxu0 0.0
        %10481 = vmatpush1.msra.mxu0 0.0
        %10482 = vmatprep.subr.mxu0 0.0
        %10483 = vmatpush1.msra.mxu0 0.0
        %10484 = vmatprep.mubr.f32.mxu0 0.0
        %v10485 = vand.u32 %v10030, 4294901760
        %10486 = vmatmul.mubr.f32.gmra.mrb[0].mxu0 %v10485
        %v10487 = vpop.f32.mrb[0].mxu0
        %v10488 = vadd.f32 %v10415, %v10487
        %v10489 = vpop.f32.mrb[0].mxu0
        %10490 = vdwg.mxu0
        %v10492 = vsel %vm346, %v8181, 0
        %10494 = vmatprep.subr.mxu0 0.0
        %v10495 = vand.u32 %v5884, 4294901760
        %10496 = vmatpush1.msra.mxu0 %v10495
        %10497 = vmatprep.subr.mxu0 0.0
        %v10498 = vand.u32 %v5885, 4294901760
        %10499 = vmatpush1.msra.mxu0 %v10498
        %10500 = vmatprep.subr.mxu0 0.0
        %10501 = vmatpush1.msra.mxu0 0.0
        %10502 = vmatprep.subr.mxu0 0.0
        %10503 = vmatpush1.msra.mxu0 0.0
        %10504 = vmatprep.subr.mxu0 0.0
        %10505 = vmatpush1.msra.mxu0 0.0
        %10506 = vmatprep.subr.mxu0 0.0
        %10507 = vmatpush1.msra.mxu0 0.0
        %10508 = vmatprep.subr.mxu0 0.0
        %10509 = vmatpush1.msra.mxu0 0.0
        %10510 = vmatprep.subr.mxu0 0.0
        %10511 = vmatpush1.msra.mxu0 0.0
        %10512 = vmatprep.subr.mxu0 0.0
        %10513 = vmatpush1.msra.mxu0 0.0
        %10514 = vmatprep.subr.mxu0 0.0
        %10515 = vmatpush1.msra.mxu0 0.0
        %10516 = vmatprep.subr.mxu0 0.0
        %10517 = vmatpush1.msra.mxu0 0.0
        %10518 = vmatprep.subr.mxu0 0.0
        %10519 = vmatpush1.msra.mxu0 0.0
        %10520 = vmatprep.subr.mxu0 0.0
        %10521 = vmatpush1.msra.mxu0 0.0
        %10522 = vmatprep.subr.mxu0 0.0
        %10523 = vmatpush1.msra.mxu0 0.0
        %10524 = vmatprep.subr.mxu0 0.0
        %10525 = vmatpush1.msra.mxu0 0.0
        %10526 = vmatprep.subr.mxu0 0.0
        %10527 = vmatpush1.msra.mxu0 0.0
        %10528 = vmatprep.subr.mxu0 0.0
        %10529 = vmatpush1.msra.mxu0 0.0
        %10530 = vmatprep.subr.mxu0 0.0
        %10531 = vmatpush1.msra.mxu0 0.0
        %10532 = vmatprep.subr.mxu0 0.0
        %10533 = vmatpush1.msra.mxu0 0.0
        %10534 = vmatprep.subr.mxu0 0.0
        %10535 = vmatpush1.msra.mxu0 0.0
        %10536 = vmatprep.subr.mxu0 0.0
        %10537 = vmatpush1.msra.mxu0 0.0
        %10538 = vmatprep.subr.mxu0 0.0
        %10539 = vmatpush1.msra.mxu0 0.0
        %10540 = vmatprep.subr.mxu0 0.0
        %10541 = vmatpush1.msra.mxu0 0.0
        %10542 = vmatprep.subr.mxu0 0.0
        %10543 = vmatpush1.msra.mxu0 0.0
        %10544 = vmatprep.subr.mxu0 0.0
        %10545 = vmatpush1.msra.mxu0 0.0
        %10546 = vmatprep.subr.mxu0 0.0
        %10547 = vmatpush1.msra.mxu0 0.0
        %10548 = vmatprep.subr.mxu0 0.0
        %10549 = vmatpush1.msra.mxu0 0.0
        %10550 = vmatprep.subr.mxu0 0.0
        %10551 = vmatpush1.msra.mxu0 0.0
        %10552 = vmatprep.subr.mxu0 0.0
        %10553 = vmatpush1.msra.mxu0 0.0
        %10554 = vmatprep.subr.mxu0 0.0
        %10555 = vmatpush1.msra.mxu0 0.0
        %10556 = vmatprep.subr.mxu0 0.0
        %10557 = vmatpush1.msra.mxu0 0.0
        %10558 = vmatprep.subr.mxu0 0.0
        %10559 = vmatpush1.msra.mxu0 0.0
        %10560 = vmatprep.mubr.f32.mxu0 0.0
        %v10561 = vand.u32 %v10492, 4294901760
        %v10562 = vsub.f32 %v10492, %v10561
        %v10563 = vand.u32 %v10562, 4294901760
        %v10564 = vsub.f32 %v10562, %v10563
        %v10565 = vand.u32 %v10564, 4294901760
        %10566 = vmatmul.mubr.f32.gmra.mrb[0].mxu0 %v10565
        %v10567 = vpop.f32.mrb[0].mxu0
        %v10568 = vadd.f32 0.0, %v10567
        %v10569 = vpop.f32.mrb[0].mxu0
        %10570 = vdwg.mxu0
        %10571 = vmatprep.subr.mxu0 0.0
        %v10572 = vand.u32 %v5884, 4294901760
        %v10573 = vsub.f32 %v5884, %v10572
        %v10574 = vand.u32 %v10573, 4294901760
        %v10575 = vsub.f32 %v10573, %v10574
        %v10576 = vand.u32 %v10575, 4294901760
        %10577 = vmatpush1.msra.mxu0 %v10576
        %10578 = vmatprep.subr.mxu0 0.0
        %v10579 = vand.u32 %v5885, 4294901760
        %v10580 = vsub.f32 %v5885, %v10579
        %v10581 = vand.u32 %v10580, 4294901760
        %v10582 = vsub.f32 %v10580, %v10581
        %v10583 = vand.u32 %v10582, 4294901760
        %10584 = vmatpush1.msra.mxu0 %v10583
        %10585 = vmatprep.subr.mxu0 0.0
        %10586 = vmatpush1.msra.mxu0 0.0
        %10587 = vmatprep.subr.mxu0 0.0
        %10588 = vmatpush1.msra.mxu0 0.0
        %10589 = vmatprep.subr.mxu0 0.0
        %10590 = vmatpush1.msra.mxu0 0.0
        %10591 = vmatprep.subr.mxu0 0.0
        %10592 = vmatpush1.msra.mxu0 0.0
        %10593 = vmatprep.subr.mxu0 0.0
        %10594 = vmatpush1.msra.mxu0 0.0
        %10595 = vmatprep.subr.mxu0 0.0
        %10596 = vmatpush1.msra.mxu0 0.0
        %10597 = vmatprep.subr.mxu0 0.0
        %10598 = vmatpush1.msra.mxu0 0.0
        %10599 = vmatprep.subr.mxu0 0.0
        %10600 = vmatpush1.msra.mxu0 0.0
        %10601 = vmatprep.subr.mxu0 0.0
        %10602 = vmatpush1.msra.mxu0 0.0
        %10603 = vmatprep.subr.mxu0 0.0
        %10604 = vmatpush1.msra.mxu0 0.0
        %10605 = vmatprep.subr.mxu0 0.0
        %10606 = vmatpush1.msra.mxu0 0.0
        %10607 = vmatprep.subr.mxu0 0.0
        %10608 = vmatpush1.msra.mxu0 0.0
        %10609 = vmatprep.subr.mxu0 0.0
        %10610 = vmatpush1.msra.mxu0 0.0
        %10611 = vmatprep.subr.mxu0 0.0
        %10612 = vmatpush1.msra.mxu0 0.0
        %10613 = vmatprep.subr.mxu0 0.0
        %10614 = vmatpush1.msra.mxu0 0.0
        %10615 = vmatprep.subr.mxu0 0.0
        %10616 = vmatpush1.msra.mxu0 0.0
        %10617 = vmatprep.subr.mxu0 0.0
        %10618 = vmatpush1.msra.mxu0 0.0
        %10619 = vmatprep.subr.mxu0 0.0
        %10620 = vmatpush1.msra.mxu0 0.0
        %10621 = vmatprep.subr.mxu0 0.0
        %10622 = vmatpush1.msra.mxu0 0.0
        %10623 = vmatprep.subr.mxu0 0.0
        %10624 = vmatpush1.msra.mxu0 0.0
        %10625 = vmatprep.subr.mxu0 0.0
        %10626 = vmatpush1.msra.mxu0 0.0
        %10627 = vmatprep.subr.mxu0 0.0
        %10628 = vmatpush1.msra.mxu0 0.0
        %10629 = vmatprep.subr.mxu0 0.0
        %10630 = vmatpush1.msra.mxu0 0.0
        %10631 = vmatprep.subr.mxu0 0.0
        %10632 = vmatpush1.msra.mxu0 0.0
        %10633 = vmatprep.subr.mxu0 0.0
        %10634 = vmatpush1.msra.mxu0 0.0
        %10635 = vmatprep.subr.mxu0 0.0
        %10636 = vmatpush1.msra.mxu0 0.0
        %10637 = vmatprep.subr.mxu0 0.0
        %10638 = vmatpush1.msra.mxu0 0.0
        %10639 = vmatprep.subr.mxu0 0.0
        %10640 = vmatpush1.msra.mxu0 0.0
        %10641 = vmatprep.subr.mxu0 0.0
        %10642 = vmatpush1.msra.mxu0 0.0
        %10643 = vmatprep.subr.mxu0 0.0
        %10644 = vmatpush1.msra.mxu0 0.0
        %10645 = vmatprep.mubr.f32.mxu0 0.0
        %v10646 = vand.u32 %v10492, 4294901760
        %10647 = vmatmul.mubr.f32.gmra.mrb[0].mxu0 %v10646
        %v10648 = vpop.f32.mrb[0].mxu0
        %v10649 = vadd.f32 %v10568, %v10648
        %v10650 = vpop.f32.mrb[0].mxu0
        %10651 = vdwg.mxu0
        %10652 = vmatprep.subr.mxu0 0.0
        %v10653 = vand.u32 %v5884, 4294901760
        %v10654 = vsub.f32 %v5884, %v10653
        %10655 = vmatpush1.msra.mxu0 %v10654
        %10656 = vmatprep.subr.mxu0 0.0
        %v10657 = vand.u32 %v5885, 4294901760
        %v10658 = vsub.f32 %v5885, %v10657
        %10659 = vmatpush1.msra.mxu0 %v10658
        %10660 = vmatprep.subr.mxu0 0.0
        %10661 = vmatpush1.msra.mxu0 0.0
        %10662 = vmatprep.subr.mxu0 0.0
        %10663 = vmatpush1.msra.mxu0 0.0
        %10664 = vmatprep.subr.mxu0 0.0
        %10665 = vmatpush1.msra.mxu0 0.0
        %10666 = vmatprep.subr.mxu0 0.0
        %10667 = vmatpush1.msra.mxu0 0.0
        %10668 = vmatprep.subr.mxu0 0.0
        %10669 = vmatpush1.msra.mxu0 0.0
        %10670 = vmatprep.subr.mxu0 0.0
        %10671 = vmatpush1.msra.mxu0 0.0
        %10672 = vmatprep.subr.mxu0 0.0
        %10673 = vmatpush1.msra.mxu0 0.0
        %10674 = vmatprep.subr.mxu0 0.0
        %10675 = vmatpush1.msra.mxu0 0.0
        %10676 = vmatprep.subr.mxu0 0.0
        %10677 = vmatpush1.msra.mxu0 0.0
        %10678 = vmatprep.subr.mxu0 0.0
        %10679 = vmatpush1.msra.mxu0 0.0
        %10680 = vmatprep.subr.mxu0 0.0
        %10681 = vmatpush1.msra.mxu0 0.0
        %10682 = vmatprep.subr.mxu0 0.0
        %10683 = vmatpush1.msra.mxu0 0.0
        %10684 = vmatprep.subr.mxu0 0.0
        %10685 = vmatpush1.msra.mxu0 0.0
        %10686 = vmatprep.subr.mxu0 0.0
        %10687 = vmatpush1.msra.mxu0 0.0
        %10688 = vmatprep.subr.mxu0 0.0
        %10689 = vmatpush1.msra.mxu0 0.0
        %10690 = vmatprep.subr.mxu0 0.0
        %10691 = vmatpush1.msra.mxu0 0.0
        %10692 = vmatprep.subr.mxu0 0.0
        %10693 = vmatpush1.msra.mxu0 0.0
        %10694 = vmatprep.subr.mxu0 0.0
        %10695 = vmatpush1.msra.mxu0 0.0
        %10696 = vmatprep.subr.mxu0 0.0
        %10697 = vmatpush1.msra.mxu0 0.0
        %10698 = vmatprep.subr.mxu0 0.0
        %10699 = vmatpush1.msra.mxu0 0.0
        %10700 = vmatprep.subr.mxu0 0.0
        %10701 = vmatpush1.msra.mxu0 0.0
        %10702 = vmatprep.subr.mxu0 0.0
        %10703 = vmatpush1.msra.mxu0 0.0
        %10704 = vmatprep.subr.mxu0 0.0
        %10705 = vmatpush1.msra.mxu0 0.0
        %10706 = vmatprep.subr.mxu0 0.0
        %10707 = vmatpush1.msra.mxu0 0.0
        %10708 = vmatprep.subr.mxu0 0.0
        %10709 = vmatpush1.msra.mxu0 0.0
        %10710 = vmatprep.subr.mxu0 0.0
        %10711 = vmatpush1.msra.mxu0 0.0
        %10712 = vmatprep.subr.mxu0 0.0
        %10713 = vmatpush1.msra.mxu0 0.0
        %10714 = vmatprep.subr.mxu0 0.0
        %10715 = vmatpush1.msra.mxu0 0.0
        %10716 = vmatprep.subr.mxu0 0.0
        %10717 = vmatpush1.msra.mxu0 0.0
        %10718 = vmatprep.subr.mxu0 0.0
        %10719 = vmatpush1.msra.mxu0 0.0
        %10720 = vmatprep.mubr.f32.mxu0 0.0
        %v10721 = vand.u32 %v10492, 4294901760
        %v10722 = vsub.f32 %v10492, %v10721
        %10723 = vmatmul.mubr.f32.gmra.mrb[0].mxu0 %v10722
        %v10724 = vpop.f32.mrb[0].mxu0
        %v10725 = vadd.f32 %v10649, %v10724
        %v10726 = vpop.f32.mrb[0].mxu0
        %10727 = vdwg.mxu0
        %10728 = vmatprep.subr.mxu0 0.0
        %v10729 = vand.u32 %v5884, 4294901760
        %10730 = vmatpush1.msra.mxu0 %v10729
        %10731 = vmatprep.subr.mxu0 0.0
        %v10732 = vand.u32 %v5885, 4294901760
        %10733 = vmatpush1.msra.mxu0 %v10732
        %10734 = vmatprep.subr.mxu0 0.0
        %10735 = vmatpush1.msra.mxu0 0.0
        %10736 = vmatprep.subr.mxu0 0.0
        %10737 = vmatpush1.msra.mxu0 0.0
        %10738 = vmatprep.subr.mxu0 0.0
        %10739 = vmatpush1.msra.mxu0 0.0
        %10740 = vmatprep.subr.mxu0 0.0
        %10741 = vmatpush1.msra.mxu0 0.0
        %10742 = vmatprep.subr.mxu0 0.0
        %10743 = vmatpush1.msra.mxu0 0.0
        %10744 = vmatprep.subr.mxu0 0.0
        %10745 = vmatpush1.msra.mxu0 0.0
        %10746 = vmatprep.subr.mxu0 0.0
        %10747 = vmatpush1.msra.mxu0 0.0
        %10748 = vmatprep.subr.mxu0 0.0
        %10749 = vmatpush1.msra.mxu0 0.0
        %10750 = vmatprep.subr.mxu0 0.0
        %10751 = vmatpush1.msra.mxu0 0.0
        %10752 = vmatprep.subr.mxu0 0.0
        %10753 = vmatpush1.msra.mxu0 0.0
        %10754 = vmatprep.subr.mxu0 0.0
        %10755 = vmatpush1.msra.mxu0 0.0
        %10756 = vmatprep.subr.mxu0 0.0
        %10757 = vmatpush1.msra.mxu0 0.0
        %10758 = vmatprep.subr.mxu0 0.0
        %10759 = vmatpush1.msra.mxu0 0.0
        %10760 = vmatprep.subr.mxu0 0.0
        %10761 = vmatpush1.msra.mxu0 0.0
        %10762 = vmatprep.subr.mxu0 0.0
        %10763 = vmatpush1.msra.mxu0 0.0
        %10764 = vmatprep.subr.mxu0 0.0
        %10765 = vmatpush1.msra.mxu0 0.0
        %10766 = vmatprep.subr.mxu0 0.0
        %10767 = vmatpush1.msra.mxu0 0.0
        %10768 = vmatprep.subr.mxu0 0.0
        %10769 = vmatpush1.msra.mxu0 0.0
        %10770 = vmatprep.subr.mxu0 0.0
        %10771 = vmatpush1.msra.mxu0 0.0
        %10772 = vmatprep.subr.mxu0 0.0
        %10773 = vmatpush1.msra.mxu0 0.0
        %10774 = vmatprep.subr.mxu0 0.0
        %10775 = vmatpush1.msra.mxu0 0.0
        %10776 = vmatprep.subr.mxu0 0.0
        %10777 = vmatpush1.msra.mxu0 0.0
        %10778 = vmatprep.subr.mxu0 0.0
        %10779 = vmatpush1.msra.mxu0 0.0
        %10780 = vmatprep.subr.mxu0 0.0
        %10781 = vmatpush1.msra.mxu0 0.0
        %10782 = vmatprep.subr.mxu0 0.0
        %10783 = vmatpush1.msra.mxu0 0.0
        %10784 = vmatprep.subr.mxu0 0.0
        %10785 = vmatpush1.msra.mxu0 0.0
        %10786 = vmatprep.subr.mxu0 0.0
        %10787 = vmatpush1.msra.mxu0 0.0
        %10788 = vmatprep.subr.mxu0 0.0
        %10789 = vmatpush1.msra.mxu0 0.0
        %10790 = vmatprep.subr.mxu0 0.0
        %10791 = vmatpush1.msra.mxu0 0.0
        %10792 = vmatprep.subr.mxu0 0.0
        %10793 = vmatpush1.msra.mxu0 0.0
        %10794 = vmatprep.mubr.f32.mxu0 0.0
        %v10795 = vand.u32 %v10492, 4294901760
        %v10796 = vsub.f32 %v10492, %v10795
        %v10797 = vand.u32 %v10796, 4294901760
        %10798 = vmatmul.mubr.f32.gmra.mrb[0].mxu0 %v10797
        %v10799 = vpop.f32.mrb[0].mxu0
        %v10800 = vadd.f32 %v10725, %v10799
        %v10801 = vpop.f32.mrb[0].mxu0
        %10802 = vdwg.mxu0
        %10803 = vmatprep.subr.mxu0 0.0
        %v10804 = vand.u32 %v5884, 4294901760
        %v10805 = vsub.f32 %v5884, %v10804
        %v10806 = vand.u32 %v10805, 4294901760
        %10807 = vmatpush1.msra.mxu0 %v10806
        %10808 = vmatprep.subr.mxu0 0.0
        %v10809 = vand.u32 %v5885, 4294901760
        %v10810 = vsub.f32 %v5885, %v10809
        %v10811 = vand.u32 %v10810, 4294901760
        %10812 = vmatpush1.msra.mxu0 %v10811
        %10813 = vmatprep.subr.mxu0 0.0
        %10814 = vmatpush1.msra.mxu0 0.0
        %10815 = vmatprep.subr.mxu0 0.0
        %10816 = vmatpush1.msra.mxu0 0.0
        %10817 = vmatprep.subr.mxu0 0.0
        %10818 = vmatpush1.msra.mxu0 0.0
        %10819 = vmatprep.subr.mxu0 0.0
        %10820 = vmatpush1.msra.mxu0 0.0
        %10821 = vmatprep.subr.mxu0 0.0
        %10822 = vmatpush1.msra.mxu0 0.0
        %10823 = vmatprep.subr.mxu0 0.0
        %10824 = vmatpush1.msra.mxu0 0.0
        %10825 = vmatprep.subr.mxu0 0.0
        %10826 = vmatpush1.msra.mxu0 0.0
        %10827 = vmatprep.subr.mxu0 0.0
        %10828 = vmatpush1.msra.mxu0 0.0
        %10829 = vmatprep.subr.mxu0 0.0
        %10830 = vmatpush1.msra.mxu0 0.0
        %10831 = vmatprep.subr.mxu0 0.0
        %10832 = vmatpush1.msra.mxu0 0.0
        %10833 = vmatprep.subr.mxu0 0.0
        %10834 = vmatpush1.msra.mxu0 0.0
        %10835 = vmatprep.subr.mxu0 0.0
        %10836 = vmatpush1.msra.mxu0 0.0
        %10837 = vmatprep.subr.mxu0 0.0
        %10838 = vmatpush1.msra.mxu0 0.0
        %10839 = vmatprep.subr.mxu0 0.0
        %10840 = vmatpush1.msra.mxu0 0.0
        %10841 = vmatprep.subr.mxu0 0.0
        %10842 = vmatpush1.msra.mxu0 0.0
        %10843 = vmatprep.subr.mxu0 0.0
        %10844 = vmatpush1.msra.mxu0 0.0
        %10845 = vmatprep.subr.mxu0 0.0
        %10846 = vmatpush1.msra.mxu0 0.0
        %10847 = vmatprep.subr.mxu0 0.0
        %10848 = vmatpush1.msra.mxu0 0.0
        %10849 = vmatprep.subr.mxu0 0.0
        %10850 = vmatpush1.msra.mxu0 0.0
        %10851 = vmatprep.subr.mxu0 0.0
        %10852 = vmatpush1.msra.mxu0 0.0
        %10853 = vmatprep.subr.mxu0 0.0
        %10854 = vmatpush1.msra.mxu0 0.0
        %10855 = vmatprep.subr.mxu0 0.0
        %10856 = vmatpush1.msra.mxu0 0.0
        %10857 = vmatprep.subr.mxu0 0.0
        %10858 = vmatpush1.msra.mxu0 0.0
        %10859 = vmatprep.subr.mxu0 0.0
        %10860 = vmatpush1.msra.mxu0 0.0
        %10861 = vmatprep.subr.mxu0 0.0
        %10862 = vmatpush1.msra.mxu0 0.0
        %10863 = vmatprep.subr.mxu0 0.0
        %10864 = vmatpush1.msra.mxu0 0.0
        %10865 = vmatprep.subr.mxu0 0.0
        %10866 = vmatpush1.msra.mxu0 0.0
        %10867 = vmatprep.subr.mxu0 0.0
        %10868 = vmatpush1.msra.mxu0 0.0
        %10869 = vmatprep.subr.mxu0 0.0
        %10870 = vmatpush1.msra.mxu0 0.0
        %10871 = vmatprep.subr.mxu0 0.0
        %10872 = vmatpush1.msra.mxu0 0.0
        %10873 = vmatprep.mubr.f32.mxu0 0.0
        %v10874 = vand.u32 %v10492, 4294901760
        %10875 = vmatmul.mubr.f32.gmra.mrb[0].mxu0 %v10874
        %v10876 = vpop.f32.mrb[0].mxu0
        %v10877 = vadd.f32 %v10800, %v10876
        %v10878 = vpop.f32.mrb[0].mxu0
        %10879 = vdwg.mxu0
        %10880 = vmatprep.subr.mxu0 0.0
        %v10881 = vand.u32 %v5884, 4294901760
        %10882 = vmatpush1.msra.mxu0 %v10881
        %10883 = vmatprep.subr.mxu0 0.0
        %v10884 = vand.u32 %v5885, 4294901760
        %10885 = vmatpush1.msra.mxu0 %v10884
        %10886 = vmatprep.subr.mxu0 0.0
        %10887 = vmatpush1.msra.mxu0 0.0
        %10888 = vmatprep.subr.mxu0 0.0
        %10889 = vmatpush1.msra.mxu0 0.0
        %10890 = vmatprep.subr.mxu0 0.0
        %10891 = vmatpush1.msra.mxu0 0.0
        %10892 = vmatprep.subr.mxu0 0.0
        %10893 = vmatpush1.msra.mxu0 0.0
        %10894 = vmatprep.subr.mxu0 0.0
        %10895 = vmatpush1.msra.mxu0 0.0
        %10896 = vmatprep.subr.mxu0 0.0
        %10897 = vmatpush1.msra.mxu0 0.0
        %10898 = vmatprep.subr.mxu0 0.0
        %10899 = vmatpush1.msra.mxu0 0.0
        %10900 = vmatprep.subr.mxu0 0.0
        %10901 = vmatpush1.msra.mxu0 0.0
        %10902 = vmatprep.subr.mxu0 0.0
        %10903 = vmatpush1.msra.mxu0 0.0
        %10904 = vmatprep.subr.mxu0 0.0
        %10905 = vmatpush1.msra.mxu0 0.0
        %10906 = vmatprep.subr.mxu0 0.0
        %10907 = vmatpush1.msra.mxu0 0.0
        %10908 = vmatprep.subr.mxu0 0.0
        %10909 = vmatpush1.msra.mxu0 0.0
        %10910 = vmatprep.subr.mxu0 0.0
        %10911 = vmatpush1.msra.mxu0 0.0
        %10912 = vmatprep.subr.mxu0 0.0
        %10913 = vmatpush1.msra.mxu0 0.0
        %10914 = vmatprep.subr.mxu0 0.0
        %10915 = vmatpush1.msra.mxu0 0.0
        %10916 = vmatprep.subr.mxu0 0.0
        %10917 = vmatpush1.msra.mxu0 0.0
        %10918 = vmatprep.subr.mxu0 0.0
        %10919 = vmatpush1.msra.mxu0 0.0
        %10920 = vmatprep.subr.mxu0 0.0
        %10921 = vmatpush1.msra.mxu0 0.0
        %10922 = vmatprep.subr.mxu0 0.0
        %10923 = vmatpush1.msra.mxu0 0.0
        %10924 = vmatprep.subr.mxu0 0.0
        %10925 = vmatpush1.msra.mxu0 0.0
        %10926 = vmatprep.subr.mxu0 0.0
        %10927 = vmatpush1.msra.mxu0 0.0
        %10928 = vmatprep.subr.mxu0 0.0
        %10929 = vmatpush1.msra.mxu0 0.0
        %10930 = vmatprep.subr.mxu0 0.0
        %10931 = vmatpush1.msra.mxu0 0.0
        %10932 = vmatprep.subr.mxu0 0.0
        %10933 = vmatpush1.msra.mxu0 0.0
        %10934 = vmatprep.subr.mxu0 0.0
        %10935 = vmatpush1.msra.mxu0 0.0
        %10936 = vmatprep.subr.mxu0 0.0
        %10937 = vmatpush1.msra.mxu0 0.0
        %10938 = vmatprep.subr.mxu0 0.0
        %10939 = vmatpush1.msra.mxu0 0.0
        %10940 = vmatprep.subr.mxu0 0.0
        %10941 = vmatpush1.msra.mxu0 0.0
        %10942 = vmatprep.subr.mxu0 0.0
        %10943 = vmatpush1.msra.mxu0 0.0
        %10944 = vmatprep.subr.mxu0 0.0
        %10945 = vmatpush1.msra.mxu0 0.0
        %10946 = vmatprep.mubr.f32.mxu0 0.0
        %v10947 = vand.u32 %v10492, 4294901760
        %10948 = vmatmul.mubr.f32.gmra.mrb[0].mxu0 %v10947
        %v10949 = vpop.f32.mrb[0].mxu0
        %v10950 = vadd.f32 %v10877, %v10949
        %v10951 = vpop.f32.mrb[0].mxu0
        %10952 = vdwg.mxu0
        %v10954 = vsel %vm346, %v8640, 0
        %10956 = vmatprep.subr.mxu0 0.0
        %v10957 = vand.u32 %v5884, 4294901760
        %10958 = vmatpush1.msra.mxu0 %v10957
        %10959 = vmatprep.subr.mxu0 0.0
        %v10960 = vand.u32 %v5885, 4294901760
        %10961 = vmatpush1.msra.mxu0 %v10960
        %10962 = vmatprep.subr.mxu0 0.0
        %10963 = vmatpush1.msra.mxu0 0.0
        %10964 = vmatprep.subr.mxu0 0.0
        %10965 = vmatpush1.msra.mxu0 0.0
        %10966 = vmatprep.subr.mxu0 0.0
        %10967 = vmatpush1.msra.mxu0 0.0
        %10968 = vmatprep.subr.mxu0 0.0
        %10969 = vmatpush1.msra.mxu0 0.0
        %10970 = vmatprep.subr.mxu0 0.0
        %10971 = vmatpush1.msra.mxu0 0.0
        %10972 = vmatprep.subr.mxu0 0.0
        %10973 = vmatpush1.msra.mxu0 0.0
        %10974 = vmatprep.subr.mxu0 0.0
        %10975 = vmatpush1.msra.mxu0 0.0
        %10976 = vmatprep.subr.mxu0 0.0
        %10977 = vmatpush1.msra.mxu0 0.0
        %10978 = vmatprep.subr.mxu0 0.0
        %10979 = vmatpush1.msra.mxu0 0.0
        %10980 = vmatprep.subr.mxu0 0.0
        %10981 = vmatpush1.msra.mxu0 0.0
        %10982 = vmatprep.subr.mxu0 0.0
        %10983 = vmatpush1.msra.mxu0 0.0
        %10984 = vmatprep.subr.mxu0 0.0
        %10985 = vmatpush1.msra.mxu0 0.0
        %10986 = vmatprep.subr.mxu0 0.0
        %10987 = vmatpush1.msra.mxu0 0.0
        %10988 = vmatprep.subr.mxu0 0.0
        %10989 = vmatpush1.msra.mxu0 0.0
        %10990 = vmatprep.subr.mxu0 0.0
        %10991 = vmatpush1.msra.mxu0 0.0
        %10992 = vmatprep.subr.mxu0 0.0
        %10993 = vmatpush1.msra.mxu0 0.0
        %10994 = vmatprep.subr.mxu0 0.0
        %10995 = vmatpush1.msra.mxu0 0.0
        %10996 = vmatprep.subr.mxu0 0.0
        %10997 = vmatpush1.msra.mxu0 0.0
        %10998 = vmatprep.subr.mxu0 0.0
        %10999 = vmatpush1.msra.mxu0 0.0
        %11000 = vmatprep.subr.mxu0 0.0
        %11001 = vmatpush1.msra.mxu0 0.0
        %11002 = vmatprep.subr.mxu0 0.0
        %11003 = vmatpush1.msra.mxu0 0.0
        %11004 = vmatprep.subr.mxu0 0.0
        %11005 = vmatpush1.msra.mxu0 0.0
        %11006 = vmatprep.subr.mxu0 0.0
        %11007 = vmatpush1.msra.mxu0 0.0
        %11008 = vmatprep.subr.mxu0 0.0
        %11009 = vmatpush1.msra.mxu0 0.0
        %11010 = vmatprep.subr.mxu0 0.0
        %11011 = vmatpush1.msra.mxu0 0.0
        %11012 = vmatprep.subr.mxu0 0.0
        %11013 = vmatpush1.msra.mxu0 0.0
        %11014 = vmatprep.subr.mxu0 0.0
        %11015 = vmatpush1.msra.mxu0 0.0
        %11016 = vmatprep.subr.mxu0 0.0
        %11017 = vmatpush1.msra.mxu0 0.0
        %11018 = vmatprep.subr.mxu0 0.0
        %11019 = vmatpush1.msra.mxu0 0.0
        %11020 = vmatprep.subr.mxu0 0.0
        %11021 = vmatpush1.msra.mxu0 0.0
        %11022 = vmatprep.mubr.f32.mxu0 0.0
        %v11023 = vand.u32 %v10954, 4294901760
        %v11024 = vsub.f32 %v10954, %v11023
        %v11025 = vand.u32 %v11024, 4294901760
        %v11026 = vsub.f32 %v11024, %v11025
        %v11027 = vand.u32 %v11026, 4294901760
        %11028 = vmatmul.mubr.f32.gmra.mrb[0].mxu0 %v11027
        %v11029 = vpop.f32.mrb[0].mxu0
        %v11030 = vadd.f32 0.0, %v11029
        %v11031 = vpop.f32.mrb[0].mxu0
        %11032 = vdwg.mxu0
        %11033 = vmatprep.subr.mxu0 0.0
        %v11034 = vand.u32 %v5884, 4294901760
        %v11035 = vsub.f32 %v5884, %v11034
        %v11036 = vand.u32 %v11035, 4294901760
        %v11037 = vsub.f32 %v11035, %v11036
        %v11038 = vand.u32 %v11037, 4294901760
        %11039 = vmatpush1.msra.mxu0 %v11038
        %11040 = vmatprep.subr.mxu0 0.0
        %v11041 = vand.u32 %v5885, 4294901760
        %v11042 = vsub.f32 %v5885, %v11041
        %v11043 = vand.u32 %v11042, 4294901760
        %v11044 = vsub.f32 %v11042, %v11043
        %v11045 = vand.u32 %v11044, 4294901760
        %11046 = vmatpush1.msra.mxu0 %v11045
        %11047 = vmatprep.subr.mxu0 0.0
        %11048 = vmatpush1.msra.mxu0 0.0
        %11049 = vmatprep.subr.mxu0 0.0
        %11050 = vmatpush1.msra.mxu0 0.0
        %11051 = vmatprep.subr.mxu0 0.0
        %11052 = vmatpush1.msra.mxu0 0.0
        %11053 = vmatprep.subr.mxu0 0.0
        %11054 = vmatpush1.msra.mxu0 0.0
        %11055 = vmatprep.subr.mxu0 0.0
        %11056 = vmatpush1.msra.mxu0 0.0
        %11057 = vmatprep.subr.mxu0 0.0
        %11058 = vmatpush1.msra.mxu0 0.0
        %11059 = vmatprep.subr.mxu0 0.0
        %11060 = vmatpush1.msra.mxu0 0.0
        %11061 = vmatprep.subr.mxu0 0.0
        %11062 = vmatpush1.msra.mxu0 0.0
        %11063 = vmatprep.subr.mxu0 0.0
        %11064 = vmatpush1.msra.mxu0 0.0
        %11065 = vmatprep.subr.mxu0 0.0
        %11066 = vmatpush1.msra.mxu0 0.0
        %11067 = vmatprep.subr.mxu0 0.0
        %11068 = vmatpush1.msra.mxu0 0.0
        %11069 = vmatprep.subr.mxu0 0.0
        %11070 = vmatpush1.msra.mxu0 0.0
        %11071 = vmatprep.subr.mxu0 0.0
        %11072 = vmatpush1.msra.mxu0 0.0
        %11073 = vmatprep.subr.mxu0 0.0
        %11074 = vmatpush1.msra.mxu0 0.0
        %11075 = vmatprep.subr.mxu0 0.0
        %11076 = vmatpush1.msra.mxu0 0.0
        %11077 = vmatprep.subr.mxu0 0.0
        %11078 = vmatpush1.msra.mxu0 0.0
        %11079 = vmatprep.subr.mxu0 0.0
        %11080 = vmatpush1.msra.mxu0 0.0
        %11081 = vmatprep.subr.mxu0 0.0
        %11082 = vmatpush1.msra.mxu0 0.0
        %11083 = vmatprep.subr.mxu0 0.0
        %11084 = vmatpush1.msra.mxu0 0.0
        %11085 = vmatprep.subr.mxu0 0.0
        %11086 = vmatpush1.msra.mxu0 0.0
        %11087 = vmatprep.subr.mxu0 0.0
        %11088 = vmatpush1.msra.mxu0 0.0
        %11089 = vmatprep.subr.mxu0 0.0
        %11090 = vmatpush1.msra.mxu0 0.0
        %11091 = vmatprep.subr.mxu0 0.0
        %11092 = vmatpush1.msra.mxu0 0.0
        %11093 = vmatprep.subr.mxu0 0.0
        %11094 = vmatpush1.msra.mxu0 0.0
        %11095 = vmatprep.subr.mxu0 0.0
        %11096 = vmatpush1.msra.mxu0 0.0
        %11097 = vmatprep.subr.mxu0 0.0
        %11098 = vmatpush1.msra.mxu0 0.0
        %11099 = vmatprep.subr.mxu0 0.0
        %11100 = vmatpush1.msra.mxu0 0.0
        %11101 = vmatprep.subr.mxu0 0.0
        %11102 = vmatpush1.msra.mxu0 0.0
        %11103 = vmatprep.subr.mxu0 0.0
        %11104 = vmatpush1.msra.mxu0 0.0
        %11105 = vmatprep.subr.mxu0 0.0
        %11106 = vmatpush1.msra.mxu0 0.0
        %11107 = vmatprep.mubr.f32.mxu0 0.0
        %v11108 = vand.u32 %v10954, 4294901760
        %11109 = vmatmul.mubr.f32.gmra.mrb[0].mxu0 %v11108
        %v11110 = vpop.f32.mrb[0].mxu0
        %v11111 = vadd.f32 %v11030, %v11110
        %v11112 = vpop.f32.mrb[0].mxu0
        %11113 = vdwg.mxu0
        %11114 = vmatprep.subr.mxu0 0.0
        %v11115 = vand.u32 %v5884, 4294901760
        %v11116 = vsub.f32 %v5884, %v11115
        %11117 = vmatpush1.msra.mxu0 %v11116
        %11118 = vmatprep.subr.mxu0 0.0
        %v11119 = vand.u32 %v5885, 4294901760
        %v11120 = vsub.f32 %v5885, %v11119
        %11121 = vmatpush1.msra.mxu0 %v11120
        %11122 = vmatprep.subr.mxu0 0.0
        %11123 = vmatpush1.msra.mxu0 0.0
        %11124 = vmatprep.subr.mxu0 0.0
        %11125 = vmatpush1.msra.mxu0 0.0
        %11126 = vmatprep.subr.mxu0 0.0
        %11127 = vmatpush1.msra.mxu0 0.0
        %11128 = vmatprep.subr.mxu0 0.0
        %11129 = vmatpush1.msra.mxu0 0.0
        %11130 = vmatprep.subr.mxu0 0.0
        %11131 = vmatpush1.msra.mxu0 0.0
        %11132 = vmatprep.subr.mxu0 0.0
        %11133 = vmatpush1.msra.mxu0 0.0
        %11134 = vmatprep.subr.mxu0 0.0
        %11135 = vmatpush1.msra.mxu0 0.0
        %11136 = vmatprep.subr.mxu0 0.0
        %11137 = vmatpush1.msra.mxu0 0.0
        %11138 = vmatprep.subr.mxu0 0.0
        %11139 = vmatpush1.msra.mxu0 0.0
        %11140 = vmatprep.subr.mxu0 0.0
        %11141 = vmatpush1.msra.mxu0 0.0
        %11142 = vmatprep.subr.mxu0 0.0
        %11143 = vmatpush1.msra.mxu0 0.0
        %11144 = vmatprep.subr.mxu0 0.0
        %11145 = vmatpush1.msra.mxu0 0.0
        %11146 = vmatprep.subr.mxu0 0.0
        %11147 = vmatpush1.msra.mxu0 0.0
        %11148 = vmatprep.subr.mxu0 0.0
        %11149 = vmatpush1.msra.mxu0 0.0
        %11150 = vmatprep.subr.mxu0 0.0
        %11151 = vmatpush1.msra.mxu0 0.0
        %11152 = vmatprep.subr.mxu0 0.0
        %11153 = vmatpush1.msra.mxu0 0.0
        %11154 = vmatprep.subr.mxu0 0.0
        %11155 = vmatpush1.msra.mxu0 0.0
        %11156 = vmatprep.subr.mxu0 0.0
        %11157 = vmatpush1.msra.mxu0 0.0
        %11158 = vmatprep.subr.mxu0 0.0
        %11159 = vmatpush1.msra.mxu0 0.0
        %11160 = vmatprep.subr.mxu0 0.0
        %11161 = vmatpush1.msra.mxu0 0.0
        %11162 = vmatprep.subr.mxu0 0.0
        %11163 = vmatpush1.msra.mxu0 0.0
        %11164 = vmatprep.subr.mxu0 0.0
        %11165 = vmatpush1.msra.mxu0 0.0
        %11166 = vmatprep.subr.mxu0 0.0
        %11167 = vmatpush1.msra.mxu0 0.0
        %11168 = vmatprep.subr.mxu0 0.0
        %11169 = vmatpush1.msra.mxu0 0.0
        %11170 = vmatprep.subr.mxu0 0.0
        %11171 = vmatpush1.msra.mxu0 0.0
        %11172 = vmatprep.subr.mxu0 0.0
        %11173 = vmatpush1.msra.mxu0 0.0
        %11174 = vmatprep.subr.mxu0 0.0
        %11175 = vmatpush1.msra.mxu0 0.0
        %11176 = vmatprep.subr.mxu0 0.0
        %11177 = vmatpush1.msra.mxu0 0.0
        %11178 = vmatprep.subr.mxu0 0.0
        %11179 = vmatpush1.msra.mxu0 0.0
        %11180 = vmatprep.subr.mxu0 0.0
        %11181 = vmatpush1.msra.mxu0 0.0
        %11182 = vmatprep.mubr.f32.mxu0 0.0
        %v11183 = vand.u32 %v10954, 4294901760
        %v11184 = vsub.f32 %v10954, %v11183
        %11185 = vmatmul.mubr.f32.gmra.mrb[0].mxu0 %v11184
        %v11186 = vpop.f32.mrb[0].mxu0
        %v11187 = vadd.f32 %v11111, %v11186
        %v11188 = vpop.f32.mrb[0].mxu0
        %11189 = vdwg.mxu0
        %11190 = vmatprep.subr.mxu0 0.0
        %v11191 = vand.u32 %v5884, 4294901760
        %11192 = vmatpush1.msra.mxu0 %v11191
        %11193 = vmatprep.subr.mxu0 0.0
        %v11194 = vand.u32 %v5885, 4294901760
        %11195 = vmatpush1.msra.mxu0 %v11194
        %11196 = vmatprep.subr.mxu0 0.0
        %11197 = vmatpush1.msra.mxu0 0.0
        %11198 = vmatprep.subr.mxu0 0.0
        %11199 = vmatpush1.msra.mxu0 0.0
        %11200 = vmatprep.subr.mxu0 0.0
        %11201 = vmatpush1.msra.mxu0 0.0
        %11202 = vmatprep.subr.mxu0 0.0
        %11203 = vmatpush1.msra.mxu0 0.0
        %11204 = vmatprep.subr.mxu0 0.0
        %11205 = vmatpush1.msra.mxu0 0.0
        %11206 = vmatprep.subr.mxu0 0.0
        %11207 = vmatpush1.msra.mxu0 0.0
        %11208 = vmatprep.subr.mxu0 0.0
        %11209 = vmatpush1.msra.mxu0 0.0
        %11210 = vmatprep.subr.mxu0 0.0
        %11211 = vmatpush1.msra.mxu0 0.0
        %11212 = vmatprep.subr.mxu0 0.0
        %11213 = vmatpush1.msra.mxu0 0.0
        %11214 = vmatprep.subr.mxu0 0.0
        %11215 = vmatpush1.msra.mxu0 0.0
        %11216 = vmatprep.subr.mxu0 0.0
        %11217 = vmatpush1.msra.mxu0 0.0
        %11218 = vmatprep.subr.mxu0 0.0
        %11219 = vmatpush1.msra.mxu0 0.0
        %11220 = vmatprep.subr.mxu0 0.0
        %11221 = vmatpush1.msra.mxu0 0.0
        %11222 = vmatprep.subr.mxu0 0.0
        %11223 = vmatpush1.msra.mxu0 0.0
        %11224 = vmatprep.subr.mxu0 0.0
        %11225 = vmatpush1.msra.mxu0 0.0
        %11226 = vmatprep.subr.mxu0 0.0
        %11227 = vmatpush1.msra.mxu0 0.0
        %11228 = vmatprep.subr.mxu0 0.0
        %11229 = vmatpush1.msra.mxu0 0.0
        %11230 = vmatprep.subr.mxu0 0.0
        %11231 = vmatpush1.msra.mxu0 0.0
        %11232 = vmatprep.subr.mxu0 0.0
        %11233 = vmatpush1.msra.mxu0 0.0
        %11234 = vmatprep.subr.mxu0 0.0
        %11235 = vmatpush1.msra.mxu0 0.0
        %11236 = vmatprep.subr.mxu0 0.0
        %11237 = vmatpush1.msra.mxu0 0.0
        %11238 = vmatprep.subr.mxu0 0.0
        %11239 = vmatpush1.msra.mxu0 0.0
        %11240 = vmatprep.subr.mxu0 0.0
        %11241 = vmatpush1.msra.mxu0 0.0
        %11242 = vmatprep.subr.mxu0 0.0
        %11243 = vmatpush1.msra.mxu0 0.0
        %11244 = vmatprep.subr.mxu0 0.0
        %11245 = vmatpush1.msra.mxu0 0.0
        %11246 = vmatprep.subr.mxu0 0.0
        %11247 = vmatpush1.msra.mxu0 0.0
        %11248 = vmatprep.subr.mxu0 0.0
        %11249 = vmatpush1.msra.mxu0 0.0
        %11250 = vmatprep.subr.mxu0 0.0
        %11251 = vmatpush1.msra.mxu0 0.0
        %11252 = vmatprep.subr.mxu0 0.0
        %11253 = vmatpush1.msra.mxu0 0.0
        %11254 = vmatprep.subr.mxu0 0.0
        %11255 = vmatpush1.msra.mxu0 0.0
        %11256 = vmatprep.mubr.f32.mxu0 0.0
        %v11257 = vand.u32 %v10954, 4294901760
        %v11258 = vsub.f32 %v10954, %v11257
        %v11259 = vand.u32 %v11258, 4294901760
        %11260 = vmatmul.mubr.f32.gmra.mrb[0].mxu0 %v11259
        %v11261 = vpop.f32.mrb[0].mxu0
        %v11262 = vadd.f32 %v11187, %v11261
        %v11263 = vpop.f32.mrb[0].mxu0
        %11264 = vdwg.mxu0
        %11265 = vmatprep.subr.mxu0 0.0
        %v11266 = vand.u32 %v5884, 4294901760
        %v11267 = vsub.f32 %v5884, %v11266
        %v11268 = vand.u32 %v11267, 4294901760
        %11269 = vmatpush1.msra.mxu0 %v11268
        %11270 = vmatprep.subr.mxu0 0.0
        %v11271 = vand.u32 %v5885, 4294901760
        %v11272 = vsub.f32 %v5885, %v11271
        %v11273 = vand.u32 %v11272, 4294901760
        %11274 = vmatpush1.msra.mxu0 %v11273
        %11275 = vmatprep.subr.mxu0 0.0
        %11276 = vmatpush1.msra.mxu0 0.0
        %11277 = vmatprep.subr.mxu0 0.0
        %11278 = vmatpush1.msra.mxu0 0.0
        %11279 = vmatprep.subr.mxu0 0.0
        %11280 = vmatpush1.msra.mxu0 0.0
        %11281 = vmatprep.subr.mxu0 0.0
        %11282 = vmatpush1.msra.mxu0 0.0
        %11283 = vmatprep.subr.mxu0 0.0
        %11284 = vmatpush1.msra.mxu0 0.0
        %11285 = vmatprep.subr.mxu0 0.0
        %11286 = vmatpush1.msra.mxu0 0.0
        %11287 = vmatprep.subr.mxu0 0.0
        %11288 = vmatpush1.msra.mxu0 0.0
        %11289 = vmatprep.subr.mxu0 0.0
        %11290 = vmatpush1.msra.mxu0 0.0
        %11291 = vmatprep.subr.mxu0 0.0
        %11292 = vmatpush1.msra.mxu0 0.0
        %11293 = vmatprep.subr.mxu0 0.0
        %11294 = vmatpush1.msra.mxu0 0.0
        %11295 = vmatprep.subr.mxu0 0.0
        %11296 = vmatpush1.msra.mxu0 0.0
        %11297 = vmatprep.subr.mxu0 0.0
        %11298 = vmatpush1.msra.mxu0 0.0
        %11299 = vmatprep.subr.mxu0 0.0
        %11300 = vmatpush1.msra.mxu0 0.0
        %11301 = vmatprep.subr.mxu0 0.0
        %11302 = vmatpush1.msra.mxu0 0.0
        %11303 = vmatprep.subr.mxu0 0.0
        %11304 = vmatpush1.msra.mxu0 0.0
        %11305 = vmatprep.subr.mxu0 0.0
        %11306 = vmatpush1.msra.mxu0 0.0
        %11307 = vmatprep.subr.mxu0 0.0
        %11308 = vmatpush1.msra.mxu0 0.0
        %11309 = vmatprep.subr.mxu0 0.0
        %11310 = vmatpush1.msra.mxu0 0.0
        %11311 = vmatprep.subr.mxu0 0.0
        %11312 = vmatpush1.msra.mxu0 0.0
        %11313 = vmatprep.subr.mxu0 0.0
        %11314 = vmatpush1.msra.mxu0 0.0
        %11315 = vmatprep.subr.mxu0 0.0
        %11316 = vmatpush1.msra.mxu0 0.0
        %11317 = vmatprep.subr.mxu0 0.0
        %11318 = vmatpush1.msra.mxu0 0.0
        %11319 = vmatprep.subr.mxu0 0.0
        %11320 = vmatpush1.msra.mxu0 0.0
        %11321 = vmatprep.subr.mxu0 0.0
        %11322 = vmatpush1.msra.mxu0 0.0
        %11323 = vmatprep.subr.mxu0 0.0
        %11324 = vmatpush1.msra.mxu0 0.0
        %11325 = vmatprep.subr.mxu0 0.0
        %11326 = vmatpush1.msra.mxu0 0.0
        %11327 = vmatprep.subr.mxu0 0.0
        %11328 = vmatpush1.msra.mxu0 0.0
        %11329 = vmatprep.subr.mxu0 0.0
        %11330 = vmatpush1.msra.mxu0 0.0
        %11331 = vmatprep.subr.mxu0 0.0
        %11332 = vmatpush1.msra.mxu0 0.0
        %11333 = vmatprep.subr.mxu0 0.0
        %11334 = vmatpush1.msra.mxu0 0.0
        %11335 = vmatprep.mubr.f32.mxu0 0.0
        %v11336 = vand.u32 %v10954, 4294901760
        %11337 = vmatmul.mubr.f32.gmra.mrb[0].mxu0 %v11336
        %v11338 = vpop.f32.mrb[0].mxu0
        %v11339 = vadd.f32 %v11262, %v11338
        %v11340 = vpop.f32.mrb[0].mxu0
        %11341 = vdwg.mxu0
        %11342 = vmatprep.subr.mxu0 0.0
        %v11343 = vand.u32 %v5884, 4294901760
        %11344 = vmatpush1.msra.mxu0 %v11343
        %11345 = vmatprep.subr.mxu0 0.0
        %v11346 = vand.u32 %v5885, 4294901760
        %11347 = vmatpush1.msra.mxu0 %v11346
        %11348 = vmatprep.subr.mxu0 0.0
        %11349 = vmatpush1.msra.mxu0 0.0
        %11350 = vmatprep.subr.mxu0 0.0
        %11351 = vmatpush1.msra.mxu0 0.0
        %11352 = vmatprep.subr.mxu0 0.0
        %11353 = vmatpush1.msra.mxu0 0.0
        %11354 = vmatprep.subr.mxu0 0.0
        %11355 = vmatpush1.msra.mxu0 0.0
        %11356 = vmatprep.subr.mxu0 0.0
        %11357 = vmatpush1.msra.mxu0 0.0
        %11358 = vmatprep.subr.mxu0 0.0
        %11359 = vmatpush1.msra.mxu0 0.0
        %11360 = vmatprep.subr.mxu0 0.0
        %11361 = vmatpush1.msra.mxu0 0.0
        %11362 = vmatprep.subr.mxu0 0.0
        %11363 = vmatpush1.msra.mxu0 0.0
        %11364 = vmatprep.subr.mxu0 0.0
        %11365 = vmatpush1.msra.mxu0 0.0
        %11366 = vmatprep.subr.mxu0 0.0
        %11367 = vmatpush1.msra.mxu0 0.0
        %11368 = vmatprep.subr.mxu0 0.0
        %11369 = vmatpush1.msra.mxu0 0.0
        %11370 = vmatprep.subr.mxu0 0.0
        %11371 = vmatpush1.msra.mxu0 0.0
        %11372 = vmatprep.subr.mxu0 0.0
        %11373 = vmatpush1.msra.mxu0 0.0
        %11374 = vmatprep.subr.mxu0 0.0
        %11375 = vmatpush1.msra.mxu0 0.0
        %11376 = vmatprep.subr.mxu0 0.0
        %11377 = vmatpush1.msra.mxu0 0.0
        %11378 = vmatprep.subr.mxu0 0.0
        %11379 = vmatpush1.msra.mxu0 0.0
        %11380 = vmatprep.subr.mxu0 0.0
        %11381 = vmatpush1.msra.mxu0 0.0
        %11382 = vmatprep.subr.mxu0 0.0
        %11383 = vmatpush1.msra.mxu0 0.0
        %11384 = vmatprep.subr.mxu0 0.0
        %11385 = vmatpush1.msra.mxu0 0.0
        %11386 = vmatprep.subr.mxu0 0.0
        %11387 = vmatpush1.msra.mxu0 0.0
        %11388 = vmatprep.subr.mxu0 0.0
        %11389 = vmatpush1.msra.mxu0 0.0
        %11390 = vmatprep.subr.mxu0 0.0
        %11391 = vmatpush1.msra.mxu0 0.0
        %11392 = vmatprep.subr.mxu0 0.0
        %11393 = vmatpush1.msra.mxu0 0.0
        %11394 = vmatprep.subr.mxu0 0.0
        %11395 = vmatpush1.msra.mxu0 0.0
        %11396 = vmatprep.subr.mxu0 0.0
        %11397 = vmatpush1.msra.mxu0 0.0
        %11398 = vmatprep.subr.mxu0 0.0
        %11399 = vmatpush1.msra.mxu0 0.0
        %11400 = vmatprep.subr.mxu0 0.0
        %11401 = vmatpush1.msra.mxu0 0.0
        %11402 = vmatprep.subr.mxu0 0.0
        %11403 = vmatpush1.msra.mxu0 0.0
        %11404 = vmatprep.subr.mxu0 0.0
        %11405 = vmatpush1.msra.mxu0 0.0
        %11406 = vmatprep.subr.mxu0 0.0
        %11407 = vmatpush1.msra.mxu0 0.0
        %11408 = vmatprep.mubr.f32.mxu0 0.0
        %v11409 = vand.u32 %v10954, 4294901760
        %11410 = vmatmul.mubr.f32.gmra.mrb[0].mxu0 %v11409
        %v11411 = vpop.f32.mrb[0].mxu0
        %v11412 = vadd.f32 %v11339, %v11411
        %v11413 = vpop.f32.mrb[0].mxu0
        %11414 = vdwg.mxu0
        %vm11415 = vcmask 27648
        %11416 = vst.msk [vmem:[%s329] sm:$0xf] %vm11415, %v9102
        %11417 = vst.msk [vmem:[%s329 + $0x4] sm:$0xf] %vm11415, %v9564
        %11418 = vst.msk [vmem:[%s329 + $0x8] sm:$0xf] %vm11415, %v10026
        %11419 = vst.msk [vmem:[%s329 + $0xc] sm:$0xf] %vm11415, %v10488
        %11420 = vst.msk [vmem:[%s329 + $0x10] sm:$0xf] %vm11415, %v10950
        %11421 = vst.msk [vmem:[%s329 + $0x14] sm:$0xf] %vm11415, %v11412
        %s11422 = smul.u32 6, %s23
        %p11423 = scmp.lt.s32.totalorder %s11422, 11
        %s11424 = scalar_select %p11423, %s11422, 11
        %s11425 = smul.addr %s11424, 8
        %s11426 = scalar_lea.vmem %s5, %s11425
        %s11427 = smul.u32 6, %s23
        %p11428 = scmp.lt.s32.totalorder %s11427, 11
        %s11429 = scalar_select %p11428, %s11427, 11
        %s11430 = smul.addr %s11429, 4
        %s11431 = scalar_lea.vmem %s6, %s11430
        // Predicated region
        $region57: #{_pyramid_on_planes.1} parent=39 // pred_check
          %p11432 = pneg %p151
        $region58: #{_pyramid_on_planes.1} parent=39 // pred_check_branch
          %11434 = sbr.rel (%p11432) target = $region60
        $region59: #{_pyramid_on_planes.1} parent=39 // pred_region
          %s11435 = smul.u32 6, %s23
        $region60: #{_pyramid_on_planes.1} parent=39 // pred_fallthru
          _
        // Predicated region
        $region61: #{_pyramid_on_planes.1} parent=39 // pred_check
          %p11436 = pneg %p177
        $region62: #{_pyramid_on_planes.1} parent=39 // pred_check_branch
          %11438 = sbr.rel (%p11436) target = $region64
        $region63: #{_pyramid_on_planes.1} parent=39 // pred_region
          %s11439 = smul.u32 6, %s23
        $region64: #{_pyramid_on_planes.1} parent=39 // pred_fallthru
          _
      $region40: #{_pyramid_on_planes.1} parent=5 // pred_fallthru
        _
      %p11440 = scmp.le.s32.totalorder 2, %s18
      // Predicated region
      $region65: #{_pyramid_on_planes.1} parent=5 // pred_check
        %p11441 = pneg %p11440
      $region66: #{_pyramid_on_planes.1} parent=5 // pred_check_branch
        %11443 = sbr.rel (%p11441) target = $region68
      $region67: #{_pyramid_on_planes.1} parent=5 // pred_region
        %s11444 = ssub.s32 %s18, 2
        // Predicated region
        $region69: #{_pyramid_on_planes.1} parent=67 // pred_check
          %p11445 = pneg %p157
        $region70: #{_pyramid_on_planes.1} parent=67 // pred_check_branch
          %11447 = sbr.rel (%p11445) target = $region72
        $region71: #{_pyramid_on_planes.1} parent=67 // pred_region
          %s11448 = smul.u32 6, %s24
          %p11449 = scmp.lt.s32.totalorder %s11448, 11
          %s11450 = scalar_select %p11449, %s11448, 11
          %s11451 = smul.addr %s11450, 8
          %s11452 = scalar_lea.vmem %s5, %s11451
        $region72: #{_pyramid_on_planes.1} parent=67 // pred_fallthru
          _
        // Predicated region
        $region73: #{_pyramid_on_planes.1} parent=67 // pred_check
          %p11453 = pneg %p183
        $region74: #{_pyramid_on_planes.1} parent=67 // pred_check_branch
          %11455 = sbr.rel (%p11453) target = $region76
        $region75: #{_pyramid_on_planes.1} parent=67 // pred_region
          %s11456 = smul.u32 6, %s24
          %p11457 = scmp.lt.s32.totalorder %s11456, 11
          %s11458 = scalar_select %p11457, %s11456, 11
          %s11459 = smul.addr %s11458, 4
          %s11460 = scalar_lea.vmem %s6, %s11459
        $region76: #{_pyramid_on_planes.1} parent=67 // pred_fallthru
          _
      $region68: #{_pyramid_on_planes.1} parent=5 // pred_fallthru
        _
    $region6: #{_pyramid_on_planes.1} parent=1 // loop_footer
      %s22 = sadd.s32 1, %s18
    $region7: #{_pyramid_on_planes.1} parent=1 // loop_footer_branch
      %17 = sbr.rel target = $region3
    $region8: #{_pyramid_on_planes.1} parent=1 // loop_exit
      _
    %11461 = vsyncpa [#allocation3], 1
    %s11462 = scalar_lea.sflag [#allocation3], 1
    %11463 = vsyncpa %s11462, 1
    %11464 = vsyncpa [#allocation5], 1
    %11465 = vsyncpa [#allocation8], 1

</llo_original>
